<compile_context>
chip_gen: v6e
topology: v6e:2x2x1
jax: 0.10.0
libtpu: 0.0.40
codegen_flags: <defaults>
</compile_context>

<pallas_src>
import functools

import jax
import jax.numpy as jnp
from jax import lax
from jax.experimental import pallas as pl
from jax.experimental.pallas import tpu as pltpu

EPS = 1e-5
LANE = 128


def _round_up(x, m):
    return (x + m - 1) // m * m


def _pick_rows(H2, W2, c_p, target_bytes=2 * 1024 * 1024):
    """Largest divisor of H2 whose (rows*W2, c_p) f32 accumulator tile fits target."""
    per_row = W2 * c_p * 4
    best = 1
    for r in range(1, H2 + 1):
        if H2 % r == 0 and r * per_row <= target_bytes:
            best = r
    return best


def _vmem_limit_bytes():
    # Per-generation scoped-VMEM request: ~48 MiB on v7x (64 MiB physical per TC),
    # ~96 MiB on v5e/v6e (128 MiB).  Fallback if the query is unavailable.
    try:
        cap = int(pltpu.get_tpu_info().vmem_capacity_bytes)
        return max(32 * 1024 * 1024, min(cap * 3 // 4, 96 * 1024 * 1024))
    except Exception:  # pragma: no cover
        return 64 * 1024 * 1024


def _pool2x2(x, rows, W2, Cin):
    """2x2 max-pool of a (2*rows, 2*W2, Cin) bf16 block (max is exact in bf16)."""
    a = jnp.max(x.reshape(rows, 2, 2 * W2, Cin), axis=1)       # (rows, 2*W2, Cin)
    return jnp.max(a.reshape(rows, W2, 2, Cin), axis=2)        # (rows, W2, Cin)


def _zero_side_cols(pad_ref, rows, W2, Cin):
    # Scratch persists across grid steps; rows 0..rows+1 are fully rewritten every
    # step, so only the left/right 1-px zero columns need refreshing (O(perimeter)).
    zc = jnp.zeros((rows + 2, 1, Cin), jnp.bfloat16)
    pad_ref[:, 0:1, :] = zc
    pad_ref[:, W2 + 1:W2 + 2, :] = zc


def _conv3x3(pad_ref, w_ref, acc_ref, win_ref, rows, W2, Cin):
    """3x3 'same' conv over the zero-padded (rows+2, W2+2, Cin) bf16 scratch.

    kx taps are folded into the contraction: per ky one (rows*W2, 3*Cin) x
    (3*Cin, Cout) bf16 matmul with f32 accumulation into the explicit VMEM scratch
    acc_ref.  When Cin is a lane multiple the window is staged through win_ref with
    lane-aligned stores; otherwise (small Cin of the first conv) a concat-built
    window is used.  kx=1,2 source slices are sublane-offset (inherent to conv).
    """
    P = rows * W2
    use_win = (win_ref is not None) and (Cin % LANE == 0)
    for ky in range(3):
        if use_win:
            for kx in range(3):
                win_ref[:, :, kx * Cin:(kx + 1) * Cin] = \
                    pad_ref[ky:ky + rows, kx:kx + W2, :]
            win = win_ref[...]
        else:
            r = pad_ref[ky:ky + rows, :, :]
            win = jnp.concatenate([r[:, kx:kx + W2, :] for kx in range(3)], axis=-1)
        mm = jnp.dot(win.reshape(P, 3 * Cin), w_ref[ky],
                     preferred_element_type=jnp.float32)
        if ky == 0:
            acc_ref[...] = mm
        else:
            acc_ref[...] = acc_ref[...] + mm


def _finish_conv(acc_ref, b_ref, y_ref, s_ref, ss_ref, rows, W2):
    acc = acc_ref[...] + b_ref[...]                              # (P, Cout) f32
    y_ref[...] = acc.reshape(1, rows, W2, acc.shape[-1]).astype(y_ref.dtype)
    s_ref[...] = jnp.sum(acc, axis=0).reshape(1, 1, 1, -1)
    ss_ref[...] = jnp.sum(acc * acc, axis=0).reshape(1, 1, 1, -1)


def _pool_conv1_kernel(x_ref, xt_ref, xb_ref, w_ref, b_ref,
                       y_ref, s_ref, ss_ref,
                       pad_ref, acc_ref, *win, rows, W2, Cin):
    win_ref = win[0] if win else None
    s = pl.program_id(1)
    n_strips = pl.num_programs(1)
    _zero_side_cols(pad_ref, rows, W2, Cin)
    # 2x2 max-pool (bf16) of the body strip and its 1-pooled-row halos.
    body = _pool2x2(x_ref[0], rows, W2, Cin)
    top = _pool2x2(xt_ref[0], 1, W2, Cin)
    bot = _pool2x2(xb_ref[0], 1, W2, Cin)
    pad_ref[1:rows + 1, 1:W2 + 1, :] = body
    # Halo rows: index_map clamps at the image border; mask those to the conv zero pad.
    pad_ref[0:1, 1:W2 + 1, :] = jnp.where(s > 0, top, jnp.zeros_like(top))
    pad_ref[rows + 1:rows + 2, 1:W2 + 1, :] = jnp.where(s < n_strips - 1, bot,
                                                        jnp.zeros_like(bot))
    _conv3x3(pad_ref, w_ref, acc_ref, win_ref, rows, W2, Cin)
    _finish_conv(acc_ref, b_ref, y_ref, s_ref, ss_ref, rows, W2)


def _bnrelu_conv2_kernel(y_ref, yt_ref, yb_ref, sc_ref, sh_ref, w_ref, b_ref,
                         o_ref, s_ref, ss_ref,
                         pad_ref, acc_ref, *win, rows, W2, Cin):
    win_ref = win[0] if win else None
    s = pl.program_id(1)
    n_strips = pl.num_programs(1)
    _zero_side_cols(pad_ref, rows, W2, Cin)
    sc = sc_ref[...].reshape(1, 1, Cin)
    sh = sh_ref[...].reshape(1, 1, Cin)

    def bn_relu(v):  # bf16 in, f32 BN math (v5e has no bf16 VPU), bf16 out for MXU
        return jnp.maximum(v.astype(jnp.float32) * sc + sh, 0.0).astype(jnp.bfloat16)

    body = bn_relu(y_ref[0])
    top = bn_relu(yt_ref[0])
    bot = bn_relu(yb_ref[0])
    pad_ref[1:rows + 1, 1:W2 + 1, :] = body
    pad_ref[0:1, 1:W2 + 1, :] = jnp.where(s > 0, top, jnp.zeros_like(top))
    pad_ref[rows + 1:rows + 2, 1:W2 + 1, :] = jnp.where(s < n_strips - 1, bot,
                                                        jnp.zeros_like(bot))
    _conv3x3(pad_ref, w_ref, acc_ref, win_ref, rows, W2, Cin)
    _finish_conv(acc_ref, b_ref, o_ref, s_ref, ss_ref, rows, W2)


def _bnrelu_kernel(y_ref, sc_ref, sh_ref, o_ref):
    # Final BatchNorm + ReLU (elementwise; bf16 in, f32 out).
    c = y_ref.shape[-1]
    o_ref[...] = jnp.maximum(
        y_ref[...].astype(jnp.float32) * sc_ref[...].reshape(1, 1, 1, c)
        + sh_ref[...].reshape(1, 1, 1, c), 0.0)


def init_down_params(key, in_channels, out_channels):
    """Deterministic init mirroring nn.Conv2d / nn.BatchNorm2d defaults (shapes only)."""
    mid = out_channels
    k1, k2, k3, k4 = jax.random.split(key, 4)
    bound1 = 1.0 / (in_channels * 9) ** 0.5
    w1 = jax.random.uniform(k1, (mid, in_channels, 3, 3), jnp.float32, -bound1, bound1)
    b1 = jax.random.uniform(k2, (mid,), jnp.float32, -bound1, bound1)
    bound2 = 1.0 / (mid * 9) ** 0.5
    w2 = jax.random.uniform(k3, (out_channels, mid, 3, 3), jnp.float32, -bound2, bound2)
    b2 = jax.random.uniform(k4, (out_channels,), jnp.float32, -bound2, bound2)
    g1 = jnp.ones((mid,), jnp.float32)
    be1 = jnp.zeros((mid,), jnp.float32)
    g2 = jnp.ones((out_channels,), jnp.float32)
    be2 = jnp.zeros((out_channels,), jnp.float32)
    return (w1, b1, g1, be1, w2, b2, g2, be2)


def prep_down_params(params):
    """One-time parameter prep (hoisted out of the forward): conv weights ->
    (ky, kx-folded K, lane-padded Cout) bf16; lane-padded bias / BN params."""
    w1, b1, g1, be1, w2, b2, g2, be2 = params
    Cmid, Cin = w1.shape[0], w1.shape[1]
    Cout = w2.shape[0]
    Cmid_p, Cout_p = _round_up(Cmid, LANE), _round_up(Cout, LANE)
    w1t = jnp.transpose(w1, (2, 3, 1, 0))
    w1t = jnp.pad(w1t, ((0, 0), (0, 0), (0, 0), (0, Cmid_p - Cmid)))
    w1t = w1t.reshape(3, 3 * Cin, Cmid_p).astype(jnp.bfloat16)
    w2t = jnp.transpose(w2, (2, 3, 1, 0))
    w2t = jnp.pad(w2t, ((0, 0), (0, 0), (0, Cmid_p - Cmid), (0, Cout_p - Cout)))
    w2t = w2t.reshape(3, 3 * Cmid_p, Cout_p).astype(jnp.bfloat16)
    b1p = jnp.pad(b1, (0, Cmid_p - Cmid)).reshape(1, Cmid_p)
    b2p = jnp.pad(b2, (0, Cout_p - Cout)).reshape(1, Cout_p)
    g1p = jnp.pad(g1, (0, Cmid_p - Cmid))
    be1p = jnp.pad(be1, (0, Cmid_p - Cmid))
    g2p = jnp.pad(g2, (0, Cout_p - Cout))
    be2p = jnp.pad(be2, (0, Cout_p - Cout))
    return (w1t, b1p, g1p, be1p, w2t, b2p, g2p, be2p)


@functools.partial(jax.jit, static_argnames=("out_channels", "block_rows"))
def down_forward(x_nchw, prepped, out_channels, block_rows=None):
    w1t, b1p, g1p, be1p, w2t, b2p, g2p, be2p = prepped
    N, Cin, H, W = x_nchw.shape
    assert H % 2 == 0 and W % 2 == 0
    H2, W2 = H // 2, W // 2
    P = H2 * W2
    Cmid_p = w1t.shape[2]
    Cout_p = w2t.shape[2]

    rows = block_rows if block_rows is not None else \
        _pick_rows(H2, W2, max(Cmid_p, Cout_p))
    assert H2 % rows == 0, "block_rows must divide H//2"
    S = H2 // rows

    # NCHW -> NHWC, bf16 for the HBM-resident conv input (MXU operand dtype).
    x = jnp.transpose(x_nchw, (0, 2, 3, 1)).astype(jnp.bfloat16)

    cp = pltpu.CompilerParams(dimension_semantics=("parallel", "parallel"),
                              vmem_limit_bytes=_vmem_limit_bytes())

    # ---- kernel 1: in-kernel maxpool(2) + conv1 (pre-BN) + per-strip BN stats ----
    k1_scratch = [pltpu.VMEM((rows + 2, W2 + 2, Cin), jnp.bfloat16),
                  pltpu.VMEM((rows * W2, Cmid_p), jnp.float32)]
    if Cin % LANE == 0:
        k1_scratch.append(pltpu.VMEM((rows, W2, 3 * Cin), jnp.bfloat16))
    y1, s1, ss1 = pl.pallas_call(
        functools.partial(_pool_conv1_kernel, rows=rows, W2=W2, Cin=Cin),
        out_shape=(jax.ShapeDtypeStruct((N, H2, W2, Cmid_p), jnp.bfloat16),
                   jax.ShapeDtypeStruct((N, S, 1, Cmid_p), jnp.float32),
                   jax.ShapeDtypeStruct((N, S, 1, Cmid_p), jnp.float32)),
        grid_spec=pltpu.PrefetchScalarGridSpec(
            num_scalar_prefetch=0, grid=(N, S),
            in_specs=[
                pl.BlockSpec((1, 2 * rows, W, Cin), lambda n, s: (n, s, 0, 0)),
                pl.BlockSpec((1, 2, W, Cin),
                             lambda n, s: (n, jnp.maximum(s * rows - 1, 0), 0, 0)),
                pl.BlockSpec((1, 2, W, Cin),
                             lambda n, s: (n, jnp.minimum((s + 1) * rows, H2 - 1), 0, 0)),
                pl.BlockSpec((3, 3 * Cin, Cmid_p), lambda n, s: (0, 0, 0)),
                pl.BlockSpec((1, Cmid_p), lambda n, s: (0, 0)),
            ],
            out_specs=(
                pl.BlockSpec((1, rows, W2, Cmid_p), lambda n, s: (n, s, 0, 0)),
                pl.BlockSpec((1, 1, 1, Cmid_p), lambda n, s: (n, s, 0, 0)),
                pl.BlockSpec((1, 1, 1, Cmid_p), lambda n, s: (n, s, 0, 0)),
            ),
            scratch_shapes=k1_scratch),
        compiler_params=cp,
        cost_estimate=pl.CostEstimate(
            flops=2 * N * P * 9 * Cin * Cmid_p, transcendentals=0,
            bytes_accessed=N * H * W * Cin * 2 + N * P * Cmid_p * 2),
    )(x, x, x, w1t, b1p)

    # BatchNorm1 batch statistics (training-mode forward, biased variance)
    cnt = N * P
    mean1 = jnp.sum(s1, axis=(0, 1, 2)) / cnt
    var1 = jnp.maximum(jnp.sum(ss1, axis=(0, 1, 2)) / cnt - mean1 * mean1, 0.0)
    scale1 = g1p / jnp.sqrt(var1 + EPS)
    shift1 = be1p - mean1 * scale1

    # ---- kernel 2: BN1 + ReLU + conv2 (pre-BN) + per-strip BN stats ----
    y2, s2, ss2 = pl.pallas_call(
        functools.partial(_bnrelu_conv2_kernel, rows=rows, W2=W2, Cin=Cmid_p),
        out_shape=(jax.ShapeDtypeStruct((N, H2, W2, Cout_p), jnp.bfloat16),
                   jax.ShapeDtypeStruct((N, S, 1, Cout_p), jnp.float32),
                   jax.ShapeDtypeStruct((N, S, 1, Cout_p), jnp.float32)),
        grid_spec=pltpu.PrefetchScalarGridSpec(
            num_scalar_prefetch=0, grid=(N, S),
            in_specs=[
                pl.BlockSpec((1, rows, W2, Cmid_p), lambda n, s: (n, s, 0, 0)),
                pl.BlockSpec((1, 1, W2, Cmid_p),
                             lambda n, s: (n, jnp.maximum(s * rows - 1, 0), 0, 0)),
                pl.BlockSpec((1, 1, W2, Cmid_p),
                             lambda n, s: (n, jnp.minimum((s + 1) * rows, H2 - 1), 0, 0)),
                pl.BlockSpec((1, Cmid_p), lambda n, s: (0, 0)),
                pl.BlockSpec((1, Cmid_p), lambda n, s: (0, 0)),
                pl.BlockSpec((3, 3 * Cmid_p, Cout_p), lambda n, s: (0, 0, 0)),
                pl.BlockSpec((1, Cout_p), lambda n, s: (0, 0)),
            ],
            out_specs=(
                pl.BlockSpec((1, rows, W2, Cout_p), lambda n, s: (n, s, 0, 0)),
                pl.BlockSpec((1, 1, 1, Cout_p), lambda n, s: (n, s, 0, 0)),
                pl.BlockSpec((1, 1, 1, Cout_p), lambda n, s: (n, s, 0, 0)),
            ),
            scratch_shapes=[pltpu.VMEM((rows + 2, W2 + 2, Cmid_p), jnp.bfloat16),
                            pltpu.VMEM((rows * W2, Cout_p), jnp.float32),
                            pltpu.VMEM((rows, W2, 3 * Cmid_p), jnp.bfloat16)]),
        compiler_params=cp,
        cost_estimate=pl.CostEstimate(
            flops=2 * N * P * 9 * Cmid_p * Cout_p, transcendentals=0,
            bytes_accessed=N * P * (Cmid_p + Cout_p) * 2),
    )(y1, y1, y1, scale1.reshape(1, Cmid_p), shift1.reshape(1, Cmid_p), w2t, b2p)

    # BatchNorm2 batch statistics
    mean2 = jnp.sum(s2, axis=(0, 1, 2)) / cnt
    var2 = jnp.maximum(jnp.sum(ss2, axis=(0, 1, 2)) / cnt - mean2 * mean2, 0.0)
    scale2 = g2p / jnp.sqrt(var2 + EPS)
    shift2 = be2p - mean2 * scale2

    # ---- kernel 3: BN2 + ReLU (elementwise; bf16 read, f32 write) ----
    out = pl.pallas_call(
        _bnrelu_kernel,
        out_shape=jax.ShapeDtypeStruct((N, H2, W2, Cout_p), jnp.float32),
        grid_spec=pltpu.PrefetchScalarGridSpec(
            num_scalar_prefetch=0, grid=(N, S),
            in_specs=[pl.BlockSpec((1, rows, W2, Cout_p), lambda n, s: (n, s, 0, 0)),
                      pl.BlockSpec((1, Cout_p), lambda n, s: (0, 0)),
                      pl.BlockSpec((1, Cout_p), lambda n, s: (0, 0))],
            out_specs=pl.BlockSpec((1, rows, W2, Cout_p), lambda n, s: (n, s, 0, 0))),
        compiler_params=cp,
        cost_estimate=pl.CostEstimate(
            flops=2 * N * P * Cout_p, transcendentals=0,
            bytes_accessed=N * P * Cout_p * (2 + 4)),
    )(y2, scale2.reshape(1, Cout_p), shift2.reshape(1, Cout_p))

    # drop channel padding, NHWC -> NCHW
    out = out[..., :out_channels]
    return jnp.transpose(out, (0, 3, 1, 2))


def down_reference(x, params):
    """Pure-JAX f32 reference of Down (maxpool2 -> conv-bn-relu -> conv-bn-relu)."""
    w1, b1, g1, be1, w2, b2, g2, be2 = params
    N, C, H, W = x.shape
    xp = jnp.max(x.reshape(N, C, H // 2, 2, W // 2, 2), axis=(3, 5))

    def conv(h, w, b):
        y = lax.conv_general_dilated(h, w, window_strides=(1, 1),
                                     padding=((1, 1), (1, 1)),
                                     dimension_numbers=("NCHW", "OIHW", "NCHW"),
                                     precision=lax.Precision.HIGHEST)
        return y + b.reshape(1, -1, 1, 1)

    def bn_relu(h, g, be):
        m = jnp.mean(h, axis=(0, 2, 3), keepdims=True)
        v = jnp.mean((h - m) ** 2, axis=(0, 2, 3), keepdims=True)
        hn = (h - m) / jnp.sqrt(v + EPS)
        return jax.nn.relu(hn * g.reshape(1, -1, 1, 1) + be.reshape(1, -1, 1, 1))

    h = bn_relu(conv(xp, w1, b1), g1, be1)
    return bn_relu(conv(h, w2, b2), g2, be2)


if __name__ == "__main__":
    key = jax.random.PRNGKey(0)
    k_x, k_p = jax.random.split(key)
    N, Cin, H, W = 2, 4, 16, 16
    Cout = 8
    x = jax.random.normal(k_x, (N, Cin, H, W), jnp.float32)
    params = init_down_params(k_p, Cin, Cout)
    prepped = prep_down_params(params)

    out = jax.block_until_ready(down_forward(x, prepped, out_channels=Cout))
    # also exercise the multi-strip (halo) path explicitly at this small size
    out_tiled = jax.block_until_ready(
        down_forward(x, prepped, out_channels=Cout, block_rows=2))

    assert out.shape == (N, Cout, H // 2, W // 2)
    assert bool(jnp.all(jnp.isfinite(out))) and bool(jnp.all(jnp.isfinite(out_tiled)))

    ref = down_reference(x, params)
    err = float(jnp.max(jnp.abs(out - ref)))
    err_tiled = float(jnp.max(jnp.abs(out_tiled - ref)))
    assert err < 0.25 and err_tiled < 0.25, (err, err_tiled)
    print("KERNEL_OK")
</pallas_src>

<mosaic_0001>
module attributes {stable_mosaic.version = 11 : i64} {
  func.func @_pool_conv1_kernel(%arg0: i32, %arg1: i32, %arg2: memref<1x16x16x4xbf16, #tpu.memory_space<vmem>>, %arg3: memref<1x2x16x4xbf16, #tpu.memory_space<vmem>>, %arg4: memref<1x2x16x4xbf16, #tpu.memory_space<vmem>>, %arg5: memref<3x12x128xbf16, #tpu.memory_space<vmem>>, %arg6: memref<1x128xf32, #tpu.memory_space<vmem>>, %arg7: memref<1x8x8x128xbf16, #tpu.memory_space<vmem>>, %arg8: memref<1x1x1x128xf32, #tpu.memory_space<vmem>>, %arg9: memref<1x1x1x128xf32, #tpu.memory_space<vmem>>, %arg10: memref<10x10x4xbf16, #tpu.memory_space<vmem>>, %arg11: memref<64x128xf32, #tpu.memory_space<vmem>>) attributes {dimension_semantics = [#tpu.dimension_semantics<parallel>, #tpu.dimension_semantics<parallel>], iteration_bounds = array<i64: 2, 1>, scalar_prefetch = 0 : i64, scratch_operands = 2 : i64, tpu.core_type = #tpu.core_type<tc>, window_params = [{transform_indices = @transform_0, window_bounds = array<i64: 1, 16, 16, 4>}, {transform_indices = @transform_1, window_bounds = array<i64: 1, 2, 16, 4>}, {transform_indices = @transform_2, window_bounds = array<i64: 1, 2, 16, 4>}, {pipeline_mode = #tpu.pipeline_mode<synchronous>, transform_indices = @transform_3, window_bounds = array<i64: 3, 12, 128>}, {pipeline_mode = #tpu.pipeline_mode<synchronous>, transform_indices = @transform_4, window_bounds = array<i64: 1, 128>}, {transform_indices = @transform_5, window_bounds = array<i64: 1, 8, 8, 128>}, {transform_indices = @transform_6, window_bounds = array<i64: 1, 1, 1, 128>}, {transform_indices = @transform_7, window_bounds = array<i64: 1, 1, 1, 128>}]} {
    %cst = arith.constant 0.000000e+00 : bf16
    %0 = vector.broadcast %cst : bf16 to vector<10x1x4xbf16>
    %c0 = arith.constant 0 : index
    %c0_0 = arith.constant 0 : index
    %c0_1 = arith.constant 0 : index
    %1 = vector.load %arg10[%c0, %c0_0, %c0_1] : memref<10x10x4xbf16, #tpu.memory_space<vmem>>, vector<10x1x4xbf16>
    tpu.vector_store %arg10[%c0, %c0_0, %c0_1], %0 {strides = array<i32>} : memref<10x10x4xbf16, #tpu.memory_space<vmem>>, vector<10x1x4xbf16>,
    %c0_2 = arith.constant 0 : index
    %c9 = arith.constant 9 : index
    %c0_3 = arith.constant 0 : index
    %2 = vector.load %arg10[%c0_2, %c9, %c0_3] : memref<10x10x4xbf16, #tpu.memory_space<vmem>>, vector<10x1x4xbf16>
    tpu.vector_store %arg10[%c0_2, %c9, %c0_3], %0 {strides = array<i32>} : memref<10x10x4xbf16, #tpu.memory_space<vmem>>, vector<10x1x4xbf16>,
    %c0_4 = arith.constant 0 : index
    %c0_5 = arith.constant 0 : index
    %c0_6 = arith.constant 0 : index
    %c0_7 = arith.constant 0 : index
    %3 = vector.load %arg2[%c0_4, %c0_5, %c0_6, %c0_7] : memref<1x16x16x4xbf16, #tpu.memory_space<vmem>>, vector<1x16x16x4xbf16>
    %4 = vector.shape_cast %3 : vector<1x16x16x4xbf16> to vector<16x16x4xbf16>
    %5 = vector.shape_cast %4 : vector<16x16x4xbf16> to vector<8x2x16x4xbf16>
    %cst_8 = arith.constant dense<0xFF80> : vector<8x16x4xbf16>
    %6 = vector.multi_reduction <maximumf>, %5, %cst_8 [1] : vector<8x2x16x4xbf16> to vector<8x16x4xbf16>
    %7 = vector.shape_cast %6 : vector<8x16x4xbf16> to vector<8x8x2x4xbf16>
    %cst_9 = arith.constant dense<0xFF80> : vector<8x8x4xbf16>
    %8 = vector.multi_reduction <maximumf>, %7, %cst_9 [2] : vector<8x8x2x4xbf16> to vector<8x8x4xbf16>
    %c0_10 = arith.constant 0 : index
    %c0_11 = arith.constant 0 : index
    %c0_12 = arith.constant 0 : index
    %c0_13 = arith.constant 0 : index
    %9 = vector.load %arg3[%c0_10, %c0_11, %c0_12, %c0_13] : memref<1x2x16x4xbf16, #tpu.memory_space<vmem>>, vector<1x2x16x4xbf16>
    %10 = vector.shape_cast %9 : vector<1x2x16x4xbf16> to vector<2x16x4xbf16>
    %11 = vector.shape_cast %10 : vector<2x16x4xbf16> to vector<1x2x16x4xbf16>
    %cst_14 = arith.constant dense<0xFF80> : vector<1x16x4xbf16>
    %12 = vector.multi_reduction <maximumf>, %11, %cst_14 [1] : vector<1x2x16x4xbf16> to vector<1x16x4xbf16>
    %13 = vector.shape_cast %12 : vector<1x16x4xbf16> to vector<1x8x2x4xbf16>
    %cst_15 = arith.constant dense<0xFF80> : vector<1x8x4xbf16>
    %14 = vector.multi_reduction <maximumf>, %13, %cst_15 [2] : vector<1x8x2x4xbf16> to vector<1x8x4xbf16>
    %c0_16 = arith.constant 0 : index
    %c0_17 = arith.constant 0 : index
    %c0_18 = arith.constant 0 : index
    %c0_19 = arith.constant 0 : index
    %15 = vector.load %arg4[%c0_16, %c0_17, %c0_18, %c0_19] : memref<1x2x16x4xbf16, #tpu.memory_space<vmem>>, vector<1x2x16x4xbf16>
    %16 = vector.shape_cast %15 : vector<1x2x16x4xbf16> to vector<2x16x4xbf16>
    %17 = vector.shape_cast %16 : vector<2x16x4xbf16> to vector<1x2x16x4xbf16>
    %cst_20 = arith.constant dense<0xFF80> : vector<1x16x4xbf16>
    %18 = vector.multi_reduction <maximumf>, %17, %cst_20 [1] : vector<1x2x16x4xbf16> to vector<1x16x4xbf16>
    %19 = vector.shape_cast %18 : vector<1x16x4xbf16> to vector<1x8x2x4xbf16>
    %cst_21 = arith.constant dense<0xFF80> : vector<1x8x4xbf16>
    %20 = vector.multi_reduction <maximumf>, %19, %cst_21 [2] : vector<1x8x2x4xbf16> to vector<1x8x4xbf16>
    %c1 = arith.constant 1 : index
    %c1_22 = arith.constant 1 : index
    %c0_23 = arith.constant 0 : index
    %21 = vector.load %arg10[%c1, %c1_22, %c0_23] : memref<10x10x4xbf16, #tpu.memory_space<vmem>>, vector<8x8x4xbf16>
    tpu.vector_store %arg10[%c1, %c1_22, %c0_23], %8 {strides = array<i32>} : memref<10x10x4xbf16, #tpu.memory_space<vmem>>, vector<8x8x4xbf16>,
    %c0_i32 = arith.constant 0 : i32
    %22 = arith.cmpi sgt, %arg1, %c0_i32 : i32
    %cst_24 = arith.constant 0.000000e+00 : bf16
    %23 = vector.broadcast %cst_24 : bf16 to vector<1x8x4xbf16>
    %24 = arith.select %22, %14, %23 : vector<1x8x4xbf16>
    %c0_25 = arith.constant 0 : index
    %c1_26 = arith.constant 1 : index
    %c0_27 = arith.constant 0 : index
    %25 = vector.load %arg10[%c0_25, %c1_26, %c0_27] : memref<10x10x4xbf16, #tpu.memory_space<vmem>>, vector<1x8x4xbf16>
    tpu.vector_store %arg10[%c0_25, %c1_26, %c0_27], %24 {strides = array<i32>} : memref<10x10x4xbf16, #tpu.memory_space<vmem>>, vector<1x8x4xbf16>,
    %c0_i32_28 = arith.constant 0 : i32
    %26 = arith.cmpi slt, %arg1, %c0_i32_28 : i32
    %cst_29 = arith.constant 0.000000e+00 : bf16
    %27 = vector.broadcast %cst_29 : bf16 to vector<1x8x4xbf16>
    %28 = arith.select %26, %20, %27 : vector<1x8x4xbf16>
    %c9_30 = arith.constant 9 : index
    %c1_31 = arith.constant 1 : index
    %c0_32 = arith.constant 0 : index
    %29 = vector.load %arg10[%c9_30, %c1_31, %c0_32] : memref<10x10x4xbf16, #tpu.memory_space<vmem>>, vector<1x8x4xbf16>
    tpu.vector_store %arg10[%c9_30, %c1_31, %c0_32], %28 {strides = array<i32>} : memref<10x10x4xbf16, #tpu.memory_space<vmem>>, vector<1x8x4xbf16>,
    %c0_33 = arith.constant 0 : index
    %c0_34 = arith.constant 0 : index
    %c0_35 = arith.constant 0 : index
    %30 = vector.load %arg10[%c0_33, %c0_34, %c0_35] : memref<10x10x4xbf16, #tpu.memory_space<vmem>>, vector<8x10x4xbf16>
    %31 = vector.extract_strided_slice %30 {offsets = [0, 0, 0], sizes = [8, 8, 4], strides = [1, 1, 1]} : vector<8x10x4xbf16> to vector<8x8x4xbf16>
    %32 = vector.extract_strided_slice %30 {offsets = [0, 1, 0], sizes = [8, 8, 4], strides = [1, 1, 1]} : vector<8x10x4xbf16> to vector<8x8x4xbf16>
    %33 = vector.extract_strided_slice %30 {offsets = [0, 2, 0], sizes = [8, 8, 4], strides = [1, 1, 1]} : vector<8x10x4xbf16> to vector<8x8x4xbf16>
    %34 = tpu.concatenate %31, %32, %33 in 2 : vector<8x8x4xbf16>, vector<8x8x4xbf16>, vector<8x8x4xbf16> -> vector<8x8x12xbf16>
    %35 = vector.shape_cast %34 : vector<8x8x12xbf16> to vector<64x12xbf16>
    %c0_36 = arith.constant 0 : index
    %c0_37 = arith.constant 0 : index
    %c0_38 = arith.constant 0 : index
    %36 = vector.load %arg5[%c0_36, %c0_37, %c0_38] : memref<3x12x128xbf16, #tpu.memory_space<vmem>>, vector<1x12x128xbf16>
    %37 = vector.shape_cast %36 : vector<1x12x128xbf16> to vector<12x128xbf16>
    %cst_39 = arith.constant dense<0.000000e+00> : vector<64x128xf32>
    %38 = tpu.matmul %35, %37, %cst_39 {dimension_numbers = #tpu.dot_dimension_numbers<[1], [0], [0], [1], [0, 0, 1, 1], [], []>} : vector<64x12xbf16>, vector<12x128xbf16>, vector<64x128xf32> -> vector<64x128xf32>
    %c0_40 = arith.constant 0 : index
    %c0_41 = arith.constant 0 : index
    %39 = vector.load %arg11[%c0_40, %c0_41] : memref<64x128xf32, #tpu.memory_space<vmem>>, vector<64x128xf32>
    tpu.vector_store %arg11[%c0_40, %c0_41], %38 {strides = array<i32>} : memref<64x128xf32, #tpu.memory_space<vmem>>, vector<64x128xf32>,
    %c1_42 = arith.constant 1 : index
    %c0_43 = arith.constant 0 : index
    %c0_44 = arith.constant 0 : index
    %40 = vector.load %arg10[%c1_42, %c0_43, %c0_44] : memref<10x10x4xbf16, #tpu.memory_space<vmem>>, vector<8x10x4xbf16>
    %41 = vector.extract_strided_slice %40 {offsets = [0, 0, 0], sizes = [8, 8, 4], strides = [1, 1, 1]} : vector<8x10x4xbf16> to vector<8x8x4xbf16>
    %42 = vector.extract_strided_slice %40 {offsets = [0, 1, 0], sizes = [8, 8, 4], strides = [1, 1, 1]} : vector<8x10x4xbf16> to vector<8x8x4xbf16>
    %43 = vector.extract_strided_slice %40 {offsets = [0, 2, 0], sizes = [8, 8, 4], strides = [1, 1, 1]} : vector<8x10x4xbf16> to vector<8x8x4xbf16>
    %44 = tpu.concatenate %41, %42, %43 in 2 : vector<8x8x4xbf16>, vector<8x8x4xbf16>, vector<8x8x4xbf16> -> vector<8x8x12xbf16>
    %45 = vector.shape_cast %44 : vector<8x8x12xbf16> to vector<64x12xbf16>
    %c1_45 = arith.constant 1 : index
    %c0_46 = arith.constant 0 : index
    %c0_47 = arith.constant 0 : index
    %46 = vector.load %arg5[%c1_45, %c0_46, %c0_47] : memref<3x12x128xbf16, #tpu.memory_space<vmem>>, vector<1x12x128xbf16>
    %47 = vector.shape_cast %46 : vector<1x12x128xbf16> to vector<12x128xbf16>
    %cst_48 = arith.constant dense<0.000000e+00> : vector<64x128xf32>
    %48 = tpu.matmul %45, %47, %cst_48 {dimension_numbers = #tpu.dot_dimension_numbers<[1], [0], [0], [1], [0, 0, 1, 1], [], []>} : vector<64x12xbf16>, vector<12x128xbf16>, vector<64x128xf32> -> vector<64x128xf32>
    %c0_49 = arith.constant 0 : index
    %c0_50 = arith.constant 0 : index
    %49 = vector.load %arg11[%c0_49, %c0_50] : memref<64x128xf32, #tpu.memory_space<vmem>>, vector<64x128xf32>
    %50 = arith.addf %49, %48 : vector<64x128xf32>
    %c0_51 = arith.constant 0 : index
    %c0_52 = arith.constant 0 : index
    %51 = vector.load %arg11[%c0_51, %c0_52] : memref<64x128xf32, #tpu.memory_space<vmem>>, vector<64x128xf32>
    tpu.vector_store %arg11[%c0_51, %c0_52], %50 {strides = array<i32>} : memref<64x128xf32, #tpu.memory_space<vmem>>, vector<64x128xf32>,
    %c2 = arith.constant 2 : index
    %c0_53 = arith.constant 0 : index
    %c0_54 = arith.constant 0 : index
    %52 = vector.load %arg10[%c2, %c0_53, %c0_54] : memref<10x10x4xbf16, #tpu.memory_space<vmem>>, vector<8x10x4xbf16>
    %53 = vector.extract_strided_slice %52 {offsets = [0, 0, 0], sizes = [8, 8, 4], strides = [1, 1, 1]} : vector<8x10x4xbf16> to vector<8x8x4xbf16>
    %54 = vector.extract_strided_slice %52 {offsets = [0, 1, 0], sizes = [8, 8, 4], strides = [1, 1, 1]} : vector<8x10x4xbf16> to vector<8x8x4xbf16>
    %55 = vector.extract_strided_slice %52 {offsets = [0, 2, 0], sizes = [8, 8, 4], strides = [1, 1, 1]} : vector<8x10x4xbf16> to vector<8x8x4xbf16>
    %56 = tpu.concatenate %53, %54, %55 in 2 : vector<8x8x4xbf16>, vector<8x8x4xbf16>, vector<8x8x4xbf16> -> vector<8x8x12xbf16>
    %57 = vector.shape_cast %56 : vector<8x8x12xbf16> to vector<64x12xbf16>
    %c2_55 = arith.constant 2 : index
    %c0_56 = arith.constant 0 : index
    %c0_57 = arith.constant 0 : index
    %58 = vector.load %arg5[%c2_55, %c0_56, %c0_57] : memref<3x12x128xbf16, #tpu.memory_space<vmem>>, vector<1x12x128xbf16>
    %59 = vector.shape_cast %58 : vector<1x12x128xbf16> to vector<12x128xbf16>
    %cst_58 = arith.constant dense<0.000000e+00> : vector<64x128xf32>
    %60 = tpu.matmul %57, %59, %cst_58 {dimension_numbers = #tpu.dot_dimension_numbers<[1], [0], [0], [1], [0, 0, 1, 1], [], []>} : vector<64x12xbf16>, vector<12x128xbf16>, vector<64x128xf32> -> vector<64x128xf32>
    %c0_59 = arith.constant 0 : index
    %c0_60 = arith.constant 0 : index
    %61 = vector.load %arg11[%c0_59, %c0_60] : memref<64x128xf32, #tpu.memory_space<vmem>>, vector<64x128xf32>
    %62 = arith.addf %61, %60 : vector<64x128xf32>
    %c0_61 = arith.constant 0 : index
    %c0_62 = arith.constant 0 : index
    %63 = vector.load %arg11[%c0_61, %c0_62] : memref<64x128xf32, #tpu.memory_space<vmem>>, vector<64x128xf32>
    tpu.vector_store %arg11[%c0_61, %c0_62], %62 {strides = array<i32>} : memref<64x128xf32, #tpu.memory_space<vmem>>, vector<64x128xf32>,
    %c0_63 = arith.constant 0 : index
    %c0_64 = arith.constant 0 : index
    %64 = vector.load %arg11[%c0_63, %c0_64] : memref<64x128xf32, #tpu.memory_space<vmem>>, vector<64x128xf32>
    %c0_65 = arith.constant 0 : index
    %c0_66 = arith.constant 0 : index
    %65 = vector.load %arg6[%c0_65, %c0_66] : memref<1x128xf32, #tpu.memory_space<vmem>>, vector<1x128xf32>
    %66 = vector.broadcast %65 : vector<1x128xf32> to vector<64x128xf32>
    %67 = arith.addf %64, %66 : vector<64x128xf32>
    %68 = vector.shape_cast %67 : vector<64x128xf32> to vector<1x8x8x128xf32>
    %69 = arith.truncf %68 : vector<1x8x8x128xf32> to vector<1x8x8x128xbf16>
    %c0_67 = arith.constant 0 : index
    %c0_68 = arith.constant 0 : index
    %c0_69 = arith.constant 0 : index
    %c0_70 = arith.constant 0 : index
    %70 = vector.load %arg7[%c0_67, %c0_68, %c0_69, %c0_70] : memref<1x8x8x128xbf16, #tpu.memory_space<vmem>>, vector<1x8x8x128xbf16>
    tpu.vector_store %arg7[%c0_67, %c0_68, %c0_69, %c0_70], %69 {strides = array<i32>} : memref<1x8x8x128xbf16, #tpu.memory_space<vmem>>, vector<1x8x8x128xbf16>,
    %cst_71 = arith.constant dense<0.000000e+00> : vector<128xf32>
    %71 = vector.multi_reduction <add>, %67, %cst_71 [0] : vector<64x128xf32> to vector<128xf32>
    %72 = vector.shape_cast %71 : vector<128xf32> to vector<1x1x1x128xf32>
    %c0_72 = arith.constant 0 : index
    %c0_73 = arith.constant 0 : index
    %c0_74 = arith.constant 0 : index
    %c0_75 = arith.constant 0 : index
    %73 = vector.load %arg8[%c0_72, %c0_73, %c0_74, %c0_75] : memref<1x1x1x128xf32, #tpu.memory_space<vmem>>, vector<1x1x1x128xf32>
    tpu.vector_store %arg8[%c0_72, %c0_73, %c0_74, %c0_75], %72 {strides = array<i32>} : memref<1x1x1x128xf32, #tpu.memory_space<vmem>>, vector<1x1x1x128xf32>,
    %74 = arith.mulf %67, %67 : vector<64x128xf32>
    %cst_76 = arith.constant dense<0.000000e+00> : vector<128xf32>
    %75 = vector.multi_reduction <add>, %74, %cst_76 [0] : vector<64x128xf32> to vector<128xf32>
    %76 = vector.shape_cast %75 : vector<128xf32> to vector<1x1x1x128xf32>
    %c0_77 = arith.constant 0 : index
    %c0_78 = arith.constant 0 : index
    %c0_79 = arith.constant 0 : index
    %c0_80 = arith.constant 0 : index
    %77 = vector.load %arg9[%c0_77, %c0_78, %c0_79, %c0_80] : memref<1x1x1x128xf32, #tpu.memory_space<vmem>>, vector<1x1x1x128xf32>
    tpu.vector_store %arg9[%c0_77, %c0_78, %c0_79, %c0_80], %76 {strides = array<i32>} : memref<1x1x1x128xf32, #tpu.memory_space<vmem>>, vector<1x1x1x128xf32>,
    return
  }
  func.func @transform_0(%arg0: i32, %arg1: i32) -> (i32, i32, i32, i32) {
    %c0_i32 = arith.constant 0 : i32
    %c0_i32_0 = arith.constant 0 : i32
    %c0_i32_1 = arith.constant 0 : i32
    return %arg0, %arg1, %c0_i32, %c0_i32_0 : i32, i32, i32, i32
  }
  func.func @transform_1(%arg0: i32, %arg1: i32) -> (i32, i32, i32, i32) {
    %c8_i32 = arith.constant 8 : i32
    %0 = arith.muli %arg1, %c8_i32 : i32
    %c1_i32 = arith.constant 1 : i32
    %1 = arith.subi %0, %c1_i32 : i32
    %c0_i32 = arith.constant 0 : i32
    %2 = arith.maxsi %1, %c0_i32 : i32
    %c0_i32_0 = arith.constant 0 : i32
    %c0_i32_1 = arith.constant 0 : i32
    %c0_i32_2 = arith.constant 0 : i32
    return %arg0, %2, %c0_i32_0, %c0_i32_1 : i32, i32, i32, i32
  }
  func.func @transform_2(%arg0: i32, %arg1: i32) -> (i32, i32, i32, i32) {
    %c1_i32 = arith.constant 1 : i32
    %0 = arith.addi %arg1, %c1_i32 : i32
    %c8_i32 = arith.constant 8 : i32
    %1 = arith.muli %0, %c8_i32 : i32
    %c7_i32 = arith.constant 7 : i32
    %2 = arith.minsi %1, %c7_i32 : i32
    %c0_i32 = arith.constant 0 : i32
    %c0_i32_0 = arith.constant 0 : i32
    %c0_i32_1 = arith.constant 0 : i32
    return %arg0, %2, %c0_i32, %c0_i32_0 : i32, i32, i32, i32
  }
  func.func @transform_3(%arg0: i32, %arg1: i32) -> (i32, i32, i32) {
    %c0_i32 = arith.constant 0 : i32
    %c0_i32_0 = arith.constant 0 : i32
    %c0_i32_1 = arith.constant 0 : i32
    %c0_i32_2 = arith.constant 0 : i32
    return %c0_i32, %c0_i32_0, %c0_i32_1 : i32, i32, i32
  }
  func.func @transform_4(%arg0: i32, %arg1: i32) -> (i32, i32) {
    %c0_i32 = arith.constant 0 : i32
    %c0_i32_0 = arith.constant 0 : i32
    %c0_i32_1 = arith.constant 0 : i32
    return %c0_i32, %c0_i32_0 : i32, i32
  }
  func.func @transform_5(%arg0: i32, %arg1: i32) -> (i32, i32, i32, i32) {
    %c0_i32 = arith.constant 0 : i32
    %c0_i32_0 = arith.constant 0 : i32
    %c0_i32_1 = arith.constant 0 : i32
    return %arg0, %arg1, %c0_i32, %c0_i32_0 : i32, i32, i32, i32
  }
  func.func @transform_6(%arg0: i32, %arg1: i32) -> (i32, i32, i32, i32) {
    %c0_i32 = arith.constant 0 : i32
    %c0_i32_0 = arith.constant 0 : i32
    %c0_i32_1 = arith.constant 0 : i32
    return %arg0, %arg1, %c0_i32, %c0_i32_0 : i32, i32, i32, i32
  }
  func.func @transform_7(%arg0: i32, %arg1: i32) -> (i32, i32, i32, i32) {
    %c0_i32 = arith.constant 0 : i32
    %c0_i32_0 = arith.constant 0 : i32
    %c0_i32_1 = arith.constant 0 : i32
    return %arg0, %arg1, %c0_i32, %c0_i32_0 : i32, i32, i32, i32
  }
}

module attributes {stable_mosaic.version = 11 : i64} {
  func.func @_bnrelu_kernel(%arg0: i32, %arg1: i32, %arg2: memref<1x8x8x128xbf16, #tpu.memory_space<vmem>>, %arg3: memref<1x128xf32, #tpu.memory_space<vmem>>, %arg4: memref<1x128xf32, #tpu.memory_space<vmem>>, %arg5: memref<1x8x8x128xf32, #tpu.memory_space<vmem>>) attributes {dimension_semantics = [#tpu.dimension_semantics<parallel>, #tpu.dimension_semantics<parallel>], iteration_bounds = array<i64: 2, 1>, scalar_prefetch = 0 : i64, scratch_operands = 0 : i64, tpu.core_type = #tpu.core_type<tc>, window_params = [{transform_indices = @transform_0, window_bounds = array<i64: 1, 8, 8, 128>}, {pipeline_mode = #tpu.pipeline_mode<synchronous>, transform_indices = @transform_1, window_bounds = array<i64: 1, 128>}, {pipeline_mode = #tpu.pipeline_mode<synchronous>, transform_indices = @transform_2, window_bounds = array<i64: 1, 128>}, {transform_indices = @transform_3, window_bounds = array<i64: 1, 8, 8, 128>}]} {
    %c0 = arith.constant 0 : index
    %c0_0 = arith.constant 0 : index
    %c0_1 = arith.constant 0 : index
    %c0_2 = arith.constant 0 : index
    %0 = vector.load %arg2[%c0, %c0_0, %c0_1, %c0_2] : memref<1x8x8x128xbf16, #tpu.memory_space<vmem>>, vector<1x8x8x128xbf16>
    %1 = arith.extf %0 : vector<1x8x8x128xbf16> to vector<1x8x8x128xf32>
    %c0_3 = arith.constant 0 : index
    %c0_4 = arith.constant 0 : index
    %2 = vector.load %arg3[%c0_3, %c0_4] : memref<1x128xf32, #tpu.memory_space<vmem>>, vector<1x128xf32>
    %3 = vector.shape_cast %2 : vector<1x128xf32> to vector<1x1x1x128xf32>
    %4 = vector.broadcast %3 : vector<1x1x1x128xf32> to vector<1x8x8x128xf32>
    %5 = arith.mulf %1, %4 : vector<1x8x8x128xf32>
    %c0_5 = arith.constant 0 : index
    %c0_6 = arith.constant 0 : index
    %6 = vector.load %arg4[%c0_5, %c0_6] : memref<1x128xf32, #tpu.memory_space<vmem>>, vector<1x128xf32>
    %7 = vector.shape_cast %6 : vector<1x128xf32> to vector<1x1x1x128xf32>
    %8 = vector.broadcast %7 : vector<1x1x1x128xf32> to vector<1x8x8x128xf32>
    %9 = arith.addf %5, %8 : vector<1x8x8x128xf32>
    %cst = arith.constant 0.000000e+00 : f32
    %10 = vector.broadcast %cst : f32 to vector<1x8x8x128xf32>
    %11 = arith.maximumf %9, %10 : vector<1x8x8x128xf32>
    %c0_7 = arith.constant 0 : index
    %c0_8 = arith.constant 0 : index
    %c0_9 = arith.constant 0 : index
    %c0_10 = arith.constant 0 : index
    %12 = vector.load %arg5[%c0_7, %c0_8, %c0_9, %c0_10] : memref<1x8x8x128xf32, #tpu.memory_space<vmem>>, vector<1x8x8x128xf32>
    tpu.vector_store %arg5[%c0_7, %c0_8, %c0_9, %c0_10], %11 {strides = array<i32>} : memref<1x8x8x128xf32, #tpu.memory_space<vmem>>, vector<1x8x8x128xf32>,
    return
  }
  func.func @transform_0(%arg0: i32, %arg1: i32) -> (i32, i32, i32, i32) {
    %c0_i32 = arith.constant 0 : i32
    %c0_i32_0 = arith.constant 0 : i32
    %c0_i32_1 = arith.constant 0 : i32
    return %arg0, %arg1, %c0_i32, %c0_i32_0 : i32, i32, i32, i32
  }
  func.func @transform_1(%arg0: i32, %arg1: i32) -> (i32, i32) {
    %c0_i32 = arith.constant 0 : i32
    %c0_i32_0 = arith.constant 0 : i32
    %c0_i32_1 = arith.constant 0 : i32
    return %c0_i32, %c0_i32_0 : i32, i32
  }
  func.func @transform_2(%arg0: i32, %arg1: i32) -> (i32, i32) {
    %c0_i32 = arith.constant 0 : i32
    %c0_i32_0 = arith.constant 0 : i32
    %c0_i32_1 = arith.constant 0 : i32
    return %c0_i32, %c0_i32_0 : i32, i32
  }
  func.func @transform_3(%arg0: i32, %arg1: i32) -> (i32, i32, i32, i32) {
    %c0_i32 = arith.constant 0 : i32
    %c0_i32_0 = arith.constant 0 : i32
    %c0_i32_1 = arith.constant 0 : i32
    return %arg0, %arg1, %c0_i32, %c0_i32_0 : i32, i32, i32, i32
  }
}

module attributes {stable_mosaic.version = 11 : i64} {
  func.func @_bnrelu_conv2_kernel(%arg0: i32, %arg1: i32, %arg2: memref<1x8x8x128xbf16, #tpu.memory_space<vmem>>, %arg3: memref<1x1x8x128xbf16, #tpu.memory_space<vmem>>, %arg4: memref<1x1x8x128xbf16, #tpu.memory_space<vmem>>, %arg5: memref<1x128xf32, #tpu.memory_space<vmem>>, %arg6: memref<1x128xf32, #tpu.memory_space<vmem>>, %arg7: memref<3x384x128xbf16, #tpu.memory_space<vmem>>, %arg8: memref<1x128xf32, #tpu.memory_space<vmem>>, %arg9: memref<1x8x8x128xbf16, #tpu.memory_space<vmem>>, %arg10: memref<1x1x1x128xf32, #tpu.memory_space<vmem>>, %arg11: memref<1x1x1x128xf32, #tpu.memory_space<vmem>>, %arg12: memref<10x10x128xbf16, #tpu.memory_space<vmem>>, %arg13: memref<64x128xf32, #tpu.memory_space<vmem>>, %arg14: memref<8x8x384xbf16, #tpu.memory_space<vmem>>) attributes {dimension_semantics = [#tpu.dimension_semantics<parallel>, #tpu.dimension_semantics<parallel>], iteration_bounds = array<i64: 2, 1>, scalar_prefetch = 0 : i64, scratch_operands = 3 : i64, tpu.core_type = #tpu.core_type<tc>, window_params = [{transform_indices = @transform_0, window_bounds = array<i64: 1, 8, 8, 128>}, {transform_indices = @transform_1, window_bounds = array<i64: 1, 1, 8, 128>}, {transform_indices = @transform_2, window_bounds = array<i64: 1, 1, 8, 128>}, {pipeline_mode = #tpu.pipeline_mode<synchronous>, transform_indices = @transform_3, window_bounds = array<i64: 1, 128>}, {pipeline_mode = #tpu.pipeline_mode<synchronous>, transform_indices = @transform_4, window_bounds = array<i64: 1, 128>}, {pipeline_mode = #tpu.pipeline_mode<synchronous>, transform_indices = @transform_5, window_bounds = array<i64: 3, 384, 128>}, {pipeline_mode = #tpu.pipeline_mode<synchronous>, transform_indices = @transform_6, window_bounds = array<i64: 1, 128>}, {transform_indices = @transform_7, window_bounds = array<i64: 1, 8, 8, 128>}, {transform_indices = @transform_8, window_bounds = array<i64: 1, 1, 1, 128>}, {transform_indices = @transform_9, window_bounds = array<i64: 1, 1, 1, 128>}]} {
    %cst = arith.constant 0.000000e+00 : bf16
    %0 = vector.broadcast %cst : bf16 to vector<10x1x128xbf16>
    %c0 = arith.constant 0 : index
    %c0_0 = arith.constant 0 : index
    %c0_1 = arith.constant 0 : index
    %1 = vector.load %arg12[%c0, %c0_0, %c0_1] : memref<10x10x128xbf16, #tpu.memory_space<vmem>>, vector<10x1x128xbf16>
    tpu.vector_store %arg12[%c0, %c0_0, %c0_1], %0 {strides = array<i32>} : memref<10x10x128xbf16, #tpu.memory_space<vmem>>, vector<10x1x128xbf16>,
    %c0_2 = arith.constant 0 : index
    %c9 = arith.constant 9 : index
    %c0_3 = arith.constant 0 : index
    %2 = vector.load %arg12[%c0_2, %c9, %c0_3] : memref<10x10x128xbf16, #tpu.memory_space<vmem>>, vector<10x1x128xbf16>
    tpu.vector_store %arg12[%c0_2, %c9, %c0_3], %0 {strides = array<i32>} : memref<10x10x128xbf16, #tpu.memory_space<vmem>>, vector<10x1x128xbf16>,
    %c0_4 = arith.constant 0 : index
    %c0_5 = arith.constant 0 : index
    %3 = vector.load %arg5[%c0_4, %c0_5] : memref<1x128xf32, #tpu.memory_space<vmem>>, vector<1x128xf32>
    %4 = vector.shape_cast %3 : vector<1x128xf32> to vector<1x1x128xf32>
    %c0_6 = arith.constant 0 : index
    %c0_7 = arith.constant 0 : index
    %5 = vector.load %arg6[%c0_6, %c0_7] : memref<1x128xf32, #tpu.memory_space<vmem>>, vector<1x128xf32>
    %6 = vector.shape_cast %5 : vector<1x128xf32> to vector<1x1x128xf32>
    %c0_8 = arith.constant 0 : index
    %c0_9 = arith.constant 0 : index
    %c0_10 = arith.constant 0 : index
    %c0_11 = arith.constant 0 : index
    %7 = vector.load %arg2[%c0_8, %c0_9, %c0_10, %c0_11] : memref<1x8x8x128xbf16, #tpu.memory_space<vmem>>, vector<1x8x8x128xbf16>
    %8 = vector.shape_cast %7 : vector<1x8x8x128xbf16> to vector<8x8x128xbf16>
    %9 = arith.extf %8 : vector<8x8x128xbf16> to vector<8x8x128xf32>
    %10 = vector.broadcast %4 : vector<1x1x128xf32> to vector<8x8x128xf32>
    %11 = arith.mulf %9, %10 : vector<8x8x128xf32>
    %12 = vector.broadcast %6 : vector<1x1x128xf32> to vector<8x8x128xf32>
    %13 = arith.addf %11, %12 : vector<8x8x128xf32>
    %cst_12 = arith.constant 0.000000e+00 : f32
    %14 = vector.broadcast %cst_12 : f32 to vector<8x8x128xf32>
    %15 = arith.maximumf %13, %14 : vector<8x8x128xf32>
    %16 = arith.truncf %15 : vector<8x8x128xf32> to vector<8x8x128xbf16>
    %c0_13 = arith.constant 0 : index
    %c0_14 = arith.constant 0 : index
    %c0_15 = arith.constant 0 : index
    %c0_16 = arith.constant 0 : index
    %17 = vector.load %arg3[%c0_13, %c0_14, %c0_15, %c0_16] : memref<1x1x8x128xbf16, #tpu.memory_space<vmem>>, vector<1x1x8x128xbf16>
    %18 = vector.shape_cast %17 : vector<1x1x8x128xbf16> to vector<1x8x128xbf16>
    %19 = arith.extf %18 : vector<1x8x128xbf16> to vector<1x8x128xf32>
    %20 = vector.broadcast %4 : vector<1x1x128xf32> to vector<1x8x128xf32>
    %21 = arith.mulf %19, %20 : vector<1x8x128xf32>
    %22 = vector.broadcast %6 : vector<1x1x128xf32> to vector<1x8x128xf32>
    %23 = arith.addf %21, %22 : vector<1x8x128xf32>
    %cst_17 = arith.constant 0.000000e+00 : f32
    %24 = vector.broadcast %cst_17 : f32 to vector<1x8x128xf32>
    %25 = arith.maximumf %23, %24 : vector<1x8x128xf32>
    %26 = arith.truncf %25 : vector<1x8x128xf32> to vector<1x8x128xbf16>
    %c0_18 = arith.constant 0 : index
    %c0_19 = arith.constant 0 : index
    %c0_20 = arith.constant 0 : index
    %c0_21 = arith.constant 0 : index
    %27 = vector.load %arg4[%c0_18, %c0_19, %c0_20, %c0_21] : memref<1x1x8x128xbf16, #tpu.memory_space<vmem>>, vector<1x1x8x128xbf16>
    %28 = vector.shape_cast %27 : vector<1x1x8x128xbf16> to vector<1x8x128xbf16>
    %29 = arith.extf %28 : vector<1x8x128xbf16> to vector<1x8x128xf32>
    %30 = vector.broadcast %4 : vector<1x1x128xf32> to vector<1x8x128xf32>
    %31 = arith.mulf %29, %30 : vector<1x8x128xf32>
    %32 = vector.broadcast %6 : vector<1x1x128xf32> to vector<1x8x128xf32>
    %33 = arith.addf %31, %32 : vector<1x8x128xf32>
    %cst_22 = arith.constant 0.000000e+00 : f32
    %34 = vector.broadcast %cst_22 : f32 to vector<1x8x128xf32>
    %35 = arith.maximumf %33, %34 : vector<1x8x128xf32>
    %36 = arith.truncf %35 : vector<1x8x128xf32> to vector<1x8x128xbf16>
    %c1 = arith.constant 1 : index
    %c1_23 = arith.constant 1 : index
    %c0_24 = arith.constant 0 : index
    %37 = vector.load %arg12[%c1, %c1_23, %c0_24] : memref<10x10x128xbf16, #tpu.memory_space<vmem>>, vector<8x8x128xbf16>
    tpu.vector_store %arg12[%c1, %c1_23, %c0_24], %16 {strides = array<i32>} : memref<10x10x128xbf16, #tpu.memory_space<vmem>>, vector<8x8x128xbf16>,
    %c0_i32 = arith.constant 0 : i32
    %38 = arith.cmpi sgt, %arg1, %c0_i32 : i32
    %cst_25 = arith.constant 0.000000e+00 : bf16
    %39 = vector.broadcast %cst_25 : bf16 to vector<1x8x128xbf16>
    %40 = arith.select %38, %26, %39 : vector<1x8x128xbf16>
    %c0_26 = arith.constant 0 : index
    %c1_27 = arith.constant 1 : index
    %c0_28 = arith.constant 0 : index
    %41 = vector.load %arg12[%c0_26, %c1_27, %c0_28] : memref<10x10x128xbf16, #tpu.memory_space<vmem>>, vector<1x8x128xbf16>
    tpu.vector_store %arg12[%c0_26, %c1_27, %c0_28], %40 {strides = array<i32>} : memref<10x10x128xbf16, #tpu.memory_space<vmem>>, vector<1x8x128xbf16>,
    %c0_i32_29 = arith.constant 0 : i32
    %42 = arith.cmpi slt, %arg1, %c0_i32_29 : i32
    %cst_30 = arith.constant 0.000000e+00 : bf16
    %43 = vector.broadcast %cst_30 : bf16 to vector<1x8x128xbf16>
    %44 = arith.select %42, %36, %43 : vector<1x8x128xbf16>
    %c9_31 = arith.constant 9 : index
    %c1_32 = arith.constant 1 : index
    %c0_33 = arith.constant 0 : index
    %45 = vector.load %arg12[%c9_31, %c1_32, %c0_33] : memref<10x10x128xbf16, #tpu.memory_space<vmem>>, vector<1x8x128xbf16>
    tpu.vector_store %arg12[%c9_31, %c1_32, %c0_33], %44 {strides = array<i32>} : memref<10x10x128xbf16, #tpu.memory_space<vmem>>, vector<1x8x128xbf16>,
    %c0_34 = arith.constant 0 : index
    %c0_35 = arith.constant 0 : index
    %c0_36 = arith.constant 0 : index
    %46 = vector.load %arg12[%c0_34, %c0_35, %c0_36] : memref<10x10x128xbf16, #tpu.memory_space<vmem>>, vector<8x8x128xbf16>
    %c0_37 = arith.constant 0 : index
    %c0_38 = arith.constant 0 : index
    %c0_39 = arith.constant 0 : index
    %47 = vector.load %arg14[%c0_37, %c0_38, %c0_39] : memref<8x8x384xbf16, #tpu.memory_space<vmem>>, vector<8x8x128xbf16>
    tpu.vector_store %arg14[%c0_37, %c0_38, %c0_39], %46 {strides = array<i32>} : memref<8x8x384xbf16, #tpu.memory_space<vmem>>, vector<8x8x128xbf16>,
    %c0_40 = arith.constant 0 : index
    %c1_41 = arith.constant 1 : index
    %c0_42 = arith.constant 0 : index
    %48 = vector.load %arg12[%c0_40, %c1_41, %c0_42] : memref<10x10x128xbf16, #tpu.memory_space<vmem>>, vector<8x8x128xbf16>
    %c0_43 = arith.constant 0 : index
    %c0_44 = arith.constant 0 : index
    %c128 = arith.constant 128 : index
    %49 = vector.load %arg14[%c0_43, %c0_44, %c128] : memref<8x8x384xbf16, #tpu.memory_space<vmem>>, vector<8x8x128xbf16>
    tpu.vector_store %arg14[%c0_43, %c0_44, %c128], %48 {strides = array<i32>} : memref<8x8x384xbf16, #tpu.memory_space<vmem>>, vector<8x8x128xbf16>,
    %c0_45 = arith.constant 0 : index
    %c2 = arith.constant 2 : index
    %c0_46 = arith.constant 0 : index
    %50 = vector.load %arg12[%c0_45, %c2, %c0_46] : memref<10x10x128xbf16, #tpu.memory_space<vmem>>, vector<8x8x128xbf16>
    %c0_47 = arith.constant 0 : index
    %c0_48 = arith.constant 0 : index
    %c256 = arith.constant 256 : index
    %51 = vector.load %arg14[%c0_47, %c0_48, %c256] : memref<8x8x384xbf16, #tpu.memory_space<vmem>>, vector<8x8x128xbf16>
    tpu.vector_store %arg14[%c0_47, %c0_48, %c256], %50 {strides = array<i32>} : memref<8x8x384xbf16, #tpu.memory_space<vmem>>, vector<8x8x128xbf16>,
    %c0_49 = arith.constant 0 : index
    %c0_50 = arith.constant 0 : index
    %c0_51 = arith.constant 0 : index
    %52 = vector.load %arg14[%c0_49, %c0_50, %c0_51] : memref<8x8x384xbf16, #tpu.memory_space<vmem>>, vector<8x8x384xbf16>
    %53 = vector.shape_cast %52 : vector<8x8x384xbf16> to vector<64x384xbf16>
    %c0_52 = arith.constant 0 : index
    %c0_53 = arith.constant 0 : index
    %c0_54 = arith.constant 0 : index
    %54 = vector.load %arg7[%c0_52, %c0_53, %c0_54] : memref<3x384x128xbf16, #tpu.memory_space<vmem>>, vector<1x384x128xbf16>
    %55 = vector.shape_cast %54 : vector<1x384x128xbf16> to vector<384x128xbf16>
    %cst_55 = arith.constant dense<0.000000e+00> : vector<64x128xf32>
    %56 = tpu.matmul %53, %55, %cst_55 {dimension_numbers = #tpu.dot_dimension_numbers<[1], [0], [0], [1], [0, 0, 1, 1], [], []>} : vector<64x384xbf16>, vector<384x128xbf16>, vector<64x128xf32> -> vector<64x128xf32>
    %c0_56 = arith.constant 0 : index
    %c0_57 = arith.constant 0 : index
    %57 = vector.load %arg13[%c0_56, %c0_57] : memref<64x128xf32, #tpu.memory_space<vmem>>, vector<64x128xf32>
    tpu.vector_store %arg13[%c0_56, %c0_57], %56 {strides = array<i32>} : memref<64x128xf32, #tpu.memory_space<vmem>>, vector<64x128xf32>,
    %c1_58 = arith.constant 1 : index
    %c0_59 = arith.constant 0 : index
    %c0_60 = arith.constant 0 : index
    %58 = vector.load %arg12[%c1_58, %c0_59, %c0_60] : memref<10x10x128xbf16, #tpu.memory_space<vmem>>, vector<8x8x128xbf16>
    %c0_61 = arith.constant 0 : index
    %c0_62 = arith.constant 0 : index
    %c0_63 = arith.constant 0 : index
    %59 = vector.load %arg14[%c0_61, %c0_62, %c0_63] : memref<8x8x384xbf16, #tpu.memory_space<vmem>>, vector<8x8x128xbf16>
    tpu.vector_store %arg14[%c0_61, %c0_62, %c0_63], %58 {strides = array<i32>} : memref<8x8x384xbf16, #tpu.memory_space<vmem>>, vector<8x8x128xbf16>,
    %c1_64 = arith.constant 1 : index
    %c1_65 = arith.constant 1 : index
    %c0_66 = arith.constant 0 : index
    %60 = vector.load %arg12[%c1_64, %c1_65, %c0_66] : memref<10x10x128xbf16, #tpu.memory_space<vmem>>, vector<8x8x128xbf16>
    %c0_67 = arith.constant 0 : index
    %c0_68 = arith.constant 0 : index
    %c128_69 = arith.constant 128 : index
    %61 = vector.load %arg14[%c0_67, %c0_68, %c128_69] : memref<8x8x384xbf16, #tpu.memory_space<vmem>>, vector<8x8x128xbf16>
    tpu.vector_store %arg14[%c0_67, %c0_68, %c128_69], %60 {strides = array<i32>} : memref<8x8x384xbf16, #tpu.memory_space<vmem>>, vector<8x8x128xbf16>,
    %c1_70 = arith.constant 1 : index
    %c2_71 = arith.constant 2 : index
    %c0_72 = arith.constant 0 : index
    %62 = vector.load %arg12[%c1_70, %c2_71, %c0_72] : memref<10x10x128xbf16, #tpu.memory_space<vmem>>, vector<8x8x128xbf16>
    %c0_73 = arith.constant 0 : index
    %c0_74 = arith.constant 0 : index
    %c256_75 = arith.constant 256 : index
    %63 = vector.load %arg14[%c0_73, %c0_74, %c256_75] : memref<8x8x384xbf16, #tpu.memory_space<vmem>>, vector<8x8x128xbf16>
    tpu.vector_store %arg14[%c0_73, %c0_74, %c256_75], %62 {strides = array<i32>} : memref<8x8x384xbf16, #tpu.memory_space<vmem>>, vector<8x8x128xbf16>,
    %c0_76 = arith.constant 0 : index
    %c0_77 = arith.constant 0 : index
    %c0_78 = arith.constant 0 : index
    %64 = vector.load %arg14[%c0_76, %c0_77, %c0_78] : memref<8x8x384xbf16, #tpu.memory_space<vmem>>, vector<8x8x384xbf16>
    %65 = vector.shape_cast %64 : vector<8x8x384xbf16> to vector<64x384xbf16>
    %c1_79 = arith.constant 1 : index
    %c0_80 = arith.constant 0 : index
    %c0_81 = arith.constant 0 : index
    %66 = vector.load %arg7[%c1_79, %c0_80, %c0_81] : memref<3x384x128xbf16, #tpu.memory_space<vmem>>, vector<1x384x128xbf16>
    %67 = vector.shape_cast %66 : vector<1x384x128xbf16> to vector<384x128xbf16>
    %cst_82 = arith.constant dense<0.000000e+00> : vector<64x128xf32>
    %68 = tpu.matmul %65, %67, %cst_82 {dimension_numbers = #tpu.dot_dimension_numbers<[1], [0], [0], [1], [0, 0, 1, 1], [], []>} : vector<64x384xbf16>, vector<384x128xbf16>, vector<64x128xf32> -> vector<64x128xf32>
    %c0_83 = arith.constant 0 : index
    %c0_84 = arith.constant 0 : index
    %69 = vector.load %arg13[%c0_83, %c0_84] : memref<64x128xf32, #tpu.memory_space<vmem>>, vector<64x128xf32>
    %70 = arith.addf %69, %68 : vector<64x128xf32>
    %c0_85 = arith.constant 0 : index
    %c0_86 = arith.constant 0 : index
    %71 = vector.load %arg13[%c0_85, %c0_86] : memref<64x128xf32, #tpu.memory_space<vmem>>, vector<64x128xf32>
    tpu.vector_store %arg13[%c0_85, %c0_86], %70 {strides = array<i32>} : memref<64x128xf32, #tpu.memory_space<vmem>>, vector<64x128xf32>,
    %c2_87 = arith.constant 2 : index
    %c0_88 = arith.constant 0 : index
    %c0_89 = arith.constant 0 : index
    %72 = vector.load %arg12[%c2_87, %c0_88, %c0_89] : memref<10x10x128xbf16, #tpu.memory_space<vmem>>, vector<8x8x128xbf16>
    %c0_90 = arith.constant 0 : index
    %c0_91 = arith.constant 0 : index
    %c0_92 = arith.constant 0 : index
    %73 = vector.load %arg14[%c0_90, %c0_91, %c0_92] : memref<8x8x384xbf16, #tpu.memory_space<vmem>>, vector<8x8x128xbf16>
    tpu.vector_store %arg14[%c0_90, %c0_91, %c0_92], %72 {strides = array<i32>} : memref<8x8x384xbf16, #tpu.memory_space<vmem>>, vector<8x8x128xbf16>,
    %c2_93 = arith.constant 2 : index
    %c1_94 = arith.constant 1 : index
    %c0_95 = arith.constant 0 : index
    %74 = vector.load %arg12[%c2_93, %c1_94, %c0_95] : memref<10x10x128xbf16, #tpu.memory_space<vmem>>, vector<8x8x128xbf16>
    %c0_96 = arith.constant 0 : index
    %c0_97 = arith.constant 0 : index
    %c128_98 = arith.constant 128 : index
    %75 = vector.load %arg14[%c0_96, %c0_97, %c128_98] : memref<8x8x384xbf16, #tpu.memory_space<vmem>>, vector<8x8x128xbf16>
    tpu.vector_store %arg14[%c0_96, %c0_97, %c128_98], %74 {strides = array<i32>} : memref<8x8x384xbf16, #tpu.memory_space<vmem>>, vector<8x8x128xbf16>,
    %c2_99 = arith.constant 2 : index
    %c2_100 = arith.constant 2 : index
    %c0_101 = arith.constant 0 : index
    %76 = vector.load %arg12[%c2_99, %c2_100, %c0_101] : memref<10x10x128xbf16, #tpu.memory_space<vmem>>, vector<8x8x128xbf16>
    %c0_102 = arith.constant 0 : index
    %c0_103 = arith.constant 0 : index
    %c256_104 = arith.constant 256 : index
    %77 = vector.load %arg14[%c0_102, %c0_103, %c256_104] : memref<8x8x384xbf16, #tpu.memory_space<vmem>>, vector<8x8x128xbf16>
    tpu.vector_store %arg14[%c0_102, %c0_103, %c256_104], %76 {strides = array<i32>} : memref<8x8x384xbf16, #tpu.memory_space<vmem>>, vector<8x8x128xbf16>,
    %c0_105 = arith.constant 0 : index
    %c0_106 = arith.constant 0 : index
    %c0_107 = arith.constant 0 : index
    %78 = vector.load %arg14[%c0_105, %c0_106, %c0_107] : memref<8x8x384xbf16, #tpu.memory_space<vmem>>, vector<8x8x384xbf16>
    %79 = vector.shape_cast %78 : vector<8x8x384xbf16> to vector<64x384xbf16>
    %c2_108 = arith.constant 2 : index
    %c0_109 = arith.constant 0 : index
    %c0_110 = arith.constant 0 : index
    %80 = vector.load %arg7[%c2_108, %c0_109, %c0_110] : memref<3x384x128xbf16, #tpu.memory_space<vmem>>, vector<1x384x128xbf16>
    %81 = vector.shape_cast %80 : vector<1x384x128xbf16> to vector<384x128xbf16>
    %cst_111 = arith.constant dense<0.000000e+00> : vector<64x128xf32>
    %82 = tpu.matmul %79, %81, %cst_111 {dimension_numbers = #tpu.dot_dimension_numbers<[1], [0], [0], [1], [0, 0, 1, 1], [], []>} : vector<64x384xbf16>, vector<384x128xbf16>, vector<64x128xf32> -> vector<64x128xf32>
    %c0_112 = arith.constant 0 : index
    %c0_113 = arith.constant 0 : index
    %83 = vector.load %arg13[%c0_112, %c0_113] : memref<64x128xf32, #tpu.memory_space<vmem>>, vector<64x128xf32>
    %84 = arith.addf %83, %82 : vector<64x128xf32>
    %c0_114 = arith.constant 0 : index
    %c0_115 = arith.constant 0 : index
    %85 = vector.load %arg13[%c0_114, %c0_115] : memref<64x128xf32, #tpu.memory_space<vmem>>, vector<64x128xf32>
    tpu.vector_store %arg13[%c0_114, %c0_115], %84 {strides = array<i32>} : memref<64x128xf32, #tpu.memory_space<vmem>>, vector<64x128xf32>,
    %c0_116 = arith.constant 0 : index
    %c0_117 = arith.constant 0 : index
    %86 = vector.load %arg13[%c0_116, %c0_117] : memref<64x128xf32, #tpu.memory_space<vmem>>, vector<64x128xf32>
    %c0_118 = arith.constant 0 : index
    %c0_119 = arith.constant 0 : index
    %87 = vector.load %arg8[%c0_118, %c0_119] : memref<1x128xf32, #tpu.memory_space<vmem>>, vector<1x128xf32>
    %88 = vector.broadcast %87 : vector<1x128xf32> to vector<64x128xf32>
    %89 = arith.addf %86, %88 : vector<64x128xf32>
    %90 = vector.shape_cast %89 : vector<64x128xf32> to vector<1x8x8x128xf32>
    %91 = arith.truncf %90 : vector<1x8x8x128xf32> to vector<1x8x8x128xbf16>
    %c0_120 = arith.constant 0 : index
    %c0_121 = arith.constant 0 : index
    %c0_122 = arith.constant 0 : index
    %c0_123 = arith.constant 0 : index
    %92 = vector.load %arg9[%c0_120, %c0_121, %c0_122, %c0_123] : memref<1x8x8x128xbf16, #tpu.memory_space<vmem>>, vector<1x8x8x128xbf16>
    tpu.vector_store %arg9[%c0_120, %c0_121, %c0_122, %c0_123], %91 {strides = array<i32>} : memref<1x8x8x128xbf16, #tpu.memory_space<vmem>>, vector<1x8x8x128xbf16>,
    %cst_124 = arith.constant dense<0.000000e+00> : vector<128xf32>
    %93 = vector.multi_reduction <add>, %89, %cst_124 [0] : vector<64x128xf32> to vector<128xf32>
    %94 = vector.shape_cast %93 : vector<128xf32> to vector<1x1x1x128xf32>
    %c0_125 = arith.constant 0 : index
    %c0_126 = arith.constant 0 : index
    %c0_127 = arith.constant 0 : index
    %c0_128 = arith.constant 0 : index
    %95 = vector.load %arg10[%c0_125, %c0_126, %c0_127, %c0_128] : memref<1x1x1x128xf32, #tpu.memory_space<vmem>>, vector<1x1x1x128xf32>
    tpu.vector_store %arg10[%c0_125, %c0_126, %c0_127, %c0_128], %94 {strides = array<i32>} : memref<1x1x1x128xf32, #tpu.memory_space<vmem>>, vector<1x1x1x128xf32>,
    %96 = arith.mulf %89, %89 : vector<64x128xf32>
    %cst_129 = arith.constant dense<0.000000e+00> : vector<128xf32>
    %97 = vector.multi_reduction <add>, %96, %cst_129 [0] : vector<64x128xf32> to vector<128xf32>
    %98 = vector.shape_cast %97 : vector<128xf32> to vector<1x1x1x128xf32>
    %c0_130 = arith.constant 0 : index
    %c0_131 = arith.constant 0 : index
    %c0_132 = arith.constant 0 : index
    %c0_133 = arith.constant 0 : index
    %99 = vector.load %arg11[%c0_130, %c0_131, %c0_132, %c0_133] : memref<1x1x1x128xf32, #tpu.memory_space<vmem>>, vector<1x1x1x128xf32>
    tpu.vector_store %arg11[%c0_130, %c0_131, %c0_132, %c0_133], %98 {strides = array<i32>} : memref<1x1x1x128xf32, #tpu.memory_space<vmem>>, vector<1x1x1x128xf32>,
    return
  }
  func.func @transform_0(%arg0: i32, %arg1: i32) -> (i32, i32, i32, i32) {
    %c0_i32 = arith.constant 0 : i32
    %c0_i32_0 = arith.constant 0 : i32
    %c0_i32_1 = arith.constant 0 : i32
    return %arg0, %arg1, %c0_i32, %c0_i32_0 : i32, i32, i32, i32
  }
  func.func @transform_1(%arg0: i32, %arg1: i32) -> (i32, i32, i32, i32) {
    %c8_i32 = arith.constant 8 : i32
    %0 = arith.muli %arg1, %c8_i32 : i32
    %c1_i32 = arith.constant 1 : i32
    %1 = arith.subi %0, %c1_i32 : i32
    %c0_i32 = arith.constant 0 : i32
    %2 = arith.maxsi %1, %c0_i32 : i32
    %c0_i32_0 = arith.constant 0 : i32
    %c0_i32_1 = arith.constant 0 : i32
    %c0_i32_2 = arith.constant 0 : i32
    return %arg0, %2, %c0_i32_0, %c0_i32_1 : i32, i32, i32, i32
  }
  func.func @transform_2(%arg0: i32, %arg1: i32) -> (i32, i32, i32, i32) {
    %c1_i32 = arith.constant 1 : i32
    %0 = arith.addi %arg1, %c1_i32 : i32
    %c8_i32 = arith.constant 8 : i32
    %1 = arith.muli %0, %c8_i32 : i32
    %c7_i32 = arith.constant 7 : i32
    %2 = arith.minsi %1, %c7_i32 : i32
    %c0_i32 = arith.constant 0 : i32
    %c0_i32_0 = arith.constant 0 : i32
    %c0_i32_1 = arith.constant 0 : i32
    return %arg0, %2, %c0_i32, %c0_i32_0 : i32, i32, i32, i32
  }
  func.func @transform_3(%arg0: i32, %arg1: i32) -> (i32, i32) {
    %c0_i32 = arith.constant 0 : i32
    %c0_i32_0 = arith.constant 0 : i32
    %c0_i32_1 = arith.constant 0 : i32
    return %c0_i32, %c0_i32_0 : i32, i32
  }
  func.func @transform_4(%arg0: i32, %arg1: i32) -> (i32, i32) {
    %c0_i32 = arith.constant 0 : i32
    %c0_i32_0 = arith.constant 0 : i32
    %c0_i32_1 = arith.constant 0 : i32
    return %c0_i32, %c0_i32_0 : i32, i32
  }
  func.func @transform_5(%arg0: i32, %arg1: i32) -> (i32, i32, i32) {
    %c0_i32 = arith.constant 0 : i32
    %c0_i32_0 = arith.constant 0 : i32
    %c0_i32_1 = arith.constant 0 : i32
    %c0_i32_2 = arith.constant 0 : i32
    return %c0_i32, %c0_i32_0, %c0_i32_1 : i32, i32, i32
  }
  func.func @transform_6(%arg0: i32, %arg1: i32) -> (i32, i32) {
    %c0_i32 = arith.constant 0 : i32
    %c0_i32_0 = arith.constant 0 : i32
    %c0_i32_1 = arith.constant 0 : i32
    return %c0_i32, %c0_i32_0 : i32, i32
  }
  func.func @transform_7(%arg0: i32, %arg1: i32) -> (i32, i32, i32, i32) {
    %c0_i32 = arith.constant 0 : i32
    %c0_i32_0 = arith.constant 0 : i32
    %c0_i32_1 = arith.constant 0 : i32
    return %arg0, %arg1, %c0_i32, %c0_i32_0 : i32, i32, i32, i32
  }
  func.func @transform_8(%arg0: i32, %arg1: i32) -> (i32, i32, i32, i32) {
    %c0_i32 = arith.constant 0 : i32
    %c0_i32_0 = arith.constant 0 : i32
    %c0_i32_1 = arith.constant 0 : i32
    return %arg0, %arg1, %c0_i32, %c0_i32_0 : i32, i32, i32, i32
  }
  func.func @transform_9(%arg0: i32, %arg1: i32) -> (i32, i32, i32, i32) {
    %c0_i32 = arith.constant 0 : i32
    %c0_i32_0 = arith.constant 0 : i32
    %c0_i32_1 = arith.constant 0 : i32
    return %arg0, %arg1, %c0_i32, %c0_i32_0 : i32, i32, i32, i32
  }
}

</mosaic_0001>

<llo_original>
// kernel: down_forward.5
$region0: #{down_forward.5}
  #allocation0 [shape = 'u32[]', space=smem, size = 0x4, offset = 0x4, fixed_abs, tag = 'smem constant byte address 0x4 - core index']
  #allocation1 [shape = 'u32[144,128]{1,0:T(1,128)}', space=vmem, size = 0x12000, scoped, tag = 'internal scratch']
  %s0 = inlined_call_operand.vmem [shape: bf16[2,8,8,128], index: 0, kind: input, shape index: {}]
  %s1 = inlined_call_operand.vmem [shape: f32[1,128], index: 1, kind: input, shape index: {}]
  %s2 = inlined_call_operand.vmem [shape: f32[1,128], index: 2, kind: input, shape index: {}]
  %s3 = inlined_call_operand.vmem [shape: f32[2,8,8,128], index: 3, kind: output, shape index: {}]
  %s4 = sld [smem:[#allocation0]]
  $region45: #{down_forward.5} parent=0
    _
  %s6 = ssub.s32 1, %s4
  %s7 = scalar_select 0, %s6, %s4
  loop: start=0, step=1, limit=4
  $region2: #{down_forward.5} parent=0 // loop_pre_header
    _
  $region3: #{down_forward.5} parent=0 // loop_header
    %s9 = sphi 0, %s13
    %p10 = scmp.ge.s32.totalorder %s9, 4
    %s16 = sphi 0, %s28
    %s17 = sphi 0, %s24
    %s18 = sphi 0, %s16
    %s19 = sphi 0, %s17
    %s20 = sphi 0, %s18
    %s21 = sphi 0, %s19
    %s33 = sphi 0, %s35
    %s36 = sphi 0, %s33
    %s37 = sphi 0, %s36
    %s53 = sphi 0, %s37
    %s57 = sphi 0, %s57
    %s59 = sphi 0, %s57
    %s60 = sphi 0, %s59
    %s74 = sphi 0, %s60
    %s78 = sphi 0, %s78
    %s80 = sphi 0, %s78
    %s81 = sphi 0, %s80
    %s95 = sphi 0, %s81
    %s103 = sphi 0, %s105
    %s106 = sphi 0, %s103
    %s107 = sphi 0, %s106
    %s123 = sphi 0, %s107
  $region4: #{down_forward.5} parent=0 // loop_header_branch
    %12 = sbr.rel (%p10) target = $region8
  $region5: #{down_forward.5} parent=0 // loop_body
    %s14 = ssub.s32 %s9, 1
    %s15 = ssub.s32 %s9, 2
    %s22 = sadd.s32 1, %s17
    %p23 = scmp.ge.s32.totalorder %s22, 1
    %s24 = scalar_select %p23, 0, %s22
    %s25 = sadd.s32 1, %s16
    %s26 = scalar_select %p23, %s25, %s16
    %p27 = scmp.ge.s32.totalorder %s26, 2
    %s28 = scalar_select %p27, 0, %s26
    %s29 = ssub.s32 %s16, %s28
    %s30 = ssub.s32 %s17, %s24
    %s31 = sor.u32 %s29, %s30
    %p32 = scmp.eq.s32.totalorder %s31, 0
    %s34 = sadd.s32 %s33, 1
    %s35 = scalar_select %p32, %s33, %s34
    %p38 = pneg %p32
    %p39 = scmp.eq.s32.totalorder %s9, 1
    %p40 = por %p38, %p39
    %p41 = scmp.ne.s32.totalorder %s33, %s36
    %p42 = scmp.eq.s32.totalorder %s9, 0
    %p43 = por %p41, %p42
    %p44 = scmp.ne.s32.totalorder %s33, %s36
    %p45 = scmp.eq.s32.totalorder %s14, 1
    %p46 = por %p44, %p45
    %p47 = scmp.ne.s32.totalorder %s36, %s37
    %p48 = scmp.eq.s32.totalorder %s14, 0
    %p49 = por %p47, %p48
    %p50 = scmp.ne.s32.totalorder %s36, %s37
    %p51 = scmp.eq.s32.totalorder %s15, 1
    %p52 = por %p50, %p51
    %p54 = scmp.ne.s32.totalorder %s37, %s53
    %p55 = scmp.eq.s32.totalorder %s15, 0
    %p56 = por %p54, %p55
    %s58 = sadd.s32 %s57, 1
    %p61 = scmp.eq.s32.totalorder %s9, 1
    %p62 = scmp.ne.s32.totalorder %s57, %s59
    %p63 = scmp.eq.s32.totalorder %s9, 0
    %p64 = por %p62, %p63
    %p65 = scmp.ne.s32.totalorder %s57, %s59
    %p66 = scmp.eq.s32.totalorder %s14, 1
    %p67 = por %p65, %p66
    %p68 = scmp.ne.s32.totalorder %s59, %s60
    %p69 = scmp.eq.s32.totalorder %s14, 0
    %p70 = por %p68, %p69
    %p71 = scmp.ne.s32.totalorder %s59, %s60
    %p72 = scmp.eq.s32.totalorder %s15, 1
    %p73 = por %p71, %p72
    %p75 = scmp.ne.s32.totalorder %s60, %s74
    %p76 = scmp.eq.s32.totalorder %s15, 0
    %p77 = por %p75, %p76
    %s79 = sadd.s32 %s78, 1
    %p82 = scmp.eq.s32.totalorder %s9, 1
    %p83 = scmp.ne.s32.totalorder %s78, %s80
    %p84 = scmp.eq.s32.totalorder %s9, 0
    %p85 = por %p83, %p84
    %p86 = scmp.ne.s32.totalorder %s78, %s80
    %p87 = scmp.eq.s32.totalorder %s14, 1
    %p88 = por %p86, %p87
    %p89 = scmp.ne.s32.totalorder %s80, %s81
    %p90 = scmp.eq.s32.totalorder %s14, 0
    %p91 = por %p89, %p90
    %p92 = scmp.ne.s32.totalorder %s80, %s81
    %p93 = scmp.eq.s32.totalorder %s15, 1
    %p94 = por %p92, %p93
    %p96 = scmp.ne.s32.totalorder %s81, %s95
    %p97 = scmp.eq.s32.totalorder %s15, 0
    %p98 = por %p96, %p97
    %s99 = ssub.s32 %s16, %s28
    %s100 = ssub.s32 %s17, %s24
    %s101 = sor.u32 %s99, %s100
    %p102 = scmp.eq.s32.totalorder %s101, 0
    %s104 = sadd.s32 %s103, 1
    %s105 = scalar_select %p102, %s103, %s104
    %p108 = pneg %p102
    %p109 = scmp.eq.s32.totalorder %s9, 1
    %p110 = por %p108, %p109
    %p111 = scmp.ne.s32.totalorder %s103, %s106
    %p112 = scmp.eq.s32.totalorder %s9, 0
    %p113 = por %p111, %p112
    %p114 = scmp.ne.s32.totalorder %s103, %s106
    %p115 = scmp.eq.s32.totalorder %s14, 1
    %p116 = por %p114, %p115
    %p117 = scmp.ne.s32.totalorder %s106, %s107
    %p118 = scmp.eq.s32.totalorder %s14, 0
    %p119 = por %p117, %p118
    %p120 = scmp.ne.s32.totalorder %s106, %s107
    %p121 = scmp.eq.s32.totalorder %s15, 1
    %p122 = por %p120, %p121
    %p124 = scmp.ne.s32.totalorder %s107, %s123
    %p125 = scmp.eq.s32.totalorder %s15, 0
    %p126 = por %p124, %p125
    %p127 = scmp.le.s32.totalorder 1, %s9
    %p128 = scmp.lt.s32.totalorder %s9, 3
    %p129 = pnand %p127, %p128
    %p130 = pneg %p129
    // Predicated region
    $region9: #{down_forward.5} parent=5 // pred_check
      _
    $region10: #{down_forward.5} parent=5 // pred_check_branch
      %132 = sbr.rel (%p129) target = $region12
    $region11: #{down_forward.5} parent=5 // pred_region
      %s133 = ssub.s32 %s9, 1
      // Predicated region
      $region13: #{down_forward.5} parent=11 // pred_check
        %p134 = pneg %p70
      $region14: #{down_forward.5} parent=11 // pred_check_branch
        %136 = sbr.rel (%p134) target = $region16
      $region15: #{down_forward.5} parent=11 // pred_region
        _
      $region16: #{down_forward.5} parent=11 // pred_fallthru
        _
      // Predicated region
      $region17: #{down_forward.5} parent=11 // pred_check
        %p137 = pneg %p91
      $region18: #{down_forward.5} parent=11 // pred_check_branch
        %139 = sbr.rel (%p137) target = $region20
      $region19: #{down_forward.5} parent=11 // pred_region
        _
      $region20: #{down_forward.5} parent=11 // pred_fallthru
        _
    $region12: #{down_forward.5} parent=5 // pred_fallthru
      _
    %p140 = scmp.lt.s32.totalorder %s9, 2
    // Predicated region
    $region21: #{down_forward.5} parent=5 // pred_check
      %p141 = pneg %p140
    $region22: #{down_forward.5} parent=5 // pred_check_branch
      %143 = sbr.rel (%p141) target = $region24
    $region23: #{down_forward.5} parent=5 // pred_region
      // Predicated region
      $region25: #{down_forward.5} parent=23 // pred_check
        %p144 = pneg %p43
      $region26: #{down_forward.5} parent=23 // pred_check_branch
        %146 = sbr.rel (%p144) target = $region28
      $region27: #{down_forward.5} parent=23 // pred_region
        %s147 = smul.u32 8, %s17
        %p148 = scmp.lt.s32.totalorder %s16, 1
        %s149 = scalar_select %p148, %s16, 1
        %p150 = scmp.lt.s32.totalorder %s147, 7
        %s151 = scalar_select %p150, %s147, 7
        %s152 = smul.addr %s149, 8
        %s153 = sadd.s32 %s151, %s152
        %s154 = smul.addr %s153, 4
        %s155 = scalar_lea.vmem %s0, %s154
        %s156 = smul.u32 8, %s17
      $region28: #{down_forward.5} parent=23 // pred_fallthru
        _
    $region24: #{down_forward.5} parent=5 // pred_fallthru
      _
    %p157 = scmp.le.s32.totalorder 1, %s9
    %p158 = scmp.lt.s32.totalorder %s9, 3
    %p159 = pnand %p157, %p158
    %p160 = pneg %p159
    // Predicated region
    $region29: #{down_forward.5} parent=5 // pred_check
      _
    $region30: #{down_forward.5} parent=5 // pred_check_branch
      %162 = sbr.rel (%p159) target = $region32
    $region31: #{down_forward.5} parent=5 // pred_region
      %s163 = ssub.s32 %s9, 1
      %s164 = smul.u32 8, %s19
      %p165 = scmp.lt.s32.totalorder %s18, 1
      %s166 = scalar_select %p165, %s18, 1
      %p167 = scmp.lt.s32.totalorder %s164, 7
      %s168 = scalar_select %p167, %s164, 7
      %s169 = smul.addr %s166, 8
      %s170 = sadd.s32 %s168, %s169
      %s171 = smul.addr %s170, 4
      %s172 = scalar_lea.vmem %s0, %s171
      %p173 = pneg %p49
      %p174 = pneg %p46
      %p175 = pneg %p70
      %p176 = pneg %p67
      %p177 = pneg %p91
      %p178 = pneg %p88
      %p179 = pneg %p119
      %p180 = pneg %p116
      %s181 = smul.u32 8, %s19
      %p182 = scmp.lt.s32.totalorder %s18, 1
      %s183 = scalar_select %p182, %s18, 1
      %p184 = scmp.lt.s32.totalorder %s181, 7
      %s185 = scalar_select %p184, %s181, 7
      %s186 = smul.addr %s183, 8
      %s187 = sadd.s32 %s185, %s186
      %s188 = smul.addr %s187, 8
      %s189 = scalar_lea.vmem %s3, %s188
      %s190 = smul.u32 8, %s19
      %p191 = scmp.lt.s32.totalorder %s18, 1
      %s192 = scalar_select %p191, %s18, 1
      %p193 = scmp.lt.s32.totalorder %s190, 7
      %s194 = scalar_select %p193, %s190, 7
      %s195 = smul.addr %s192, 8
      %s196 = sadd.s32 %s194, %s195
      %s197 = smul.addr %s196, 4
      %s198 = scalar_lea.vmem %s0, %s197
      %s199 = smul.u32 8, %s19
      %s200 = smul.u32 8, %s19
      %p201 = scmp.lt.s32.totalorder %s18, 1
      %s202 = scalar_select %p201, %s18, 1
      %p203 = scmp.lt.s32.totalorder %s200, 7
      %s204 = scalar_select %p203, %s200, 7
      %s205 = smul.addr %s202, 8
      %s206 = sadd.s32 %s204, %s205
      %s207 = smul.addr %s206, 8
      %s208 = scalar_lea.vmem %s3, %s207
      %s209 = smul.u32 8, %s19
      %v210 = vld [vmem:[%s198] sm:$0xf]
      %v211 = vld [vmem:[%s198 + $0x4] sm:$0xf]
      %v212 = vld [vmem:[%s198 + $0x8] sm:$0xf]
      %v213 = vld [vmem:[%s198 + $0xc] sm:$0xf]
      %v214 = vld [vmem:[%s198 + $0x10] sm:$0xf]
      %v215 = vld [vmem:[%s198 + $0x14] sm:$0xf]
      %v216 = vld [vmem:[%s198 + $0x18] sm:$0xf]
      %v217 = vld [vmem:[%s198 + $0x1c] sm:$0xf]
      %v218 = vunpack.c.l.bf16 %v210
      %v219 = vunpack.c.l.bf16 %v211
      %v220 = vunpack.c.l.bf16 %v212
      %v221 = vunpack.c.l.bf16 %v213
      %v222 = vunpack.c.l.bf16 %v214
      %v223 = vunpack.c.l.bf16 %v215
      %v224 = vunpack.c.l.bf16 %v216
      %v225 = vunpack.c.l.bf16 %v217
      %v226 = vld [vmem:[%s1] sm:$0x1]
      %v228 = vlaneseq
      %v229 = vshrl.u32 %v228, 7
      %v230 = vsub.s32 0, %v229
      %v231 = vrot.slane %v226, %v230
      %v233 = vmul.f32 %v218, %v231
      %v234 = vmul.f32 %v219, %v231
      %v235 = vmul.f32 %v220, %v231
      %v236 = vmul.f32 %v221, %v231
      %v237 = vmul.f32 %v222, %v231
      %v238 = vmul.f32 %v223, %v231
      %v239 = vmul.f32 %v224, %v231
      %v240 = vmul.f32 %v225, %v231
      %v241 = vld [vmem:[%s2] sm:$0x1]
      %v243 = vlaneseq
      %v244 = vshrl.u32 %v243, 7
      %v245 = vsub.s32 0, %v244
      %v246 = vrot.slane %v241, %v245
      %v248 = vadd.f32 %v233, %v246
      %v249 = vadd.f32 %v234, %v246
      %v250 = vadd.f32 %v235, %v246
      %v251 = vadd.f32 %v236, %v246
      %v252 = vadd.f32 %v237, %v246
      %v253 = vadd.f32 %v238, %v246
      %v254 = vadd.f32 %v239, %v246
      %v255 = vadd.f32 %v240, %v246
      %v256 = vmax.f32 %v248, 0.0
      %v257 = vmax.f32 %v249, 0.0
      %v258 = vmax.f32 %v250, 0.0
      %v259 = vmax.f32 %v251, 0.0
      %v260 = vmax.f32 %v252, 0.0
      %v261 = vmax.f32 %v253, 0.0
      %v262 = vmax.f32 %v254, 0.0
      %v263 = vmax.f32 %v255, 0.0
      %264 = vst [vmem:[%s208] sm:$0xff] %v256
      %265 = vst [vmem:[%s208 + $0x8] sm:$0xff] %v257
      %266 = vst [vmem:[%s208 + $0x10] sm:$0xff] %v258
      %267 = vst [vmem:[%s208 + $0x18] sm:$0xff] %v259
      %268 = vst [vmem:[%s208 + $0x20] sm:$0xff] %v260
      %269 = vst [vmem:[%s208 + $0x28] sm:$0xff] %v261
      %270 = vst [vmem:[%s208 + $0x30] sm:$0xff] %v262
      %271 = vst [vmem:[%s208 + $0x38] sm:$0xff] %v263
      %s272 = smul.u32 8, %s19
      %p273 = scmp.lt.s32.totalorder %s18, 1
      %s274 = scalar_select %p273, %s18, 1
      %p275 = scmp.lt.s32.totalorder %s272, 7
      %s276 = scalar_select %p275, %s272, 7
      %s277 = smul.addr %s274, 8
      %s278 = sadd.s32 %s276, %s277
      %s279 = smul.addr %s278, 8
      %s280 = scalar_lea.vmem %s3, %s279
      // Predicated region
      $region33: #{down_forward.5} parent=31 // pred_check
        %p281 = pneg %p116
      $region34: #{down_forward.5} parent=31 // pred_check_branch
        %283 = sbr.rel (%p281) target = $region36
      $region35: #{down_forward.5} parent=31 // pred_region
        %s284 = smul.u32 8, %s19
      $region36: #{down_forward.5} parent=31 // pred_fallthru
        _
    $region32: #{down_forward.5} parent=5 // pred_fallthru
      _
    %p285 = scmp.le.s32.totalorder 2, %s9
    // Predicated region
    $region37: #{down_forward.5} parent=5 // pred_check
      %p286 = pneg %p285
    $region38: #{down_forward.5} parent=5 // pred_check_branch
      %288 = sbr.rel (%p286) target = $region40
    $region39: #{down_forward.5} parent=5 // pred_region
      %s289 = ssub.s32 %s9, 2
      // Predicated region
      $region41: #{down_forward.5} parent=39 // pred_check
        %p290 = pneg %p122
      $region42: #{down_forward.5} parent=39 // pred_check_branch
        %292 = sbr.rel (%p290) target = $region44
      $region43: #{down_forward.5} parent=39 // pred_region
        %s293 = smul.u32 8, %s21
        %p294 = scmp.lt.s32.totalorder %s20, 1
        %s295 = scalar_select %p294, %s20, 1
        %p296 = scmp.lt.s32.totalorder %s293, 7
        %s297 = scalar_select %p296, %s293, 7
        %s298 = smul.addr %s295, 8
        %s299 = sadd.s32 %s297, %s298
        %s300 = smul.addr %s299, 8
        %s301 = scalar_lea.vmem %s3, %s300
      $region44: #{down_forward.5} parent=39 // pred_fallthru
        _
    $region40: #{down_forward.5} parent=5 // pred_fallthru
      _
  $region6: #{down_forward.5} parent=0 // loop_footer
    %s13 = sadd.s32 1, %s9
  $region7: #{down_forward.5} parent=0 // loop_footer_branch
    %8 = sbr.rel target = $region3
  $region8: #{down_forward.5} parent=0 // loop_exit
    _

// kernel: down_forward.3
$region0: #{down_forward.3}
  #allocation0 [shape = 'u32[]', space=smem, size = 0x4, offset = 0x4, fixed_abs, tag = 'smem constant byte address 0x4 - core index']
  #allocation1 [shape = 'u32[144,128]{1,0:T(1,128)}', space=vmem, size = 0x12000, scoped, tag = 'internal scratch']
  #allocation2 [shape = 'bf16[10,10,4]{2,1,0:T(8,128)(2,1)}', space=vmem, size = 0xa000, scoped, tag = 'scratch operand']
  #allocation3 [shape = 'f32[64,128]{1,0:T(8,128)}', space=vmem, size = 0x8000, scoped, tag = 'scratch operand']
  %s0 = inlined_call_operand.vmem [shape: bf16[2,16,16,4], index: 0, kind: input, shape index: {}, may-alias: {0,1,2}]
  %s1 = inlined_call_operand.vmem [shape: bf16[2,16,16,4], index: 1, kind: input, shape index: {}, may-alias: {0,1,2}]
  %s2 = inlined_call_operand.vmem [shape: bf16[2,16,16,4], index: 2, kind: input, shape index: {}, may-alias: {0,1,2}]
  %s3 = inlined_call_operand.vmem [shape: bf16[3,12,128], index: 3, kind: input, shape index: {}]
  %s4 = inlined_call_operand.vmem [shape: f32[1,128], index: 4, kind: input, shape index: {}]
  %s5 = inlined_call_operand.vmem [shape: bf16[2,8,8,128], index: 5, kind: output, shape index: {0}]
  %s6 = inlined_call_operand.vmem [shape: f32[2,1,1,128], index: 6, kind: output, shape index: {1}]
  %s7 = inlined_call_operand.vmem [shape: f32[2,1,1,128], index: 7, kind: output, shape index: {2}]
  %8 = xla_tuple %s5, %s6, %s7
  %s9 = sld [smem:[#allocation0]]
  $region69: #{down_forward.3} parent=0
    _
  %s11 = ssub.s32 1, %s9
  %s12 = scalar_select 0, %s11, %s9
  loop: start=0, step=1, limit=4
  $region2: #{down_forward.3} parent=0 // loop_pre_header
    _
  $region3: #{down_forward.3} parent=0 // loop_header
    %s14 = sphi 0, %s18
    %p15 = scmp.ge.s32.totalorder %s14, 4
    %s21 = sphi 0, %s33
    %s22 = sphi 0, %s29
    %s23 = sphi 0, %s21
    %s24 = sphi 0, %s22
    %s25 = sphi 0, %s23
    %s26 = sphi 0, %s24
    %s38 = sphi 0, %s40
    %s41 = sphi 0, %s38
    %s42 = sphi 0, %s41
    %s58 = sphi 0, %s42
    %s74 = sphi 0, %s76
    %s77 = sphi 0, %s74
    %s78 = sphi 0, %s77
    %s94 = sphi 0, %s78
    %s110 = sphi 0, %s112
    %s113 = sphi 0, %s110
    %s114 = sphi 0, %s113
    %s130 = sphi 0, %s114
    %s134 = sphi 0, %s134
    %s136 = sphi 0, %s134
    %s137 = sphi 0, %s136
    %s151 = sphi 0, %s137
    %s155 = sphi 0, %s155
    %s157 = sphi 0, %s155
    %s158 = sphi 0, %s157
    %s172 = sphi 0, %s158
    %s180 = sphi 0, %s182
    %s183 = sphi 0, %s180
    %s184 = sphi 0, %s183
    %s200 = sphi 0, %s184
    %s208 = sphi 0, %s210
    %s211 = sphi 0, %s208
    %s212 = sphi 0, %s211
    %s228 = sphi 0, %s212
    %s236 = sphi 0, %s238
    %s239 = sphi 0, %s236
    %s240 = sphi 0, %s239
    %s256 = sphi 0, %s240
  $region4: #{down_forward.3} parent=0 // loop_header_branch
    %17 = sbr.rel (%p15) target = $region8
  $region5: #{down_forward.3} parent=0 // loop_body
    %s19 = ssub.s32 %s14, 1
    %s20 = ssub.s32 %s14, 2
    %s27 = sadd.s32 1, %s22
    %p28 = scmp.ge.s32.totalorder %s27, 1
    %s29 = scalar_select %p28, 0, %s27
    %s30 = sadd.s32 1, %s21
    %s31 = scalar_select %p28, %s30, %s21
    %p32 = scmp.ge.s32.totalorder %s31, 2
    %s33 = scalar_select %p32, 0, %s31
    %s34 = ssub.s32 %s21, %s33
    %s35 = ssub.s32 %s22, %s29
    %s36 = sor.u32 %s34, %s35
    %p37 = scmp.eq.s32.totalorder %s36, 0
    %s39 = sadd.s32 %s38, 1
    %s40 = scalar_select %p37, %s38, %s39
    %p43 = pneg %p37
    %p44 = scmp.eq.s32.totalorder %s14, 1
    %p45 = por %p43, %p44
    %p46 = scmp.ne.s32.totalorder %s38, %s41
    %p47 = scmp.eq.s32.totalorder %s14, 0
    %p48 = por %p46, %p47
    %p49 = scmp.ne.s32.totalorder %s38, %s41
    %p50 = scmp.eq.s32.totalorder %s19, 1
    %p51 = por %p49, %p50
    %p52 = scmp.ne.s32.totalorder %s41, %s42
    %p53 = scmp.eq.s32.totalorder %s19, 0
    %p54 = por %p52, %p53
    %p55 = scmp.ne.s32.totalorder %s41, %s42
    %p56 = scmp.eq.s32.totalorder %s20, 1
    %p57 = por %p55, %p56
    %p59 = scmp.ne.s32.totalorder %s42, %s58
    %p60 = scmp.eq.s32.totalorder %s20, 0
    %p61 = por %p59, %p60
    %s62 = smul.u32 %s22, 8
    %s63 = ssub.s32 %s62, 1
    %p64 = scmp.gt.s32.totalorder %s63, 0
    %s65 = scalar_select %p64, %s63, 0
    %s66 = smul.u32 %s29, 8
    %s67 = ssub.s32 %s66, 1
    %p68 = scmp.gt.s32.totalorder %s67, 0
    %s69 = scalar_select %p68, %s67, 0
    %s70 = ssub.s32 %s21, %s33
    %s71 = ssub.s32 %s65, %s69
    %s72 = sor.u32 %s70, %s71
    %p73 = scmp.eq.s32.totalorder %s72, 0
    %s75 = sadd.s32 %s74, 1
    %s76 = scalar_select %p73, %s74, %s75
    %p79 = pneg %p73
    %p80 = scmp.eq.s32.totalorder %s14, 1
    %p81 = por %p79, %p80
    %p82 = scmp.ne.s32.totalorder %s74, %s77
    %p83 = scmp.eq.s32.totalorder %s14, 0
    %p84 = por %p82, %p83
    %p85 = scmp.ne.s32.totalorder %s74, %s77
    %p86 = scmp.eq.s32.totalorder %s19, 1
    %p87 = por %p85, %p86
    %p88 = scmp.ne.s32.totalorder %s77, %s78
    %p89 = scmp.eq.s32.totalorder %s19, 0
    %p90 = por %p88, %p89
    %p91 = scmp.ne.s32.totalorder %s77, %s78
    %p92 = scmp.eq.s32.totalorder %s20, 1
    %p93 = por %p91, %p92
    %p95 = scmp.ne.s32.totalorder %s78, %s94
    %p96 = scmp.eq.s32.totalorder %s20, 0
    %p97 = por %p95, %p96
    %s98 = sadd.s32 %s22, 1
    %s99 = smul.u32 %s98, 8
    %p100 = scmp.lt.s32.totalorder %s99, 7
    %s101 = scalar_select %p100, %s99, 7
    %s102 = sadd.s32 %s29, 1
    %s103 = smul.u32 %s102, 8
    %p104 = scmp.lt.s32.totalorder %s103, 7
    %s105 = scalar_select %p104, %s103, 7
    %s106 = ssub.s32 %s21, %s33
    %s107 = ssub.s32 %s101, %s105
    %s108 = sor.u32 %s106, %s107
    %p109 = scmp.eq.s32.totalorder %s108, 0
    %s111 = sadd.s32 %s110, 1
    %s112 = scalar_select %p109, %s110, %s111
    %p115 = pneg %p109
    %p116 = scmp.eq.s32.totalorder %s14, 1
    %p117 = por %p115, %p116
    %p118 = scmp.ne.s32.totalorder %s110, %s113
    %p119 = scmp.eq.s32.totalorder %s14, 0
    %p120 = por %p118, %p119
    %p121 = scmp.ne.s32.totalorder %s110, %s113
    %p122 = scmp.eq.s32.totalorder %s19, 1
    %p123 = por %p121, %p122
    %p124 = scmp.ne.s32.totalorder %s113, %s114
    %p125 = scmp.eq.s32.totalorder %s19, 0
    %p126 = por %p124, %p125
    %p127 = scmp.ne.s32.totalorder %s113, %s114
    %p128 = scmp.eq.s32.totalorder %s20, 1
    %p129 = por %p127, %p128
    %p131 = scmp.ne.s32.totalorder %s114, %s130
    %p132 = scmp.eq.s32.totalorder %s20, 0
    %p133 = por %p131, %p132
    %s135 = sadd.s32 %s134, 1
    %p138 = scmp.eq.s32.totalorder %s14, 1
    %p139 = scmp.ne.s32.totalorder %s134, %s136
    %p140 = scmp.eq.s32.totalorder %s14, 0
    %p141 = por %p139, %p140
    %p142 = scmp.ne.s32.totalorder %s134, %s136
    %p143 = scmp.eq.s32.totalorder %s19, 1
    %p144 = por %p142, %p143
    %p145 = scmp.ne.s32.totalorder %s136, %s137
    %p146 = scmp.eq.s32.totalorder %s19, 0
    %p147 = por %p145, %p146
    %p148 = scmp.ne.s32.totalorder %s136, %s137
    %p149 = scmp.eq.s32.totalorder %s20, 1
    %p150 = por %p148, %p149
    %p152 = scmp.ne.s32.totalorder %s137, %s151
    %p153 = scmp.eq.s32.totalorder %s20, 0
    %p154 = por %p152, %p153
    %s156 = sadd.s32 %s155, 1
    %p159 = scmp.eq.s32.totalorder %s14, 1
    %p160 = scmp.ne.s32.totalorder %s155, %s157
    %p161 = scmp.eq.s32.totalorder %s14, 0
    %p162 = por %p160, %p161
    %p163 = scmp.ne.s32.totalorder %s155, %s157
    %p164 = scmp.eq.s32.totalorder %s19, 1
    %p165 = por %p163, %p164
    %p166 = scmp.ne.s32.totalorder %s157, %s158
    %p167 = scmp.eq.s32.totalorder %s19, 0
    %p168 = por %p166, %p167
    %p169 = scmp.ne.s32.totalorder %s157, %s158
    %p170 = scmp.eq.s32.totalorder %s20, 1
    %p171 = por %p169, %p170
    %p173 = scmp.ne.s32.totalorder %s158, %s172
    %p174 = scmp.eq.s32.totalorder %s20, 0
    %p175 = por %p173, %p174
    %s176 = ssub.s32 %s21, %s33
    %s177 = ssub.s32 %s22, %s29
    %s178 = sor.u32 %s176, %s177
    %p179 = scmp.eq.s32.totalorder %s178, 0
    %s181 = sadd.s32 %s180, 1
    %s182 = scalar_select %p179, %s180, %s181
    %p185 = pneg %p179
    %p186 = scmp.eq.s32.totalorder %s14, 1
    %p187 = por %p185, %p186
    %p188 = scmp.ne.s32.totalorder %s180, %s183
    %p189 = scmp.eq.s32.totalorder %s14, 0
    %p190 = por %p188, %p189
    %p191 = scmp.ne.s32.totalorder %s180, %s183
    %p192 = scmp.eq.s32.totalorder %s19, 1
    %p193 = por %p191, %p192
    %p194 = scmp.ne.s32.totalorder %s183, %s184
    %p195 = scmp.eq.s32.totalorder %s19, 0
    %p196 = por %p194, %p195
    %p197 = scmp.ne.s32.totalorder %s183, %s184
    %p198 = scmp.eq.s32.totalorder %s20, 1
    %p199 = por %p197, %p198
    %p201 = scmp.ne.s32.totalorder %s184, %s200
    %p202 = scmp.eq.s32.totalorder %s20, 0
    %p203 = por %p201, %p202
    %s204 = ssub.s32 %s21, %s33
    %s205 = ssub.s32 %s22, %s29
    %s206 = sor.u32 %s204, %s205
    %p207 = scmp.eq.s32.totalorder %s206, 0
    %s209 = sadd.s32 %s208, 1
    %s210 = scalar_select %p207, %s208, %s209
    %p213 = pneg %p207
    %p214 = scmp.eq.s32.totalorder %s14, 1
    %p215 = por %p213, %p214
    %p216 = scmp.ne.s32.totalorder %s208, %s211
    %p217 = scmp.eq.s32.totalorder %s14, 0
    %p218 = por %p216, %p217
    %p219 = scmp.ne.s32.totalorder %s208, %s211
    %p220 = scmp.eq.s32.totalorder %s19, 1
    %p221 = por %p219, %p220
    %p222 = scmp.ne.s32.totalorder %s211, %s212
    %p223 = scmp.eq.s32.totalorder %s19, 0
    %p224 = por %p222, %p223
    %p225 = scmp.ne.s32.totalorder %s211, %s212
    %p226 = scmp.eq.s32.totalorder %s20, 1
    %p227 = por %p225, %p226
    %p229 = scmp.ne.s32.totalorder %s212, %s228
    %p230 = scmp.eq.s32.totalorder %s20, 0
    %p231 = por %p229, %p230
    %s232 = ssub.s32 %s21, %s33
    %s233 = ssub.s32 %s22, %s29
    %s234 = sor.u32 %s232, %s233
    %p235 = scmp.eq.s32.totalorder %s234, 0
    %s237 = sadd.s32 %s236, 1
    %s238 = scalar_select %p235, %s236, %s237
    %p241 = pneg %p235
    %p242 = scmp.eq.s32.totalorder %s14, 1
    %p243 = por %p241, %p242
    %p244 = scmp.ne.s32.totalorder %s236, %s239
    %p245 = scmp.eq.s32.totalorder %s14, 0
    %p246 = por %p244, %p245
    %p247 = scmp.ne.s32.totalorder %s236, %s239
    %p248 = scmp.eq.s32.totalorder %s19, 1
    %p249 = por %p247, %p248
    %p250 = scmp.ne.s32.totalorder %s239, %s240
    %p251 = scmp.eq.s32.totalorder %s19, 0
    %p252 = por %p250, %p251
    %p253 = scmp.ne.s32.totalorder %s239, %s240
    %p254 = scmp.eq.s32.totalorder %s20, 1
    %p255 = por %p253, %p254
    %p257 = scmp.ne.s32.totalorder %s240, %s256
    %p258 = scmp.eq.s32.totalorder %s20, 0
    %p259 = por %p257, %p258
    %p260 = scmp.le.s32.totalorder 1, %s14
    %p261 = scmp.lt.s32.totalorder %s14, 3
    %p262 = pnand %p260, %p261
    %p263 = pneg %p262
    // Predicated region
    $region9: #{down_forward.3} parent=5 // pred_check
      _
    $region10: #{down_forward.3} parent=5 // pred_check_branch
      %265 = sbr.rel (%p262) target = $region12
    $region11: #{down_forward.3} parent=5 // pred_region
      %s266 = ssub.s32 %s14, 1
      // Predicated region
      $region13: #{down_forward.3} parent=11 // pred_check
        %p267 = pneg %p147
      $region14: #{down_forward.3} parent=11 // pred_check_branch
        %269 = sbr.rel (%p267) target = $region16
      $region15: #{down_forward.3} parent=11 // pred_region
        _
      $region16: #{down_forward.3} parent=11 // pred_fallthru
        _
      // Predicated region
      $region17: #{down_forward.3} parent=11 // pred_check
        %p270 = pneg %p168
      $region18: #{down_forward.3} parent=11 // pred_check_branch
        %272 = sbr.rel (%p270) target = $region20
      $region19: #{down_forward.3} parent=11 // pred_region
        _
      $region20: #{down_forward.3} parent=11 // pred_fallthru
        _
    $region12: #{down_forward.3} parent=5 // pred_fallthru
      _
    %p273 = scmp.lt.s32.totalorder %s14, 2
    // Predicated region
    $region21: #{down_forward.3} parent=5 // pred_check
      %p274 = pneg %p273
    $region22: #{down_forward.3} parent=5 // pred_check_branch
      %276 = sbr.rel (%p274) target = $region24
    $region23: #{down_forward.3} parent=5 // pred_region
      // Predicated region
      $region25: #{down_forward.3} parent=23 // pred_check
        %p277 = pneg %p48
      $region26: #{down_forward.3} parent=23 // pred_check_branch
        %279 = sbr.rel (%p277) target = $region28
      $region27: #{down_forward.3} parent=23 // pred_region
        %s280 = smul.u32 16, %s22
        %p281 = scmp.lt.s32.totalorder %s21, 1
        %s282 = scalar_select %p281, %s21, 1
        %p283 = scmp.lt.s32.totalorder %s280, 15
        %s284 = scalar_select %p283, %s280, 15
        %s285 = smul.addr %s284, 2
        %s286 = smul.addr %s282, 32
        %s287 = sadd.s32 %s285, %s286
        %s288 = smul.addr %s287, 4
        %s289 = scalar_lea.vmem %s0, %s288
        %s290 = smul.u32 16, %s22
      $region28: #{down_forward.3} parent=23 // pred_fallthru
        _
      // Predicated region
      $region29: #{down_forward.3} parent=23 // pred_check
        %p291 = pneg %p84
      $region30: #{down_forward.3} parent=23 // pred_check_branch
        %293 = sbr.rel (%p291) target = $region32
      $region31: #{down_forward.3} parent=23 // pred_region
        %s294 = smul.u32 %s22, 8
        %s295 = ssub.s32 %s294, 1
        %p296 = scmp.gt.s32.totalorder %s295, 0
        %s297 = scalar_select %p296, %s295, 0
        %s298 = smul.u32 2, %s297
        %p299 = scmp.lt.s32.totalorder %s21, 1
        %s300 = scalar_select %p299, %s21, 1
        %p301 = scmp.lt.s32.totalorder %s298, 15
        %s302 = scalar_select %p301, %s298, 15
        %s303 = smul.addr %s302, 2
        %s304 = smul.addr %s300, 32
        %s305 = sadd.s32 %s303, %s304
        %s306 = smul.addr %s305, 4
        %s307 = scalar_lea.vmem %s1, %s306
        %s308 = smul.u32 %s22, 8
        %s309 = ssub.s32 %s308, 1
        %p310 = scmp.gt.s32.totalorder %s309, 0
        %s311 = scalar_select %p310, %s309, 0
        %s312 = smul.u32 2, %s311
      $region32: #{down_forward.3} parent=23 // pred_fallthru
        _
      // Predicated region
      $region33: #{down_forward.3} parent=23 // pred_check
        %p313 = pneg %p120
      $region34: #{down_forward.3} parent=23 // pred_check_branch
        %315 = sbr.rel (%p313) target = $region36
      $region35: #{down_forward.3} parent=23 // pred_region
        %s316 = sadd.s32 %s22, 1
        %s317 = smul.u32 %s316, 8
        %p318 = scmp.lt.s32.totalorder %s317, 7
        %s319 = scalar_select %p318, %s317, 7
        %s320 = smul.u32 2, %s319
        %p321 = scmp.lt.s32.totalorder %s21, 1
        %s322 = scalar_select %p321, %s21, 1
        %p323 = scmp.lt.s32.totalorder %s320, 15
        %s324 = scalar_select %p323, %s320, 15
        %s325 = smul.addr %s324, 2
        %s326 = smul.addr %s322, 32
        %s327 = sadd.s32 %s325, %s326
        %s328 = smul.addr %s327, 4
        %s329 = scalar_lea.vmem %s2, %s328
        %s330 = sadd.s32 %s22, 1
        %s331 = smul.u32 %s330, 8
        %p332 = scmp.lt.s32.totalorder %s331, 7
        %s333 = scalar_select %p332, %s331, 7
        %s334 = smul.u32 2, %s333
      $region36: #{down_forward.3} parent=23 // pred_fallthru
        _
    $region24: #{down_forward.3} parent=5 // pred_fallthru
      _
    %p335 = scmp.le.s32.totalorder 1, %s14
    %p336 = scmp.lt.s32.totalorder %s14, 3
    %p337 = pnand %p335, %p336
    %p338 = pneg %p337
    // Predicated region
    $region37: #{down_forward.3} parent=5 // pred_check
      _
    $region38: #{down_forward.3} parent=5 // pred_check_branch
      %340 = sbr.rel (%p337) target = $region40
    $region39: #{down_forward.3} parent=5 // pred_region
      %s341 = ssub.s32 %s14, 1
      %s342 = smul.u32 16, %s24
      %p343 = scmp.lt.s32.totalorder %s23, 1
      %s344 = scalar_select %p343, %s23, 1
      %p345 = scmp.lt.s32.totalorder %s342, 15
      %s346 = scalar_select %p345, %s342, 15
      %s347 = smul.addr %s346, 2
      %s348 = smul.addr %s344, 32
      %s349 = sadd.s32 %s347, %s348
      %s350 = smul.addr %s349, 4
      %s351 = scalar_lea.vmem %s0, %s350
      %p352 = pneg %p54
      %p353 = pneg %p51
      %s354 = smul.u32 %s24, 8
      %s355 = ssub.s32 %s354, 1
      %p356 = scmp.gt.s32.totalorder %s355, 0
      %s357 = scalar_select %p356, %s355, 0
      %s358 = smul.u32 2, %s357
      %p359 = scmp.lt.s32.totalorder %s23, 1
      %s360 = scalar_select %p359, %s23, 1
      %p361 = scmp.lt.s32.totalorder %s358, 15
      %s362 = scalar_select %p361, %s358, 15
      %s363 = smul.addr %s362, 2
      %s364 = smul.addr %s360, 32
      %s365 = sadd.s32 %s363, %s364
      %s366 = smul.addr %s365, 4
      %s367 = scalar_lea.vmem %s1, %s366
      %p368 = pneg %p90
      %p369 = pneg %p87
      %s370 = sadd.s32 %s24, 1
      %s371 = smul.u32 %s370, 8
      %p372 = scmp.lt.s32.totalorder %s371, 7
      %s373 = scalar_select %p372, %s371, 7
      %s374 = smul.u32 2, %s373
      %p375 = scmp.lt.s32.totalorder %s23, 1
      %s376 = scalar_select %p375, %s23, 1
      %p377 = scmp.lt.s32.totalorder %s374, 15
      %s378 = scalar_select %p377, %s374, 15
      %s379 = smul.addr %s378, 2
      %s380 = smul.addr %s376, 32
      %s381 = sadd.s32 %s379, %s380
      %s382 = smul.addr %s381, 4
      %s383 = scalar_lea.vmem %s2, %s382
      %p384 = pneg %p126
      %p385 = pneg %p123
      %p386 = pneg %p147
      %p387 = pneg %p144
      %p388 = pneg %p168
      %p389 = pneg %p165
      %p390 = pneg %p196
      %p391 = pneg %p193
      %s392 = smul.u32 8, %s24
      %p393 = scmp.lt.s32.totalorder %s23, 1
      %s394 = scalar_select %p393, %s23, 1
      %p395 = scmp.lt.s32.totalorder %s392, 7
      %s396 = scalar_select %p395, %s392, 7
      %s397 = smul.addr %s394, 8
      %s398 = sadd.s32 %s396, %s397
      %s399 = smul.addr %s398, 4
      %s400 = scalar_lea.vmem %s5, %s399
      %p401 = pneg %p224
      %p402 = pneg %p221
      %p403 = scmp.lt.s32.totalorder %s23, 1
      %s404 = scalar_select %p403, %s23, 1
      %p405 = scmp.lt.s32.totalorder %s24, 0
      %s406 = scalar_select %p405, %s24, 0
      %s407 = sadd.s32 %s406, %s404
      %s408 = scalar_lea.vmem %s6, %s407
      %p409 = pneg %p252
      %p410 = pneg %p249
      %p411 = scmp.lt.s32.totalorder %s23, 1
      %s412 = scalar_select %p411, %s23, 1
      %p413 = scmp.lt.s32.totalorder %s24, 0
      %s414 = scalar_select %p413, %s24, 0
      %s415 = sadd.s32 %s414, %s412
      %s416 = scalar_lea.vmem %s7, %s415
      %s417 = smul.u32 16, %s24
      %p418 = scmp.lt.s32.totalorder %s23, 1
      %s419 = scalar_select %p418, %s23, 1
      %p420 = scmp.lt.s32.totalorder %s417, 15
      %s421 = scalar_select %p420, %s417, 15
      %s422 = smul.addr %s421, 2
      %s423 = smul.addr %s419, 32
      %s424 = sadd.s32 %s422, %s423
      %s425 = smul.addr %s424, 4
      %s426 = scalar_lea.vmem %s0, %s425
      %s427 = smul.u32 16, %s24
      %s428 = smul.u32 %s24, 8
      %s429 = ssub.s32 %s428, 1
      %p430 = scmp.gt.s32.totalorder %s429, 0
      %s431 = scalar_select %p430, %s429, 0
      %s432 = smul.u32 2, %s431
      %p433 = scmp.lt.s32.totalorder %s23, 1
      %s434 = scalar_select %p433, %s23, 1
      %p435 = scmp.lt.s32.totalorder %s432, 15
      %s436 = scalar_select %p435, %s432, 15
      %s437 = smul.addr %s436, 2
      %s438 = smul.addr %s434, 32
      %s439 = sadd.s32 %s437, %s438
      %s440 = smul.addr %s439, 4
      %s441 = scalar_lea.vmem %s1, %s440
      %s442 = smul.u32 %s24, 8
      %s443 = ssub.s32 %s442, 1
      %p444 = scmp.gt.s32.totalorder %s443, 0
      %s445 = scalar_select %p444, %s443, 0
      %s446 = smul.u32 2, %s445
      %s447 = sadd.s32 %s24, 1
      %s448 = smul.u32 %s447, 8
      %p449 = scmp.lt.s32.totalorder %s448, 7
      %s450 = scalar_select %p449, %s448, 7
      %s451 = smul.u32 2, %s450
      %p452 = scmp.lt.s32.totalorder %s23, 1
      %s453 = scalar_select %p452, %s23, 1
      %p454 = scmp.lt.s32.totalorder %s451, 15
      %s455 = scalar_select %p454, %s451, 15
      %s456 = smul.addr %s455, 2
      %s457 = smul.addr %s453, 32
      %s458 = sadd.s32 %s456, %s457
      %s459 = smul.addr %s458, 4
      %s460 = scalar_lea.vmem %s2, %s459
      %s461 = sadd.s32 %s24, 1
      %s462 = smul.u32 %s461, 8
      %p463 = scmp.lt.s32.totalorder %s462, 7
      %s464 = scalar_select %p463, %s462, 7
      %s465 = smul.u32 2, %s464
      %s466 = smul.u32 8, %s24
      %p467 = scmp.lt.s32.totalorder %s23, 1
      %s468 = scalar_select %p467, %s23, 1
      %p469 = scmp.lt.s32.totalorder %s466, 7
      %s470 = scalar_select %p469, %s466, 7
      %s471 = smul.addr %s468, 8
      %s472 = sadd.s32 %s470, %s471
      %s473 = smul.addr %s472, 4
      %s474 = scalar_lea.vmem %s5, %s473
      %s475 = smul.u32 8, %s24
      %p476 = scmp.lt.s32.totalorder %s23, 1
      %s477 = scalar_select %p476, %s23, 1
      %p478 = scmp.lt.s32.totalorder %s24, 0
      %s479 = scalar_select %p478, %s24, 0
      %s480 = sadd.s32 %s479, %s477
      %s481 = scalar_lea.vmem %s6, %s480
      %p482 = scmp.lt.s32.totalorder %s23, 1
      %s483 = scalar_select %p482, %s23, 1
      %p484 = scmp.lt.s32.totalorder %s24, 0
      %s485 = scalar_select %p484, %s24, 0
      %s486 = sadd.s32 %s485, %s483
      %s487 = scalar_lea.vmem %s7, %s486
      %vm490 = vcmask 24576
      %vm491 = vsmask.f32 256
      %vm492 = vmand %vm490, %vm491
      %v493 = vld [vmem:[#allocation2] sm:$0x1]
      %v494 = vsel %vm492, 0, %v493
      %495 = vst [vmem:[#allocation2] sm:$0x1] %v494
      %v496 = vld [vmem:[#allocation2 + $0x8] sm:$0x1]
      %v497 = vsel %vm492, 0, %v496
      %498 = vst [vmem:[#allocation2 + $0x8] sm:$0x1] %v497
      %v499 = vld [vmem:[#allocation2 + $0x10] sm:$0x1]
      %v500 = vsel %vm492, 0, %v499
      %501 = vst [vmem:[#allocation2 + $0x10] sm:$0x1] %v500
      %v502 = vld [vmem:[#allocation2 + $0x18] sm:$0x1]
      %v503 = vsel %vm492, 0, %v502
      %504 = vst [vmem:[#allocation2 + $0x18] sm:$0x1] %v503
      %v505 = vld [vmem:[#allocation2 + $0x20] sm:$0x1]
      %v506 = vsel %vm492, 0, %v505
      %507 = vst [vmem:[#allocation2 + $0x20] sm:$0x1] %v506
      %v508 = vld [vmem:[#allocation2 + $0x28] sm:$0x1]
      %v509 = vsel %vm492, 0, %v508
      %510 = vst [vmem:[#allocation2 + $0x28] sm:$0x1] %v509
      %v511 = vld [vmem:[#allocation2 + $0x30] sm:$0x1]
      %v512 = vsel %vm492, 0, %v511
      %513 = vst [vmem:[#allocation2 + $0x30] sm:$0x1] %v512
      %v514 = vld [vmem:[#allocation2 + $0x38] sm:$0x1]
      %v515 = vsel %vm492, 0, %v514
      %516 = vst [vmem:[#allocation2 + $0x38] sm:$0x1] %v515
      %v517 = vld [vmem:[#allocation2 + $0x40] sm:$0x1]
      %v518 = vsel %vm492, 0, %v517
      %519 = vst [vmem:[#allocation2 + $0x40] sm:$0x1] %v518
      %v520 = vld [vmem:[#allocation2 + $0x48] sm:$0x1]
      %v521 = vsel %vm492, 0, %v520
      %522 = vst [vmem:[#allocation2 + $0x48] sm:$0x1] %v521
      %vm523 = vsmask.f32 7938
      %vm524 = vmand %vm490, %vm523
      %v525 = vld [vmem:[#allocation2 + $0x4] sm:$0x1]
      %v526 = vsel %vm524, 0, %v525
      %527 = vst [vmem:[#allocation2 + $0x4] sm:$0x1] %v526
      %v528 = vld [vmem:[#allocation2 + $0xc] sm:$0x1]
      %v529 = vsel %vm524, 0, %v528
      %530 = vst [vmem:[#allocation2 + $0xc] sm:$0x1] %v529
      %v531 = vld [vmem:[#allocation2 + $0x14] sm:$0x1]
      %v532 = vsel %vm524, 0, %v531
      %533 = vst [vmem:[#allocation2 + $0x14] sm:$0x1] %v532
      %v534 = vld [vmem:[#allocation2 + $0x1c] sm:$0x1]
      %v535 = vsel %vm524, 0, %v534
      %536 = vst [vmem:[#allocation2 + $0x1c] sm:$0x1] %v535
      %v537 = vld [vmem:[#allocation2 + $0x24] sm:$0x1]
      %v538 = vsel %vm524, 0, %v537
      %539 = vst [vmem:[#allocation2 + $0x24] sm:$0x1] %v538
      %v540 = vld [vmem:[#allocation2 + $0x2c] sm:$0x1]
      %v541 = vsel %vm524, 0, %v540
      %542 = vst [vmem:[#allocation2 + $0x2c] sm:$0x1] %v541
      %v543 = vld [vmem:[#allocation2 + $0x34] sm:$0x1]
      %v544 = vsel %vm524, 0, %v543
      %545 = vst [vmem:[#allocation2 + $0x34] sm:$0x1] %v544
      %v546 = vld [vmem:[#allocation2 + $0x3c] sm:$0x1]
      %v547 = vsel %vm524, 0, %v546
      %548 = vst [vmem:[#allocation2 + $0x3c] sm:$0x1] %v547
      %v549 = vld [vmem:[#allocation2 + $0x44] sm:$0x1]
      %v550 = vsel %vm524, 0, %v549
      %551 = vst [vmem:[#allocation2 + $0x44] sm:$0x1] %v550
      %v552 = vld [vmem:[#allocation2 + $0x4c] sm:$0x1]
      %v553 = vsel %vm524, 0, %v552
      %554 = vst [vmem:[#allocation2 + $0x4c] sm:$0x1] %v553
      %v555 = vld [vmem:[%s426] sm:$0xf]
      %v556 = vld [vmem:[%s426 + $0x4] sm:$0xf]
      %v557 = vld [vmem:[%s426 + $0x8] sm:$0xf]
      %v558 = vld [vmem:[%s426 + $0xc] sm:$0xf]
      %v559 = vld [vmem:[%s426 + $0x10] sm:$0xf]
      %v560 = vld [vmem:[%s426 + $0x14] sm:$0xf]
      %v561 = vld [vmem:[%s426 + $0x18] sm:$0xf]
      %v562 = vld [vmem:[%s426 + $0x1c] sm:$0xf]
      %v563 = vld [vmem:[%s426 + $0x20] sm:$0xf]
      %v564 = vld [vmem:[%s426 + $0x24] sm:$0xf]
      %v565 = vld [vmem:[%s426 + $0x28] sm:$0xf]
      %v566 = vld [vmem:[%s426 + $0x2c] sm:$0xf]
      %v567 = vld [vmem:[%s426 + $0x30] sm:$0xf]
      %v568 = vld [vmem:[%s426 + $0x34] sm:$0xf]
      %v569 = vld [vmem:[%s426 + $0x38] sm:$0xf]
      %v570 = vld [vmem:[%s426 + $0x3c] sm:$0xf]
      %v571 = vld [vmem:[%s426 + $0x40] sm:$0xf]
      %v572 = vld [vmem:[%s426 + $0x44] sm:$0xf]
      %v573 = vld [vmem:[%s426 + $0x48] sm:$0xf]
      %v574 = vld [vmem:[%s426 + $0x4c] sm:$0xf]
      %v575 = vld [vmem:[%s426 + $0x50] sm:$0xf]
      %v576 = vld [vmem:[%s426 + $0x54] sm:$0xf]
      %v577 = vld [vmem:[%s426 + $0x58] sm:$0xf]
      %v578 = vld [vmem:[%s426 + $0x5c] sm:$0xf]
      %v579 = vld [vmem:[%s426 + $0x60] sm:$0xf]
      %v580 = vld [vmem:[%s426 + $0x64] sm:$0xf]
      %v581 = vld [vmem:[%s426 + $0x68] sm:$0xf]
      %v582 = vld [vmem:[%s426 + $0x6c] sm:$0xf]
      %v583 = vld [vmem:[%s426 + $0x70] sm:$0xf]
      %v584 = vld [vmem:[%s426 + $0x74] sm:$0xf]
      %v585 = vld [vmem:[%s426 + $0x78] sm:$0xf]
      %v586 = vld [vmem:[%s426 + $0x7c] sm:$0xf]
      %vm587 = vcmask 27648
      %v590 = vsel %vm587, %v555, 4286644096
      %v593 = vsel %vm587, %v557, 4286644096
      %v595 = vmax.bf16 %v590, %v593
      %v597 = vsel %vm587, %v556, 4286644096
      %v600 = vsel %vm587, %v558, 4286644096
      %v602 = vmax.bf16 %v597, %v600
      %v604 = vsel %vm587, %v559, 4286644096
      %v607 = vsel %vm587, %v561, 4286644096
      %v609 = vmax.bf16 %v604, %v607
      %v611 = vsel %vm587, %v560, 4286644096
      %v614 = vsel %vm587, %v562, 4286644096
      %v616 = vmax.bf16 %v611, %v614
      %v618 = vsel %vm587, %v563, 4286644096
      %v621 = vsel %vm587, %v565, 4286644096
      %v623 = vmax.bf16 %v618, %v621
      %v625 = vsel %vm587, %v564, 4286644096
      %v628 = vsel %vm587, %v566, 4286644096
      %v630 = vmax.bf16 %v625, %v628
      %v632 = vsel %vm587, %v567, 4286644096
      %v635 = vsel %vm587, %v569, 4286644096
      %v637 = vmax.bf16 %v632, %v635
      %v639 = vsel %vm587, %v568, 4286644096
      %v642 = vsel %vm587, %v570, 4286644096
      %v644 = vmax.bf16 %v639, %v642
      %v646 = vsel %vm587, %v571, 4286644096
      %v649 = vsel %vm587, %v573, 4286644096
      %v651 = vmax.bf16 %v646, %v649
      %v653 = vsel %vm587, %v572, 4286644096
      %v656 = vsel %vm587, %v574, 4286644096
      %v658 = vmax.bf16 %v653, %v656
      %v660 = vsel %vm587, %v575, 4286644096
      %v663 = vsel %vm587, %v577, 4286644096
      %v665 = vmax.bf16 %v660, %v663
      %v667 = vsel %vm587, %v576, 4286644096
      %v670 = vsel %vm587, %v578, 4286644096
      %v672 = vmax.bf16 %v667, %v670
      %v674 = vsel %vm587, %v579, 4286644096
      %v677 = vsel %vm587, %v581, 4286644096
      %v679 = vmax.bf16 %v674, %v677
      %v681 = vsel %vm587, %v580, 4286644096
      %v684 = vsel %vm587, %v582, 4286644096
      %v686 = vmax.bf16 %v681, %v684
      %v688 = vsel %vm587, %v583, 4286644096
      %v691 = vsel %vm587, %v585, 4286644096
      %v693 = vmax.bf16 %v688, %v691
      %v695 = vsel %vm587, %v584, 4286644096
      %v698 = vsel %vm587, %v586, 4286644096
      %v700 = vmax.bf16 %v695, %v698
      %v718 = vunpack.c.l.s4 1966171168
      %v719 = vunpack.c.0.s8 %v718
      %v720 = vlaneseq
      %v721 = vshrl.u32 %v720, 7
      %v722 = vsub.s32 %v719, %v721
      %v723 = vrot.slane %v595, %v722
      %v724 = vcombine.high %v723, %v723
      %v726 = vunpack.c.l.s4 1966171168
      %v727 = vunpack.c.0.s8 %v726
      %v728 = vlaneseq
      %v729 = vshrl.u32 %v728, 7
      %v730 = vsub.s32 %v727, %v729
      %v731 = vrot.slane %v723, %v730
      %v733 = vunpack.c.l.s4 1966171168
      %v734 = vunpack.c.0.s8 %v733
      %v735 = vlaneseq
      %v736 = vshrl.u32 %v735, 7
      %v737 = vsub.s32 %v734, %v736
      %v738 = vrot.slane %v724, %v737
      %v739 = vcombine.high %v731, %v731
      %v740 = vcombine.high %v738, %v738
      %v742 = vunpack.c.l.s4 1966171168
      %v743 = vunpack.c.0.s8 %v742
      %v744 = vlaneseq
      %v745 = vshrl.u32 %v744, 7
      %v746 = vsub.s32 %v743, %v745
      %v747 = vrot.slane %v602, %v746
      %v748 = vcombine.high %v747, %v747
      %v750 = vunpack.c.l.s4 1966171168
      %v751 = vunpack.c.0.s8 %v750
      %v752 = vlaneseq
      %v753 = vshrl.u32 %v752, 7
      %v754 = vsub.s32 %v751, %v753
      %v755 = vrot.slane %v747, %v754
      %v757 = vunpack.c.l.s4 1966171168
      %v758 = vunpack.c.0.s8 %v757
      %v759 = vlaneseq
      %v760 = vshrl.u32 %v759, 7
      %v761 = vsub.s32 %v758, %v760
      %v762 = vrot.slane %v748, %v761
      %v763 = vcombine.high %v755, %v755
      %v764 = vcombine.high %v762, %v762
      %v766 = vunpack.c.l.s4 1966171168
      %v767 = vunpack.c.0.s8 %v766
      %v768 = vlaneseq
      %v769 = vshrl.u32 %v768, 7
      %v770 = vsub.s32 %v767, %v769
      %v771 = vrot.slane %v609, %v770
      %v772 = vcombine.high %v771, %v771
      %v774 = vunpack.c.l.s4 1966171168
      %v775 = vunpack.c.0.s8 %v774
      %v776 = vlaneseq
      %v777 = vshrl.u32 %v776, 7
      %v778 = vsub.s32 %v775, %v777
      %v779 = vrot.slane %v771, %v778
      %v781 = vunpack.c.l.s4 1966171168
      %v782 = vunpack.c.0.s8 %v781
      %v783 = vlaneseq
      %v784 = vshrl.u32 %v783, 7
      %v785 = vsub.s32 %v782, %v784
      %v786 = vrot.slane %v772, %v785
      %v787 = vcombine.high %v779, %v779
      %v788 = vcombine.high %v786, %v786
      %v790 = vunpack.c.l.s4 1966171168
      %v791 = vunpack.c.0.s8 %v790
      %v792 = vlaneseq
      %v793 = vshrl.u32 %v792, 7
      %v794 = vsub.s32 %v791, %v793
      %v795 = vrot.slane %v616, %v794
      %v796 = vcombine.high %v795, %v795
      %v798 = vunpack.c.l.s4 1966171168
      %v799 = vunpack.c.0.s8 %v798
      %v800 = vlaneseq
      %v801 = vshrl.u32 %v800, 7
      %v802 = vsub.s32 %v799, %v801
      %v803 = vrot.slane %v795, %v802
      %v805 = vunpack.c.l.s4 1966171168
      %v806 = vunpack.c.0.s8 %v805
      %v807 = vlaneseq
      %v808 = vshrl.u32 %v807, 7
      %v809 = vsub.s32 %v806, %v808
      %v810 = vrot.slane %v796, %v809
      %v811 = vcombine.high %v803, %v803
      %v812 = vcombine.high %v810, %v810
      %v814 = vunpack.c.l.s4 1966171168
      %v815 = vunpack.c.0.s8 %v814
      %v816 = vlaneseq
      %v817 = vshrl.u32 %v816, 7
      %v818 = vsub.s32 %v815, %v817
      %v819 = vrot.slane %v623, %v818
      %v820 = vcombine.high %v819, %v819
      %v822 = vunpack.c.l.s4 1966171168
      %v823 = vunpack.c.0.s8 %v822
      %v824 = vlaneseq
      %v825 = vshrl.u32 %v824, 7
      %v826 = vsub.s32 %v823, %v825
      %v827 = vrot.slane %v819, %v826
      %v829 = vunpack.c.l.s4 1966171168
      %v830 = vunpack.c.0.s8 %v829
      %v831 = vlaneseq
      %v832 = vshrl.u32 %v831, 7
      %v833 = vsub.s32 %v830, %v832
      %v834 = vrot.slane %v820, %v833
      %v835 = vcombine.high %v827, %v827
      %v836 = vcombine.high %v834, %v834
      %v838 = vunpack.c.l.s4 1966171168
      %v839 = vunpack.c.0.s8 %v838
      %v840 = vlaneseq
      %v841 = vshrl.u32 %v840, 7
      %v842 = vsub.s32 %v839, %v841
      %v843 = vrot.slane %v630, %v842
      %v844 = vcombine.high %v843, %v843
      %v846 = vunpack.c.l.s4 1966171168
      %v847 = vunpack.c.0.s8 %v846
      %v848 = vlaneseq
      %v849 = vshrl.u32 %v848, 7
      %v850 = vsub.s32 %v847, %v849
      %v851 = vrot.slane %v843, %v850
      %v853 = vunpack.c.l.s4 1966171168
      %v854 = vunpack.c.0.s8 %v853
      %v855 = vlaneseq
      %v856 = vshrl.u32 %v855, 7
      %v857 = vsub.s32 %v854, %v856
      %v858 = vrot.slane %v844, %v857
      %v859 = vcombine.high %v851, %v851
      %v860 = vcombine.high %v858, %v858
      %v862 = vunpack.c.l.s4 1966171168
      %v863 = vunpack.c.0.s8 %v862
      %v864 = vlaneseq
      %v865 = vshrl.u32 %v864, 7
      %v866 = vsub.s32 %v863, %v865
      %v867 = vrot.slane %v637, %v866
      %v868 = vcombine.high %v867, %v867
      %v870 = vunpack.c.l.s4 1966171168
      %v871 = vunpack.c.0.s8 %v870
      %v872 = vlaneseq
      %v873 = vshrl.u32 %v872, 7
      %v874 = vsub.s32 %v871, %v873
      %v875 = vrot.slane %v867, %v874
      %v877 = vunpack.c.l.s4 1966171168
      %v878 = vunpack.c.0.s8 %v877
      %v879 = vlaneseq
      %v880 = vshrl.u32 %v879, 7
      %v881 = vsub.s32 %v878, %v880
      %v882 = vrot.slane %v868, %v881
      %v883 = vcombine.high %v875, %v875
      %v884 = vcombine.high %v882, %v882
      %v886 = vunpack.c.l.s4 1966171168
      %v887 = vunpack.c.0.s8 %v886
      %v888 = vlaneseq
      %v889 = vshrl.u32 %v888, 7
      %v890 = vsub.s32 %v887, %v889
      %v891 = vrot.slane %v644, %v890
      %v892 = vcombine.high %v891, %v891
      %v894 = vunpack.c.l.s4 1966171168
      %v895 = vunpack.c.0.s8 %v894
      %v896 = vlaneseq
      %v897 = vshrl.u32 %v896, 7
      %v898 = vsub.s32 %v895, %v897
      %v899 = vrot.slane %v891, %v898
      %v901 = vunpack.c.l.s4 1966171168
      %v902 = vunpack.c.0.s8 %v901
      %v903 = vlaneseq
      %v904 = vshrl.u32 %v903, 7
      %v905 = vsub.s32 %v902, %v904
      %v906 = vrot.slane %v892, %v905
      %v907 = vcombine.high %v899, %v899
      %v908 = vcombine.high %v906, %v906
      %v910 = vunpack.c.l.s4 1966171168
      %v911 = vunpack.c.0.s8 %v910
      %v912 = vlaneseq
      %v913 = vshrl.u32 %v912, 7
      %v914 = vsub.s32 %v911, %v913
      %v915 = vrot.slane %v651, %v914
      %v916 = vcombine.high %v915, %v915
      %v918 = vunpack.c.l.s4 1966171168
      %v919 = vunpack.c.0.s8 %v918
      %v920 = vlaneseq
      %v921 = vshrl.u32 %v920, 7
      %v922 = vsub.s32 %v919, %v921
      %v923 = vrot.slane %v915, %v922
      %v925 = vunpack.c.l.s4 1966171168
      %v926 = vunpack.c.0.s8 %v925
      %v927 = vlaneseq
      %v928 = vshrl.u32 %v927, 7
      %v929 = vsub.s32 %v926, %v928
      %v930 = vrot.slane %v916, %v929
      %v931 = vcombine.high %v923, %v923
      %v932 = vcombine.high %v930, %v930
      %v934 = vunpack.c.l.s4 1966171168
      %v935 = vunpack.c.0.s8 %v934
      %v936 = vlaneseq
      %v937 = vshrl.u32 %v936, 7
      %v938 = vsub.s32 %v935, %v937
      %v939 = vrot.slane %v658, %v938
      %v940 = vcombine.high %v939, %v939
      %v942 = vunpack.c.l.s4 1966171168
      %v943 = vunpack.c.0.s8 %v942
      %v944 = vlaneseq
      %v945 = vshrl.u32 %v944, 7
      %v946 = vsub.s32 %v943, %v945
      %v947 = vrot.slane %v939, %v946
      %v949 = vunpack.c.l.s4 1966171168
      %v950 = vunpack.c.0.s8 %v949
      %v951 = vlaneseq
      %v952 = vshrl.u32 %v951, 7
      %v953 = vsub.s32 %v950, %v952
      %v954 = vrot.slane %v940, %v953
      %v955 = vcombine.high %v947, %v947
      %v956 = vcombine.high %v954, %v954
      %v958 = vunpack.c.l.s4 1966171168
      %v959 = vunpack.c.0.s8 %v958
      %v960 = vlaneseq
      %v961 = vshrl.u32 %v960, 7
      %v962 = vsub.s32 %v959, %v961
      %v963 = vrot.slane %v665, %v962
      %v964 = vcombine.high %v963, %v963
      %v966 = vunpack.c.l.s4 1966171168
      %v967 = vunpack.c.0.s8 %v966
      %v968 = vlaneseq
      %v969 = vshrl.u32 %v968, 7
      %v970 = vsub.s32 %v967, %v969
      %v971 = vrot.slane %v963, %v970
      %v973 = vunpack.c.l.s4 1966171168
      %v974 = vunpack.c.0.s8 %v973
      %v975 = vlaneseq
      %v976 = vshrl.u32 %v975, 7
      %v977 = vsub.s32 %v974, %v976
      %v978 = vrot.slane %v964, %v977
      %v979 = vcombine.high %v971, %v971
      %v980 = vcombine.high %v978, %v978
      %v982 = vunpack.c.l.s4 1966171168
      %v983 = vunpack.c.0.s8 %v982
      %v984 = vlaneseq
      %v985 = vshrl.u32 %v984, 7
      %v986 = vsub.s32 %v983, %v985
      %v987 = vrot.slane %v672, %v986
      %v988 = vcombine.high %v987, %v987
      %v990 = vunpack.c.l.s4 1966171168
      %v991 = vunpack.c.0.s8 %v990
      %v992 = vlaneseq
      %v993 = vshrl.u32 %v992, 7
      %v994 = vsub.s32 %v991, %v993
      %v995 = vrot.slane %v987, %v994
      %v997 = vunpack.c.l.s4 1966171168
      %v998 = vunpack.c.0.s8 %v997
      %v999 = vlaneseq
      %v1000 = vshrl.u32 %v999, 7
      %v1001 = vsub.s32 %v998, %v1000
      %v1002 = vrot.slane %v988, %v1001
      %v1003 = vcombine.high %v995, %v995
      %v1004 = vcombine.high %v1002, %v1002
      %v1006 = vunpack.c.l.s4 1966171168
      %v1007 = vunpack.c.0.s8 %v1006
      %v1008 = vlaneseq
      %v1009 = vshrl.u32 %v1008, 7
      %v1010 = vsub.s32 %v1007, %v1009
      %v1011 = vrot.slane %v679, %v1010
      %v1012 = vcombine.high %v1011, %v1011
      %v1014 = vunpack.c.l.s4 1966171168
      %v1015 = vunpack.c.0.s8 %v1014
      %v1016 = vlaneseq
      %v1017 = vshrl.u32 %v1016, 7
      %v1018 = vsub.s32 %v1015, %v1017
      %v1019 = vrot.slane %v1011, %v1018
      %v1021 = vunpack.c.l.s4 1966171168
      %v1022 = vunpack.c.0.s8 %v1021
      %v1023 = vlaneseq
      %v1024 = vshrl.u32 %v1023, 7
      %v1025 = vsub.s32 %v1022, %v1024
      %v1026 = vrot.slane %v1012, %v1025
      %v1027 = vcombine.high %v1019, %v1019
      %v1028 = vcombine.high %v1026, %v1026
      %v1030 = vunpack.c.l.s4 1966171168
      %v1031 = vunpack.c.0.s8 %v1030
      %v1032 = vlaneseq
      %v1033 = vshrl.u32 %v1032, 7
      %v1034 = vsub.s32 %v1031, %v1033
      %v1035 = vrot.slane %v686, %v1034
      %v1036 = vcombine.high %v1035, %v1035
      %v1038 = vunpack.c.l.s4 1966171168
      %v1039 = vunpack.c.0.s8 %v1038
      %v1040 = vlaneseq
      %v1041 = vshrl.u32 %v1040, 7
      %v1042 = vsub.s32 %v1039, %v1041
      %v1043 = vrot.slane %v1035, %v1042
      %v1045 = vunpack.c.l.s4 1966171168
      %v1046 = vunpack.c.0.s8 %v1045
      %v1047 = vlaneseq
      %v1048 = vshrl.u32 %v1047, 7
      %v1049 = vsub.s32 %v1046, %v1048
      %v1050 = vrot.slane %v1036, %v1049
      %v1051 = vcombine.high %v1043, %v1043
      %v1052 = vcombine.high %v1050, %v1050
      %v1054 = vunpack.c.l.s4 1966171168
      %v1055 = vunpack.c.0.s8 %v1054
      %v1056 = vlaneseq
      %v1057 = vshrl.u32 %v1056, 7
      %v1058 = vsub.s32 %v1055, %v1057
      %v1059 = vrot.slane %v693, %v1058
      %v1060 = vcombine.high %v1059, %v1059
      %v1062 = vunpack.c.l.s4 1966171168
      %v1063 = vunpack.c.0.s8 %v1062
      %v1064 = vlaneseq
      %v1065 = vshrl.u32 %v1064, 7
      %v1066 = vsub.s32 %v1063, %v1065
      %v1067 = vrot.slane %v1059, %v1066
      %v1069 = vunpack.c.l.s4 1966171168
      %v1070 = vunpack.c.0.s8 %v1069
      %v1071 = vlaneseq
      %v1072 = vshrl.u32 %v1071, 7
      %v1073 = vsub.s32 %v1070, %v1072
      %v1074 = vrot.slane %v1060, %v1073
      %v1075 = vcombine.high %v1067, %v1067
      %v1076 = vcombine.high %v1074, %v1074
      %v1078 = vunpack.c.l.s4 1966171168
      %v1079 = vunpack.c.0.s8 %v1078
      %v1080 = vlaneseq
      %v1081 = vshrl.u32 %v1080, 7
      %v1082 = vsub.s32 %v1079, %v1081
      %v1083 = vrot.slane %v700, %v1082
      %v1084 = vcombine.high %v1083, %v1083
      %v1086 = vunpack.c.l.s4 1966171168
      %v1087 = vunpack.c.0.s8 %v1086
      %v1088 = vlaneseq
      %v1089 = vshrl.u32 %v1088, 7
      %v1090 = vsub.s32 %v1087, %v1089
      %v1091 = vrot.slane %v1083, %v1090
      %v1093 = vunpack.c.l.s4 1966171168
      %v1094 = vunpack.c.0.s8 %v1093
      %v1095 = vlaneseq
      %v1096 = vshrl.u32 %v1095, 7
      %v1097 = vsub.s32 %v1094, %v1096
      %v1098 = vrot.slane %v1084, %v1097
      %v1099 = vcombine.high %v1091, %v1091
      %v1100 = vcombine.high %v1098, %v1098
      %vm1101 = vcmask 24576
      %v1103 = vsel %vm1101, %v731, 4286644096
      %v1105 = vunpack.i.l.bf16 %v1103
      %v1106 = vunpack.i.h.bf16 %v1103
      %v1107 = vmax.f32 %v1105, %v1106
      %v1108 = vrot.slane %v1107, 4
      %v1109 = vmax.f32 %v1107, %v1108
      %v1110 = vrot.slane %v1109, 2
      %v1111 = vmax.f32 %v1109, %v1110
      %v1112 = vrot.slane %v1111, 1
      %v1113 = vmax.f32 %v1111, %v1112
      %v1114 = vpack.i.bf16 %v1113, %v1113
      %v1116 = vsel %vm1101, %v738, 4286644096
      %v1118 = vunpack.i.l.bf16 %v1116
      %v1119 = vunpack.i.h.bf16 %v1116
      %v1120 = vmax.f32 %v1118, %v1119
      %v1121 = vrot.slane %v1120, 4
      %v1122 = vmax.f32 %v1120, %v1121
      %v1123 = vrot.slane %v1122, 2
      %v1124 = vmax.f32 %v1122, %v1123
      %v1125 = vrot.slane %v1124, 1
      %v1126 = vmax.f32 %v1124, %v1125
      %v1127 = vpack.i.bf16 %v1126, %v1126
      %v1129 = vsel %vm1101, %v739, 4286644096
      %v1131 = vunpack.i.l.bf16 %v1129
      %v1132 = vunpack.i.h.bf16 %v1129
      %v1133 = vmax.f32 %v1131, %v1132
      %v1134 = vrot.slane %v1133, 4
      %v1135 = vmax.f32 %v1133, %v1134
      %v1136 = vrot.slane %v1135, 2
      %v1137 = vmax.f32 %v1135, %v1136
      %v1138 = vrot.slane %v1137, 1
      %v1139 = vmax.f32 %v1137, %v1138
      %v1140 = vpack.i.bf16 %v1139, %v1139
      %v1142 = vsel %vm1101, %v740, 4286644096
      %v1144 = vunpack.i.l.bf16 %v1142
      %v1145 = vunpack.i.h.bf16 %v1142
      %v1146 = vmax.f32 %v1144, %v1145
      %v1147 = vrot.slane %v1146, 4
      %v1148 = vmax.f32 %v1146, %v1147
      %v1149 = vrot.slane %v1148, 2
      %v1150 = vmax.f32 %v1148, %v1149
      %v1151 = vrot.slane %v1150, 1
      %v1152 = vmax.f32 %v1150, %v1151
      %v1153 = vpack.i.bf16 %v1152, %v1152
      %v1155 = vsel %vm1101, %v755, 4286644096
      %v1157 = vunpack.i.l.bf16 %v1155
      %v1158 = vunpack.i.h.bf16 %v1155
      %v1159 = vmax.f32 %v1157, %v1158
      %v1160 = vrot.slane %v1159, 4
      %v1161 = vmax.f32 %v1159, %v1160
      %v1162 = vrot.slane %v1161, 2
      %v1163 = vmax.f32 %v1161, %v1162
      %v1164 = vrot.slane %v1163, 1
      %v1165 = vmax.f32 %v1163, %v1164
      %v1166 = vpack.i.bf16 %v1165, %v1165
      %v1168 = vsel %vm1101, %v762, 4286644096
      %v1170 = vunpack.i.l.bf16 %v1168
      %v1171 = vunpack.i.h.bf16 %v1168
      %v1172 = vmax.f32 %v1170, %v1171
      %v1173 = vrot.slane %v1172, 4
      %v1174 = vmax.f32 %v1172, %v1173
      %v1175 = vrot.slane %v1174, 2
      %v1176 = vmax.f32 %v1174, %v1175
      %v1177 = vrot.slane %v1176, 1
      %v1178 = vmax.f32 %v1176, %v1177
      %v1179 = vpack.i.bf16 %v1178, %v1178
      %v1181 = vsel %vm1101, %v763, 4286644096
      %v1183 = vunpack.i.l.bf16 %v1181
      %v1184 = vunpack.i.h.bf16 %v1181
      %v1185 = vmax.f32 %v1183, %v1184
      %v1186 = vrot.slane %v1185, 4
      %v1187 = vmax.f32 %v1185, %v1186
      %v1188 = vrot.slane %v1187, 2
      %v1189 = vmax.f32 %v1187, %v1188
      %v1190 = vrot.slane %v1189, 1
      %v1191 = vmax.f32 %v1189, %v1190
      %v1192 = vpack.i.bf16 %v1191, %v1191
      %v1194 = vsel %vm1101, %v764, 4286644096
      %v1196 = vunpack.i.l.bf16 %v1194
      %v1197 = vunpack.i.h.bf16 %v1194
      %v1198 = vmax.f32 %v1196, %v1197
      %v1199 = vrot.slane %v1198, 4
      %v1200 = vmax.f32 %v1198, %v1199
      %v1201 = vrot.slane %v1200, 2
      %v1202 = vmax.f32 %v1200, %v1201
      %v1203 = vrot.slane %v1202, 1
      %v1204 = vmax.f32 %v1202, %v1203
      %v1205 = vpack.i.bf16 %v1204, %v1204
      %v1207 = vsel %vm1101, %v779, 4286644096
      %v1209 = vunpack.i.l.bf16 %v1207
      %v1210 = vunpack.i.h.bf16 %v1207
      %v1211 = vmax.f32 %v1209, %v1210
      %v1212 = vrot.slane %v1211, 4
      %v1213 = vmax.f32 %v1211, %v1212
      %v1214 = vrot.slane %v1213, 2
      %v1215 = vmax.f32 %v1213, %v1214
      %v1216 = vrot.slane %v1215, 1
      %v1217 = vmax.f32 %v1215, %v1216
      %v1218 = vpack.i.bf16 %v1217, %v1217
      %v1220 = vsel %vm1101, %v786, 4286644096
      %v1222 = vunpack.i.l.bf16 %v1220
      %v1223 = vunpack.i.h.bf16 %v1220
      %v1224 = vmax.f32 %v1222, %v1223
      %v1225 = vrot.slane %v1224, 4
      %v1226 = vmax.f32 %v1224, %v1225
      %v1227 = vrot.slane %v1226, 2
      %v1228 = vmax.f32 %v1226, %v1227
      %v1229 = vrot.slane %v1228, 1
      %v1230 = vmax.f32 %v1228, %v1229
      %v1231 = vpack.i.bf16 %v1230, %v1230
      %v1233 = vsel %vm1101, %v787, 4286644096
      %v1235 = vunpack.i.l.bf16 %v1233
      %v1236 = vunpack.i.h.bf16 %v1233
      %v1237 = vmax.f32 %v1235, %v1236
      %v1238 = vrot.slane %v1237, 4
      %v1239 = vmax.f32 %v1237, %v1238
      %v1240 = vrot.slane %v1239, 2
      %v1241 = vmax.f32 %v1239, %v1240
      %v1242 = vrot.slane %v1241, 1
      %v1243 = vmax.f32 %v1241, %v1242
      %v1244 = vpack.i.bf16 %v1243, %v1243
      %v1246 = vsel %vm1101, %v788, 4286644096
      %v1248 = vunpack.i.l.bf16 %v1246
      %v1249 = vunpack.i.h.bf16 %v1246
      %v1250 = vmax.f32 %v1248, %v1249
      %v1251 = vrot.slane %v1250, 4
      %v1252 = vmax.f32 %v1250, %v1251
      %v1253 = vrot.slane %v1252, 2
      %v1254 = vmax.f32 %v1252, %v1253
      %v1255 = vrot.slane %v1254, 1
      %v1256 = vmax.f32 %v1254, %v1255
      %v1257 = vpack.i.bf16 %v1256, %v1256
      %v1259 = vsel %vm1101, %v803, 4286644096
      %v1261 = vunpack.i.l.bf16 %v1259
      %v1262 = vunpack.i.h.bf16 %v1259
      %v1263 = vmax.f32 %v1261, %v1262
      %v1264 = vrot.slane %v1263, 4
      %v1265 = vmax.f32 %v1263, %v1264
      %v1266 = vrot.slane %v1265, 2
      %v1267 = vmax.f32 %v1265, %v1266
      %v1268 = vrot.slane %v1267, 1
      %v1269 = vmax.f32 %v1267, %v1268
      %v1270 = vpack.i.bf16 %v1269, %v1269
      %v1272 = vsel %vm1101, %v810, 4286644096
      %v1274 = vunpack.i.l.bf16 %v1272
      %v1275 = vunpack.i.h.bf16 %v1272
      %v1276 = vmax.f32 %v1274, %v1275
      %v1277 = vrot.slane %v1276, 4
      %v1278 = vmax.f32 %v1276, %v1277
      %v1279 = vrot.slane %v1278, 2
      %v1280 = vmax.f32 %v1278, %v1279
      %v1281 = vrot.slane %v1280, 1
      %v1282 = vmax.f32 %v1280, %v1281
      %v1283 = vpack.i.bf16 %v1282, %v1282
      %v1285 = vsel %vm1101, %v811, 4286644096
      %v1287 = vunpack.i.l.bf16 %v1285
      %v1288 = vunpack.i.h.bf16 %v1285
      %v1289 = vmax.f32 %v1287, %v1288
      %v1290 = vrot.slane %v1289, 4
      %v1291 = vmax.f32 %v1289, %v1290
      %v1292 = vrot.slane %v1291, 2
      %v1293 = vmax.f32 %v1291, %v1292
      %v1294 = vrot.slane %v1293, 1
      %v1295 = vmax.f32 %v1293, %v1294
      %v1296 = vpack.i.bf16 %v1295, %v1295
      %v1298 = vsel %vm1101, %v812, 4286644096
      %v1300 = vunpack.i.l.bf16 %v1298
      %v1301 = vunpack.i.h.bf16 %v1298
      %v1302 = vmax.f32 %v1300, %v1301
      %v1303 = vrot.slane %v1302, 4
      %v1304 = vmax.f32 %v1302, %v1303
      %v1305 = vrot.slane %v1304, 2
      %v1306 = vmax.f32 %v1304, %v1305
      %v1307 = vrot.slane %v1306, 1
      %v1308 = vmax.f32 %v1306, %v1307
      %v1309 = vpack.i.bf16 %v1308, %v1308
      %v1311 = vsel %vm1101, %v827, 4286644096
      %v1313 = vunpack.i.l.bf16 %v1311
      %v1314 = vunpack.i.h.bf16 %v1311
      %v1315 = vmax.f32 %v1313, %v1314
      %v1316 = vrot.slane %v1315, 4
      %v1317 = vmax.f32 %v1315, %v1316
      %v1318 = vrot.slane %v1317, 2
      %v1319 = vmax.f32 %v1317, %v1318
      %v1320 = vrot.slane %v1319, 1
      %v1321 = vmax.f32 %v1319, %v1320
      %v1322 = vpack.i.bf16 %v1321, %v1321
      %v1324 = vsel %vm1101, %v834, 4286644096
      %v1326 = vunpack.i.l.bf16 %v1324
      %v1327 = vunpack.i.h.bf16 %v1324
      %v1328 = vmax.f32 %v1326, %v1327
      %v1329 = vrot.slane %v1328, 4
      %v1330 = vmax.f32 %v1328, %v1329
      %v1331 = vrot.slane %v1330, 2
      %v1332 = vmax.f32 %v1330, %v1331
      %v1333 = vrot.slane %v1332, 1
      %v1334 = vmax.f32 %v1332, %v1333
      %v1335 = vpack.i.bf16 %v1334, %v1334
      %v1337 = vsel %vm1101, %v835, 4286644096
      %v1339 = vunpack.i.l.bf16 %v1337
      %v1340 = vunpack.i.h.bf16 %v1337
      %v1341 = vmax.f32 %v1339, %v1340
      %v1342 = vrot.slane %v1341, 4
      %v1343 = vmax.f32 %v1341, %v1342
      %v1344 = vrot.slane %v1343, 2
      %v1345 = vmax.f32 %v1343, %v1344
      %v1346 = vrot.slane %v1345, 1
      %v1347 = vmax.f32 %v1345, %v1346
      %v1348 = vpack.i.bf16 %v1347, %v1347
      %v1350 = vsel %vm1101, %v836, 4286644096
      %v1352 = vunpack.i.l.bf16 %v1350
      %v1353 = vunpack.i.h.bf16 %v1350
      %v1354 = vmax.f32 %v1352, %v1353
      %v1355 = vrot.slane %v1354, 4
      %v1356 = vmax.f32 %v1354, %v1355
      %v1357 = vrot.slane %v1356, 2
      %v1358 = vmax.f32 %v1356, %v1357
      %v1359 = vrot.slane %v1358, 1
      %v1360 = vmax.f32 %v1358, %v1359
      %v1361 = vpack.i.bf16 %v1360, %v1360
      %v1363 = vsel %vm1101, %v851, 4286644096
      %v1365 = vunpack.i.l.bf16 %v1363
      %v1366 = vunpack.i.h.bf16 %v1363
      %v1367 = vmax.f32 %v1365, %v1366
      %v1368 = vrot.slane %v1367, 4
      %v1369 = vmax.f32 %v1367, %v1368
      %v1370 = vrot.slane %v1369, 2
      %v1371 = vmax.f32 %v1369, %v1370
      %v1372 = vrot.slane %v1371, 1
      %v1373 = vmax.f32 %v1371, %v1372
      %v1374 = vpack.i.bf16 %v1373, %v1373
      %v1376 = vsel %vm1101, %v858, 4286644096
      %v1378 = vunpack.i.l.bf16 %v1376
      %v1379 = vunpack.i.h.bf16 %v1376
      %v1380 = vmax.f32 %v1378, %v1379
      %v1381 = vrot.slane %v1380, 4
      %v1382 = vmax.f32 %v1380, %v1381
      %v1383 = vrot.slane %v1382, 2
      %v1384 = vmax.f32 %v1382, %v1383
      %v1385 = vrot.slane %v1384, 1
      %v1386 = vmax.f32 %v1384, %v1385
      %v1387 = vpack.i.bf16 %v1386, %v1386
      %v1389 = vsel %vm1101, %v859, 4286644096
      %v1391 = vunpack.i.l.bf16 %v1389
      %v1392 = vunpack.i.h.bf16 %v1389
      %v1393 = vmax.f32 %v1391, %v1392
      %v1394 = vrot.slane %v1393, 4
      %v1395 = vmax.f32 %v1393, %v1394
      %v1396 = vrot.slane %v1395, 2
      %v1397 = vmax.f32 %v1395, %v1396
      %v1398 = vrot.slane %v1397, 1
      %v1399 = vmax.f32 %v1397, %v1398
      %v1400 = vpack.i.bf16 %v1399, %v1399
      %v1402 = vsel %vm1101, %v860, 4286644096
      %v1404 = vunpack.i.l.bf16 %v1402
      %v1405 = vunpack.i.h.bf16 %v1402
      %v1406 = vmax.f32 %v1404, %v1405
      %v1407 = vrot.slane %v1406, 4
      %v1408 = vmax.f32 %v1406, %v1407
      %v1409 = vrot.slane %v1408, 2
      %v1410 = vmax.f32 %v1408, %v1409
      %v1411 = vrot.slane %v1410, 1
      %v1412 = vmax.f32 %v1410, %v1411
      %v1413 = vpack.i.bf16 %v1412, %v1412
      %v1415 = vsel %vm1101, %v875, 4286644096
      %v1417 = vunpack.i.l.bf16 %v1415
      %v1418 = vunpack.i.h.bf16 %v1415
      %v1419 = vmax.f32 %v1417, %v1418
      %v1420 = vrot.slane %v1419, 4
      %v1421 = vmax.f32 %v1419, %v1420
      %v1422 = vrot.slane %v1421, 2
      %v1423 = vmax.f32 %v1421, %v1422
      %v1424 = vrot.slane %v1423, 1
      %v1425 = vmax.f32 %v1423, %v1424
      %v1426 = vpack.i.bf16 %v1425, %v1425
      %v1428 = vsel %vm1101, %v882, 4286644096
      %v1430 = vunpack.i.l.bf16 %v1428
      %v1431 = vunpack.i.h.bf16 %v1428
      %v1432 = vmax.f32 %v1430, %v1431
      %v1433 = vrot.slane %v1432, 4
      %v1434 = vmax.f32 %v1432, %v1433
      %v1435 = vrot.slane %v1434, 2
      %v1436 = vmax.f32 %v1434, %v1435
      %v1437 = vrot.slane %v1436, 1
      %v1438 = vmax.f32 %v1436, %v1437
      %v1439 = vpack.i.bf16 %v1438, %v1438
      %v1441 = vsel %vm1101, %v883, 4286644096
      %v1443 = vunpack.i.l.bf16 %v1441
      %v1444 = vunpack.i.h.bf16 %v1441
      %v1445 = vmax.f32 %v1443, %v1444
      %v1446 = vrot.slane %v1445, 4
      %v1447 = vmax.f32 %v1445, %v1446
      %v1448 = vrot.slane %v1447, 2
      %v1449 = vmax.f32 %v1447, %v1448
      %v1450 = vrot.slane %v1449, 1
      %v1451 = vmax.f32 %v1449, %v1450
      %v1452 = vpack.i.bf16 %v1451, %v1451
      %v1454 = vsel %vm1101, %v884, 4286644096
      %v1456 = vunpack.i.l.bf16 %v1454
      %v1457 = vunpack.i.h.bf16 %v1454
      %v1458 = vmax.f32 %v1456, %v1457
      %v1459 = vrot.slane %v1458, 4
      %v1460 = vmax.f32 %v1458, %v1459
      %v1461 = vrot.slane %v1460, 2
      %v1462 = vmax.f32 %v1460, %v1461
      %v1463 = vrot.slane %v1462, 1
      %v1464 = vmax.f32 %v1462, %v1463
      %v1465 = vpack.i.bf16 %v1464, %v1464
      %v1467 = vsel %vm1101, %v899, 4286644096
      %v1469 = vunpack.i.l.bf16 %v1467
      %v1470 = vunpack.i.h.bf16 %v1467
      %v1471 = vmax.f32 %v1469, %v1470
      %v1472 = vrot.slane %v1471, 4
      %v1473 = vmax.f32 %v1471, %v1472
      %v1474 = vrot.slane %v1473, 2
      %v1475 = vmax.f32 %v1473, %v1474
      %v1476 = vrot.slane %v1475, 1
      %v1477 = vmax.f32 %v1475, %v1476
      %v1478 = vpack.i.bf16 %v1477, %v1477
      %v1480 = vsel %vm1101, %v906, 4286644096
      %v1482 = vunpack.i.l.bf16 %v1480
      %v1483 = vunpack.i.h.bf16 %v1480
      %v1484 = vmax.f32 %v1482, %v1483
      %v1485 = vrot.slane %v1484, 4
      %v1486 = vmax.f32 %v1484, %v1485
      %v1487 = vrot.slane %v1486, 2
      %v1488 = vmax.f32 %v1486, %v1487
      %v1489 = vrot.slane %v1488, 1
      %v1490 = vmax.f32 %v1488, %v1489
      %v1491 = vpack.i.bf16 %v1490, %v1490
      %v1493 = vsel %vm1101, %v907, 4286644096
      %v1495 = vunpack.i.l.bf16 %v1493
      %v1496 = vunpack.i.h.bf16 %v1493
      %v1497 = vmax.f32 %v1495, %v1496
      %v1498 = vrot.slane %v1497, 4
      %v1499 = vmax.f32 %v1497, %v1498
      %v1500 = vrot.slane %v1499, 2
      %v1501 = vmax.f32 %v1499, %v1500
      %v1502 = vrot.slane %v1501, 1
      %v1503 = vmax.f32 %v1501, %v1502
      %v1504 = vpack.i.bf16 %v1503, %v1503
      %v1506 = vsel %vm1101, %v908, 4286644096
      %v1508 = vunpack.i.l.bf16 %v1506
      %v1509 = vunpack.i.h.bf16 %v1506
      %v1510 = vmax.f32 %v1508, %v1509
      %v1511 = vrot.slane %v1510, 4
      %v1512 = vmax.f32 %v1510, %v1511
      %v1513 = vrot.slane %v1512, 2
      %v1514 = vmax.f32 %v1512, %v1513
      %v1515 = vrot.slane %v1514, 1
      %v1516 = vmax.f32 %v1514, %v1515
      %v1517 = vpack.i.bf16 %v1516, %v1516
      %v1519 = vsel %vm1101, %v923, 4286644096
      %v1521 = vunpack.i.l.bf16 %v1519
      %v1522 = vunpack.i.h.bf16 %v1519
      %v1523 = vmax.f32 %v1521, %v1522
      %v1524 = vrot.slane %v1523, 4
      %v1525 = vmax.f32 %v1523, %v1524
      %v1526 = vrot.slane %v1525, 2
      %v1527 = vmax.f32 %v1525, %v1526
      %v1528 = vrot.slane %v1527, 1
      %v1529 = vmax.f32 %v1527, %v1528
      %v1530 = vpack.i.bf16 %v1529, %v1529
      %v1532 = vsel %vm1101, %v930, 4286644096
      %v1534 = vunpack.i.l.bf16 %v1532
      %v1535 = vunpack.i.h.bf16 %v1532
      %v1536 = vmax.f32 %v1534, %v1535
      %v1537 = vrot.slane %v1536, 4
      %v1538 = vmax.f32 %v1536, %v1537
      %v1539 = vrot.slane %v1538, 2
      %v1540 = vmax.f32 %v1538, %v1539
      %v1541 = vrot.slane %v1540, 1
      %v1542 = vmax.f32 %v1540, %v1541
      %v1543 = vpack.i.bf16 %v1542, %v1542
      %v1545 = vsel %vm1101, %v931, 4286644096
      %v1547 = vunpack.i.l.bf16 %v1545
      %v1548 = vunpack.i.h.bf16 %v1545
      %v1549 = vmax.f32 %v1547, %v1548
      %v1550 = vrot.slane %v1549, 4
      %v1551 = vmax.f32 %v1549, %v1550
      %v1552 = vrot.slane %v1551, 2
      %v1553 = vmax.f32 %v1551, %v1552
      %v1554 = vrot.slane %v1553, 1
      %v1555 = vmax.f32 %v1553, %v1554
      %v1556 = vpack.i.bf16 %v1555, %v1555
      %v1558 = vsel %vm1101, %v932, 4286644096
      %v1560 = vunpack.i.l.bf16 %v1558
      %v1561 = vunpack.i.h.bf16 %v1558
      %v1562 = vmax.f32 %v1560, %v1561
      %v1563 = vrot.slane %v1562, 4
      %v1564 = vmax.f32 %v1562, %v1563
      %v1565 = vrot.slane %v1564, 2
      %v1566 = vmax.f32 %v1564, %v1565
      %v1567 = vrot.slane %v1566, 1
      %v1568 = vmax.f32 %v1566, %v1567
      %v1569 = vpack.i.bf16 %v1568, %v1568
      %v1571 = vsel %vm1101, %v947, 4286644096
      %v1573 = vunpack.i.l.bf16 %v1571
      %v1574 = vunpack.i.h.bf16 %v1571
      %v1575 = vmax.f32 %v1573, %v1574
      %v1576 = vrot.slane %v1575, 4
      %v1577 = vmax.f32 %v1575, %v1576
      %v1578 = vrot.slane %v1577, 2
      %v1579 = vmax.f32 %v1577, %v1578
      %v1580 = vrot.slane %v1579, 1
      %v1581 = vmax.f32 %v1579, %v1580
      %v1582 = vpack.i.bf16 %v1581, %v1581
      %v1584 = vsel %vm1101, %v954, 4286644096
      %v1586 = vunpack.i.l.bf16 %v1584
      %v1587 = vunpack.i.h.bf16 %v1584
      %v1588 = vmax.f32 %v1586, %v1587
      %v1589 = vrot.slane %v1588, 4
      %v1590 = vmax.f32 %v1588, %v1589
      %v1591 = vrot.slane %v1590, 2
      %v1592 = vmax.f32 %v1590, %v1591
      %v1593 = vrot.slane %v1592, 1
      %v1594 = vmax.f32 %v1592, %v1593
      %v1595 = vpack.i.bf16 %v1594, %v1594
      %v1597 = vsel %vm1101, %v955, 4286644096
      %v1599 = vunpack.i.l.bf16 %v1597
      %v1600 = vunpack.i.h.bf16 %v1597
      %v1601 = vmax.f32 %v1599, %v1600
      %v1602 = vrot.slane %v1601, 4
      %v1603 = vmax.f32 %v1601, %v1602
      %v1604 = vrot.slane %v1603, 2
      %v1605 = vmax.f32 %v1603, %v1604
      %v1606 = vrot.slane %v1605, 1
      %v1607 = vmax.f32 %v1605, %v1606
      %v1608 = vpack.i.bf16 %v1607, %v1607
      %v1610 = vsel %vm1101, %v956, 4286644096
      %v1612 = vunpack.i.l.bf16 %v1610
      %v1613 = vunpack.i.h.bf16 %v1610
      %v1614 = vmax.f32 %v1612, %v1613
      %v1615 = vrot.slane %v1614, 4
      %v1616 = vmax.f32 %v1614, %v1615
      %v1617 = vrot.slane %v1616, 2
      %v1618 = vmax.f32 %v1616, %v1617
      %v1619 = vrot.slane %v1618, 1
      %v1620 = vmax.f32 %v1618, %v1619
      %v1621 = vpack.i.bf16 %v1620, %v1620
      %v1623 = vsel %vm1101, %v971, 4286644096
      %v1625 = vunpack.i.l.bf16 %v1623
      %v1626 = vunpack.i.h.bf16 %v1623
      %v1627 = vmax.f32 %v1625, %v1626
      %v1628 = vrot.slane %v1627, 4
      %v1629 = vmax.f32 %v1627, %v1628
      %v1630 = vrot.slane %v1629, 2
      %v1631 = vmax.f32 %v1629, %v1630
      %v1632 = vrot.slane %v1631, 1
      %v1633 = vmax.f32 %v1631, %v1632
      %v1634 = vpack.i.bf16 %v1633, %v1633
      %v1636 = vsel %vm1101, %v978, 4286644096
      %v1638 = vunpack.i.l.bf16 %v1636
      %v1639 = vunpack.i.h.bf16 %v1636
      %v1640 = vmax.f32 %v1638, %v1639
      %v1641 = vrot.slane %v1640, 4
      %v1642 = vmax.f32 %v1640, %v1641
      %v1643 = vrot.slane %v1642, 2
      %v1644 = vmax.f32 %v1642, %v1643
      %v1645 = vrot.slane %v1644, 1
      %v1646 = vmax.f32 %v1644, %v1645
      %v1647 = vpack.i.bf16 %v1646, %v1646
      %v1649 = vsel %vm1101, %v979, 4286644096
      %v1651 = vunpack.i.l.bf16 %v1649
      %v1652 = vunpack.i.h.bf16 %v1649
      %v1653 = vmax.f32 %v1651, %v1652
      %v1654 = vrot.slane %v1653, 4
      %v1655 = vmax.f32 %v1653, %v1654
      %v1656 = vrot.slane %v1655, 2
      %v1657 = vmax.f32 %v1655, %v1656
      %v1658 = vrot.slane %v1657, 1
      %v1659 = vmax.f32 %v1657, %v1658
      %v1660 = vpack.i.bf16 %v1659, %v1659
      %v1662 = vsel %vm1101, %v980, 4286644096
      %v1664 = vunpack.i.l.bf16 %v1662
      %v1665 = vunpack.i.h.bf16 %v1662
      %v1666 = vmax.f32 %v1664, %v1665
      %v1667 = vrot.slane %v1666, 4
      %v1668 = vmax.f32 %v1666, %v1667
      %v1669 = vrot.slane %v1668, 2
      %v1670 = vmax.f32 %v1668, %v1669
      %v1671 = vrot.slane %v1670, 1
      %v1672 = vmax.f32 %v1670, %v1671
      %v1673 = vpack.i.bf16 %v1672, %v1672
      %v1675 = vsel %vm1101, %v995, 4286644096
      %v1677 = vunpack.i.l.bf16 %v1675
      %v1678 = vunpack.i.h.bf16 %v1675
      %v1679 = vmax.f32 %v1677, %v1678
      %v1680 = vrot.slane %v1679, 4
      %v1681 = vmax.f32 %v1679, %v1680
      %v1682 = vrot.slane %v1681, 2
      %v1683 = vmax.f32 %v1681, %v1682
      %v1684 = vrot.slane %v1683, 1
      %v1685 = vmax.f32 %v1683, %v1684
      %v1686 = vpack.i.bf16 %v1685, %v1685
      %v1688 = vsel %vm1101, %v1002, 4286644096
      %v1690 = vunpack.i.l.bf16 %v1688
      %v1691 = vunpack.i.h.bf16 %v1688
      %v1692 = vmax.f32 %v1690, %v1691
      %v1693 = vrot.slane %v1692, 4
      %v1694 = vmax.f32 %v1692, %v1693
      %v1695 = vrot.slane %v1694, 2
      %v1696 = vmax.f32 %v1694, %v1695
      %v1697 = vrot.slane %v1696, 1
      %v1698 = vmax.f32 %v1696, %v1697
      %v1699 = vpack.i.bf16 %v1698, %v1698
      %v1701 = vsel %vm1101, %v1003, 4286644096
      %v1703 = vunpack.i.l.bf16 %v1701
      %v1704 = vunpack.i.h.bf16 %v1701
      %v1705 = vmax.f32 %v1703, %v1704
      %v1706 = vrot.slane %v1705, 4
      %v1707 = vmax.f32 %v1705, %v1706
      %v1708 = vrot.slane %v1707, 2
      %v1709 = vmax.f32 %v1707, %v1708
      %v1710 = vrot.slane %v1709, 1
      %v1711 = vmax.f32 %v1709, %v1710
      %v1712 = vpack.i.bf16 %v1711, %v1711
      %v1714 = vsel %vm1101, %v1004, 4286644096
      %v1716 = vunpack.i.l.bf16 %v1714
      %v1717 = vunpack.i.h.bf16 %v1714
      %v1718 = vmax.f32 %v1716, %v1717
      %v1719 = vrot.slane %v1718, 4
      %v1720 = vmax.f32 %v1718, %v1719
      %v1721 = vrot.slane %v1720, 2
      %v1722 = vmax.f32 %v1720, %v1721
      %v1723 = vrot.slane %v1722, 1
      %v1724 = vmax.f32 %v1722, %v1723
      %v1725 = vpack.i.bf16 %v1724, %v1724
      %v1727 = vsel %vm1101, %v1019, 4286644096
      %v1729 = vunpack.i.l.bf16 %v1727
      %v1730 = vunpack.i.h.bf16 %v1727
      %v1731 = vmax.f32 %v1729, %v1730
      %v1732 = vrot.slane %v1731, 4
      %v1733 = vmax.f32 %v1731, %v1732
      %v1734 = vrot.slane %v1733, 2
      %v1735 = vmax.f32 %v1733, %v1734
      %v1736 = vrot.slane %v1735, 1
      %v1737 = vmax.f32 %v1735, %v1736
      %v1738 = vpack.i.bf16 %v1737, %v1737
      %v1740 = vsel %vm1101, %v1026, 4286644096
      %v1742 = vunpack.i.l.bf16 %v1740
      %v1743 = vunpack.i.h.bf16 %v1740
      %v1744 = vmax.f32 %v1742, %v1743
      %v1745 = vrot.slane %v1744, 4
      %v1746 = vmax.f32 %v1744, %v1745
      %v1747 = vrot.slane %v1746, 2
      %v1748 = vmax.f32 %v1746, %v1747
      %v1749 = vrot.slane %v1748, 1
      %v1750 = vmax.f32 %v1748, %v1749
      %v1751 = vpack.i.bf16 %v1750, %v1750
      %v1753 = vsel %vm1101, %v1027, 4286644096
      %v1755 = vunpack.i.l.bf16 %v1753
      %v1756 = vunpack.i.h.bf16 %v1753
      %v1757 = vmax.f32 %v1755, %v1756
      %v1758 = vrot.slane %v1757, 4
      %v1759 = vmax.f32 %v1757, %v1758
      %v1760 = vrot.slane %v1759, 2
      %v1761 = vmax.f32 %v1759, %v1760
      %v1762 = vrot.slane %v1761, 1
      %v1763 = vmax.f32 %v1761, %v1762
      %v1764 = vpack.i.bf16 %v1763, %v1763
      %v1766 = vsel %vm1101, %v1028, 4286644096
      %v1768 = vunpack.i.l.bf16 %v1766
      %v1769 = vunpack.i.h.bf16 %v1766
      %v1770 = vmax.f32 %v1768, %v1769
      %v1771 = vrot.slane %v1770, 4
      %v1772 = vmax.f32 %v1770, %v1771
      %v1773 = vrot.slane %v1772, 2
      %v1774 = vmax.f32 %v1772, %v1773
      %v1775 = vrot.slane %v1774, 1
      %v1776 = vmax.f32 %v1774, %v1775
      %v1777 = vpack.i.bf16 %v1776, %v1776
      %v1779 = vsel %vm1101, %v1043, 4286644096
      %v1781 = vunpack.i.l.bf16 %v1779
      %v1782 = vunpack.i.h.bf16 %v1779
      %v1783 = vmax.f32 %v1781, %v1782
      %v1784 = vrot.slane %v1783, 4
      %v1785 = vmax.f32 %v1783, %v1784
      %v1786 = vrot.slane %v1785, 2
      %v1787 = vmax.f32 %v1785, %v1786
      %v1788 = vrot.slane %v1787, 1
      %v1789 = vmax.f32 %v1787, %v1788
      %v1790 = vpack.i.bf16 %v1789, %v1789
      %v1792 = vsel %vm1101, %v1050, 4286644096
      %v1794 = vunpack.i.l.bf16 %v1792
      %v1795 = vunpack.i.h.bf16 %v1792
      %v1796 = vmax.f32 %v1794, %v1795
      %v1797 = vrot.slane %v1796, 4
      %v1798 = vmax.f32 %v1796, %v1797
      %v1799 = vrot.slane %v1798, 2
      %v1800 = vmax.f32 %v1798, %v1799
      %v1801 = vrot.slane %v1800, 1
      %v1802 = vmax.f32 %v1800, %v1801
      %v1803 = vpack.i.bf16 %v1802, %v1802
      %v1805 = vsel %vm1101, %v1051, 4286644096
      %v1807 = vunpack.i.l.bf16 %v1805
      %v1808 = vunpack.i.h.bf16 %v1805
      %v1809 = vmax.f32 %v1807, %v1808
      %v1810 = vrot.slane %v1809, 4
      %v1811 = vmax.f32 %v1809, %v1810
      %v1812 = vrot.slane %v1811, 2
      %v1813 = vmax.f32 %v1811, %v1812
      %v1814 = vrot.slane %v1813, 1
      %v1815 = vmax.f32 %v1813, %v1814
      %v1816 = vpack.i.bf16 %v1815, %v1815
      %v1818 = vsel %vm1101, %v1052, 4286644096
      %v1820 = vunpack.i.l.bf16 %v1818
      %v1821 = vunpack.i.h.bf16 %v1818
      %v1822 = vmax.f32 %v1820, %v1821
      %v1823 = vrot.slane %v1822, 4
      %v1824 = vmax.f32 %v1822, %v1823
      %v1825 = vrot.slane %v1824, 2
      %v1826 = vmax.f32 %v1824, %v1825
      %v1827 = vrot.slane %v1826, 1
      %v1828 = vmax.f32 %v1826, %v1827
      %v1829 = vpack.i.bf16 %v1828, %v1828
      %v1831 = vsel %vm1101, %v1067, 4286644096
      %v1833 = vunpack.i.l.bf16 %v1831
      %v1834 = vunpack.i.h.bf16 %v1831
      %v1835 = vmax.f32 %v1833, %v1834
      %v1836 = vrot.slane %v1835, 4
      %v1837 = vmax.f32 %v1835, %v1836
      %v1838 = vrot.slane %v1837, 2
      %v1839 = vmax.f32 %v1837, %v1838
      %v1840 = vrot.slane %v1839, 1
      %v1841 = vmax.f32 %v1839, %v1840
      %v1842 = vpack.i.bf16 %v1841, %v1841
      %v1844 = vsel %vm1101, %v1074, 4286644096
      %v1846 = vunpack.i.l.bf16 %v1844
      %v1847 = vunpack.i.h.bf16 %v1844
      %v1848 = vmax.f32 %v1846, %v1847
      %v1849 = vrot.slane %v1848, 4
      %v1850 = vmax.f32 %v1848, %v1849
      %v1851 = vrot.slane %v1850, 2
      %v1852 = vmax.f32 %v1850, %v1851
      %v1853 = vrot.slane %v1852, 1
      %v1854 = vmax.f32 %v1852, %v1853
      %v1855 = vpack.i.bf16 %v1854, %v1854
      %v1857 = vsel %vm1101, %v1075, 4286644096
      %v1859 = vunpack.i.l.bf16 %v1857
      %v1860 = vunpack.i.h.bf16 %v1857
      %v1861 = vmax.f32 %v1859, %v1860
      %v1862 = vrot.slane %v1861, 4
      %v1863 = vmax.f32 %v1861, %v1862
      %v1864 = vrot.slane %v1863, 2
      %v1865 = vmax.f32 %v1863, %v1864
      %v1866 = vrot.slane %v1865, 1
      %v1867 = vmax.f32 %v1865, %v1866
      %v1868 = vpack.i.bf16 %v1867, %v1867
      %v1870 = vsel %vm1101, %v1076, 4286644096
      %v1872 = vunpack.i.l.bf16 %v1870
      %v1873 = vunpack.i.h.bf16 %v1870
      %v1874 = vmax.f32 %v1872, %v1873
      %v1875 = vrot.slane %v1874, 4
      %v1876 = vmax.f32 %v1874, %v1875
      %v1877 = vrot.slane %v1876, 2
      %v1878 = vmax.f32 %v1876, %v1877
      %v1879 = vrot.slane %v1878, 1
      %v1880 = vmax.f32 %v1878, %v1879
      %v1881 = vpack.i.bf16 %v1880, %v1880
      %v1883 = vsel %vm1101, %v1091, 4286644096
      %v1885 = vunpack.i.l.bf16 %v1883
      %v1886 = vunpack.i.h.bf16 %v1883
      %v1887 = vmax.f32 %v1885, %v1886
      %v1888 = vrot.slane %v1887, 4
      %v1889 = vmax.f32 %v1887, %v1888
      %v1890 = vrot.slane %v1889, 2
      %v1891 = vmax.f32 %v1889, %v1890
      %v1892 = vrot.slane %v1891, 1
      %v1893 = vmax.f32 %v1891, %v1892
      %v1894 = vpack.i.bf16 %v1893, %v1893
      %v1896 = vsel %vm1101, %v1098, 4286644096
      %v1898 = vunpack.i.l.bf16 %v1896
      %v1899 = vunpack.i.h.bf16 %v1896
      %v1900 = vmax.f32 %v1898, %v1899
      %v1901 = vrot.slane %v1900, 4
      %v1902 = vmax.f32 %v1900, %v1901
      %v1903 = vrot.slane %v1902, 2
      %v1904 = vmax.f32 %v1902, %v1903
      %v1905 = vrot.slane %v1904, 1
      %v1906 = vmax.f32 %v1904, %v1905
      %v1907 = vpack.i.bf16 %v1906, %v1906
      %v1909 = vsel %vm1101, %v1099, 4286644096
      %v1911 = vunpack.i.l.bf16 %v1909
      %v1912 = vunpack.i.h.bf16 %v1909
      %v1913 = vmax.f32 %v1911, %v1912
      %v1914 = vrot.slane %v1913, 4
      %v1915 = vmax.f32 %v1913, %v1914
      %v1916 = vrot.slane %v1915, 2
      %v1917 = vmax.f32 %v1915, %v1916
      %v1918 = vrot.slane %v1917, 1
      %v1919 = vmax.f32 %v1917, %v1918
      %v1920 = vpack.i.bf16 %v1919, %v1919
      %v1922 = vsel %vm1101, %v1100, 4286644096
      %v1924 = vunpack.i.l.bf16 %v1922
      %v1925 = vunpack.i.h.bf16 %v1922
      %v1926 = vmax.f32 %v1924, %v1925
      %v1927 = vrot.slane %v1926, 4
      %v1928 = vmax.f32 %v1926, %v1927
      %v1929 = vrot.slane %v1928, 2
      %v1930 = vmax.f32 %v1928, %v1929
      %v1931 = vrot.slane %v1930, 1
      %v1932 = vmax.f32 %v1930, %v1931
      %v1933 = vpack.i.bf16 %v1932, %v1932
      %v1934 = vld [vmem:[%s441] sm:$0xf]
      %v1935 = vld [vmem:[%s441 + $0x4] sm:$0xf]
      %v1936 = vld [vmem:[%s441 + $0x8] sm:$0xf]
      %v1937 = vld [vmem:[%s441 + $0xc] sm:$0xf]
      %v1939 = vsel %vm587, %v1934, 4286644096
      %v1942 = vsel %vm587, %v1936, 4286644096
      %v1944 = vmax.bf16 %v1939, %v1942
      %v1946 = vsel %vm587, %v1935, 4286644096
      %v1949 = vsel %vm587, %v1937, 4286644096
      %v1951 = vmax.bf16 %v1946, %v1949
      %v1955 = vunpack.c.l.s4 1966171168
      %v1956 = vunpack.c.0.s8 %v1955
      %v1957 = vlaneseq
      %v1958 = vshrl.u32 %v1957, 7
      %v1959 = vsub.s32 %v1956, %v1958
      %v1960 = vrot.slane %v1944, %v1959
      %v1961 = vcombine.high %v1960, %v1960
      %v1963 = vunpack.c.l.s4 1966171168
      %v1964 = vunpack.c.0.s8 %v1963
      %v1965 = vlaneseq
      %v1966 = vshrl.u32 %v1965, 7
      %v1967 = vsub.s32 %v1964, %v1966
      %v1968 = vrot.slane %v1960, %v1967
      %v1970 = vunpack.c.l.s4 1966171168
      %v1971 = vunpack.c.0.s8 %v1970
      %v1972 = vlaneseq
      %v1973 = vshrl.u32 %v1972, 7
      %v1974 = vsub.s32 %v1971, %v1973
      %v1975 = vrot.slane %v1961, %v1974
      %v1976 = vcombine.high %v1968, %v1968
      %v1977 = vcombine.high %v1975, %v1975
      %v1979 = vunpack.c.l.s4 1966171168
      %v1980 = vunpack.c.0.s8 %v1979
      %v1981 = vlaneseq
      %v1982 = vshrl.u32 %v1981, 7
      %v1983 = vsub.s32 %v1980, %v1982
      %v1984 = vrot.slane %v1951, %v1983
      %v1985 = vcombine.high %v1984, %v1984
      %v1987 = vunpack.c.l.s4 1966171168
      %v1988 = vunpack.c.0.s8 %v1987
      %v1989 = vlaneseq
      %v1990 = vshrl.u32 %v1989, 7
      %v1991 = vsub.s32 %v1988, %v1990
      %v1992 = vrot.slane %v1984, %v1991
      %v1994 = vunpack.c.l.s4 1966171168
      %v1995 = vunpack.c.0.s8 %v1994
      %v1996 = vlaneseq
      %v1997 = vshrl.u32 %v1996, 7
      %v1998 = vsub.s32 %v1995, %v1997
      %v1999 = vrot.slane %v1985, %v1998
      %v2000 = vcombine.high %v1992, %v1992
      %v2001 = vcombine.high %v1999, %v1999
      %v2003 = vsel %vm1101, %v1968, 4286644096
      %v2005 = vunpack.i.l.bf16 %v2003
      %v2006 = vunpack.i.h.bf16 %v2003
      %v2007 = vmax.f32 %v2005, %v2006
      %v2008 = vrot.slane %v2007, 4
      %v2009 = vmax.f32 %v2007, %v2008
      %v2010 = vrot.slane %v2009, 2
      %v2011 = vmax.f32 %v2009, %v2010
      %v2012 = vrot.slane %v2011, 1
      %v2013 = vmax.f32 %v2011, %v2012
      %v2014 = vpack.i.bf16 %v2013, %v2013
      %v2016 = vsel %vm1101, %v1975, 4286644096
      %v2018 = vunpack.i.l.bf16 %v2016
      %v2019 = vunpack.i.h.bf16 %v2016
      %v2020 = vmax.f32 %v2018, %v2019
      %v2021 = vrot.slane %v2020, 4
      %v2022 = vmax.f32 %v2020, %v2021
      %v2023 = vrot.slane %v2022, 2
      %v2024 = vmax.f32 %v2022, %v2023
      %v2025 = vrot.slane %v2024, 1
      %v2026 = vmax.f32 %v2024, %v2025
      %v2027 = vpack.i.bf16 %v2026, %v2026
      %v2029 = vsel %vm1101, %v1976, 4286644096
      %v2031 = vunpack.i.l.bf16 %v2029
      %v2032 = vunpack.i.h.bf16 %v2029
      %v2033 = vmax.f32 %v2031, %v2032
      %v2034 = vrot.slane %v2033, 4
      %v2035 = vmax.f32 %v2033, %v2034
      %v2036 = vrot.slane %v2035, 2
      %v2037 = vmax.f32 %v2035, %v2036
      %v2038 = vrot.slane %v2037, 1
      %v2039 = vmax.f32 %v2037, %v2038
      %v2040 = vpack.i.bf16 %v2039, %v2039
      %v2042 = vsel %vm1101, %v1977, 4286644096
      %v2044 = vunpack.i.l.bf16 %v2042
      %v2045 = vunpack.i.h.bf16 %v2042
      %v2046 = vmax.f32 %v2044, %v2045
      %v2047 = vrot.slane %v2046, 4
      %v2048 = vmax.f32 %v2046, %v2047
      %v2049 = vrot.slane %v2048, 2
      %v2050 = vmax.f32 %v2048, %v2049
      %v2051 = vrot.slane %v2050, 1
      %v2052 = vmax.f32 %v2050, %v2051
      %v2053 = vpack.i.bf16 %v2052, %v2052
      %v2055 = vsel %vm1101, %v1992, 4286644096
      %v2057 = vunpack.i.l.bf16 %v2055
      %v2058 = vunpack.i.h.bf16 %v2055
      %v2059 = vmax.f32 %v2057, %v2058
      %v2060 = vrot.slane %v2059, 4
      %v2061 = vmax.f32 %v2059, %v2060
      %v2062 = vrot.slane %v2061, 2
      %v2063 = vmax.f32 %v2061, %v2062
      %v2064 = vrot.slane %v2063, 1
      %v2065 = vmax.f32 %v2063, %v2064
      %v2066 = vpack.i.bf16 %v2065, %v2065
      %v2068 = vsel %vm1101, %v1999, 4286644096
      %v2070 = vunpack.i.l.bf16 %v2068
      %v2071 = vunpack.i.h.bf16 %v2068
      %v2072 = vmax.f32 %v2070, %v2071
      %v2073 = vrot.slane %v2072, 4
      %v2074 = vmax.f32 %v2072, %v2073
      %v2075 = vrot.slane %v2074, 2
      %v2076 = vmax.f32 %v2074, %v2075
      %v2077 = vrot.slane %v2076, 1
      %v2078 = vmax.f32 %v2076, %v2077
      %v2079 = vpack.i.bf16 %v2078, %v2078
      %v2081 = vsel %vm1101, %v2000, 4286644096
      %v2083 = vunpack.i.l.bf16 %v2081
      %v2084 = vunpack.i.h.bf16 %v2081
      %v2085 = vmax.f32 %v2083, %v2084
      %v2086 = vrot.slane %v2085, 4
      %v2087 = vmax.f32 %v2085, %v2086
      %v2088 = vrot.slane %v2087, 2
      %v2089 = vmax.f32 %v2087, %v2088
      %v2090 = vrot.slane %v2089, 1
      %v2091 = vmax.f32 %v2089, %v2090
      %v2092 = vpack.i.bf16 %v2091, %v2091
      %v2094 = vsel %vm1101, %v2001, 4286644096
      %v2096 = vunpack.i.l.bf16 %v2094
      %v2097 = vunpack.i.h.bf16 %v2094
      %v2098 = vmax.f32 %v2096, %v2097
      %v2099 = vrot.slane %v2098, 4
      %v2100 = vmax.f32 %v2098, %v2099
      %v2101 = vrot.slane %v2100, 2
      %v2102 = vmax.f32 %v2100, %v2101
      %v2103 = vrot.slane %v2102, 1
      %v2104 = vmax.f32 %v2102, %v2103
      %v2105 = vpack.i.bf16 %v2104, %v2104
      %v2106 = vld [vmem:[%s460] sm:$0xf]
      %v2107 = vld [vmem:[%s460 + $0x4] sm:$0xf]
      %v2108 = vld [vmem:[%s460 + $0x8] sm:$0xf]
      %v2109 = vld [vmem:[%s460 + $0xc] sm:$0xf]
      %v2111 = vsel %vm587, %v2106, 4286644096
      %v2114 = vsel %vm587, %v2108, 4286644096
      %v2116 = vmax.bf16 %v2111, %v2114
      %v2118 = vsel %vm587, %v2107, 4286644096
      %v2121 = vsel %vm587, %v2109, 4286644096
      %v2123 = vmax.bf16 %v2118, %v2121
      %v2127 = vunpack.c.l.s4 1966171168
      %v2128 = vunpack.c.0.s8 %v2127
      %v2129 = vlaneseq
      %v2130 = vshrl.u32 %v2129, 7
      %v2131 = vsub.s32 %v2128, %v2130
      %v2132 = vrot.slane %v2116, %v2131
      %v2133 = vcombine.high %v2132, %v2132
      %v2135 = vunpack.c.l.s4 1966171168
      %v2136 = vunpack.c.0.s8 %v2135
      %v2137 = vlaneseq
      %v2138 = vshrl.u32 %v2137, 7
      %v2139 = vsub.s32 %v2136, %v2138
      %v2140 = vrot.slane %v2132, %v2139
      %v2142 = vunpack.c.l.s4 1966171168
      %v2143 = vunpack.c.0.s8 %v2142
      %v2144 = vlaneseq
      %v2145 = vshrl.u32 %v2144, 7
      %v2146 = vsub.s32 %v2143, %v2145
      %v2147 = vrot.slane %v2133, %v2146
      %v2148 = vcombine.high %v2140, %v2140
      %v2149 = vcombine.high %v2147, %v2147
      %v2151 = vunpack.c.l.s4 1966171168
      %v2152 = vunpack.c.0.s8 %v2151
      %v2153 = vlaneseq
      %v2154 = vshrl.u32 %v2153, 7
      %v2155 = vsub.s32 %v2152, %v2154
      %v2156 = vrot.slane %v2123, %v2155
      %v2157 = vcombine.high %v2156, %v2156
      %v2159 = vunpack.c.l.s4 1966171168
      %v2160 = vunpack.c.0.s8 %v2159
      %v2161 = vlaneseq
      %v2162 = vshrl.u32 %v2161, 7
      %v2163 = vsub.s32 %v2160, %v2162
      %v2164 = vrot.slane %v2156, %v2163
      %v2166 = vunpack.c.l.s4 1966171168
      %v2167 = vunpack.c.0.s8 %v2166
      %v2168 = vlaneseq
      %v2169 = vshrl.u32 %v2168, 7
      %v2170 = vsub.s32 %v2167, %v2169
      %v2171 = vrot.slane %v2157, %v2170
      %v2172 = vcombine.high %v2164, %v2164
      %v2173 = vcombine.high %v2171, %v2171
      %v2175 = vsel %vm1101, %v2140, 4286644096
      %v2177 = vunpack.i.l.bf16 %v2175
      %v2178 = vunpack.i.h.bf16 %v2175
      %v2179 = vmax.f32 %v2177, %v2178
      %v2180 = vrot.slane %v2179, 4
      %v2181 = vmax.f32 %v2179, %v2180
      %v2182 = vrot.slane %v2181, 2
      %v2183 = vmax.f32 %v2181, %v2182
      %v2184 = vrot.slane %v2183, 1
      %v2185 = vmax.f32 %v2183, %v2184
      %v2186 = vpack.i.bf16 %v2185, %v2185
      %v2188 = vsel %vm1101, %v2147, 4286644096
      %v2190 = vunpack.i.l.bf16 %v2188
      %v2191 = vunpack.i.h.bf16 %v2188
      %v2192 = vmax.f32 %v2190, %v2191
      %v2193 = vrot.slane %v2192, 4
      %v2194 = vmax.f32 %v2192, %v2193
      %v2195 = vrot.slane %v2194, 2
      %v2196 = vmax.f32 %v2194, %v2195
      %v2197 = vrot.slane %v2196, 1
      %v2198 = vmax.f32 %v2196, %v2197
      %v2199 = vpack.i.bf16 %v2198, %v2198
      %v2201 = vsel %vm1101, %v2148, 4286644096
      %v2203 = vunpack.i.l.bf16 %v2201
      %v2204 = vunpack.i.h.bf16 %v2201
      %v2205 = vmax.f32 %v2203, %v2204
      %v2206 = vrot.slane %v2205, 4
      %v2207 = vmax.f32 %v2205, %v2206
      %v2208 = vrot.slane %v2207, 2
      %v2209 = vmax.f32 %v2207, %v2208
      %v2210 = vrot.slane %v2209, 1
      %v2211 = vmax.f32 %v2209, %v2210
      %v2212 = vpack.i.bf16 %v2211, %v2211
      %v2214 = vsel %vm1101, %v2149, 4286644096
      %v2216 = vunpack.i.l.bf16 %v2214
      %v2217 = vunpack.i.h.bf16 %v2214
      %v2218 = vmax.f32 %v2216, %v2217
      %v2219 = vrot.slane %v2218, 4
      %v2220 = vmax.f32 %v2218, %v2219
      %v2221 = vrot.slane %v2220, 2
      %v2222 = vmax.f32 %v2220, %v2221
      %v2223 = vrot.slane %v2222, 1
      %v2224 = vmax.f32 %v2222, %v2223
      %v2225 = vpack.i.bf16 %v2224, %v2224
      %v2227 = vsel %vm1101, %v2164, 4286644096
      %v2229 = vunpack.i.l.bf16 %v2227
      %v2230 = vunpack.i.h.bf16 %v2227
      %v2231 = vmax.f32 %v2229, %v2230
      %v2232 = vrot.slane %v2231, 4
      %v2233 = vmax.f32 %v2231, %v2232
      %v2234 = vrot.slane %v2233, 2
      %v2235 = vmax.f32 %v2233, %v2234
      %v2236 = vrot.slane %v2235, 1
      %v2237 = vmax.f32 %v2235, %v2236
      %v2238 = vpack.i.bf16 %v2237, %v2237
      %v2240 = vsel %vm1101, %v2171, 4286644096
      %v2242 = vunpack.i.l.bf16 %v2240
      %v2243 = vunpack.i.h.bf16 %v2240
      %v2244 = vmax.f32 %v2242, %v2243
      %v2245 = vrot.slane %v2244, 4
      %v2246 = vmax.f32 %v2244, %v2245
      %v2247 = vrot.slane %v2246, 2
      %v2248 = vmax.f32 %v2246, %v2247
      %v2249 = vrot.slane %v2248, 1
      %v2250 = vmax.f32 %v2248, %v2249
      %v2251 = vpack.i.bf16 %v2250, %v2250
      %v2253 = vsel %vm1101, %v2172, 4286644096
      %v2255 = vunpack.i.l.bf16 %v2253
      %v2256 = vunpack.i.h.bf16 %v2253
      %v2257 = vmax.f32 %v2255, %v2256
      %v2258 = vrot.slane %v2257, 4
      %v2259 = vmax.f32 %v2257, %v2258
      %v2260 = vrot.slane %v2259, 2
      %v2261 = vmax.f32 %v2259, %v2260
      %v2262 = vrot.slane %v2261, 1
      %v2263 = vmax.f32 %v2261, %v2262
      %v2264 = vpack.i.bf16 %v2263, %v2263
      %v2266 = vsel %vm1101, %v2173, 4286644096
      %v2268 = vunpack.i.l.bf16 %v2266
      %v2269 = vunpack.i.h.bf16 %v2266
      %v2270 = vmax.f32 %v2268, %v2269
      %v2271 = vrot.slane %v2270, 4
      %v2272 = vmax.f32 %v2270, %v2271
      %v2273 = vrot.slane %v2272, 2
      %v2274 = vmax.f32 %v2272, %v2273
      %v2275 = vrot.slane %v2274, 1
      %v2276 = vmax.f32 %v2274, %v2275
      %v2277 = vpack.i.bf16 %v2276, %v2276
      %v2342 = vunpack.c.l.b16 %v1114
      %v2343 = vunpack.c.l.b16 %v1127
      %v2344 = vunpack.c.l.b16 %v1140
      %v2345 = vunpack.c.l.b16 %v1153
      %v2346 = vunpack.c.l.b16 %v1166
      %v2347 = vunpack.c.l.b16 %v1179
      %v2348 = vunpack.c.l.b16 %v1192
      %v2349 = vunpack.c.l.b16 %v1205
      %v2350 = vunpack.c.l.b16 %v1218
      %v2351 = vunpack.c.l.b16 %v1231
      %v2352 = vunpack.c.l.b16 %v1244
      %v2353 = vunpack.c.l.b16 %v1257
      %v2354 = vunpack.c.l.b16 %v1270
      %v2355 = vunpack.c.l.b16 %v1283
      %v2356 = vunpack.c.l.b16 %v1296
      %v2357 = vunpack.c.l.b16 %v1309
      %v2358 = vunpack.c.l.b16 %v1322
      %v2359 = vunpack.c.l.b16 %v1335
      %v2360 = vunpack.c.l.b16 %v1348
      %v2361 = vunpack.c.l.b16 %v1361
      %v2362 = vunpack.c.l.b16 %v1374
      %v2363 = vunpack.c.l.b16 %v1387
      %v2364 = vunpack.c.l.b16 %v1400
      %v2365 = vunpack.c.l.b16 %v1413
      %v2366 = vunpack.c.l.b16 %v1426
      %v2367 = vunpack.c.l.b16 %v1439
      %v2368 = vunpack.c.l.b16 %v1452
      %v2369 = vunpack.c.l.b16 %v1465
      %v2370 = vunpack.c.l.b16 %v1478
      %v2371 = vunpack.c.l.b16 %v1491
      %v2372 = vunpack.c.l.b16 %v1504
      %v2373 = vunpack.c.l.b16 %v1517
      %v2374 = vunpack.c.l.b16 %v1530
      %v2375 = vunpack.c.l.b16 %v1543
      %v2376 = vunpack.c.l.b16 %v1556
      %v2377 = vunpack.c.l.b16 %v1569
      %v2378 = vunpack.c.l.b16 %v1582
      %v2379 = vunpack.c.l.b16 %v1595
      %v2380 = vunpack.c.l.b16 %v1608
      %v2381 = vunpack.c.l.b16 %v1621
      %v2382 = vunpack.c.l.b16 %v1634
      %v2383 = vunpack.c.l.b16 %v1647
      %v2384 = vunpack.c.l.b16 %v1660
      %v2385 = vunpack.c.l.b16 %v1673
      %v2386 = vunpack.c.l.b16 %v1686
      %v2387 = vunpack.c.l.b16 %v1699
      %v2388 = vunpack.c.l.b16 %v1712
      %v2389 = vunpack.c.l.b16 %v1725
      %v2390 = vunpack.c.l.b16 %v1738
      %v2391 = vunpack.c.l.b16 %v1751
      %v2392 = vunpack.c.l.b16 %v1764
      %v2393 = vunpack.c.l.b16 %v1777
      %v2394 = vunpack.c.l.b16 %v1790
      %v2395 = vunpack.c.l.b16 %v1803
      %v2396 = vunpack.c.l.b16 %v1816
      %v2397 = vunpack.c.l.b16 %v1829
      %v2398 = vunpack.c.l.b16 %v1842
      %v2399 = vunpack.c.l.b16 %v1855
      %v2400 = vunpack.c.l.b16 %v1868
      %v2401 = vunpack.c.l.b16 %v1881
      %v2402 = vunpack.c.l.b16 %v1894
      %v2403 = vunpack.c.l.b16 %v1907
      %v2404 = vunpack.c.l.b16 %v1920
      %v2405 = vunpack.c.l.b16 %v1933
      %v2406 = vpack.c.b16 %v2342, %v2342
      %v2407 = vpack.c.b16 %v2343, %v2343
      %v2408 = vpack.c.b16 %v2344, %v2344
      %v2409 = vpack.c.b16 %v2345, %v2345
      %v2410 = vpack.c.b16 %v2346, %v2346
      %v2411 = vpack.c.b16 %v2347, %v2347
      %v2412 = vpack.c.b16 %v2348, %v2348
      %v2413 = vpack.c.b16 %v2349, %v2349
      %v2414 = vpack.c.b16 %v2350, %v2350
      %v2415 = vpack.c.b16 %v2351, %v2351
      %v2416 = vpack.c.b16 %v2352, %v2352
      %v2417 = vpack.c.b16 %v2353, %v2353
      %v2418 = vpack.c.b16 %v2354, %v2354
      %v2419 = vpack.c.b16 %v2355, %v2355
      %v2420 = vpack.c.b16 %v2356, %v2356
      %v2421 = vpack.c.b16 %v2357, %v2357
      %v2422 = vpack.c.b16 %v2358, %v2358
      %v2423 = vpack.c.b16 %v2359, %v2359
      %v2424 = vpack.c.b16 %v2360, %v2360
      %v2425 = vpack.c.b16 %v2361, %v2361
      %v2426 = vpack.c.b16 %v2362, %v2362
      %v2427 = vpack.c.b16 %v2363, %v2363
      %v2428 = vpack.c.b16 %v2364, %v2364
      %v2429 = vpack.c.b16 %v2365, %v2365
      %v2430 = vpack.c.b16 %v2366, %v2366
      %v2431 = vpack.c.b16 %v2367, %v2367
      %v2432 = vpack.c.b16 %v2368, %v2368
      %v2433 = vpack.c.b16 %v2369, %v2369
      %v2434 = vpack.c.b16 %v2370, %v2370
      %v2435 = vpack.c.b16 %v2371, %v2371
      %v2436 = vpack.c.b16 %v2372, %v2372
      %v2437 = vpack.c.b16 %v2373, %v2373
      %v2438 = vpack.c.b16 %v2374, %v2374
      %v2439 = vpack.c.b16 %v2375, %v2375
      %v2440 = vpack.c.b16 %v2376, %v2376
      %v2441 = vpack.c.b16 %v2377, %v2377
      %v2442 = vpack.c.b16 %v2378, %v2378
      %v2443 = vpack.c.b16 %v2379, %v2379
      %v2444 = vpack.c.b16 %v2380, %v2380
      %v2445 = vpack.c.b16 %v2381, %v2381
      %v2446 = vpack.c.b16 %v2382, %v2382
      %v2447 = vpack.c.b16 %v2383, %v2383
      %v2448 = vpack.c.b16 %v2384, %v2384
      %v2449 = vpack.c.b16 %v2385, %v2385
      %v2450 = vpack.c.b16 %v2386, %v2386
      %v2451 = vpack.c.b16 %v2387, %v2387
      %v2452 = vpack.c.b16 %v2388, %v2388
      %v2453 = vpack.c.b16 %v2389, %v2389
      %v2454 = vpack.c.b16 %v2390, %v2390
      %v2455 = vpack.c.b16 %v2391, %v2391
      %v2456 = vpack.c.b16 %v2392, %v2392
      %v2457 = vpack.c.b16 %v2393, %v2393
      %v2458 = vpack.c.b16 %v2394, %v2394
      %v2459 = vpack.c.b16 %v2395, %v2395
      %v2460 = vpack.c.b16 %v2396, %v2396
      %v2461 = vpack.c.b16 %v2397, %v2397
      %v2462 = vpack.c.b16 %v2398, %v2398
      %v2463 = vpack.c.b16 %v2399, %v2399
      %v2464 = vpack.c.b16 %v2400, %v2400
      %v2465 = vpack.c.b16 %v2401, %v2401
      %v2466 = vpack.c.b16 %v2402, %v2402
      %v2467 = vpack.c.b16 %v2403, %v2403
      %v2468 = vpack.c.b16 %v2404, %v2404
      %v2469 = vpack.c.b16 %v2405, %v2405
      %v2470 = vunpack.c.l.b16 %v2406
      %v2471 = vunpack.c.l.b16 %v2407
      %v2472 = vunpack.c.l.b16 %v2408
      %v2473 = vunpack.c.l.b16 %v2409
      %v2474 = vunpack.c.l.b16 %v2410
      %v2475 = vunpack.c.l.b16 %v2411
      %v2476 = vunpack.c.l.b16 %v2412
      %v2477 = vunpack.c.l.b16 %v2413
      %v2478 = vunpack.c.l.b16 %v2414
      %v2479 = vunpack.c.l.b16 %v2415
      %v2480 = vunpack.c.l.b16 %v2416
      %v2481 = vunpack.c.l.b16 %v2417
      %v2482 = vunpack.c.l.b16 %v2418
      %v2483 = vunpack.c.l.b16 %v2419
      %v2484 = vunpack.c.l.b16 %v2420
      %v2485 = vunpack.c.l.b16 %v2421
      %v2486 = vunpack.c.l.b16 %v2422
      %v2487 = vunpack.c.l.b16 %v2423
      %v2488 = vunpack.c.l.b16 %v2424
      %v2489 = vunpack.c.l.b16 %v2425
      %v2490 = vunpack.c.l.b16 %v2426
      %v2491 = vunpack.c.l.b16 %v2427
      %v2492 = vunpack.c.l.b16 %v2428
      %v2493 = vunpack.c.l.b16 %v2429
      %v2494 = vunpack.c.l.b16 %v2430
      %v2495 = vunpack.c.l.b16 %v2431
      %v2496 = vunpack.c.l.b16 %v2432
      %v2497 = vunpack.c.l.b16 %v2433
      %v2498 = vunpack.c.l.b16 %v2434
      %v2499 = vunpack.c.l.b16 %v2435
      %v2500 = vunpack.c.l.b16 %v2436
      %v2501 = vunpack.c.l.b16 %v2437
      %v2502 = vunpack.c.l.b16 %v2438
      %v2503 = vunpack.c.l.b16 %v2439
      %v2504 = vunpack.c.l.b16 %v2440
      %v2505 = vunpack.c.l.b16 %v2441
      %v2506 = vunpack.c.l.b16 %v2442
      %v2507 = vunpack.c.l.b16 %v2443
      %v2508 = vunpack.c.l.b16 %v2444
      %v2509 = vunpack.c.l.b16 %v2445
      %v2510 = vunpack.c.l.b16 %v2446
      %v2511 = vunpack.c.l.b16 %v2447
      %v2512 = vunpack.c.l.b16 %v2448
      %v2513 = vunpack.c.l.b16 %v2449
      %v2514 = vunpack.c.l.b16 %v2450
      %v2515 = vunpack.c.l.b16 %v2451
      %v2516 = vunpack.c.l.b16 %v2452
      %v2517 = vunpack.c.l.b16 %v2453
      %v2518 = vunpack.c.l.b16 %v2454
      %v2519 = vunpack.c.l.b16 %v2455
      %v2520 = vunpack.c.l.b16 %v2456
      %v2521 = vunpack.c.l.b16 %v2457
      %v2522 = vunpack.c.l.b16 %v2458
      %v2523 = vunpack.c.l.b16 %v2459
      %v2524 = vunpack.c.l.b16 %v2460
      %v2525 = vunpack.c.l.b16 %v2461
      %v2526 = vunpack.c.l.b16 %v2462
      %v2527 = vunpack.c.l.b16 %v2463
      %v2528 = vunpack.c.l.b16 %v2464
      %v2529 = vunpack.c.l.b16 %v2465
      %v2530 = vunpack.c.l.b16 %v2466
      %v2531 = vunpack.c.l.b16 %v2467
      %v2532 = vunpack.c.l.b16 %v2468
      %v2533 = vunpack.c.l.b16 %v2469
      %vm2534 = vcmask 1042434
      %v2535 = vsel %vm2534, %v2471, %v2470
      %vm2536 = vcmask 1043459
      %v2537 = vsel %vm2536, %v2472, %v2535
      %vm2538 = vcmask 1044484
      %v2539 = vsel %vm2538, %v2473, %v2537
      %vm2540 = vcmask 1045509
      %v2541 = vsel %vm2540, %v2474, %v2539
      %vm2542 = vcmask 1046534
      %v2543 = vsel %vm2542, %v2475, %v2541
      %vm2544 = vcmask 1047559
      %v2545 = vsel %vm2544, %v2476, %v2543
      %v2546 = vsel %vm2534, %v2479, %v2478
      %v2547 = vsel %vm2536, %v2480, %v2546
      %v2548 = vsel %vm2538, %v2481, %v2547
      %v2549 = vsel %vm2540, %v2482, %v2548
      %v2550 = vsel %vm2542, %v2483, %v2549
      %v2551 = vsel %vm2544, %v2484, %v2550
      %v2552 = vsel %vm2534, %v2487, %v2486
      %v2553 = vsel %vm2536, %v2488, %v2552
      %v2554 = vsel %vm2538, %v2489, %v2553
      %v2555 = vsel %vm2540, %v2490, %v2554
      %v2556 = vsel %vm2542, %v2491, %v2555
      %v2557 = vsel %vm2544, %v2492, %v2556
      %v2558 = vsel %vm2534, %v2495, %v2494
      %v2559 = vsel %vm2536, %v2496, %v2558
      %v2560 = vsel %vm2538, %v2497, %v2559
      %v2561 = vsel %vm2540, %v2498, %v2560
      %v2562 = vsel %vm2542, %v2499, %v2561
      %v2563 = vsel %vm2544, %v2500, %v2562
      %v2564 = vsel %vm2534, %v2503, %v2502
      %v2565 = vsel %vm2536, %v2504, %v2564
      %v2566 = vsel %vm2538, %v2505, %v2565
      %v2567 = vsel %vm2540, %v2506, %v2566
      %v2568 = vsel %vm2542, %v2507, %v2567
      %v2569 = vsel %vm2544, %v2508, %v2568
      %v2570 = vsel %vm2534, %v2511, %v2510
      %v2571 = vsel %vm2536, %v2512, %v2570
      %v2572 = vsel %vm2538, %v2513, %v2571
      %v2573 = vsel %vm2540, %v2514, %v2572
      %v2574 = vsel %vm2542, %v2515, %v2573
      %v2575 = vsel %vm2544, %v2516, %v2574
      %v2576 = vsel %vm2534, %v2519, %v2518
      %v2577 = vsel %vm2536, %v2520, %v2576
      %v2578 = vsel %vm2538, %v2521, %v2577
      %v2579 = vsel %vm2540, %v2522, %v2578
      %v2580 = vsel %vm2542, %v2523, %v2579
      %v2581 = vsel %vm2544, %v2524, %v2580
      %v2582 = vsel %vm2534, %v2527, %v2526
      %v2583 = vsel %vm2536, %v2528, %v2582
      %v2584 = vsel %vm2538, %v2529, %v2583
      %v2585 = vsel %vm2540, %v2530, %v2584
      %v2586 = vsel %vm2542, %v2531, %v2585
      %v2587 = vsel %vm2544, %v2532, %v2586
      %v2588 = vpack.c.b16 %v2545, %v2545
      %v2589 = vpack.c.b16 %v2477, %v2477
      %v2590 = vpack.c.b16 %v2551, %v2551
      %v2591 = vpack.c.b16 %v2485, %v2485
      %v2592 = vpack.c.b16 %v2557, %v2557
      %v2593 = vpack.c.b16 %v2493, %v2493
      %v2594 = vpack.c.b16 %v2563, %v2563
      %v2595 = vpack.c.b16 %v2501, %v2501
      %v2596 = vpack.c.b16 %v2569, %v2569
      %v2597 = vpack.c.b16 %v2509, %v2509
      %v2598 = vpack.c.b16 %v2575, %v2575
      %v2599 = vpack.c.b16 %v2517, %v2517
      %v2600 = vpack.c.b16 %v2581, %v2581
      %v2601 = vpack.c.b16 %v2525, %v2525
      %v2602 = vpack.c.b16 %v2587, %v2587
      %v2603 = vpack.c.b16 %v2533, %v2533
      %s2620 = scalar_lea.vmem [#allocation2], 8
      %vm2621 = vcmask 27648
      %vm2622 = vmand %vm2621, %vm523
      %v2623 = vld [vmem:[%s2620] sm:$0xf]
      %v2624 = vsel %vm2622, %v2588, %v2623
      %2625 = vst [vmem:[%s2620] sm:$0xf] %v2624
      %v2626 = vld [vmem:[%s2620 + $0x4] sm:$0x1]
      %v2627 = vsel %vm492, %v2589, %v2626
      %2628 = vst [vmem:[%s2620 + $0x4] sm:$0x1] %v2627
      %v2629 = vld [vmem:[%s2620 + $0x8] sm:$0xf]
      %v2630 = vsel %vm2622, %v2590, %v2629
      %2631 = vst [vmem:[%s2620 + $0x8] sm:$0xf] %v2630
      %v2632 = vld [vmem:[%s2620 + $0xc] sm:$0x1]
      %v2633 = vsel %vm492, %v2591, %v2632
      %2634 = vst [vmem:[%s2620 + $0xc] sm:$0x1] %v2633
      %v2635 = vld [vmem:[%s2620 + $0x10] sm:$0xf]
      %v2636 = vsel %vm2622, %v2592, %v2635
      %2637 = vst [vmem:[%s2620 + $0x10] sm:$0xf] %v2636
      %v2638 = vld [vmem:[%s2620 + $0x14] sm:$0x1]
      %v2639 = vsel %vm492, %v2593, %v2638
      %2640 = vst [vmem:[%s2620 + $0x14] sm:$0x1] %v2639
      %v2641 = vld [vmem:[%s2620 + $0x18] sm:$0xf]
      %v2642 = vsel %vm2622, %v2594, %v2641
      %2643 = vst [vmem:[%s2620 + $0x18] sm:$0xf] %v2642
      %v2644 = vld [vmem:[%s2620 + $0x1c] sm:$0x1]
      %v2645 = vsel %vm492, %v2595, %v2644
      %2646 = vst [vmem:[%s2620 + $0x1c] sm:$0x1] %v2645
      %v2647 = vld [vmem:[%s2620 + $0x20] sm:$0xf]
      %v2648 = vsel %vm2622, %v2596, %v2647
      %2649 = vst [vmem:[%s2620 + $0x20] sm:$0xf] %v2648
      %v2650 = vld [vmem:[%s2620 + $0x24] sm:$0x1]
      %v2651 = vsel %vm492, %v2597, %v2650
      %2652 = vst [vmem:[%s2620 + $0x24] sm:$0x1] %v2651
      %v2653 = vld [vmem:[%s2620 + $0x28] sm:$0xf]
      %v2654 = vsel %vm2622, %v2598, %v2653
      %2655 = vst [vmem:[%s2620 + $0x28] sm:$0xf] %v2654
      %v2656 = vld [vmem:[%s2620 + $0x2c] sm:$0x1]
      %v2657 = vsel %vm492, %v2599, %v2656
      %2658 = vst [vmem:[%s2620 + $0x2c] sm:$0x1] %v2657
      %v2659 = vld [vmem:[%s2620 + $0x30] sm:$0xf]
      %v2660 = vsel %vm2622, %v2600, %v2659
      %2661 = vst [vmem:[%s2620 + $0x30] sm:$0xf] %v2660
      %v2662 = vld [vmem:[%s2620 + $0x34] sm:$0x1]
      %v2663 = vsel %vm492, %v2601, %v2662
      %2664 = vst [vmem:[%s2620 + $0x34] sm:$0x1] %v2663
      %v2665 = vld [vmem:[%s2620 + $0x38] sm:$0xf]
      %v2666 = vsel %vm2622, %v2602, %v2665
      %2667 = vst [vmem:[%s2620 + $0x38] sm:$0xf] %v2666
      %v2668 = vld [vmem:[%s2620 + $0x3c] sm:$0x1]
      %v2669 = vsel %vm492, %v2603, %v2668
      %2670 = vst [vmem:[%s2620 + $0x3c] sm:$0x1] %v2669
      %p2671 = scmp.gt.s32.totalorder %s24, 0
      %s2672 = scalar_select %p2671, 1, 0
      %v2673 = vstv %s2672
      %vm2674 = vcmp.eq.s32.totalorder %v2673, 1
      %v2675 = vsel %vm2674, %v2014, 0
      %v2676 = vsel %vm2674, %v2027, 0
      %v2677 = vsel %vm2674, %v2040, 0
      %v2678 = vsel %vm2674, %v2053, 0
      %v2679 = vsel %vm2674, %v2066, 0
      %v2680 = vsel %vm2674, %v2079, 0
      %v2681 = vsel %vm2674, %v2092, 0
      %v2682 = vsel %vm2674, %v2105, 0
      %v2691 = vunpack.c.l.b16 %v2675
      %v2692 = vunpack.c.l.b16 %v2676
      %v2693 = vunpack.c.l.b16 %v2677
      %v2694 = vunpack.c.l.b16 %v2678
      %v2695 = vunpack.c.l.b16 %v2679
      %v2696 = vunpack.c.l.b16 %v2680
      %v2697 = vunpack.c.l.b16 %v2681
      %v2698 = vunpack.c.l.b16 %v2682
      %v2699 = vpack.c.b16 %v2691, %v2691
      %v2700 = vpack.c.b16 %v2692, %v2692
      %v2701 = vpack.c.b16 %v2693, %v2693
      %v2702 = vpack.c.b16 %v2694, %v2694
      %v2703 = vpack.c.b16 %v2695, %v2695
      %v2704 = vpack.c.b16 %v2696, %v2696
      %v2705 = vpack.c.b16 %v2697, %v2697
      %v2706 = vpack.c.b16 %v2698, %v2698
      %v2707 = vunpack.c.l.b16 %v2699
      %v2708 = vunpack.c.l.b16 %v2700
      %v2709 = vunpack.c.l.b16 %v2701
      %v2710 = vunpack.c.l.b16 %v2702
      %v2711 = vunpack.c.l.b16 %v2703
      %v2712 = vunpack.c.l.b16 %v2704
      %v2713 = vunpack.c.l.b16 %v2705
      %v2714 = vunpack.c.l.b16 %v2706
      %v2715 = vsel %vm2534, %v2708, %v2707
      %v2716 = vsel %vm2536, %v2709, %v2715
      %v2717 = vsel %vm2538, %v2710, %v2716
      %v2718 = vsel %vm2540, %v2711, %v2717
      %v2719 = vsel %vm2542, %v2712, %v2718
      %v2720 = vsel %vm2544, %v2713, %v2719
      %v2721 = vpack.c.b16 %v2720, %v2720
      %v2722 = vpack.c.b16 %v2714, %v2714
      %v2725 = vld [vmem:[#allocation2] sm:$0xf]
      %v2726 = vsel %vm2622, %v2721, %v2725
      %2727 = vst [vmem:[#allocation2] sm:$0xf] %v2726
      %v2728 = vld [vmem:[#allocation2 + $0x4] sm:$0x1]
      %v2729 = vsel %vm492, %v2722, %v2728
      %2730 = vst [vmem:[#allocation2 + $0x4] sm:$0x1] %v2729
      %p2731 = scmp.lt.s32.totalorder %s24, 0
      %s2732 = scalar_select %p2731, 1, 0
      %v2733 = vstv %s2732
      %vm2734 = vcmp.eq.s32.totalorder %v2733, 1
      %v2735 = vsel %vm2734, %v2186, 0
      %v2736 = vsel %vm2734, %v2199, 0
      %v2737 = vsel %vm2734, %v2212, 0
      %v2738 = vsel %vm2734, %v2225, 0
      %v2739 = vsel %vm2734, %v2238, 0
      %v2740 = vsel %vm2734, %v2251, 0
      %v2741 = vsel %vm2734, %v2264, 0
      %v2742 = vsel %vm2734, %v2277, 0
      %v2751 = vunpack.c.l.b16 %v2735
      %v2752 = vunpack.c.l.b16 %v2736
      %v2753 = vunpack.c.l.b16 %v2737
      %v2754 = vunpack.c.l.b16 %v2738
      %v2755 = vunpack.c.l.b16 %v2739
      %v2756 = vunpack.c.l.b16 %v2740
      %v2757 = vunpack.c.l.b16 %v2741
      %v2758 = vunpack.c.l.b16 %v2742
      %v2759 = vpack.c.b16 %v2751, %v2751
      %v2760 = vpack.c.b16 %v2752, %v2752
      %v2761 = vpack.c.b16 %v2753, %v2753
      %v2762 = vpack.c.b16 %v2754, %v2754
      %v2763 = vpack.c.b16 %v2755, %v2755
      %v2764 = vpack.c.b16 %v2756, %v2756
      %v2765 = vpack.c.b16 %v2757, %v2757
      %v2766 = vpack.c.b16 %v2758, %v2758
      %v2767 = vunpack.c.l.b16 %v2759
      %v2768 = vunpack.c.l.b16 %v2760
      %v2769 = vunpack.c.l.b16 %v2761
      %v2770 = vunpack.c.l.b16 %v2762
      %v2771 = vunpack.c.l.b16 %v2763
      %v2772 = vunpack.c.l.b16 %v2764
      %v2773 = vunpack.c.l.b16 %v2765
      %v2774 = vunpack.c.l.b16 %v2766
      %v2775 = vsel %vm2534, %v2768, %v2767
      %v2776 = vsel %vm2536, %v2769, %v2775
      %v2777 = vsel %vm2538, %v2770, %v2776
      %v2778 = vsel %vm2540, %v2771, %v2777
      %v2779 = vsel %vm2542, %v2772, %v2778
      %v2780 = vsel %vm2544, %v2773, %v2779
      %v2781 = vpack.c.b16 %v2780, %v2780
      %v2782 = vpack.c.b16 %v2774, %v2774
      %s2785 = scalar_lea.vmem [#allocation2], 72
      %v2786 = vld [vmem:[%s2785] sm:$0xf]
      %v2787 = vsel %vm2622, %v2781, %v2786
      %2788 = vst [vmem:[%s2785] sm:$0xf] %v2787
      %v2789 = vld [vmem:[%s2785 + $0x4] sm:$0x1]
      %v2790 = vsel %vm492, %v2782, %v2789
      %2791 = vst [vmem:[%s2785 + $0x4] sm:$0x1] %v2790
      %v2792 = vld [vmem:[#allocation2] sm:$0xf]
      %v2793 = vld [vmem:[#allocation2 + $0x4] sm:$0x1]
      %v2794 = vld [vmem:[#allocation2 + $0x8] sm:$0xf]
      %v2795 = vld [vmem:[#allocation2 + $0xc] sm:$0x1]
      %v2796 = vld [vmem:[#allocation2 + $0x10] sm:$0xf]
      %v2797 = vld [vmem:[#allocation2 + $0x14] sm:$0x1]
      %v2798 = vld [vmem:[#allocation2 + $0x18] sm:$0xf]
      %v2799 = vld [vmem:[#allocation2 + $0x1c] sm:$0x1]
      %v2800 = vld [vmem:[#allocation2 + $0x20] sm:$0xf]
      %v2801 = vld [vmem:[#allocation2 + $0x24] sm:$0x1]
      %v2802 = vld [vmem:[#allocation2 + $0x28] sm:$0xf]
      %v2803 = vld [vmem:[#allocation2 + $0x2c] sm:$0x1]
      %v2804 = vld [vmem:[#allocation2 + $0x30] sm:$0xf]
      %v2805 = vld [vmem:[#allocation2 + $0x34] sm:$0x1]
      %v2806 = vld [vmem:[#allocation2 + $0x38] sm:$0xf]
      %v2807 = vld [vmem:[#allocation2 + $0x3c] sm:$0x1]
      %v2824 = vunpack.c.l.b16 %v2792
      %v2825 = vunpack.c.l.b16 %v2793
      %v2826 = vunpack.c.l.b16 %v2794
      %v2827 = vunpack.c.l.b16 %v2795
      %v2828 = vunpack.c.l.b16 %v2796
      %v2829 = vunpack.c.l.b16 %v2797
      %v2830 = vunpack.c.l.b16 %v2798
      %v2831 = vunpack.c.l.b16 %v2799
      %v2832 = vunpack.c.l.b16 %v2800
      %v2833 = vunpack.c.l.b16 %v2801
      %v2834 = vunpack.c.l.b16 %v2802
      %v2835 = vunpack.c.l.b16 %v2803
      %v2836 = vunpack.c.l.b16 %v2804
      %v2837 = vunpack.c.l.b16 %v2805
      %v2838 = vunpack.c.l.b16 %v2806
      %v2839 = vunpack.c.l.b16 %v2807
      %v2840 = vpack.c.b16 %v2825, %v2824
      %v2841 = vpack.c.b16 %v2827, %v2826
      %v2842 = vpack.c.b16 %v2829, %v2828
      %v2843 = vpack.c.b16 %v2831, %v2830
      %v2844 = vpack.c.b16 %v2833, %v2832
      %v2845 = vpack.c.b16 %v2835, %v2834
      %v2846 = vpack.c.b16 %v2837, %v2836
      %v2847 = vpack.c.b16 %v2839, %v2838
      %v2849 = vshrl.u32 %v2840, 16
      %v2851 = vshll.u32 %v2840, 16
      %v2853 = vrot.slane %v2851, 1
      %v2854 = vor.u32 %v2849, %v2853
      %v2856 = vshrl.u32 %v2841, 16
      %v2858 = vshll.u32 %v2841, 16
      %v2860 = vrot.slane %v2858, 1
      %v2861 = vor.u32 %v2856, %v2860
      %v2863 = vshrl.u32 %v2842, 16
      %v2865 = vshll.u32 %v2842, 16
      %v2867 = vrot.slane %v2865, 1
      %v2868 = vor.u32 %v2863, %v2867
      %v2870 = vshrl.u32 %v2843, 16
      %v2872 = vshll.u32 %v2843, 16
      %v2874 = vrot.slane %v2872, 1
      %v2875 = vor.u32 %v2870, %v2874
      %v2877 = vshrl.u32 %v2844, 16
      %v2879 = vshll.u32 %v2844, 16
      %v2881 = vrot.slane %v2879, 1
      %v2882 = vor.u32 %v2877, %v2881
      %v2884 = vshrl.u32 %v2845, 16
      %v2886 = vshll.u32 %v2845, 16
      %v2888 = vrot.slane %v2886, 1
      %v2889 = vor.u32 %v2884, %v2888
      %v2891 = vshrl.u32 %v2846, 16
      %v2893 = vshll.u32 %v2846, 16
      %v2895 = vrot.slane %v2893, 1
      %v2896 = vor.u32 %v2891, %v2895
      %v2898 = vshrl.u32 %v2847, 16
      %v2900 = vshll.u32 %v2847, 16
      %v2902 = vrot.slane %v2900, 1
      %v2903 = vor.u32 %v2898, %v2902
      %2904 = vrot.lane.b32.xlu0 %v2854, 4
      %v2905 = vpop.permute.xlu0 %2904
      %2906 = vrot.lane.b32.xlu0 %v2861, 4
      %v2907 = vpop.permute.xlu0 %2906
      %2908 = vrot.lane.b32.xlu0 %v2868, 4
      %v2909 = vpop.permute.xlu0 %2908
      %2910 = vrot.lane.b32.xlu0 %v2875, 4
      %v2911 = vpop.permute.xlu0 %2910
      %2912 = vrot.lane.b32.xlu0 %v2882, 4
      %v2913 = vpop.permute.xlu0 %2912
      %2914 = vrot.lane.b32.xlu0 %v2889, 4
      %v2915 = vpop.permute.xlu0 %2914
      %2916 = vrot.lane.b32.xlu0 %v2896, 4
      %v2917 = vpop.permute.xlu0 %2916
      %2918 = vrot.lane.b32.xlu0 %v2903, 4
      %v2919 = vpop.permute.xlu0 %2918
      %v2920 = vrot.slane %v2840, 1
      %v2921 = vrot.slane %v2841, 1
      %v2922 = vrot.slane %v2842, 1
      %v2923 = vrot.slane %v2843, 1
      %v2924 = vrot.slane %v2844, 1
      %v2925 = vrot.slane %v2845, 1
      %v2926 = vrot.slane %v2846, 1
      %v2927 = vrot.slane %v2847, 1
      %2928 = vrot.lane.b32.xlu0 %v2920, 8
      %v2929 = vpop.permute.xlu0 %2928
      %2930 = vrot.lane.b32.xlu0 %v2921, 8
      %v2931 = vpop.permute.xlu0 %2930
      %2932 = vrot.lane.b32.xlu0 %v2922, 8
      %v2933 = vpop.permute.xlu0 %2932
      %2934 = vrot.lane.b32.xlu0 %v2923, 8
      %v2935 = vpop.permute.xlu0 %2934
      %2936 = vrot.lane.b32.xlu0 %v2924, 8
      %v2937 = vpop.permute.xlu0 %2936
      %2938 = vrot.lane.b32.xlu0 %v2925, 8
      %v2939 = vpop.permute.xlu0 %2938
      %2940 = vrot.lane.b32.xlu0 %v2926, 8
      %v2941 = vpop.permute.xlu0 %2940
      %2942 = vrot.lane.b32.xlu0 %v2927, 8
      %v2943 = vpop.permute.xlu0 %2942
      %vm2944 = vcmask 31744
      %v2947 = vsel %vm2944, %v2792, %v2905
      %v2950 = vsel %vm2944, %v2794, %v2907
      %v2953 = vsel %vm2944, %v2796, %v2909
      %v2956 = vsel %vm2944, %v2798, %v2911
      %v2959 = vsel %vm2944, %v2800, %v2913
      %v2962 = vsel %vm2944, %v2802, %v2915
      %v2965 = vsel %vm2944, %v2804, %v2917
      %v2968 = vsel %vm2944, %v2806, %v2919
      %vm2969 = vcmask 64512
      %v2971 = vsel %vm2969, %v2947, %v2929
      %v2973 = vsel %vm2969, %v2950, %v2931
      %v2975 = vsel %vm2969, %v2953, %v2933
      %v2977 = vsel %vm2969, %v2956, %v2935
      %v2979 = vsel %vm2969, %v2959, %v2937
      %v2981 = vsel %vm2969, %v2962, %v2939
      %v2983 = vsel %vm2969, %v2965, %v2941
      %v2985 = vsel %vm2969, %v2968, %v2943
      %v2986 = vld [vmem:[%s3] sm:$0xf]
      %v2987 = vld [vmem:[%s3 + $0x4] sm:$0x3]
      %v2996 = vunpack.c.l.b16 %v2971
      %v2997 = vunpack.c.l.b16 %v2973
      %v2998 = vunpack.c.l.b16 %v2975
      %v2999 = vunpack.c.l.b16 %v2977
      %v3000 = vunpack.c.l.b16 %v2979
      %v3001 = vunpack.c.l.b16 %v2981
      %v3002 = vunpack.c.l.b16 %v2983
      %v3003 = vunpack.c.l.b16 %v2985
      %v3004 = vpack.c.b16 %v2997, %v2996
      %v3005 = vpack.c.b16 %v2999, %v2998
      %v3006 = vpack.c.b16 %v3001, %v3000
      %v3007 = vpack.c.b16 %v3003, %v3002
      %v3010 = vunpack.c.l.b16 %v2986
      %v3011 = vunpack.c.l.b16 %v2987
      %v3012 = vpack.c.b16 %v3011, %v3010
      %vm3013 = vcmask 97280
      %v3015 = vsel %vm3013, %v3004, 0
      %v3018 = vsel %vm3013, %v3005, 0
      %v3021 = vsel %vm3013, %v3006, 0
      %v3024 = vsel %vm3013, %v3007, 0
      %vm3026 = vcmask 1045504
      %v3028 = vsel %vm3026, %v3012, 0
      %3030 = vmatprep.subr.bf16.mxu0 0
      %3031 = vmatpush1.bf16.msra.mxu0 0
      %3032 = vmatprep.subr.bf16.mxu0 0
      %3033 = vmatpush1.bf16.msra.mxu0 0
      %3034 = vmatprep.subr.bf16.mxu0 0
      %3035 = vmatpush1.bf16.msra.mxu0 0
      %3036 = vmatprep.subr.bf16.mxu0 0
      %3037 = vmatpush1.bf16.msra.mxu0 0
      %3038 = vmatprep.subr.bf16.mxu0 0
      %3039 = vmatpush1.bf16.msra.mxu0 0
      %3040 = vmatprep.subr.bf16.mxu0 0
      %3041 = vmatpush1.bf16.msra.mxu0 0
      %3042 = vmatprep.subr.bf16.mxu0 0
      %3043 = vmatpush1.bf16.msra.mxu0 0
      %3044 = vmatprep.subr.bf16.mxu0 0
      %3045 = vmatpush1.bf16.msra.mxu0 %v3028
      %3046 = vmatprep.subr.bf16.mxu0 0
      %3047 = vmatpush2.bf16.msra.mxu0 0
      %3048 = vmatprep.subr.bf16.mxu0 0
      %3049 = vmatpush2.bf16.msra.mxu0 0
      %3050 = vmatprep.subr.bf16.mxu0 0
      %3051 = vmatpush2.bf16.msra.mxu0 0
      %3052 = vmatprep.subr.bf16.mxu0 0
      %3053 = vmatpush2.bf16.msra.mxu0 0
      %3054 = vmatprep.subr.bf16.mxu0 0
      %3055 = vmatpush2.bf16.msra.mxu0 0
      %3056 = vmatprep.subr.bf16.mxu0 0
      %3057 = vmatpush2.bf16.msra.mxu0 0
      %3058 = vmatprep.subr.bf16.mxu0 0
      %3059 = vmatpush2.bf16.msra.mxu0 0
      %3060 = vmatprep.subr.bf16.mxu0 0
      %3061 = vmatpush2.bf16.msra.mxu0 0
      %3062 = vmatprep.mubr.bf16.mxu0 0
      %3063 = vmatmul.mubr.bf16.gmra.mxu0 %v3015
      %v3064 = vpop.f32.mrf.mxu0
      %v3065 = vadd.f32 0.0, %v3064
      %v3066 = vpop.f32.mrf.mxu0
      %v3067 = vpop.f32.mrf.mxu0
      %v3068 = vadd.f32 0.0, %v3067
      %v3069 = vpop.f32.mrf.mxu0
      %3070 = vmatprep.mubr.bf16.mxu0 0
      %3071 = vmatmul.mubr.bf16.gmra.mxu0 %v3018
      %v3072 = vpop.f32.mrf.mxu0
      %v3073 = vadd.f32 0.0, %v3072
      %v3074 = vpop.f32.mrf.mxu0
      %v3075 = vpop.f32.mrf.mxu0
      %v3076 = vadd.f32 0.0, %v3075
      %v3077 = vpop.f32.mrf.mxu0
      %3078 = vmatprep.mubr.bf16.mxu0 0
      %3079 = vmatmul.mubr.bf16.gmra.mxu0 %v3021
      %v3080 = vpop.f32.mrf.mxu0
      %v3081 = vadd.f32 0.0, %v3080
      %v3082 = vpop.f32.mrf.mxu0
      %v3083 = vpop.f32.mrf.mxu0
      %v3084 = vadd.f32 0.0, %v3083
      %v3085 = vpop.f32.mrf.mxu0
      %3086 = vmatprep.mubr.bf16.mxu0 0
      %3087 = vmatmul.mubr.bf16.gmra.mxu0 %v3024
      %v3088 = vpop.f32.mrf.mxu0
      %v3089 = vadd.f32 0.0, %v3088
      %v3090 = vpop.f32.mrf.mxu0
      %v3091 = vpop.f32.mrf.mxu0
      %v3092 = vadd.f32 0.0, %v3091
      %v3093 = vpop.f32.mrf.mxu0
      %3094 = vdwg.mxu0
      %3095 = vst [vmem:[#allocation3] sm:$0xff] %v3065
      %3096 = vst [vmem:[#allocation3 + $0x8] sm:$0xff] %v3068
      %3097 = vst [vmem:[#allocation3 + $0x10] sm:$0xff] %v3073
      %3098 = vst [vmem:[#allocation3 + $0x18] sm:$0xff] %v3076
      %3099 = vst [vmem:[#allocation3 + $0x20] sm:$0xff] %v3081
      %3100 = vst [vmem:[#allocation3 + $0x28] sm:$0xff] %v3084
      %3101 = vst [vmem:[#allocation3 + $0x30] sm:$0xff] %v3089
      %3102 = vst [vmem:[#allocation3 + $0x38] sm:$0xff] %v3092
      %v3103 = vld [vmem:[%s2620] sm:$0xf]
      %v3104 = vld [vmem:[%s2620 + $0x4] sm:$0x1]
      %v3105 = vld [vmem:[%s2620 + $0x8] sm:$0xf]
      %v3106 = vld [vmem:[%s2620 + $0xc] sm:$0x1]
      %v3107 = vld [vmem:[%s2620 + $0x10] sm:$0xf]
      %v3108 = vld [vmem:[%s2620 + $0x14] sm:$0x1]
      %v3109 = vld [vmem:[%s2620 + $0x18] sm:$0xf]
      %v3110 = vld [vmem:[%s2620 + $0x1c] sm:$0x1]
      %v3111 = vld [vmem:[%s2620 + $0x20] sm:$0xf]
      %v3112 = vld [vmem:[%s2620 + $0x24] sm:$0x1]
      %v3113 = vld [vmem:[%s2620 + $0x28] sm:$0xf]
      %v3114 = vld [vmem:[%s2620 + $0x2c] sm:$0x1]
      %v3115 = vld [vmem:[%s2620 + $0x30] sm:$0xf]
      %v3116 = vld [vmem:[%s2620 + $0x34] sm:$0x1]
      %v3117 = vld [vmem:[%s2620 + $0x38] sm:$0xf]
      %v3118 = vld [vmem:[%s2620 + $0x3c] sm:$0x1]
      %v3135 = vunpack.c.l.b16 %v3103
      %v3136 = vunpack.c.l.b16 %v3104
      %v3137 = vunpack.c.l.b16 %v3105
      %v3138 = vunpack.c.l.b16 %v3106
      %v3139 = vunpack.c.l.b16 %v3107
      %v3140 = vunpack.c.l.b16 %v3108
      %v3141 = vunpack.c.l.b16 %v3109
      %v3142 = vunpack.c.l.b16 %v3110
      %v3143 = vunpack.c.l.b16 %v3111
      %v3144 = vunpack.c.l.b16 %v3112
      %v3145 = vunpack.c.l.b16 %v3113
      %v3146 = vunpack.c.l.b16 %v3114
      %v3147 = vunpack.c.l.b16 %v3115
      %v3148 = vunpack.c.l.b16 %v3116
      %v3149 = vunpack.c.l.b16 %v3117
      %v3150 = vunpack.c.l.b16 %v3118
      %v3151 = vpack.c.b16 %v3136, %v3135
      %v3152 = vpack.c.b16 %v3138, %v3137
      %v3153 = vpack.c.b16 %v3140, %v3139
      %v3154 = vpack.c.b16 %v3142, %v3141
      %v3155 = vpack.c.b16 %v3144, %v3143
      %v3156 = vpack.c.b16 %v3146, %v3145
      %v3157 = vpack.c.b16 %v3148, %v3147
      %v3158 = vpack.c.b16 %v3150, %v3149
      %v3160 = vshrl.u32 %v3151, 16
      %v3162 = vshll.u32 %v3151, 16
      %v3164 = vrot.slane %v3162, 1
      %v3165 = vor.u32 %v3160, %v3164
      %v3167 = vshrl.u32 %v3152, 16
      %v3169 = vshll.u32 %v3152, 16
      %v3171 = vrot.slane %v3169, 1
      %v3172 = vor.u32 %v3167, %v3171
      %v3174 = vshrl.u32 %v3153, 16
      %v3176 = vshll.u32 %v3153, 16
      %v3178 = vrot.slane %v3176, 1
      %v3179 = vor.u32 %v3174, %v3178
      %v3181 = vshrl.u32 %v3154, 16
      %v3183 = vshll.u32 %v3154, 16
      %v3185 = vrot.slane %v3183, 1
      %v3186 = vor.u32 %v3181, %v3185
      %v3188 = vshrl.u32 %v3155, 16
      %v3190 = vshll.u32 %v3155, 16
      %v3192 = vrot.slane %v3190, 1
      %v3193 = vor.u32 %v3188, %v3192
      %v3195 = vshrl.u32 %v3156, 16
      %v3197 = vshll.u32 %v3156, 16
      %v3199 = vrot.slane %v3197, 1
      %v3200 = vor.u32 %v3195, %v3199
      %v3202 = vshrl.u32 %v3157, 16
      %v3204 = vshll.u32 %v3157, 16
      %v3206 = vrot.slane %v3204, 1
      %v3207 = vor.u32 %v3202, %v3206
      %v3209 = vshrl.u32 %v3158, 16
      %v3211 = vshll.u32 %v3158, 16
      %v3213 = vrot.slane %v3211, 1
      %v3214 = vor.u32 %v3209, %v3213
      %3215 = vrot.lane.b32.xlu0 %v3165, 4
      %v3216 = vpop.permute.xlu0 %3215
      %3217 = vrot.lane.b32.xlu0 %v3172, 4
      %v3218 = vpop.permute.xlu0 %3217
      %3219 = vrot.lane.b32.xlu0 %v3179, 4
      %v3220 = vpop.permute.xlu0 %3219
      %3221 = vrot.lane.b32.xlu0 %v3186, 4
      %v3222 = vpop.permute.xlu0 %3221
      %3223 = vrot.lane.b32.xlu0 %v3193, 4
      %v3224 = vpop.permute.xlu0 %3223
      %3225 = vrot.lane.b32.xlu0 %v3200, 4
      %v3226 = vpop.permute.xlu0 %3225
      %3227 = vrot.lane.b32.xlu0 %v3207, 4
      %v3228 = vpop.permute.xlu0 %3227
      %3229 = vrot.lane.b32.xlu0 %v3214, 4
      %v3230 = vpop.permute.xlu0 %3229
      %v3231 = vrot.slane %v3151, 1
      %v3232 = vrot.slane %v3152, 1
      %v3233 = vrot.slane %v3153, 1
      %v3234 = vrot.slane %v3154, 1
      %v3235 = vrot.slane %v3155, 1
      %v3236 = vrot.slane %v3156, 1
      %v3237 = vrot.slane %v3157, 1
      %v3238 = vrot.slane %v3158, 1
      %3239 = vrot.lane.b32.xlu0 %v3231, 8
      %v3240 = vpop.permute.xlu0 %3239
      %3241 = vrot.lane.b32.xlu0 %v3232, 8
      %v3242 = vpop.permute.xlu0 %3241
      %3243 = vrot.lane.b32.xlu0 %v3233, 8
      %v3244 = vpop.permute.xlu0 %3243
      %3245 = vrot.lane.b32.xlu0 %v3234, 8
      %v3246 = vpop.permute.xlu0 %3245
      %3247 = vrot.lane.b32.xlu0 %v3235, 8
      %v3248 = vpop.permute.xlu0 %3247
      %3249 = vrot.lane.b32.xlu0 %v3236, 8
      %v3250 = vpop.permute.xlu0 %3249
      %3251 = vrot.lane.b32.xlu0 %v3237, 8
      %v3252 = vpop.permute.xlu0 %3251
      %3253 = vrot.lane.b32.xlu0 %v3238, 8
      %v3254 = vpop.permute.xlu0 %3253
      %v3257 = vsel %vm2944, %v3103, %v3216
      %v3260 = vsel %vm2944, %v3105, %v3218
      %v3263 = vsel %vm2944, %v3107, %v3220
      %v3266 = vsel %vm2944, %v3109, %v3222
      %v3269 = vsel %vm2944, %v3111, %v3224
      %v3272 = vsel %vm2944, %v3113, %v3226
      %v3275 = vsel %vm2944, %v3115, %v3228
      %v3278 = vsel %vm2944, %v3117, %v3230
      %v3280 = vsel %vm2969, %v3257, %v3240
      %v3282 = vsel %vm2969, %v3260, %v3242
      %v3284 = vsel %vm2969, %v3263, %v3244
      %v3286 = vsel %vm2969, %v3266, %v3246
      %v3288 = vsel %vm2969, %v3269, %v3248
      %v3290 = vsel %vm2969, %v3272, %v3250
      %v3292 = vsel %vm2969, %v3275, %v3252
      %v3294 = vsel %vm2969, %v3278, %v3254
      %s3295 = scalar_lea.vmem %s3, 8
      %v3296 = vld [vmem:[%s3295] sm:$0xf]
      %v3297 = vld [vmem:[%s3295 + $0x4] sm:$0x3]
      %v3306 = vunpack.c.l.b16 %v3280
      %v3307 = vunpack.c.l.b16 %v3282
      %v3308 = vunpack.c.l.b16 %v3284
      %v3309 = vunpack.c.l.b16 %v3286
      %v3310 = vunpack.c.l.b16 %v3288
      %v3311 = vunpack.c.l.b16 %v3290
      %v3312 = vunpack.c.l.b16 %v3292
      %v3313 = vunpack.c.l.b16 %v3294
      %v3314 = vpack.c.b16 %v3307, %v3306
      %v3315 = vpack.c.b16 %v3309, %v3308
      %v3316 = vpack.c.b16 %v3311, %v3310
      %v3317 = vpack.c.b16 %v3313, %v3312
      %v3320 = vunpack.c.l.b16 %v3296
      %v3321 = vunpack.c.l.b16 %v3297
      %v3322 = vpack.c.b16 %v3321, %v3320
      %v3324 = vsel %vm3013, %v3314, 0
      %v3327 = vsel %vm3013, %v3315, 0
      %v3330 = vsel %vm3013, %v3316, 0
      %v3333 = vsel %vm3013, %v3317, 0
      %v3336 = vsel %vm3026, %v3322, 0
      %3338 = vmatprep.subr.bf16.mxu0 0
      %3339 = vmatpush1.bf16.msra.mxu0 0
      %3340 = vmatprep.subr.bf16.mxu0 0
      %3341 = vmatpush1.bf16.msra.mxu0 0
      %3342 = vmatprep.subr.bf16.mxu0 0
      %3343 = vmatpush1.bf16.msra.mxu0 0
      %3344 = vmatprep.subr.bf16.mxu0 0
      %3345 = vmatpush1.bf16.msra.mxu0 0
      %3346 = vmatprep.subr.bf16.mxu0 0
      %3347 = vmatpush1.bf16.msra.mxu0 0
      %3348 = vmatprep.subr.bf16.mxu0 0
      %3349 = vmatpush1.bf16.msra.mxu0 0
      %3350 = vmatprep.subr.bf16.mxu0 0
      %3351 = vmatpush1.bf16.msra.mxu0 0
      %3352 = vmatprep.subr.bf16.mxu0 0
      %3353 = vmatpush1.bf16.msra.mxu0 %v3336
      %3354 = vmatprep.subr.bf16.mxu0 0
      %3355 = vmatpush2.bf16.msra.mxu0 0
      %3356 = vmatprep.subr.bf16.mxu0 0
      %3357 = vmatpush2.bf16.msra.mxu0 0
      %3358 = vmatprep.subr.bf16.mxu0 0
      %3359 = vmatpush2.bf16.msra.mxu0 0
      %3360 = vmatprep.subr.bf16.mxu0 0
      %3361 = vmatpush2.bf16.msra.mxu0 0
      %3362 = vmatprep.subr.bf16.mxu0 0
      %3363 = vmatpush2.bf16.msra.mxu0 0
      %3364 = vmatprep.subr.bf16.mxu0 0
      %3365 = vmatpush2.bf16.msra.mxu0 0
      %3366 = vmatprep.subr.bf16.mxu0 0
      %3367 = vmatpush2.bf16.msra.mxu0 0
      %3368 = vmatprep.subr.bf16.mxu0 0
      %3369 = vmatpush2.bf16.msra.mxu0 0
      %3370 = vmatprep.mubr.bf16.mxu0 0
      %3371 = vmatmul.mubr.bf16.gmra.mxu0 %v3324
      %v3372 = vpop.f32.mrf.mxu0
      %v3373 = vadd.f32 0.0, %v3372
      %v3374 = vpop.f32.mrf.mxu0
      %v3375 = vpop.f32.mrf.mxu0
      %v3376 = vadd.f32 0.0, %v3375
      %v3377 = vpop.f32.mrf.mxu0
      %3378 = vmatprep.mubr.bf16.mxu0 0
      %3379 = vmatmul.mubr.bf16.gmra.mxu0 %v3327
      %v3380 = vpop.f32.mrf.mxu0
      %v3381 = vadd.f32 0.0, %v3380
      %v3382 = vpop.f32.mrf.mxu0
      %v3383 = vpop.f32.mrf.mxu0
      %v3384 = vadd.f32 0.0, %v3383
      %v3385 = vpop.f32.mrf.mxu0
      %3386 = vmatprep.mubr.bf16.mxu0 0
      %3387 = vmatmul.mubr.bf16.gmra.mxu0 %v3330
      %v3388 = vpop.f32.mrf.mxu0
      %v3389 = vadd.f32 0.0, %v3388
      %v3390 = vpop.f32.mrf.mxu0
      %v3391 = vpop.f32.mrf.mxu0
      %v3392 = vadd.f32 0.0, %v3391
      %v3393 = vpop.f32.mrf.mxu0
      %3394 = vmatprep.mubr.bf16.mxu0 0
      %3395 = vmatmul.mubr.bf16.gmra.mxu0 %v3333
      %v3396 = vpop.f32.mrf.mxu0
      %v3397 = vadd.f32 0.0, %v3396
      %v3398 = vpop.f32.mrf.mxu0
      %v3399 = vpop.f32.mrf.mxu0
      %v3400 = vadd.f32 0.0, %v3399
      %v3401 = vpop.f32.mrf.mxu0
      %3402 = vdwg.mxu0
      %v3403 = vld [vmem:[#allocation3] sm:$0xff]
      %v3404 = vld [vmem:[#allocation3 + $0x8] sm:$0xff]
      %v3405 = vld [vmem:[#allocation3 + $0x10] sm:$0xff]
      %v3406 = vld [vmem:[#allocation3 + $0x18] sm:$0xff]
      %v3407 = vld [vmem:[#allocation3 + $0x20] sm:$0xff]
      %v3408 = vld [vmem:[#allocation3 + $0x28] sm:$0xff]
      %v3409 = vld [vmem:[#allocation3 + $0x30] sm:$0xff]
      %v3410 = vld [vmem:[#allocation3 + $0x38] sm:$0xff]
      %v3411 = vadd.f32 %v3403, %v3373
      %v3412 = vadd.f32 %v3404, %v3376
      %v3413 = vadd.f32 %v3405, %v3381
      %v3414 = vadd.f32 %v3406, %v3384
      %v3415 = vadd.f32 %v3407, %v3389
      %v3416 = vadd.f32 %v3408, %v3392
      %v3417 = vadd.f32 %v3409, %v3397
      %v3418 = vadd.f32 %v3410, %v3400
      %3419 = vst [vmem:[#allocation3] sm:$0xff] %v3411
      %3420 = vst [vmem:[#allocation3 + $0x8] sm:$0xff] %v3412
      %3421 = vst [vmem:[#allocation3 + $0x10] sm:$0xff] %v3413
      %3422 = vst [vmem:[#allocation3 + $0x18] sm:$0xff] %v3414
      %3423 = vst [vmem:[#allocation3 + $0x20] sm:$0xff] %v3415
      %3424 = vst [vmem:[#allocation3 + $0x28] sm:$0xff] %v3416
      %3425 = vst [vmem:[#allocation3 + $0x30] sm:$0xff] %v3417
      %3426 = vst [vmem:[#allocation3 + $0x38] sm:$0xff] %v3418
      %s3427 = scalar_lea.vmem [#allocation2], 16
      %v3428 = vld [vmem:[%s3427] sm:$0xf]
      %v3429 = vld [vmem:[%s3427 + $0x4] sm:$0x1]
      %v3430 = vld [vmem:[%s3427 + $0x8] sm:$0xf]
      %v3431 = vld [vmem:[%s3427 + $0xc] sm:$0x1]
      %v3432 = vld [vmem:[%s3427 + $0x10] sm:$0xf]
      %v3433 = vld [vmem:[%s3427 + $0x14] sm:$0x1]
      %v3434 = vld [vmem:[%s3427 + $0x18] sm:$0xf]
      %v3435 = vld [vmem:[%s3427 + $0x1c] sm:$0x1]
      %v3436 = vld [vmem:[%s3427 + $0x20] sm:$0xf]
      %v3437 = vld [vmem:[%s3427 + $0x24] sm:$0x1]
      %v3438 = vld [vmem:[%s3427 + $0x28] sm:$0xf]
      %v3439 = vld [vmem:[%s3427 + $0x2c] sm:$0x1]
      %v3440 = vld [vmem:[%s3427 + $0x30] sm:$0xf]
      %v3441 = vld [vmem:[%s3427 + $0x34] sm:$0x1]
      %v3442 = vld [vmem:[%s3427 + $0x38] sm:$0xf]
      %v3443 = vld [vmem:[%s3427 + $0x3c] sm:$0x1]
      %v3460 = vunpack.c.l.b16 %v3428
      %v3461 = vunpack.c.l.b16 %v3429
      %v3462 = vunpack.c.l.b16 %v3430
      %v3463 = vunpack.c.l.b16 %v3431
      %v3464 = vunpack.c.l.b16 %v3432
      %v3465 = vunpack.c.l.b16 %v3433
      %v3466 = vunpack.c.l.b16 %v3434
      %v3467 = vunpack.c.l.b16 %v3435
      %v3468 = vunpack.c.l.b16 %v3436
      %v3469 = vunpack.c.l.b16 %v3437
      %v3470 = vunpack.c.l.b16 %v3438
      %v3471 = vunpack.c.l.b16 %v3439
      %v3472 = vunpack.c.l.b16 %v3440
      %v3473 = vunpack.c.l.b16 %v3441
      %v3474 = vunpack.c.l.b16 %v3442
      %v3475 = vunpack.c.l.b16 %v3443
      %v3476 = vpack.c.b16 %v3461, %v3460
      %v3477 = vpack.c.b16 %v3463, %v3462
      %v3478 = vpack.c.b16 %v3465, %v3464
      %v3479 = vpack.c.b16 %v3467, %v3466
      %v3480 = vpack.c.b16 %v3469, %v3468
      %v3481 = vpack.c.b16 %v3471, %v3470
      %v3482 = vpack.c.b16 %v3473, %v3472
      %v3483 = vpack.c.b16 %v3475, %v3474
      %v3485 = vshrl.u32 %v3476, 16
      %v3487 = vshll.u32 %v3476, 16
      %v3489 = vrot.slane %v3487, 1
      %v3490 = vor.u32 %v3485, %v3489
      %v3492 = vshrl.u32 %v3477, 16
      %v3494 = vshll.u32 %v3477, 16
      %v3496 = vrot.slane %v3494, 1
      %v3497 = vor.u32 %v3492, %v3496
      %v3499 = vshrl.u32 %v3478, 16
      %v3501 = vshll.u32 %v3478, 16
      %v3503 = vrot.slane %v3501, 1
      %v3504 = vor.u32 %v3499, %v3503
      %v3506 = vshrl.u32 %v3479, 16
      %v3508 = vshll.u32 %v3479, 16
      %v3510 = vrot.slane %v3508, 1
      %v3511 = vor.u32 %v3506, %v3510
      %v3513 = vshrl.u32 %v3480, 16
      %v3515 = vshll.u32 %v3480, 16
      %v3517 = vrot.slane %v3515, 1
      %v3518 = vor.u32 %v3513, %v3517
      %v3520 = vshrl.u32 %v3481, 16
      %v3522 = vshll.u32 %v3481, 16
      %v3524 = vrot.slane %v3522, 1
      %v3525 = vor.u32 %v3520, %v3524
      %v3527 = vshrl.u32 %v3482, 16
      %v3529 = vshll.u32 %v3482, 16
      %v3531 = vrot.slane %v3529, 1
      %v3532 = vor.u32 %v3527, %v3531
      %v3534 = vshrl.u32 %v3483, 16
      %v3536 = vshll.u32 %v3483, 16
      %v3538 = vrot.slane %v3536, 1
      %v3539 = vor.u32 %v3534, %v3538
      %3540 = vrot.lane.b32.xlu0 %v3490, 4
      %v3541 = vpop.permute.xlu0 %3540
      %3542 = vrot.lane.b32.xlu0 %v3497, 4
      %v3543 = vpop.permute.xlu0 %3542
      %3544 = vrot.lane.b32.xlu0 %v3504, 4
      %v3545 = vpop.permute.xlu0 %3544
      %3546 = vrot.lane.b32.xlu0 %v3511, 4
      %v3547 = vpop.permute.xlu0 %3546
      %3548 = vrot.lane.b32.xlu0 %v3518, 4
      %v3549 = vpop.permute.xlu0 %3548
      %3550 = vrot.lane.b32.xlu0 %v3525, 4
      %v3551 = vpop.permute.xlu0 %3550
      %3552 = vrot.lane.b32.xlu0 %v3532, 4
      %v3553 = vpop.permute.xlu0 %3552
      %3554 = vrot.lane.b32.xlu0 %v3539, 4
      %v3555 = vpop.permute.xlu0 %3554
      %v3556 = vrot.slane %v3476, 1
      %v3557 = vrot.slane %v3477, 1
      %v3558 = vrot.slane %v3478, 1
      %v3559 = vrot.slane %v3479, 1
      %v3560 = vrot.slane %v3480, 1
      %v3561 = vrot.slane %v3481, 1
      %v3562 = vrot.slane %v3482, 1
      %v3563 = vrot.slane %v3483, 1
      %3564 = vrot.lane.b32.xlu0 %v3556, 8
      %v3565 = vpop.permute.xlu0 %3564
      %3566 = vrot.lane.b32.xlu0 %v3557, 8
      %v3567 = vpop.permute.xlu0 %3566
      %3568 = vrot.lane.b32.xlu0 %v3558, 8
      %v3569 = vpop.permute.xlu0 %3568
      %3570 = vrot.lane.b32.xlu0 %v3559, 8
      %v3571 = vpop.permute.xlu0 %3570
      %3572 = vrot.lane.b32.xlu0 %v3560, 8
      %v3573 = vpop.permute.xlu0 %3572
      %3574 = vrot.lane.b32.xlu0 %v3561, 8
      %v3575 = vpop.permute.xlu0 %3574
      %3576 = vrot.lane.b32.xlu0 %v3562, 8
      %v3577 = vpop.permute.xlu0 %3576
      %3578 = vrot.lane.b32.xlu0 %v3563, 8
      %v3579 = vpop.permute.xlu0 %3578
      %v3582 = vsel %vm2944, %v3428, %v3541
      %v3585 = vsel %vm2944, %v3430, %v3543
      %v3588 = vsel %vm2944, %v3432, %v3545
      %v3591 = vsel %vm2944, %v3434, %v3547
      %v3594 = vsel %vm2944, %v3436, %v3549
      %v3597 = vsel %vm2944, %v3438, %v3551
      %v3600 = vsel %vm2944, %v3440, %v3553
      %v3603 = vsel %vm2944, %v3442, %v3555
      %v3605 = vsel %vm2969, %v3582, %v3565
      %v3607 = vsel %vm2969, %v3585, %v3567
      %v3609 = vsel %vm2969, %v3588, %v3569
      %v3611 = vsel %vm2969, %v3591, %v3571
      %v3613 = vsel %vm2969, %v3594, %v3573
      %v3615 = vsel %vm2969, %v3597, %v3575
      %v3617 = vsel %vm2969, %v3600, %v3577
      %v3619 = vsel %vm2969, %v3603, %v3579
      %s3620 = scalar_lea.vmem %s3, 16
      %v3621 = vld [vmem:[%s3620] sm:$0xf]
      %v3622 = vld [vmem:[%s3620 + $0x4] sm:$0x3]
      %v3631 = vunpack.c.l.b16 %v3605
      %v3632 = vunpack.c.l.b16 %v3607
      %v3633 = vunpack.c.l.b16 %v3609
      %v3634 = vunpack.c.l.b16 %v3611
      %v3635 = vunpack.c.l.b16 %v3613
      %v3636 = vunpack.c.l.b16 %v3615
      %v3637 = vunpack.c.l.b16 %v3617
      %v3638 = vunpack.c.l.b16 %v3619
      %v3639 = vpack.c.b16 %v3632, %v3631
      %v3640 = vpack.c.b16 %v3634, %v3633
      %v3641 = vpack.c.b16 %v3636, %v3635
      %v3642 = vpack.c.b16 %v3638, %v3637
      %v3645 = vunpack.c.l.b16 %v3621
      %v3646 = vunpack.c.l.b16 %v3622
      %v3647 = vpack.c.b16 %v3646, %v3645
      %v3649 = vsel %vm3013, %v3639, 0
      %v3652 = vsel %vm3013, %v3640, 0
      %v3655 = vsel %vm3013, %v3641, 0
      %v3658 = vsel %vm3013, %v3642, 0
      %v3661 = vsel %vm3026, %v3647, 0
      %3663 = vmatprep.subr.bf16.mxu0 0
      %3664 = vmatpush1.bf16.msra.mxu0 0
      %3665 = vmatprep.subr.bf16.mxu0 0
      %3666 = vmatpush1.bf16.msra.mxu0 0
      %3667 = vmatprep.subr.bf16.mxu0 0
      %3668 = vmatpush1.bf16.msra.mxu0 0
      %3669 = vmatprep.subr.bf16.mxu0 0
      %3670 = vmatpush1.bf16.msra.mxu0 0
      %3671 = vmatprep.subr.bf16.mxu0 0
      %3672 = vmatpush1.bf16.msra.mxu0 0
      %3673 = vmatprep.subr.bf16.mxu0 0
      %3674 = vmatpush1.bf16.msra.mxu0 0
      %3675 = vmatprep.subr.bf16.mxu0 0
      %3676 = vmatpush1.bf16.msra.mxu0 0
      %3677 = vmatprep.subr.bf16.mxu0 0
      %3678 = vmatpush1.bf16.msra.mxu0 %v3661
      %3679 = vmatprep.subr.bf16.mxu0 0
      %3680 = vmatpush2.bf16.msra.mxu0 0
      %3681 = vmatprep.subr.bf16.mxu0 0
      %3682 = vmatpush2.bf16.msra.mxu0 0
      %3683 = vmatprep.subr.bf16.mxu0 0
      %3684 = vmatpush2.bf16.msra.mxu0 0
      %3685 = vmatprep.subr.bf16.mxu0 0
      %3686 = vmatpush2.bf16.msra.mxu0 0
      %3687 = vmatprep.subr.bf16.mxu0 0
      %3688 = vmatpush2.bf16.msra.mxu0 0
      %3689 = vmatprep.subr.bf16.mxu0 0
      %3690 = vmatpush2.bf16.msra.mxu0 0
      %3691 = vmatprep.subr.bf16.mxu0 0
      %3692 = vmatpush2.bf16.msra.mxu0 0
      %3693 = vmatprep.subr.bf16.mxu0 0
      %3694 = vmatpush2.bf16.msra.mxu0 0
      %3695 = vmatprep.mubr.bf16.mxu0 0
      %3696 = vmatmul.mubr.bf16.gmra.mxu0 %v3649
      %v3697 = vpop.f32.mrf.mxu0
      %v3698 = vadd.f32 0.0, %v3697
      %v3699 = vpop.f32.mrf.mxu0
      %v3700 = vpop.f32.mrf.mxu0
      %v3701 = vadd.f32 0.0, %v3700
      %v3702 = vpop.f32.mrf.mxu0
      %3703 = vmatprep.mubr.bf16.mxu0 0
      %3704 = vmatmul.mubr.bf16.gmra.mxu0 %v3652
      %v3705 = vpop.f32.mrf.mxu0
      %v3706 = vadd.f32 0.0, %v3705
      %v3707 = vpop.f32.mrf.mxu0
      %v3708 = vpop.f32.mrf.mxu0
      %v3709 = vadd.f32 0.0, %v3708
      %v3710 = vpop.f32.mrf.mxu0
      %3711 = vmatprep.mubr.bf16.mxu0 0
      %3712 = vmatmul.mubr.bf16.gmra.mxu0 %v3655
      %v3713 = vpop.f32.mrf.mxu0
      %v3714 = vadd.f32 0.0, %v3713
      %v3715 = vpop.f32.mrf.mxu0
      %v3716 = vpop.f32.mrf.mxu0
      %v3717 = vadd.f32 0.0, %v3716
      %v3718 = vpop.f32.mrf.mxu0
      %3719 = vmatprep.mubr.bf16.mxu0 0
      %3720 = vmatmul.mubr.bf16.gmra.mxu0 %v3658
      %v3721 = vpop.f32.mrf.mxu0
      %v3722 = vadd.f32 0.0, %v3721
      %v3723 = vpop.f32.mrf.mxu0
      %v3724 = vpop.f32.mrf.mxu0
      %v3725 = vadd.f32 0.0, %v3724
      %v3726 = vpop.f32.mrf.mxu0
      %3727 = vdwg.mxu0
      %v3728 = vld [vmem:[#allocation3] sm:$0xff]
      %v3729 = vld [vmem:[#allocation3 + $0x8] sm:$0xff]
      %v3730 = vld [vmem:[#allocation3 + $0x10] sm:$0xff]
      %v3731 = vld [vmem:[#allocation3 + $0x18] sm:$0xff]
      %v3732 = vld [vmem:[#allocation3 + $0x20] sm:$0xff]
      %v3733 = vld [vmem:[#allocation3 + $0x28] sm:$0xff]
      %v3734 = vld [vmem:[#allocation3 + $0x30] sm:$0xff]
      %v3735 = vld [vmem:[#allocation3 + $0x38] sm:$0xff]
      %v3736 = vadd.f32 %v3728, %v3698
      %v3737 = vadd.f32 %v3729, %v3701
      %v3738 = vadd.f32 %v3730, %v3706
      %v3739 = vadd.f32 %v3731, %v3709
      %v3740 = vadd.f32 %v3732, %v3714
      %v3741 = vadd.f32 %v3733, %v3717
      %v3742 = vadd.f32 %v3734, %v3722
      %v3743 = vadd.f32 %v3735, %v3725
      %3744 = vst [vmem:[#allocation3] sm:$0xff] %v3736
      %3745 = vst [vmem:[#allocation3 + $0x8] sm:$0xff] %v3737
      %3746 = vst [vmem:[#allocation3 + $0x10] sm:$0xff] %v3738
      %3747 = vst [vmem:[#allocation3 + $0x18] sm:$0xff] %v3739
      %3748 = vst [vmem:[#allocation3 + $0x20] sm:$0xff] %v3740
      %3749 = vst [vmem:[#allocation3 + $0x28] sm:$0xff] %v3741
      %3750 = vst [vmem:[#allocation3 + $0x30] sm:$0xff] %v3742
      %3751 = vst [vmem:[#allocation3 + $0x38] sm:$0xff] %v3743
      %v3752 = vld [vmem:[#allocation3] sm:$0xff]
      %v3753 = vld [vmem:[#allocation3 + $0x8] sm:$0xff]
      %v3754 = vld [vmem:[#allocation3 + $0x10] sm:$0xff]
      %v3755 = vld [vmem:[#allocation3 + $0x18] sm:$0xff]
      %v3756 = vld [vmem:[#allocation3 + $0x20] sm:$0xff]
      %v3757 = vld [vmem:[#allocation3 + $0x28] sm:$0xff]
      %v3758 = vld [vmem:[#allocation3 + $0x30] sm:$0xff]
      %v3759 = vld [vmem:[#allocation3 + $0x38] sm:$0xff]
      %v3760 = vld [vmem:[%s4] sm:$0x1]
      %v3762 = vlaneseq
      %v3763 = vshrl.u32 %v3762, 7
      %v3764 = vsub.s32 0, %v3763
      %v3765 = vrot.slane %v3760, %v3764
      %v3767 = vadd.f32 %v3752, %v3765
      %v3768 = vadd.f32 %v3753, %v3765
      %v3769 = vadd.f32 %v3754, %v3765
      %v3770 = vadd.f32 %v3755, %v3765
      %v3771 = vadd.f32 %v3756, %v3765
      %v3772 = vadd.f32 %v3757, %v3765
      %v3773 = vadd.f32 %v3758, %v3765
      %v3774 = vadd.f32 %v3759, %v3765
      %v3775 = vpack.c.bf16 %v3767, %v3767
      %v3776 = vpack.c.bf16 %v3768, %v3768
      %v3777 = vpack.c.bf16 %v3769, %v3769
      %v3778 = vpack.c.bf16 %v3770, %v3770
      %v3779 = vpack.c.bf16 %v3771, %v3771
      %v3780 = vpack.c.bf16 %v3772, %v3772
      %v3781 = vpack.c.bf16 %v3773, %v3773
      %v3782 = vpack.c.bf16 %v3774, %v3774
      %3783 = vst [vmem:[%s474] sm:$0xf] %v3775
      %3784 = vst [vmem:[%s474 + $0x4] sm:$0xf] %v3776
      %3785 = vst [vmem:[%s474 + $0x8] sm:$0xf] %v3777
      %3786 = vst [vmem:[%s474 + $0xc] sm:$0xf] %v3778
      %3787 = vst [vmem:[%s474 + $0x10] sm:$0xf] %v3779
      %3788 = vst [vmem:[%s474 + $0x14] sm:$0xf] %v3780
      %3789 = vst [vmem:[%s474 + $0x18] sm:$0xf] %v3781
      %3790 = vst [vmem:[%s474 + $0x1c] sm:$0xf] %v3782
      %v3791 = vadd.f32 %v3767, %v3768
      %v3792 = vadd.f32 %v3791, %v3769
      %v3793 = vadd.f32 %v3792, %v3770
      %v3794 = vadd.f32 %v3793, %v3771
      %v3795 = vadd.f32 %v3794, %v3772
      %v3796 = vadd.f32 %v3795, %v3773
      %v3797 = vadd.f32 %v3796, %v3774
      %v3798 = vrot.slane %v3797, 4
      %v3799 = vadd.f32 %v3797, %v3798
      %v3800 = vrot.slane %v3799, 2
      %v3801 = vadd.f32 %v3799, %v3800
      %v3802 = vrot.slane %v3801, 1
      %v3803 = vadd.f32 %v3801, %v3802
      %3804 = vst [vmem:[%s481] sm:$0x1] %v3803
      %v3805 = vmul.f32 %v3767, %v3767
      %v3806 = vmul.f32 %v3768, %v3768
      %v3807 = vmul.f32 %v3769, %v3769
      %v3808 = vmul.f32 %v3770, %v3770
      %v3809 = vmul.f32 %v3771, %v3771
      %v3810 = vmul.f32 %v3772, %v3772
      %v3811 = vmul.f32 %v3773, %v3773
      %v3812 = vmul.f32 %v3774, %v3774
      %v3813 = vadd.f32 %v3805, %v3806
      %v3814 = vadd.f32 %v3813, %v3807
      %v3815 = vadd.f32 %v3814, %v3808
      %v3816 = vadd.f32 %v3815, %v3809
      %v3817 = vadd.f32 %v3816, %v3810
      %v3818 = vadd.f32 %v3817, %v3811
      %v3819 = vadd.f32 %v3818, %v3812
      %v3820 = vrot.slane %v3819, 4
      %v3821 = vadd.f32 %v3819, %v3820
      %v3822 = vrot.slane %v3821, 2
      %v3823 = vadd.f32 %v3821, %v3822
      %v3824 = vrot.slane %v3823, 1
      %v3825 = vadd.f32 %v3823, %v3824
      %3826 = vst [vmem:[%s487] sm:$0x1] %v3825
      %s3827 = smul.u32 8, %s24
      %p3828 = scmp.lt.s32.totalorder %s23, 1
      %s3829 = scalar_select %p3828, %s23, 1
      %p3830 = scmp.lt.s32.totalorder %s3827, 7
      %s3831 = scalar_select %p3830, %s3827, 7
      %s3832 = smul.addr %s3829, 8
      %s3833 = sadd.s32 %s3831, %s3832
      %s3834 = smul.addr %s3833, 4
      %s3835 = scalar_lea.vmem %s5, %s3834
      %p3836 = scmp.lt.s32.totalorder %s23, 1
      %s3837 = scalar_select %p3836, %s23, 1
      %p3838 = scmp.lt.s32.totalorder %s24, 0
      %s3839 = scalar_select %p3838, %s24, 0
      %s3840 = sadd.s32 %s3839, %s3837
      %s3841 = scalar_lea.vmem %s6, %s3840
      %p3842 = scmp.lt.s32.totalorder %s23, 1
      %s3843 = scalar_select %p3842, %s23, 1
      %p3844 = scmp.lt.s32.totalorder %s24, 0
      %s3845 = scalar_select %p3844, %s24, 0
      %s3846 = sadd.s32 %s3845, %s3843
      %s3847 = scalar_lea.vmem %s7, %s3846
      // Predicated region
      $region41: #{down_forward.3} parent=39 // pred_check
        %p3848 = pneg %p193
      $region42: #{down_forward.3} parent=39 // pred_check_branch
        %3850 = sbr.rel (%p3848) target = $region44
      $region43: #{down_forward.3} parent=39 // pred_region
        %s3851 = smul.u32 8, %s24
      $region44: #{down_forward.3} parent=39 // pred_fallthru
        _
      // Predicated region
      $region45: #{down_forward.3} parent=39 // pred_check
        %p3852 = pneg %p221
      $region46: #{down_forward.3} parent=39 // pred_check_branch
        %3854 = sbr.rel (%p3852) target = $region48
      $region47: #{down_forward.3} parent=39 // pred_region
        _
      $region48: #{down_forward.3} parent=39 // pred_fallthru
        _
      // Predicated region
      $region49: #{down_forward.3} parent=39 // pred_check
        %p3855 = pneg %p249
      $region50: #{down_forward.3} parent=39 // pred_check_branch
        %3857 = sbr.rel (%p3855) target = $region52
      $region51: #{down_forward.3} parent=39 // pred_region
        _
      $region52: #{down_forward.3} parent=39 // pred_fallthru
        _
    $region40: #{down_forward.3} parent=5 // pred_fallthru
      _
    %p3858 = scmp.le.s32.totalorder 2, %s14
    // Predicated region
    $region53: #{down_forward.3} parent=5 // pred_check
      %p3859 = pneg %p3858
    $region54: #{down_forward.3} parent=5 // pred_check_branch
      %3861 = sbr.rel (%p3859) target = $region56
    $region55: #{down_forward.3} parent=5 // pred_region
      %s3862 = ssub.s32 %s14, 2
      // Predicated region
      $region57: #{down_forward.3} parent=55 // pred_check
        %p3863 = pneg %p199
      $region58: #{down_forward.3} parent=55 // pred_check_branch
        %3865 = sbr.rel (%p3863) target = $region60
      $region59: #{down_forward.3} parent=55 // pred_region
        %s3866 = smul.u32 8, %s26
        %p3867 = scmp.lt.s32.totalorder %s25, 1
        %s3868 = scalar_select %p3867, %s25, 1
        %p3869 = scmp.lt.s32.totalorder %s3866, 7
        %s3870 = scalar_select %p3869, %s3866, 7
        %s3871 = smul.addr %s3868, 8
        %s3872 = sadd.s32 %s3870, %s3871
        %s3873 = smul.addr %s3872, 4
        %s3874 = scalar_lea.vmem %s5, %s3873
      $region60: #{down_forward.3} parent=55 // pred_fallthru
        _
      // Predicated region
      $region61: #{down_forward.3} parent=55 // pred_check
        %p3875 = pneg %p227
      $region62: #{down_forward.3} parent=55 // pred_check_branch
        %3877 = sbr.rel (%p3875) target = $region64
      $region63: #{down_forward.3} parent=55 // pred_region
        %p3878 = scmp.lt.s32.totalorder %s25, 1
        %s3879 = scalar_select %p3878, %s25, 1
        %p3880 = scmp.lt.s32.totalorder %s26, 0
        %s3881 = scalar_select %p3880, %s26, 0
        %s3882 = sadd.s32 %s3881, %s3879
        %s3883 = scalar_lea.vmem %s6, %s3882
      $region64: #{down_forward.3} parent=55 // pred_fallthru
        _
      // Predicated region
      $region65: #{down_forward.3} parent=55 // pred_check
        %p3884 = pneg %p255
      $region66: #{down_forward.3} parent=55 // pred_check_branch
        %3886 = sbr.rel (%p3884) target = $region68
      $region67: #{down_forward.3} parent=55 // pred_region
        %p3887 = scmp.lt.s32.totalorder %s25, 1
        %s3888 = scalar_select %p3887, %s25, 1
        %p3889 = scmp.lt.s32.totalorder %s26, 0
        %s3890 = scalar_select %p3889, %s26, 0
        %s3891 = sadd.s32 %s3890, %s3888
        %s3892 = scalar_lea.vmem %s7, %s3891
      $region68: #{down_forward.3} parent=55 // pred_fallthru
        _
    $region56: #{down_forward.3} parent=5 // pred_fallthru
      _
  $region6: #{down_forward.3} parent=0 // loop_footer
    %s18 = sadd.s32 1, %s14
  $region7: #{down_forward.3} parent=0 // loop_footer_branch
    %13 = sbr.rel target = $region3
  $region8: #{down_forward.3} parent=0 // loop_exit
    _

// kernel: down_forward.4
$region0: #{down_forward.4}
  #allocation0 [shape = 'u32[]', space=smem, size = 0x4, offset = 0x4, fixed_abs, tag = 'smem constant byte address 0x4 - core index']
  #allocation1 [shape = 'u32[144,128]{1,0:T(1,128)}', space=vmem, size = 0x12000, scoped, tag = 'internal scratch']
  #allocation2 [shape = 'bf16[10,10,128]{2,1,0:T(8,128)(2,1)}', space=vmem, size = 0xa000, scoped, tag = 'scratch operand']
  #allocation3 [shape = 'f32[64,128]{1,0:T(8,128)}', space=vmem, size = 0x8000, scoped, tag = 'scratch operand']
  #allocation4 [shape = 'bf16[8,8,384]{2,1,0:T(8,128)(2,1)}', space=vmem, size = 0xc000, scoped, tag = 'scratch operand']
  %s0 = inlined_call_operand.vmem [shape: bf16[2,8,8,128], index: 0, kind: input, shape index: {}, may-alias: {0,1,2}]
  %s1 = inlined_call_operand.vmem [shape: bf16[2,8,8,128], index: 1, kind: input, shape index: {}, may-alias: {0,1,2}]
  %s2 = inlined_call_operand.vmem [shape: bf16[2,8,8,128], index: 2, kind: input, shape index: {}, may-alias: {0,1,2}]
  %s3 = inlined_call_operand.vmem [shape: f32[1,128], index: 3, kind: input, shape index: {}]
  %s4 = inlined_call_operand.vmem [shape: f32[1,128], index: 4, kind: input, shape index: {}]
  %s5 = inlined_call_operand.vmem [shape: bf16[3,384,128], index: 5, kind: input, shape index: {}]
  %s6 = inlined_call_operand.vmem [shape: f32[1,128], index: 6, kind: input, shape index: {}]
  %s7 = inlined_call_operand.vmem [shape: bf16[2,8,8,128], index: 7, kind: output, shape index: {0}]
  %s8 = inlined_call_operand.vmem [shape: f32[2,1,1,128], index: 8, kind: output, shape index: {1}]
  %s9 = inlined_call_operand.vmem [shape: f32[2,1,1,128], index: 9, kind: output, shape index: {2}]
  %10 = xla_tuple %s7, %s8, %s9
  %s11 = sld [smem:[#allocation0]]
  $region77: #{down_forward.4} parent=0
    _
  %s13 = ssub.s32 1, %s11
  %s14 = scalar_select 0, %s13, %s11
  loop: start=0, step=1, limit=4
  $region2: #{down_forward.4} parent=0 // loop_pre_header
    _
  $region3: #{down_forward.4} parent=0 // loop_header
    %s16 = sphi 0, %s20
    %p17 = scmp.ge.s32.totalorder %s16, 4
    %s23 = sphi 0, %s35
    %s24 = sphi 0, %s31
    %s25 = sphi 0, %s23
    %s26 = sphi 0, %s24
    %s27 = sphi 0, %s25
    %s28 = sphi 0, %s26
    %s40 = sphi 0, %s42
    %s43 = sphi 0, %s40
    %s44 = sphi 0, %s43
    %s60 = sphi 0, %s44
    %s76 = sphi 0, %s78
    %s79 = sphi 0, %s76
    %s80 = sphi 0, %s79
    %s96 = sphi 0, %s80
    %s112 = sphi 0, %s114
    %s115 = sphi 0, %s112
    %s116 = sphi 0, %s115
    %s132 = sphi 0, %s116
    %s136 = sphi 0, %s136
    %s138 = sphi 0, %s136
    %s139 = sphi 0, %s138
    %s153 = sphi 0, %s139
    %s157 = sphi 0, %s157
    %s159 = sphi 0, %s157
    %s160 = sphi 0, %s159
    %s174 = sphi 0, %s160
    %s178 = sphi 0, %s178
    %s180 = sphi 0, %s178
    %s181 = sphi 0, %s180
    %s195 = sphi 0, %s181
    %s199 = sphi 0, %s199
    %s201 = sphi 0, %s199
    %s202 = sphi 0, %s201
    %s216 = sphi 0, %s202
    %s224 = sphi 0, %s226
    %s227 = sphi 0, %s224
    %s228 = sphi 0, %s227
    %s244 = sphi 0, %s228
    %s252 = sphi 0, %s254
    %s255 = sphi 0, %s252
    %s256 = sphi 0, %s255
    %s272 = sphi 0, %s256
    %s280 = sphi 0, %s282
    %s283 = sphi 0, %s280
    %s284 = sphi 0, %s283
    %s300 = sphi 0, %s284
  $region4: #{down_forward.4} parent=0 // loop_header_branch
    %19 = sbr.rel (%p17) target = $region8
  $region5: #{down_forward.4} parent=0 // loop_body
    %s21 = ssub.s32 %s16, 1
    %s22 = ssub.s32 %s16, 2
    %s29 = sadd.s32 1, %s24
    %p30 = scmp.ge.s32.totalorder %s29, 1
    %s31 = scalar_select %p30, 0, %s29
    %s32 = sadd.s32 1, %s23
    %s33 = scalar_select %p30, %s32, %s23
    %p34 = scmp.ge.s32.totalorder %s33, 2
    %s35 = scalar_select %p34, 0, %s33
    %s36 = ssub.s32 %s23, %s35
    %s37 = ssub.s32 %s24, %s31
    %s38 = sor.u32 %s36, %s37
    %p39 = scmp.eq.s32.totalorder %s38, 0
    %s41 = sadd.s32 %s40, 1
    %s42 = scalar_select %p39, %s40, %s41
    %p45 = pneg %p39
    %p46 = scmp.eq.s32.totalorder %s16, 1
    %p47 = por %p45, %p46
    %p48 = scmp.ne.s32.totalorder %s40, %s43
    %p49 = scmp.eq.s32.totalorder %s16, 0
    %p50 = por %p48, %p49
    %p51 = scmp.ne.s32.totalorder %s40, %s43
    %p52 = scmp.eq.s32.totalorder %s21, 1
    %p53 = por %p51, %p52
    %p54 = scmp.ne.s32.totalorder %s43, %s44
    %p55 = scmp.eq.s32.totalorder %s21, 0
    %p56 = por %p54, %p55
    %p57 = scmp.ne.s32.totalorder %s43, %s44
    %p58 = scmp.eq.s32.totalorder %s22, 1
    %p59 = por %p57, %p58
    %p61 = scmp.ne.s32.totalorder %s44, %s60
    %p62 = scmp.eq.s32.totalorder %s22, 0
    %p63 = por %p61, %p62
    %s64 = smul.u32 %s24, 8
    %s65 = ssub.s32 %s64, 1
    %p66 = scmp.gt.s32.totalorder %s65, 0
    %s67 = scalar_select %p66, %s65, 0
    %s68 = smul.u32 %s31, 8
    %s69 = ssub.s32 %s68, 1
    %p70 = scmp.gt.s32.totalorder %s69, 0
    %s71 = scalar_select %p70, %s69, 0
    %s72 = ssub.s32 %s23, %s35
    %s73 = ssub.s32 %s67, %s71
    %s74 = sor.u32 %s72, %s73
    %p75 = scmp.eq.s32.totalorder %s74, 0
    %s77 = sadd.s32 %s76, 1
    %s78 = scalar_select %p75, %s76, %s77
    %p81 = pneg %p75
    %p82 = scmp.eq.s32.totalorder %s16, 1
    %p83 = por %p81, %p82
    %p84 = scmp.ne.s32.totalorder %s76, %s79
    %p85 = scmp.eq.s32.totalorder %s16, 0
    %p86 = por %p84, %p85
    %p87 = scmp.ne.s32.totalorder %s76, %s79
    %p88 = scmp.eq.s32.totalorder %s21, 1
    %p89 = por %p87, %p88
    %p90 = scmp.ne.s32.totalorder %s79, %s80
    %p91 = scmp.eq.s32.totalorder %s21, 0
    %p92 = por %p90, %p91
    %p93 = scmp.ne.s32.totalorder %s79, %s80
    %p94 = scmp.eq.s32.totalorder %s22, 1
    %p95 = por %p93, %p94
    %p97 = scmp.ne.s32.totalorder %s80, %s96
    %p98 = scmp.eq.s32.totalorder %s22, 0
    %p99 = por %p97, %p98
    %s100 = sadd.s32 %s24, 1
    %s101 = smul.u32 %s100, 8
    %p102 = scmp.lt.s32.totalorder %s101, 7
    %s103 = scalar_select %p102, %s101, 7
    %s104 = sadd.s32 %s31, 1
    %s105 = smul.u32 %s104, 8
    %p106 = scmp.lt.s32.totalorder %s105, 7
    %s107 = scalar_select %p106, %s105, 7
    %s108 = ssub.s32 %s23, %s35
    %s109 = ssub.s32 %s103, %s107
    %s110 = sor.u32 %s108, %s109
    %p111 = scmp.eq.s32.totalorder %s110, 0
    %s113 = sadd.s32 %s112, 1
    %s114 = scalar_select %p111, %s112, %s113
    %p117 = pneg %p111
    %p118 = scmp.eq.s32.totalorder %s16, 1
    %p119 = por %p117, %p118
    %p120 = scmp.ne.s32.totalorder %s112, %s115
    %p121 = scmp.eq.s32.totalorder %s16, 0
    %p122 = por %p120, %p121
    %p123 = scmp.ne.s32.totalorder %s112, %s115
    %p124 = scmp.eq.s32.totalorder %s21, 1
    %p125 = por %p123, %p124
    %p126 = scmp.ne.s32.totalorder %s115, %s116
    %p127 = scmp.eq.s32.totalorder %s21, 0
    %p128 = por %p126, %p127
    %p129 = scmp.ne.s32.totalorder %s115, %s116
    %p130 = scmp.eq.s32.totalorder %s22, 1
    %p131 = por %p129, %p130
    %p133 = scmp.ne.s32.totalorder %s116, %s132
    %p134 = scmp.eq.s32.totalorder %s22, 0
    %p135 = por %p133, %p134
    %s137 = sadd.s32 %s136, 1
    %p140 = scmp.eq.s32.totalorder %s16, 1
    %p141 = scmp.ne.s32.totalorder %s136, %s138
    %p142 = scmp.eq.s32.totalorder %s16, 0
    %p143 = por %p141, %p142
    %p144 = scmp.ne.s32.totalorder %s136, %s138
    %p145 = scmp.eq.s32.totalorder %s21, 1
    %p146 = por %p144, %p145
    %p147 = scmp.ne.s32.totalorder %s138, %s139
    %p148 = scmp.eq.s32.totalorder %s21, 0
    %p149 = por %p147, %p148
    %p150 = scmp.ne.s32.totalorder %s138, %s139
    %p151 = scmp.eq.s32.totalorder %s22, 1
    %p152 = por %p150, %p151
    %p154 = scmp.ne.s32.totalorder %s139, %s153
    %p155 = scmp.eq.s32.totalorder %s22, 0
    %p156 = por %p154, %p155
    %s158 = sadd.s32 %s157, 1
    %p161 = scmp.eq.s32.totalorder %s16, 1
    %p162 = scmp.ne.s32.totalorder %s157, %s159
    %p163 = scmp.eq.s32.totalorder %s16, 0
    %p164 = por %p162, %p163
    %p165 = scmp.ne.s32.totalorder %s157, %s159
    %p166 = scmp.eq.s32.totalorder %s21, 1
    %p167 = por %p165, %p166
    %p168 = scmp.ne.s32.totalorder %s159, %s160
    %p169 = scmp.eq.s32.totalorder %s21, 0
    %p170 = por %p168, %p169
    %p171 = scmp.ne.s32.totalorder %s159, %s160
    %p172 = scmp.eq.s32.totalorder %s22, 1
    %p173 = por %p171, %p172
    %p175 = scmp.ne.s32.totalorder %s160, %s174
    %p176 = scmp.eq.s32.totalorder %s22, 0
    %p177 = por %p175, %p176
    %s179 = sadd.s32 %s178, 1
    %p182 = scmp.eq.s32.totalorder %s16, 1
    %p183 = scmp.ne.s32.totalorder %s178, %s180
    %p184 = scmp.eq.s32.totalorder %s16, 0
    %p185 = por %p183, %p184
    %p186 = scmp.ne.s32.totalorder %s178, %s180
    %p187 = scmp.eq.s32.totalorder %s21, 1
    %p188 = por %p186, %p187
    %p189 = scmp.ne.s32.totalorder %s180, %s181
    %p190 = scmp.eq.s32.totalorder %s21, 0
    %p191 = por %p189, %p190
    %p192 = scmp.ne.s32.totalorder %s180, %s181
    %p193 = scmp.eq.s32.totalorder %s22, 1
    %p194 = por %p192, %p193
    %p196 = scmp.ne.s32.totalorder %s181, %s195
    %p197 = scmp.eq.s32.totalorder %s22, 0
    %p198 = por %p196, %p197
    %s200 = sadd.s32 %s199, 1
    %p203 = scmp.eq.s32.totalorder %s16, 1
    %p204 = scmp.ne.s32.totalorder %s199, %s201
    %p205 = scmp.eq.s32.totalorder %s16, 0
    %p206 = por %p204, %p205
    %p207 = scmp.ne.s32.totalorder %s199, %s201
    %p208 = scmp.eq.s32.totalorder %s21, 1
    %p209 = por %p207, %p208
    %p210 = scmp.ne.s32.totalorder %s201, %s202
    %p211 = scmp.eq.s32.totalorder %s21, 0
    %p212 = por %p210, %p211
    %p213 = scmp.ne.s32.totalorder %s201, %s202
    %p214 = scmp.eq.s32.totalorder %s22, 1
    %p215 = por %p213, %p214
    %p217 = scmp.ne.s32.totalorder %s202, %s216
    %p218 = scmp.eq.s32.totalorder %s22, 0
    %p219 = por %p217, %p218
    %s220 = ssub.s32 %s23, %s35
    %s221 = ssub.s32 %s24, %s31
    %s222 = sor.u32 %s220, %s221
    %p223 = scmp.eq.s32.totalorder %s222, 0
    %s225 = sadd.s32 %s224, 1
    %s226 = scalar_select %p223, %s224, %s225
    %p229 = pneg %p223
    %p230 = scmp.eq.s32.totalorder %s16, 1
    %p231 = por %p229, %p230
    %p232 = scmp.ne.s32.totalorder %s224, %s227
    %p233 = scmp.eq.s32.totalorder %s16, 0
    %p234 = por %p232, %p233
    %p235 = scmp.ne.s32.totalorder %s224, %s227
    %p236 = scmp.eq.s32.totalorder %s21, 1
    %p237 = por %p235, %p236
    %p238 = scmp.ne.s32.totalorder %s227, %s228
    %p239 = scmp.eq.s32.totalorder %s21, 0
    %p240 = por %p238, %p239
    %p241 = scmp.ne.s32.totalorder %s227, %s228
    %p242 = scmp.eq.s32.totalorder %s22, 1
    %p243 = por %p241, %p242
    %p245 = scmp.ne.s32.totalorder %s228, %s244
    %p246 = scmp.eq.s32.totalorder %s22, 0
    %p247 = por %p245, %p246
    %s248 = ssub.s32 %s23, %s35
    %s249 = ssub.s32 %s24, %s31
    %s250 = sor.u32 %s248, %s249
    %p251 = scmp.eq.s32.totalorder %s250, 0
    %s253 = sadd.s32 %s252, 1
    %s254 = scalar_select %p251, %s252, %s253
    %p257 = pneg %p251
    %p258 = scmp.eq.s32.totalorder %s16, 1
    %p259 = por %p257, %p258
    %p260 = scmp.ne.s32.totalorder %s252, %s255
    %p261 = scmp.eq.s32.totalorder %s16, 0
    %p262 = por %p260, %p261
    %p263 = scmp.ne.s32.totalorder %s252, %s255
    %p264 = scmp.eq.s32.totalorder %s21, 1
    %p265 = por %p263, %p264
    %p266 = scmp.ne.s32.totalorder %s255, %s256
    %p267 = scmp.eq.s32.totalorder %s21, 0
    %p268 = por %p266, %p267
    %p269 = scmp.ne.s32.totalorder %s255, %s256
    %p270 = scmp.eq.s32.totalorder %s22, 1
    %p271 = por %p269, %p270
    %p273 = scmp.ne.s32.totalorder %s256, %s272
    %p274 = scmp.eq.s32.totalorder %s22, 0
    %p275 = por %p273, %p274
    %s276 = ssub.s32 %s23, %s35
    %s277 = ssub.s32 %s24, %s31
    %s278 = sor.u32 %s276, %s277
    %p279 = scmp.eq.s32.totalorder %s278, 0
    %s281 = sadd.s32 %s280, 1
    %s282 = scalar_select %p279, %s280, %s281
    %p285 = pneg %p279
    %p286 = scmp.eq.s32.totalorder %s16, 1
    %p287 = por %p285, %p286
    %p288 = scmp.ne.s32.totalorder %s280, %s283
    %p289 = scmp.eq.s32.totalorder %s16, 0
    %p290 = por %p288, %p289
    %p291 = scmp.ne.s32.totalorder %s280, %s283
    %p292 = scmp.eq.s32.totalorder %s21, 1
    %p293 = por %p291, %p292
    %p294 = scmp.ne.s32.totalorder %s283, %s284
    %p295 = scmp.eq.s32.totalorder %s21, 0
    %p296 = por %p294, %p295
    %p297 = scmp.ne.s32.totalorder %s283, %s284
    %p298 = scmp.eq.s32.totalorder %s22, 1
    %p299 = por %p297, %p298
    %p301 = scmp.ne.s32.totalorder %s284, %s300
    %p302 = scmp.eq.s32.totalorder %s22, 0
    %p303 = por %p301, %p302
    %p304 = scmp.le.s32.totalorder 1, %s16
    %p305 = scmp.lt.s32.totalorder %s16, 3
    %p306 = pnand %p304, %p305
    %p307 = pneg %p306
    // Predicated region
    $region9: #{down_forward.4} parent=5 // pred_check
      _
    $region10: #{down_forward.4} parent=5 // pred_check_branch
      %309 = sbr.rel (%p306) target = $region12
    $region11: #{down_forward.4} parent=5 // pred_region
      %s310 = ssub.s32 %s16, 1
      // Predicated region
      $region13: #{down_forward.4} parent=11 // pred_check
        %p311 = pneg %p149
      $region14: #{down_forward.4} parent=11 // pred_check_branch
        %313 = sbr.rel (%p311) target = $region16
      $region15: #{down_forward.4} parent=11 // pred_region
        _
      $region16: #{down_forward.4} parent=11 // pred_fallthru
        _
      // Predicated region
      $region17: #{down_forward.4} parent=11 // pred_check
        %p314 = pneg %p170
      $region18: #{down_forward.4} parent=11 // pred_check_branch
        %316 = sbr.rel (%p314) target = $region20
      $region19: #{down_forward.4} parent=11 // pred_region
        _
      $region20: #{down_forward.4} parent=11 // pred_fallthru
        _
      // Predicated region
      $region21: #{down_forward.4} parent=11 // pred_check
        %p317 = pneg %p191
      $region22: #{down_forward.4} parent=11 // pred_check_branch
        %319 = sbr.rel (%p317) target = $region24
      $region23: #{down_forward.4} parent=11 // pred_region
        _
      $region24: #{down_forward.4} parent=11 // pred_fallthru
        _
      // Predicated region
      $region25: #{down_forward.4} parent=11 // pred_check
        %p320 = pneg %p212
      $region26: #{down_forward.4} parent=11 // pred_check_branch
        %322 = sbr.rel (%p320) target = $region28
      $region27: #{down_forward.4} parent=11 // pred_region
        _
      $region28: #{down_forward.4} parent=11 // pred_fallthru
        _
    $region12: #{down_forward.4} parent=5 // pred_fallthru
      _
    %p323 = scmp.lt.s32.totalorder %s16, 2
    // Predicated region
    $region29: #{down_forward.4} parent=5 // pred_check
      %p324 = pneg %p323
    $region30: #{down_forward.4} parent=5 // pred_check_branch
      %326 = sbr.rel (%p324) target = $region32
    $region31: #{down_forward.4} parent=5 // pred_region
      // Predicated region
      $region33: #{down_forward.4} parent=31 // pred_check
        %p327 = pneg %p50
      $region34: #{down_forward.4} parent=31 // pred_check_branch
        %329 = sbr.rel (%p327) target = $region36
      $region35: #{down_forward.4} parent=31 // pred_region
        %s330 = smul.u32 8, %s24
        %p331 = scmp.lt.s32.totalorder %s23, 1
        %s332 = scalar_select %p331, %s23, 1
        %p333 = scmp.lt.s32.totalorder %s330, 7
        %s334 = scalar_select %p333, %s330, 7
        %s335 = smul.addr %s332, 8
        %s336 = sadd.s32 %s334, %s335
        %s337 = smul.addr %s336, 4
        %s338 = scalar_lea.vmem %s0, %s337
        %s339 = smul.u32 8, %s24
      $region36: #{down_forward.4} parent=31 // pred_fallthru
        _
      // Predicated region
      $region37: #{down_forward.4} parent=31 // pred_check
        %p340 = pneg %p86
      $region38: #{down_forward.4} parent=31 // pred_check_branch
        %342 = sbr.rel (%p340) target = $region40
      $region39: #{down_forward.4} parent=31 // pred_region
        %s343 = smul.u32 %s24, 8
        %s344 = ssub.s32 %s343, 1
        %p345 = scmp.gt.s32.totalorder %s344, 0
        %s346 = scalar_select %p345, %s344, 0
        %p347 = scmp.lt.s32.totalorder %s23, 1
        %s348 = scalar_select %p347, %s23, 1
        %p349 = scmp.lt.s32.totalorder %s346, 7
        %s350 = scalar_select %p349, %s346, 7
        %s351 = smul.addr %s348, 8
        %s352 = sadd.s32 %s350, %s351
        %s353 = smul.addr %s352, 4
        %s354 = scalar_lea.vmem %s1, %s353
        %s355 = smul.u32 %s24, 8
        %s356 = ssub.s32 %s355, 1
        %p357 = scmp.gt.s32.totalorder %s356, 0
        %s358 = scalar_select %p357, %s356, 0
      $region40: #{down_forward.4} parent=31 // pred_fallthru
        _
      // Predicated region
      $region41: #{down_forward.4} parent=31 // pred_check
        %p359 = pneg %p122
      $region42: #{down_forward.4} parent=31 // pred_check_branch
        %361 = sbr.rel (%p359) target = $region44
      $region43: #{down_forward.4} parent=31 // pred_region
        %s362 = sadd.s32 %s24, 1
        %s363 = smul.u32 %s362, 8
        %p364 = scmp.lt.s32.totalorder %s363, 7
        %s365 = scalar_select %p364, %s363, 7
        %p366 = scmp.lt.s32.totalorder %s23, 1
        %s367 = scalar_select %p366, %s23, 1
        %p368 = scmp.lt.s32.totalorder %s365, 7
        %s369 = scalar_select %p368, %s365, 7
        %s370 = smul.addr %s367, 8
        %s371 = sadd.s32 %s369, %s370
        %s372 = smul.addr %s371, 4
        %s373 = scalar_lea.vmem %s2, %s372
        %s374 = sadd.s32 %s24, 1
        %s375 = smul.u32 %s374, 8
        %p376 = scmp.lt.s32.totalorder %s375, 7
        %s377 = scalar_select %p376, %s375, 7
      $region44: #{down_forward.4} parent=31 // pred_fallthru
        _
    $region32: #{down_forward.4} parent=5 // pred_fallthru
      _
    %p378 = scmp.le.s32.totalorder 1, %s16
    %p379 = scmp.lt.s32.totalorder %s16, 3
    %p380 = pnand %p378, %p379
    %p381 = pneg %p380
    // Predicated region
    $region45: #{down_forward.4} parent=5 // pred_check
      _
    $region46: #{down_forward.4} parent=5 // pred_check_branch
      %383 = sbr.rel (%p380) target = $region48
    $region47: #{down_forward.4} parent=5 // pred_region
      %s384 = ssub.s32 %s16, 1
      %s385 = smul.u32 8, %s26
      %p386 = scmp.lt.s32.totalorder %s25, 1
      %s387 = scalar_select %p386, %s25, 1
      %p388 = scmp.lt.s32.totalorder %s385, 7
      %s389 = scalar_select %p388, %s385, 7
      %s390 = smul.addr %s387, 8
      %s391 = sadd.s32 %s389, %s390
      %s392 = smul.addr %s391, 4
      %s393 = scalar_lea.vmem %s0, %s392
      %p394 = pneg %p56
      %p395 = pneg %p53
      %s396 = smul.u32 %s26, 8
      %s397 = ssub.s32 %s396, 1
      %p398 = scmp.gt.s32.totalorder %s397, 0
      %s399 = scalar_select %p398, %s397, 0
      %p400 = scmp.lt.s32.totalorder %s25, 1
      %s401 = scalar_select %p400, %s25, 1
      %p402 = scmp.lt.s32.totalorder %s399, 7
      %s403 = scalar_select %p402, %s399, 7
      %s404 = smul.addr %s401, 8
      %s405 = sadd.s32 %s403, %s404
      %s406 = smul.addr %s405, 4
      %s407 = scalar_lea.vmem %s1, %s406
      %p408 = pneg %p92
      %p409 = pneg %p89
      %s410 = sadd.s32 %s26, 1
      %s411 = smul.u32 %s410, 8
      %p412 = scmp.lt.s32.totalorder %s411, 7
      %s413 = scalar_select %p412, %s411, 7
      %p414 = scmp.lt.s32.totalorder %s25, 1
      %s415 = scalar_select %p414, %s25, 1
      %p416 = scmp.lt.s32.totalorder %s413, 7
      %s417 = scalar_select %p416, %s413, 7
      %s418 = smul.addr %s415, 8
      %s419 = sadd.s32 %s417, %s418
      %s420 = smul.addr %s419, 4
      %s421 = scalar_lea.vmem %s2, %s420
      %p422 = pneg %p128
      %p423 = pneg %p125
      %p424 = pneg %p149
      %p425 = pneg %p146
      %p426 = pneg %p170
      %p427 = pneg %p167
      %p428 = pneg %p191
      %p429 = pneg %p188
      %p430 = pneg %p212
      %p431 = pneg %p209
      %p432 = pneg %p240
      %p433 = pneg %p237
      %s434 = smul.u32 8, %s26
      %p435 = scmp.lt.s32.totalorder %s25, 1
      %s436 = scalar_select %p435, %s25, 1
      %p437 = scmp.lt.s32.totalorder %s434, 7
      %s438 = scalar_select %p437, %s434, 7
      %s439 = smul.addr %s436, 8
      %s440 = sadd.s32 %s438, %s439
      %s441 = smul.addr %s440, 4
      %s442 = scalar_lea.vmem %s7, %s441
      %p443 = pneg %p268
      %p444 = pneg %p265
      %p445 = scmp.lt.s32.totalorder %s25, 1
      %s446 = scalar_select %p445, %s25, 1
      %p447 = scmp.lt.s32.totalorder %s26, 0
      %s448 = scalar_select %p447, %s26, 0
      %s449 = sadd.s32 %s448, %s446
      %s450 = scalar_lea.vmem %s8, %s449
      %p451 = pneg %p296
      %p452 = pneg %p293
      %p453 = scmp.lt.s32.totalorder %s25, 1
      %s454 = scalar_select %p453, %s25, 1
      %p455 = scmp.lt.s32.totalorder %s26, 0
      %s456 = scalar_select %p455, %s26, 0
      %s457 = sadd.s32 %s456, %s454
      %s458 = scalar_lea.vmem %s9, %s457
      %s459 = smul.u32 8, %s26
      %p460 = scmp.lt.s32.totalorder %s25, 1
      %s461 = scalar_select %p460, %s25, 1
      %p462 = scmp.lt.s32.totalorder %s459, 7
      %s463 = scalar_select %p462, %s459, 7
      %s464 = smul.addr %s461, 8
      %s465 = sadd.s32 %s463, %s464
      %s466 = smul.addr %s465, 4
      %s467 = scalar_lea.vmem %s0, %s466
      %s468 = smul.u32 8, %s26
      %s469 = smul.u32 %s26, 8
      %s470 = ssub.s32 %s469, 1
      %p471 = scmp.gt.s32.totalorder %s470, 0
      %s472 = scalar_select %p471, %s470, 0
      %p473 = scmp.lt.s32.totalorder %s25, 1
      %s474 = scalar_select %p473, %s25, 1
      %p475 = scmp.lt.s32.totalorder %s472, 7
      %s476 = scalar_select %p475, %s472, 7
      %s477 = smul.addr %s474, 8
      %s478 = sadd.s32 %s476, %s477
      %s479 = smul.addr %s478, 4
      %s480 = scalar_lea.vmem %s1, %s479
      %s481 = smul.u32 %s26, 8
      %s482 = ssub.s32 %s481, 1
      %p483 = scmp.gt.s32.totalorder %s482, 0
      %s484 = scalar_select %p483, %s482, 0
      %s485 = sadd.s32 %s26, 1
      %s486 = smul.u32 %s485, 8
      %p487 = scmp.lt.s32.totalorder %s486, 7
      %s488 = scalar_select %p487, %s486, 7
      %p489 = scmp.lt.s32.totalorder %s25, 1
      %s490 = scalar_select %p489, %s25, 1
      %p491 = scmp.lt.s32.totalorder %s488, 7
      %s492 = scalar_select %p491, %s488, 7
      %s493 = smul.addr %s490, 8
      %s494 = sadd.s32 %s492, %s493
      %s495 = smul.addr %s494, 4
      %s496 = scalar_lea.vmem %s2, %s495
      %s497 = sadd.s32 %s26, 1
      %s498 = smul.u32 %s497, 8
      %p499 = scmp.lt.s32.totalorder %s498, 7
      %s500 = scalar_select %p499, %s498, 7
      %s501 = smul.u32 8, %s26
      %p502 = scmp.lt.s32.totalorder %s25, 1
      %s503 = scalar_select %p502, %s25, 1
      %p504 = scmp.lt.s32.totalorder %s501, 7
      %s505 = scalar_select %p504, %s501, 7
      %s506 = smul.addr %s503, 8
      %s507 = sadd.s32 %s505, %s506
      %s508 = smul.addr %s507, 4
      %s509 = scalar_lea.vmem %s7, %s508
      %s510 = smul.u32 8, %s26
      %p511 = scmp.lt.s32.totalorder %s25, 1
      %s512 = scalar_select %p511, %s25, 1
      %p513 = scmp.lt.s32.totalorder %s26, 0
      %s514 = scalar_select %p513, %s26, 0
      %s515 = sadd.s32 %s514, %s512
      %s516 = scalar_lea.vmem %s8, %s515
      %p517 = scmp.lt.s32.totalorder %s25, 1
      %s518 = scalar_select %p517, %s25, 1
      %p519 = scmp.lt.s32.totalorder %s26, 0
      %s520 = scalar_select %p519, %s26, 0
      %s521 = sadd.s32 %s520, %s518
      %s522 = scalar_lea.vmem %s9, %s521
      %vm524 = vcmask 1040384
      %vm525 = vsmask.f32 256
      %vm526 = vmand %vm524, %vm525
      %v527 = vld [vmem:[#allocation2] sm:$0x1]
      %v528 = vsel %vm526, 0, %v527
      %529 = vst [vmem:[#allocation2] sm:$0x1] %v528
      %v530 = vld [vmem:[#allocation2 + $0x8] sm:$0x1]
      %v531 = vsel %vm526, 0, %v530
      %532 = vst [vmem:[#allocation2 + $0x8] sm:$0x1] %v531
      %v533 = vld [vmem:[#allocation2 + $0x10] sm:$0x1]
      %v534 = vsel %vm526, 0, %v533
      %535 = vst [vmem:[#allocation2 + $0x10] sm:$0x1] %v534
      %v536 = vld [vmem:[#allocation2 + $0x18] sm:$0x1]
      %v537 = vsel %vm526, 0, %v536
      %538 = vst [vmem:[#allocation2 + $0x18] sm:$0x1] %v537
      %v539 = vld [vmem:[#allocation2 + $0x20] sm:$0x1]
      %v540 = vsel %vm526, 0, %v539
      %541 = vst [vmem:[#allocation2 + $0x20] sm:$0x1] %v540
      %v542 = vld [vmem:[#allocation2 + $0x28] sm:$0x1]
      %v543 = vsel %vm526, 0, %v542
      %544 = vst [vmem:[#allocation2 + $0x28] sm:$0x1] %v543
      %v545 = vld [vmem:[#allocation2 + $0x30] sm:$0x1]
      %v546 = vsel %vm526, 0, %v545
      %547 = vst [vmem:[#allocation2 + $0x30] sm:$0x1] %v546
      %v548 = vld [vmem:[#allocation2 + $0x38] sm:$0x1]
      %v549 = vsel %vm526, 0, %v548
      %550 = vst [vmem:[#allocation2 + $0x38] sm:$0x1] %v549
      %v551 = vld [vmem:[#allocation2 + $0x40] sm:$0x1]
      %v552 = vsel %vm526, 0, %v551
      %553 = vst [vmem:[#allocation2 + $0x40] sm:$0x1] %v552
      %v554 = vld [vmem:[#allocation2 + $0x48] sm:$0x1]
      %v555 = vsel %vm526, 0, %v554
      %556 = vst [vmem:[#allocation2 + $0x48] sm:$0x1] %v555
      %vm557 = vsmask.f32 7938
      %vm558 = vmand %vm524, %vm557
      %v559 = vld [vmem:[#allocation2 + $0x4] sm:$0x1]
      %v560 = vsel %vm558, 0, %v559
      %561 = vst [vmem:[#allocation2 + $0x4] sm:$0x1] %v560
      %v562 = vld [vmem:[#allocation2 + $0xc] sm:$0x1]
      %v563 = vsel %vm558, 0, %v562
      %564 = vst [vmem:[#allocation2 + $0xc] sm:$0x1] %v563
      %v565 = vld [vmem:[#allocation2 + $0x14] sm:$0x1]
      %v566 = vsel %vm558, 0, %v565
      %567 = vst [vmem:[#allocation2 + $0x14] sm:$0x1] %v566
      %v568 = vld [vmem:[#allocation2 + $0x1c] sm:$0x1]
      %v569 = vsel %vm558, 0, %v568
      %570 = vst [vmem:[#allocation2 + $0x1c] sm:$0x1] %v569
      %v571 = vld [vmem:[#allocation2 + $0x24] sm:$0x1]
      %v572 = vsel %vm558, 0, %v571
      %573 = vst [vmem:[#allocation2 + $0x24] sm:$0x1] %v572
      %v574 = vld [vmem:[#allocation2 + $0x2c] sm:$0x1]
      %v575 = vsel %vm558, 0, %v574
      %576 = vst [vmem:[#allocation2 + $0x2c] sm:$0x1] %v575
      %v577 = vld [vmem:[#allocation2 + $0x34] sm:$0x1]
      %v578 = vsel %vm558, 0, %v577
      %579 = vst [vmem:[#allocation2 + $0x34] sm:$0x1] %v578
      %v580 = vld [vmem:[#allocation2 + $0x3c] sm:$0x1]
      %v581 = vsel %vm558, 0, %v580
      %582 = vst [vmem:[#allocation2 + $0x3c] sm:$0x1] %v581
      %v583 = vld [vmem:[#allocation2 + $0x44] sm:$0x1]
      %v584 = vsel %vm558, 0, %v583
      %585 = vst [vmem:[#allocation2 + $0x44] sm:$0x1] %v584
      %v586 = vld [vmem:[#allocation2 + $0x4c] sm:$0x1]
      %v587 = vsel %vm558, 0, %v586
      %588 = vst [vmem:[#allocation2 + $0x4c] sm:$0x1] %v587
      %v589 = vld [vmem:[%s3] sm:$0x1]
      %v590 = vld [vmem:[%s4] sm:$0x1]
      %v591 = vld [vmem:[%s467] sm:$0xf]
      %v592 = vld [vmem:[%s467 + $0x4] sm:$0xf]
      %v593 = vld [vmem:[%s467 + $0x8] sm:$0xf]
      %v594 = vld [vmem:[%s467 + $0xc] sm:$0xf]
      %v595 = vld [vmem:[%s467 + $0x10] sm:$0xf]
      %v596 = vld [vmem:[%s467 + $0x14] sm:$0xf]
      %v597 = vld [vmem:[%s467 + $0x18] sm:$0xf]
      %v598 = vld [vmem:[%s467 + $0x1c] sm:$0xf]
      %v599 = vunpack.c.l.bf16 %v591
      %v600 = vunpack.c.l.bf16 %v592
      %v601 = vunpack.c.l.bf16 %v593
      %v602 = vunpack.c.l.bf16 %v594
      %v603 = vunpack.c.l.bf16 %v595
      %v604 = vunpack.c.l.bf16 %v596
      %v605 = vunpack.c.l.bf16 %v597
      %v606 = vunpack.c.l.bf16 %v598
      %v608 = vlaneseq
      %v609 = vshrl.u32 %v608, 7
      %v610 = vsub.s32 0, %v609
      %v611 = vrot.slane %v589, %v610
      %v613 = vmul.f32 %v599, %v611
      %v614 = vmul.f32 %v600, %v611
      %v615 = vmul.f32 %v601, %v611
      %v616 = vmul.f32 %v602, %v611
      %v617 = vmul.f32 %v603, %v611
      %v618 = vmul.f32 %v604, %v611
      %v619 = vmul.f32 %v605, %v611
      %v620 = vmul.f32 %v606, %v611
      %v622 = vlaneseq
      %v623 = vshrl.u32 %v622, 7
      %v624 = vsub.s32 0, %v623
      %v625 = vrot.slane %v590, %v624
      %v627 = vadd.f32 %v613, %v625
      %v628 = vadd.f32 %v614, %v625
      %v629 = vadd.f32 %v615, %v625
      %v630 = vadd.f32 %v616, %v625
      %v631 = vadd.f32 %v617, %v625
      %v632 = vadd.f32 %v618, %v625
      %v633 = vadd.f32 %v619, %v625
      %v634 = vadd.f32 %v620, %v625
      %v635 = vmax.f32 %v627, 0.0
      %v636 = vmax.f32 %v628, 0.0
      %v637 = vmax.f32 %v629, 0.0
      %v638 = vmax.f32 %v630, 0.0
      %v639 = vmax.f32 %v631, 0.0
      %v640 = vmax.f32 %v632, 0.0
      %v641 = vmax.f32 %v633, 0.0
      %v642 = vmax.f32 %v634, 0.0
      %v643 = vpack.c.bf16 %v635, %v635
      %v644 = vpack.c.bf16 %v636, %v636
      %v645 = vpack.c.bf16 %v637, %v637
      %v646 = vpack.c.bf16 %v638, %v638
      %v647 = vpack.c.bf16 %v639, %v639
      %v648 = vpack.c.bf16 %v640, %v640
      %v649 = vpack.c.bf16 %v641, %v641
      %v650 = vpack.c.bf16 %v642, %v642
      %v651 = vld [vmem:[%s480] sm:$0xf]
      %v652 = vunpack.c.l.bf16 %v651
      %v653 = vmul.f32 %v652, %v611
      %v654 = vadd.f32 %v653, %v625
      %v655 = vmax.f32 %v654, 0.0
      %v656 = vpack.c.bf16 %v655, %v655
      %v657 = vld [vmem:[%s496] sm:$0xf]
      %v658 = vunpack.c.l.bf16 %v657
      %v659 = vmul.f32 %v658, %v611
      %v660 = vadd.f32 %v659, %v625
      %v661 = vmax.f32 %v660, 0.0
      %v662 = vpack.c.bf16 %v661, %v661
      %v671 = vunpack.c.l.b16 %v643
      %v672 = vunpack.c.l.b16 %v644
      %v673 = vunpack.c.l.b16 %v645
      %v674 = vunpack.c.l.b16 %v646
      %v675 = vunpack.c.l.b16 %v647
      %v676 = vunpack.c.l.b16 %v648
      %v677 = vunpack.c.l.b16 %v649
      %v678 = vunpack.c.l.b16 %v650
      %v679 = vpack.c.b16 %v671, %v671
      %v680 = vpack.c.b16 %v672, %v672
      %v681 = vpack.c.b16 %v673, %v673
      %v682 = vpack.c.b16 %v674, %v674
      %v683 = vpack.c.b16 %v675, %v675
      %v684 = vpack.c.b16 %v676, %v676
      %v685 = vpack.c.b16 %v677, %v677
      %v686 = vpack.c.b16 %v678, %v678
      %v688 = vshrl.u32 %v679, 16
      %v690 = vrot.slane %v688, 7
      %v691 = vshll.u32 %v679, 16
      %v693 = vor.u32 %v690, %v691
      %v694 = vrot.slane %v690, 4
      %v696 = vshrl.u32 %v680, 16
      %v698 = vrot.slane %v696, 7
      %v699 = vshll.u32 %v680, 16
      %v701 = vor.u32 %v698, %v699
      %v702 = vrot.slane %v698, 4
      %v704 = vshrl.u32 %v681, 16
      %v706 = vrot.slane %v704, 7
      %v707 = vshll.u32 %v681, 16
      %v709 = vor.u32 %v706, %v707
      %v710 = vrot.slane %v706, 4
      %v712 = vshrl.u32 %v682, 16
      %v714 = vrot.slane %v712, 7
      %v715 = vshll.u32 %v682, 16
      %v717 = vor.u32 %v714, %v715
      %v718 = vrot.slane %v714, 4
      %v720 = vshrl.u32 %v683, 16
      %v722 = vrot.slane %v720, 7
      %v723 = vshll.u32 %v683, 16
      %v725 = vor.u32 %v722, %v723
      %v726 = vrot.slane %v722, 4
      %v728 = vshrl.u32 %v684, 16
      %v730 = vrot.slane %v728, 7
      %v731 = vshll.u32 %v684, 16
      %v733 = vor.u32 %v730, %v731
      %v734 = vrot.slane %v730, 4
      %v736 = vshrl.u32 %v685, 16
      %v738 = vrot.slane %v736, 7
      %v739 = vshll.u32 %v685, 16
      %v741 = vor.u32 %v738, %v739
      %v742 = vrot.slane %v738, 4
      %v744 = vshrl.u32 %v686, 16
      %v746 = vrot.slane %v744, 7
      %v747 = vshll.u32 %v686, 16
      %v749 = vor.u32 %v746, %v747
      %v750 = vrot.slane %v746, 4
      %s767 = scalar_lea.vmem [#allocation2], 8
      %vm768 = vcmask 1043456
      %vm769 = vmand %vm768, %vm557
      %v770 = vld [vmem:[%s767] sm:$0xf]
      %v771 = vsel %vm769, %v693, %v770
      %772 = vst [vmem:[%s767] sm:$0xf] %v771
      %v773 = vld [vmem:[%s767 + $0x4] sm:$0x1]
      %v774 = vsel %vm526, %v694, %v773
      %775 = vst [vmem:[%s767 + $0x4] sm:$0x1] %v774
      %v776 = vld [vmem:[%s767 + $0x8] sm:$0xf]
      %v777 = vsel %vm769, %v701, %v776
      %778 = vst [vmem:[%s767 + $0x8] sm:$0xf] %v777
      %v779 = vld [vmem:[%s767 + $0xc] sm:$0x1]
      %v780 = vsel %vm526, %v702, %v779
      %781 = vst [vmem:[%s767 + $0xc] sm:$0x1] %v780
      %v782 = vld [vmem:[%s767 + $0x10] sm:$0xf]
      %v783 = vsel %vm769, %v709, %v782
      %784 = vst [vmem:[%s767 + $0x10] sm:$0xf] %v783
      %v785 = vld [vmem:[%s767 + $0x14] sm:$0x1]
      %v786 = vsel %vm526, %v710, %v785
      %787 = vst [vmem:[%s767 + $0x14] sm:$0x1] %v786
      %v788 = vld [vmem:[%s767 + $0x18] sm:$0xf]
      %v789 = vsel %vm769, %v717, %v788
      %790 = vst [vmem:[%s767 + $0x18] sm:$0xf] %v789
      %v791 = vld [vmem:[%s767 + $0x1c] sm:$0x1]
      %v792 = vsel %vm526, %v718, %v791
      %793 = vst [vmem:[%s767 + $0x1c] sm:$0x1] %v792
      %v794 = vld [vmem:[%s767 + $0x20] sm:$0xf]
      %v795 = vsel %vm769, %v725, %v794
      %796 = vst [vmem:[%s767 + $0x20] sm:$0xf] %v795
      %v797 = vld [vmem:[%s767 + $0x24] sm:$0x1]
      %v798 = vsel %vm526, %v726, %v797
      %799 = vst [vmem:[%s767 + $0x24] sm:$0x1] %v798
      %v800 = vld [vmem:[%s767 + $0x28] sm:$0xf]
      %v801 = vsel %vm769, %v733, %v800
      %802 = vst [vmem:[%s767 + $0x28] sm:$0xf] %v801
      %v803 = vld [vmem:[%s767 + $0x2c] sm:$0x1]
      %v804 = vsel %vm526, %v734, %v803
      %805 = vst [vmem:[%s767 + $0x2c] sm:$0x1] %v804
      %v806 = vld [vmem:[%s767 + $0x30] sm:$0xf]
      %v807 = vsel %vm769, %v741, %v806
      %808 = vst [vmem:[%s767 + $0x30] sm:$0xf] %v807
      %v809 = vld [vmem:[%s767 + $0x34] sm:$0x1]
      %v810 = vsel %vm526, %v742, %v809
      %811 = vst [vmem:[%s767 + $0x34] sm:$0x1] %v810
      %v812 = vld [vmem:[%s767 + $0x38] sm:$0xf]
      %v813 = vsel %vm769, %v749, %v812
      %814 = vst [vmem:[%s767 + $0x38] sm:$0xf] %v813
      %v815 = vld [vmem:[%s767 + $0x3c] sm:$0x1]
      %v816 = vsel %vm526, %v750, %v815
      %817 = vst [vmem:[%s767 + $0x3c] sm:$0x1] %v816
      %p818 = scmp.gt.s32.totalorder %s26, 0
      %s819 = scalar_select %p818, 1, 0
      %v820 = vstv %s819
      %vm821 = vcmp.eq.s32.totalorder %v820, 1
      %v822 = vsel %vm821, %v656, 0
      %v824 = vunpack.c.l.b16 %v822
      %v825 = vpack.c.b16 %v824, %v824
      %v827 = vshrl.u32 %v825, 16
      %v829 = vrot.slane %v827, 7
      %v830 = vshll.u32 %v825, 16
      %v832 = vor.u32 %v829, %v830
      %v833 = vrot.slane %v829, 4
      %v836 = vld [vmem:[#allocation2] sm:$0xf]
      %v837 = vsel %vm769, %v832, %v836
      %838 = vst [vmem:[#allocation2] sm:$0xf] %v837
      %v839 = vld [vmem:[#allocation2 + $0x4] sm:$0x1]
      %v840 = vsel %vm526, %v833, %v839
      %841 = vst [vmem:[#allocation2 + $0x4] sm:$0x1] %v840
      %p842 = scmp.lt.s32.totalorder %s26, 0
      %s843 = scalar_select %p842, 1, 0
      %v844 = vstv %s843
      %vm845 = vcmp.eq.s32.totalorder %v844, 1
      %v846 = vsel %vm845, %v662, 0
      %v848 = vunpack.c.l.b16 %v846
      %v849 = vpack.c.b16 %v848, %v848
      %v851 = vshrl.u32 %v849, 16
      %v853 = vrot.slane %v851, 7
      %v854 = vshll.u32 %v849, 16
      %v856 = vor.u32 %v853, %v854
      %v857 = vrot.slane %v853, 4
      %s860 = scalar_lea.vmem [#allocation2], 72
      %v861 = vld [vmem:[%s860] sm:$0xf]
      %v862 = vsel %vm769, %v856, %v861
      %863 = vst [vmem:[%s860] sm:$0xf] %v862
      %v864 = vld [vmem:[%s860 + $0x4] sm:$0x1]
      %v865 = vsel %vm526, %v857, %v864
      %866 = vst [vmem:[%s860 + $0x4] sm:$0x1] %v865
      %v867 = vld [vmem:[#allocation2] sm:$0xf]
      %v868 = vld [vmem:[#allocation2 + $0x8] sm:$0xf]
      %v869 = vld [vmem:[#allocation2 + $0x10] sm:$0xf]
      %v870 = vld [vmem:[#allocation2 + $0x18] sm:$0xf]
      %v871 = vld [vmem:[#allocation2 + $0x20] sm:$0xf]
      %v872 = vld [vmem:[#allocation2 + $0x28] sm:$0xf]
      %v873 = vld [vmem:[#allocation2 + $0x30] sm:$0xf]
      %v874 = vld [vmem:[#allocation2 + $0x38] sm:$0xf]
      %875 = vst [vmem:[#allocation4] sm:$0xf] %v867
      %876 = vst [vmem:[#allocation4 + $0xc] sm:$0xf] %v868
      %877 = vst [vmem:[#allocation4 + $0x18] sm:$0xf] %v869
      %878 = vst [vmem:[#allocation4 + $0x24] sm:$0xf] %v870
      %879 = vst [vmem:[#allocation4 + $0x30] sm:$0xf] %v871
      %880 = vst [vmem:[#allocation4 + $0x3c] sm:$0xf] %v872
      %881 = vst [vmem:[#allocation4 + $0x48] sm:$0xf] %v873
      %882 = vst [vmem:[#allocation4 + $0x54] sm:$0xf] %v874
      %v883 = vld [vmem:[#allocation2] sm:$0xf]
      %v884 = vld [vmem:[#allocation2 + $0x4] sm:$0x1]
      %v885 = vld [vmem:[#allocation2 + $0x8] sm:$0xf]
      %v886 = vld [vmem:[#allocation2 + $0xc] sm:$0x1]
      %v887 = vld [vmem:[#allocation2 + $0x10] sm:$0xf]
      %v888 = vld [vmem:[#allocation2 + $0x14] sm:$0x1]
      %v889 = vld [vmem:[#allocation2 + $0x18] sm:$0xf]
      %v890 = vld [vmem:[#allocation2 + $0x1c] sm:$0x1]
      %v891 = vld [vmem:[#allocation2 + $0x20] sm:$0xf]
      %v892 = vld [vmem:[#allocation2 + $0x24] sm:$0x1]
      %v893 = vld [vmem:[#allocation2 + $0x28] sm:$0xf]
      %v894 = vld [vmem:[#allocation2 + $0x2c] sm:$0x1]
      %v895 = vld [vmem:[#allocation2 + $0x30] sm:$0xf]
      %v896 = vld [vmem:[#allocation2 + $0x34] sm:$0x1]
      %v897 = vld [vmem:[#allocation2 + $0x38] sm:$0xf]
      %v898 = vld [vmem:[#allocation2 + $0x3c] sm:$0x1]
      %vm899 = vsmask.f32 3328
      %vm900 = vsmask.f32 7440
      %vm901 = vmor %vm899, %vm900
      %v903 = vshrl.u32 %v883, 16
      %v905 = vrot.slane %v903, 4
      %v906 = vshll.u32 %v883, 16
      %v908 = vrot.slane %v906, 5
      %v909 = vor.u32 %v905, %v908
      %v910 = vrot.slane %v909, 4
      %v912 = vshll.u32 %v884, 16
      %v914 = vrot.slane %v912, 5
      %v915 = vsel %vm901, %v910, %v914
      %v917 = vshrl.u32 %v885, 16
      %v919 = vrot.slane %v917, 4
      %v920 = vshll.u32 %v885, 16
      %v922 = vrot.slane %v920, 5
      %v923 = vor.u32 %v919, %v922
      %v924 = vrot.slane %v923, 4
      %v926 = vshll.u32 %v886, 16
      %v928 = vrot.slane %v926, 5
      %v929 = vsel %vm901, %v924, %v928
      %v931 = vshrl.u32 %v887, 16
      %v933 = vrot.slane %v931, 4
      %v934 = vshll.u32 %v887, 16
      %v936 = vrot.slane %v934, 5
      %v937 = vor.u32 %v933, %v936
      %v938 = vrot.slane %v937, 4
      %v940 = vshll.u32 %v888, 16
      %v942 = vrot.slane %v940, 5
      %v943 = vsel %vm901, %v938, %v942
      %v945 = vshrl.u32 %v889, 16
      %v947 = vrot.slane %v945, 4
      %v948 = vshll.u32 %v889, 16
      %v950 = vrot.slane %v948, 5
      %v951 = vor.u32 %v947, %v950
      %v952 = vrot.slane %v951, 4
      %v954 = vshll.u32 %v890, 16
      %v956 = vrot.slane %v954, 5
      %v957 = vsel %vm901, %v952, %v956
      %v959 = vshrl.u32 %v891, 16
      %v961 = vrot.slane %v959, 4
      %v962 = vshll.u32 %v891, 16
      %v964 = vrot.slane %v962, 5
      %v965 = vor.u32 %v961, %v964
      %v966 = vrot.slane %v965, 4
      %v968 = vshll.u32 %v892, 16
      %v970 = vrot.slane %v968, 5
      %v971 = vsel %vm901, %v966, %v970
      %v973 = vshrl.u32 %v893, 16
      %v975 = vrot.slane %v973, 4
      %v976 = vshll.u32 %v893, 16
      %v978 = vrot.slane %v976, 5
      %v979 = vor.u32 %v975, %v978
      %v980 = vrot.slane %v979, 4
      %v982 = vshll.u32 %v894, 16
      %v984 = vrot.slane %v982, 5
      %v985 = vsel %vm901, %v980, %v984
      %v987 = vshrl.u32 %v895, 16
      %v989 = vrot.slane %v987, 4
      %v990 = vshll.u32 %v895, 16
      %v992 = vrot.slane %v990, 5
      %v993 = vor.u32 %v989, %v992
      %v994 = vrot.slane %v993, 4
      %v996 = vshll.u32 %v896, 16
      %v998 = vrot.slane %v996, 5
      %v999 = vsel %vm901, %v994, %v998
      %v1001 = vshrl.u32 %v897, 16
      %v1003 = vrot.slane %v1001, 4
      %v1004 = vshll.u32 %v897, 16
      %v1006 = vrot.slane %v1004, 5
      %v1007 = vor.u32 %v1003, %v1006
      %v1008 = vrot.slane %v1007, 4
      %v1010 = vshll.u32 %v898, 16
      %v1012 = vrot.slane %v1010, 5
      %v1013 = vsel %vm901, %v1008, %v1012
      %1022 = vst [vmem:[#allocation4 + $0x4] sm:$0xf] %v915
      %1023 = vst [vmem:[#allocation4 + $0x10] sm:$0xf] %v929
      %1024 = vst [vmem:[#allocation4 + $0x1c] sm:$0xf] %v943
      %1025 = vst [vmem:[#allocation4 + $0x28] sm:$0xf] %v957
      %1026 = vst [vmem:[#allocation4 + $0x34] sm:$0xf] %v971
      %1027 = vst [vmem:[#allocation4 + $0x40] sm:$0xf] %v985
      %1028 = vst [vmem:[#allocation4 + $0x4c] sm:$0xf] %v999
      %1029 = vst [vmem:[#allocation4 + $0x58] sm:$0xf] %v1013
      %v1030 = vld [vmem:[#allocation2] sm:$0xe]
      %v1031 = vld [vmem:[#allocation2 + $0x4] sm:$0x1]
      %v1032 = vld [vmem:[#allocation2 + $0x8] sm:$0xe]
      %v1033 = vld [vmem:[#allocation2 + $0xc] sm:$0x1]
      %v1034 = vld [vmem:[#allocation2 + $0x10] sm:$0xe]
      %v1035 = vld [vmem:[#allocation2 + $0x14] sm:$0x1]
      %v1036 = vld [vmem:[#allocation2 + $0x18] sm:$0xe]
      %v1037 = vld [vmem:[#allocation2 + $0x1c] sm:$0x1]
      %v1038 = vld [vmem:[#allocation2 + $0x20] sm:$0xe]
      %v1039 = vld [vmem:[#allocation2 + $0x24] sm:$0x1]
      %v1040 = vld [vmem:[#allocation2 + $0x28] sm:$0xe]
      %v1041 = vld [vmem:[#allocation2 + $0x2c] sm:$0x1]
      %v1042 = vld [vmem:[#allocation2 + $0x30] sm:$0xe]
      %v1043 = vld [vmem:[#allocation2 + $0x34] sm:$0x1]
      %v1044 = vld [vmem:[#allocation2 + $0x38] sm:$0xe]
      %v1045 = vld [vmem:[#allocation2 + $0x3c] sm:$0x1]
      %vm1062 = vcmask 1042432
      %vm1063 = vcmask 1046532
      %vm1064 = vmor %vm1062, %vm1063
      %v1065 = vrot.slane %v1030, 5
      %v1066 = vrot.slane %v1065, 4
      %v1067 = vrot.slane %v1031, 5
      %v1068 = vsel %vm1064, %v1066, %v1067
      %v1069 = vrot.slane %v1032, 5
      %v1070 = vrot.slane %v1069, 4
      %v1071 = vrot.slane %v1033, 5
      %v1072 = vsel %vm1064, %v1070, %v1071
      %v1073 = vrot.slane %v1034, 5
      %v1074 = vrot.slane %v1073, 4
      %v1075 = vrot.slane %v1035, 5
      %v1076 = vsel %vm1064, %v1074, %v1075
      %v1077 = vrot.slane %v1036, 5
      %v1078 = vrot.slane %v1077, 4
      %v1079 = vrot.slane %v1037, 5
      %v1080 = vsel %vm1064, %v1078, %v1079
      %v1081 = vrot.slane %v1038, 5
      %v1082 = vrot.slane %v1081, 4
      %v1083 = vrot.slane %v1039, 5
      %v1084 = vsel %vm1064, %v1082, %v1083
      %v1085 = vrot.slane %v1040, 5
      %v1086 = vrot.slane %v1085, 4
      %v1087 = vrot.slane %v1041, 5
      %v1088 = vsel %vm1064, %v1086, %v1087
      %v1089 = vrot.slane %v1042, 5
      %v1090 = vrot.slane %v1089, 4
      %v1091 = vrot.slane %v1043, 5
      %v1092 = vsel %vm1064, %v1090, %v1091
      %v1093 = vrot.slane %v1044, 5
      %v1094 = vrot.slane %v1093, 4
      %v1095 = vrot.slane %v1045, 5
      %v1096 = vsel %vm1064, %v1094, %v1095
      %1105 = vst [vmem:[#allocation4 + $0x8] sm:$0xf] %v1068
      %1106 = vst [vmem:[#allocation4 + $0x14] sm:$0xf] %v1072
      %1107 = vst [vmem:[#allocation4 + $0x20] sm:$0xf] %v1076
      %1108 = vst [vmem:[#allocation4 + $0x2c] sm:$0xf] %v1080
      %1109 = vst [vmem:[#allocation4 + $0x38] sm:$0xf] %v1084
      %1110 = vst [vmem:[#allocation4 + $0x44] sm:$0xf] %v1088
      %1111 = vst [vmem:[#allocation4 + $0x50] sm:$0xf] %v1092
      %1112 = vst [vmem:[#allocation4 + $0x5c] sm:$0xf] %v1096
      %v1113 = vld [vmem:[#allocation4] sm:$0xff]
      %v1114 = vld [vmem:[#allocation4 + $0x8] sm:$0xf]
      %v1115 = vld [vmem:[#allocation4 + $0xc] sm:$0xff]
      %v1116 = vld [vmem:[#allocation4 + $0x14] sm:$0xf]
      %v1117 = vld [vmem:[#allocation4 + $0x18] sm:$0xff]
      %v1118 = vld [vmem:[#allocation4 + $0x20] sm:$0xf]
      %v1119 = vld [vmem:[#allocation4 + $0x24] sm:$0xff]
      %v1120 = vld [vmem:[#allocation4 + $0x2c] sm:$0xf]
      %v1121 = vld [vmem:[#allocation4 + $0x30] sm:$0xff]
      %v1122 = vld [vmem:[#allocation4 + $0x38] sm:$0xf]
      %v1123 = vld [vmem:[#allocation4 + $0x3c] sm:$0xff]
      %v1124 = vld [vmem:[#allocation4 + $0x44] sm:$0xf]
      %v1125 = vld [vmem:[#allocation4 + $0x48] sm:$0xff]
      %v1126 = vld [vmem:[#allocation4 + $0x50] sm:$0xf]
      %v1127 = vld [vmem:[#allocation4 + $0x54] sm:$0xff]
      %v1128 = vld [vmem:[#allocation4 + $0x5c] sm:$0xf]
      %v1129 = vld [vmem:[%s5] sm:$0xf]
      %v1130 = vld [vmem:[%s5 + $0x4] sm:$0xf]
      %v1131 = vld [vmem:[%s5 + $0x8] sm:$0xf]
      %v1132 = vld [vmem:[%s5 + $0xc] sm:$0xf]
      %v1133 = vld [vmem:[%s5 + $0x10] sm:$0xf]
      %v1134 = vld [vmem:[%s5 + $0x14] sm:$0xf]
      %v1135 = vld [vmem:[%s5 + $0x18] sm:$0xf]
      %v1136 = vld [vmem:[%s5 + $0x1c] sm:$0xf]
      %v1137 = vld [vmem:[%s5 + $0x20] sm:$0xf]
      %v1138 = vld [vmem:[%s5 + $0x24] sm:$0xf]
      %v1139 = vld [vmem:[%s5 + $0x28] sm:$0xf]
      %v1140 = vld [vmem:[%s5 + $0x2c] sm:$0xf]
      %v1141 = vld [vmem:[%s5 + $0x30] sm:$0xf]
      %v1142 = vld [vmem:[%s5 + $0x34] sm:$0xf]
      %v1143 = vld [vmem:[%s5 + $0x38] sm:$0xf]
      %v1144 = vld [vmem:[%s5 + $0x3c] sm:$0xf]
      %v1145 = vld [vmem:[%s5 + $0x40] sm:$0xf]
      %v1146 = vld [vmem:[%s5 + $0x44] sm:$0xf]
      %v1147 = vld [vmem:[%s5 + $0x48] sm:$0xf]
      %v1148 = vld [vmem:[%s5 + $0x4c] sm:$0xf]
      %v1149 = vld [vmem:[%s5 + $0x50] sm:$0xf]
      %v1150 = vld [vmem:[%s5 + $0x54] sm:$0xf]
      %v1151 = vld [vmem:[%s5 + $0x58] sm:$0xf]
      %v1152 = vld [vmem:[%s5 + $0x5c] sm:$0xf]
      %v1153 = vld [vmem:[%s5 + $0x60] sm:$0xf]
      %v1154 = vld [vmem:[%s5 + $0x64] sm:$0xf]
      %v1155 = vld [vmem:[%s5 + $0x68] sm:$0xf]
      %v1156 = vld [vmem:[%s5 + $0x6c] sm:$0xf]
      %v1157 = vld [vmem:[%s5 + $0x70] sm:$0xf]
      %v1158 = vld [vmem:[%s5 + $0x74] sm:$0xf]
      %v1159 = vld [vmem:[%s5 + $0x78] sm:$0xf]
      %v1160 = vld [vmem:[%s5 + $0x7c] sm:$0xf]
      %v1161 = vld [vmem:[%s5 + $0x80] sm:$0xf]
      %v1162 = vld [vmem:[%s5 + $0x84] sm:$0xf]
      %v1163 = vld [vmem:[%s5 + $0x88] sm:$0xf]
      %v1164 = vld [vmem:[%s5 + $0x8c] sm:$0xf]
      %v1165 = vld [vmem:[%s5 + $0x90] sm:$0xf]
      %v1166 = vld [vmem:[%s5 + $0x94] sm:$0xf]
      %v1167 = vld [vmem:[%s5 + $0x98] sm:$0xf]
      %v1168 = vld [vmem:[%s5 + $0x9c] sm:$0xf]
      %v1169 = vld [vmem:[%s5 + $0xa0] sm:$0xf]
      %v1170 = vld [vmem:[%s5 + $0xa4] sm:$0xf]
      %v1171 = vld [vmem:[%s5 + $0xa8] sm:$0xf]
      %v1172 = vld [vmem:[%s5 + $0xac] sm:$0xf]
      %v1173 = vld [vmem:[%s5 + $0xb0] sm:$0xf]
      %v1174 = vld [vmem:[%s5 + $0xb4] sm:$0xf]
      %v1175 = vld [vmem:[%s5 + $0xb8] sm:$0xf]
      %v1176 = vld [vmem:[%s5 + $0xbc] sm:$0xf]
      %v1193 = vunpack.c.l.b16 %v1113
      %v1194 = vunpack.c.h.b16 %v1113
      %v1195 = vunpack.c.l.b16 %v1114
      %v1196 = vunpack.c.l.b16 %v1115
      %v1197 = vunpack.c.h.b16 %v1115
      %v1198 = vunpack.c.l.b16 %v1116
      %v1199 = vunpack.c.l.b16 %v1117
      %v1200 = vunpack.c.h.b16 %v1117
      %v1201 = vunpack.c.l.b16 %v1118
      %v1202 = vunpack.c.l.b16 %v1119
      %v1203 = vunpack.c.h.b16 %v1119
      %v1204 = vunpack.c.l.b16 %v1120
      %v1205 = vunpack.c.l.b16 %v1121
      %v1206 = vunpack.c.h.b16 %v1121
      %v1207 = vunpack.c.l.b16 %v1122
      %v1208 = vunpack.c.l.b16 %v1123
      %v1209 = vunpack.c.h.b16 %v1123
      %v1210 = vunpack.c.l.b16 %v1124
      %v1211 = vunpack.c.l.b16 %v1125
      %v1212 = vunpack.c.h.b16 %v1125
      %v1213 = vunpack.c.l.b16 %v1126
      %v1214 = vunpack.c.l.b16 %v1127
      %v1215 = vunpack.c.h.b16 %v1127
      %v1216 = vunpack.c.l.b16 %v1128
      %v1217 = vpack.c.b16 %v1196, %v1193
      %v1218 = vpack.c.b16 %v1197, %v1194
      %v1219 = vpack.c.b16 %v1198, %v1195
      %v1220 = vpack.c.b16 %v1202, %v1199
      %v1221 = vpack.c.b16 %v1203, %v1200
      %v1222 = vpack.c.b16 %v1204, %v1201
      %v1223 = vpack.c.b16 %v1208, %v1205
      %v1224 = vpack.c.b16 %v1209, %v1206
      %v1225 = vpack.c.b16 %v1210, %v1207
      %v1226 = vpack.c.b16 %v1214, %v1211
      %v1227 = vpack.c.b16 %v1215, %v1212
      %v1228 = vpack.c.b16 %v1216, %v1213
      %v1289 = vunpack.c.l.b16 %v1129
      %v1290 = vunpack.c.l.b16 %v1130
      %v1291 = vunpack.c.l.b16 %v1131
      %v1292 = vunpack.c.l.b16 %v1132
      %v1293 = vunpack.c.l.b16 %v1133
      %v1294 = vunpack.c.l.b16 %v1134
      %v1295 = vunpack.c.l.b16 %v1135
      %v1296 = vunpack.c.l.b16 %v1136
      %v1297 = vunpack.c.l.b16 %v1137
      %v1298 = vunpack.c.l.b16 %v1138
      %v1299 = vunpack.c.l.b16 %v1139
      %v1300 = vunpack.c.l.b16 %v1140
      %v1301 = vunpack.c.l.b16 %v1141
      %v1302 = vunpack.c.l.b16 %v1142
      %v1303 = vunpack.c.l.b16 %v1143
      %v1304 = vunpack.c.l.b16 %v1144
      %v1305 = vunpack.c.l.b16 %v1145
      %v1306 = vunpack.c.l.b16 %v1146
      %v1307 = vunpack.c.l.b16 %v1147
      %v1308 = vunpack.c.l.b16 %v1148
      %v1309 = vunpack.c.l.b16 %v1149
      %v1310 = vunpack.c.l.b16 %v1150
      %v1311 = vunpack.c.l.b16 %v1151
      %v1312 = vunpack.c.l.b16 %v1152
      %v1313 = vunpack.c.l.b16 %v1153
      %v1314 = vunpack.c.l.b16 %v1154
      %v1315 = vunpack.c.l.b16 %v1155
      %v1316 = vunpack.c.l.b16 %v1156
      %v1317 = vunpack.c.l.b16 %v1157
      %v1318 = vunpack.c.l.b16 %v1158
      %v1319 = vunpack.c.l.b16 %v1159
      %v1320 = vunpack.c.l.b16 %v1160
      %v1321 = vunpack.c.l.b16 %v1161
      %v1322 = vunpack.c.l.b16 %v1162
      %v1323 = vunpack.c.l.b16 %v1163
      %v1324 = vunpack.c.l.b16 %v1164
      %v1325 = vunpack.c.l.b16 %v1165
      %v1326 = vunpack.c.l.b16 %v1166
      %v1327 = vunpack.c.l.b16 %v1167
      %v1328 = vunpack.c.l.b16 %v1168
      %v1329 = vunpack.c.l.b16 %v1169
      %v1330 = vunpack.c.l.b16 %v1170
      %v1331 = vunpack.c.l.b16 %v1171
      %v1332 = vunpack.c.l.b16 %v1172
      %v1333 = vunpack.c.l.b16 %v1173
      %v1334 = vunpack.c.l.b16 %v1174
      %v1335 = vunpack.c.l.b16 %v1175
      %v1336 = vunpack.c.l.b16 %v1176
      %v1337 = vpack.c.b16 %v1290, %v1289
      %v1338 = vpack.c.b16 %v1292, %v1291
      %v1339 = vpack.c.b16 %v1294, %v1293
      %v1340 = vpack.c.b16 %v1296, %v1295
      %v1341 = vpack.c.b16 %v1298, %v1297
      %v1342 = vpack.c.b16 %v1300, %v1299
      %v1343 = vpack.c.b16 %v1302, %v1301
      %v1344 = vpack.c.b16 %v1304, %v1303
      %v1345 = vpack.c.b16 %v1306, %v1305
      %v1346 = vpack.c.b16 %v1308, %v1307
      %v1347 = vpack.c.b16 %v1310, %v1309
      %v1348 = vpack.c.b16 %v1312, %v1311
      %v1349 = vpack.c.b16 %v1314, %v1313
      %v1350 = vpack.c.b16 %v1316, %v1315
      %v1351 = vpack.c.b16 %v1318, %v1317
      %v1352 = vpack.c.b16 %v1320, %v1319
      %v1353 = vpack.c.b16 %v1322, %v1321
      %v1354 = vpack.c.b16 %v1324, %v1323
      %v1355 = vpack.c.b16 %v1326, %v1325
      %v1356 = vpack.c.b16 %v1328, %v1327
      %v1357 = vpack.c.b16 %v1330, %v1329
      %v1358 = vpack.c.b16 %v1332, %v1331
      %v1359 = vpack.c.b16 %v1334, %v1333
      %v1360 = vpack.c.b16 %v1336, %v1335
      %1385 = vmatprep.subr.bf16.mxu0 0
      %1386 = vmatpush1.bf16.msra.mxu0 %v1344
      %1387 = vmatprep.subr.bf16.mxu0 0
      %1388 = vmatpush1.bf16.msra.mxu0 %v1343
      %1389 = vmatprep.subr.bf16.mxu0 0
      %1390 = vmatpush1.bf16.msra.mxu0 %v1342
      %1391 = vmatprep.subr.bf16.mxu0 0
      %1392 = vmatpush1.bf16.msra.mxu0 %v1341
      %1393 = vmatprep.subr.bf16.mxu0 0
      %1394 = vmatpush1.bf16.msra.mxu0 %v1340
      %1395 = vmatprep.subr.bf16.mxu0 0
      %1396 = vmatpush1.bf16.msra.mxu0 %v1339
      %1397 = vmatprep.subr.bf16.mxu0 0
      %1398 = vmatpush1.bf16.msra.mxu0 %v1338
      %1399 = vmatprep.subr.bf16.mxu0 0
      %1400 = vmatpush1.bf16.msra.mxu0 %v1337
      %1401 = vmatprep.subr.bf16.mxu0 0
      %1402 = vmatpush2.bf16.msra.mxu0 %v1352
      %1403 = vmatprep.subr.bf16.mxu0 0
      %1404 = vmatpush2.bf16.msra.mxu0 %v1351
      %1405 = vmatprep.subr.bf16.mxu0 0
      %1406 = vmatpush2.bf16.msra.mxu0 %v1350
      %1407 = vmatprep.subr.bf16.mxu0 0
      %1408 = vmatpush2.bf16.msra.mxu0 %v1349
      %1409 = vmatprep.subr.bf16.mxu0 0
      %1410 = vmatpush2.bf16.msra.mxu0 %v1348
      %1411 = vmatprep.subr.bf16.mxu0 0
      %1412 = vmatpush2.bf16.msra.mxu0 %v1347
      %1413 = vmatprep.subr.bf16.mxu0 0
      %1414 = vmatpush2.bf16.msra.mxu0 %v1346
      %1415 = vmatprep.subr.bf16.mxu0 0
      %1416 = vmatpush2.bf16.msra.mxu0 %v1345
      %1417 = vmatprep.mubr.bf16.mxu0 %v1218
      %1418 = vmatmul.mubr.bf16.gmra.mxu0 %v1217
      %v1419 = vpop.f32.mrf.mxu0
      %v1420 = vadd.f32 0.0, %v1419
      %v1421 = vpop.f32.mrf.mxu0
      %v1422 = vpop.f32.mrf.mxu0
      %v1423 = vadd.f32 0.0, %v1422
      %v1424 = vpop.f32.mrf.mxu0
      %1425 = vmatprep.mubr.bf16.mxu0 %v1221
      %1426 = vmatmul.mubr.bf16.gmra.mxu0 %v1220
      %v1427 = vpop.f32.mrf.mxu0
      %v1428 = vadd.f32 0.0, %v1427
      %v1429 = vpop.f32.mrf.mxu0
      %v1430 = vpop.f32.mrf.mxu0
      %v1431 = vadd.f32 0.0, %v1430
      %v1432 = vpop.f32.mrf.mxu0
      %1433 = vmatprep.mubr.bf16.mxu0 %v1224
      %1434 = vmatmul.mubr.bf16.gmra.mxu0 %v1223
      %v1435 = vpop.f32.mrf.mxu0
      %v1436 = vadd.f32 0.0, %v1435
      %v1437 = vpop.f32.mrf.mxu0
      %v1438 = vpop.f32.mrf.mxu0
      %v1439 = vadd.f32 0.0, %v1438
      %v1440 = vpop.f32.mrf.mxu0
      %1441 = vmatprep.mubr.bf16.mxu0 %v1227
      %1442 = vmatmul.mubr.bf16.gmra.mxu0 %v1226
      %v1443 = vpop.f32.mrf.mxu0
      %v1444 = vadd.f32 0.0, %v1443
      %v1445 = vpop.f32.mrf.mxu0
      %v1446 = vpop.f32.mrf.mxu0
      %v1447 = vadd.f32 0.0, %v1446
      %v1448 = vpop.f32.mrf.mxu0
      %1449 = vdwg.mxu0
      %1450 = vmatprep.subr.bf16.mxu0 0
      %1451 = vmatpush1.bf16.msra.mxu0 %v1360
      %1452 = vmatprep.subr.bf16.mxu0 0
      %1453 = vmatpush1.bf16.msra.mxu0 %v1359
      %1454 = vmatprep.subr.bf16.mxu0 0
      %1455 = vmatpush1.bf16.msra.mxu0 %v1358
      %1456 = vmatprep.subr.bf16.mxu0 0
      %1457 = vmatpush1.bf16.msra.mxu0 %v1357
      %1458 = vmatprep.subr.bf16.mxu0 0
      %1459 = vmatpush1.bf16.msra.mxu0 %v1356
      %1460 = vmatprep.subr.bf16.mxu0 0
      %1461 = vmatpush1.bf16.msra.mxu0 %v1355
      %1462 = vmatprep.subr.bf16.mxu0 0
      %1463 = vmatpush1.bf16.msra.mxu0 %v1354
      %1464 = vmatprep.subr.bf16.mxu0 0
      %1465 = vmatpush1.bf16.msra.mxu0 %v1353
      %1466 = vmatprep.subr.bf16.mxu0 0
      %1467 = vmatpush2.bf16.msra.mxu0 0
      %1468 = vmatprep.subr.bf16.mxu0 0
      %1469 = vmatpush2.bf16.msra.mxu0 0
      %1470 = vmatprep.subr.bf16.mxu0 0
      %1471 = vmatpush2.bf16.msra.mxu0 0
      %1472 = vmatprep.subr.bf16.mxu0 0
      %1473 = vmatpush2.bf16.msra.mxu0 0
      %1474 = vmatprep.subr.bf16.mxu0 0
      %1475 = vmatpush2.bf16.msra.mxu0 0
      %1476 = vmatprep.subr.bf16.mxu0 0
      %1477 = vmatpush2.bf16.msra.mxu0 0
      %1478 = vmatprep.subr.bf16.mxu0 0
      %1479 = vmatpush2.bf16.msra.mxu0 0
      %1480 = vmatprep.subr.bf16.mxu0 0
      %1481 = vmatpush2.bf16.msra.mxu0 0
      %1482 = vmatprep.mubr.bf16.mxu0 0
      %1483 = vmatmul.mubr.bf16.gmra.mxu0 %v1219
      %v1484 = vpop.f32.mrf.mxu0
      %v1485 = vadd.f32 %v1420, %v1484
      %v1486 = vpop.f32.mrf.mxu0
      %v1487 = vpop.f32.mrf.mxu0
      %v1488 = vadd.f32 %v1423, %v1487
      %v1489 = vpop.f32.mrf.mxu0
      %1490 = vmatprep.mubr.bf16.mxu0 0
      %1491 = vmatmul.mubr.bf16.gmra.mxu0 %v1222
      %v1492 = vpop.f32.mrf.mxu0
      %v1493 = vadd.f32 %v1428, %v1492
      %v1494 = vpop.f32.mrf.mxu0
      %v1495 = vpop.f32.mrf.mxu0
      %v1496 = vadd.f32 %v1431, %v1495
      %v1497 = vpop.f32.mrf.mxu0
      %1498 = vmatprep.mubr.bf16.mxu0 0
      %1499 = vmatmul.mubr.bf16.gmra.mxu0 %v1225
      %v1500 = vpop.f32.mrf.mxu0
      %v1501 = vadd.f32 %v1436, %v1500
      %v1502 = vpop.f32.mrf.mxu0
      %v1503 = vpop.f32.mrf.mxu0
      %v1504 = vadd.f32 %v1439, %v1503
      %v1505 = vpop.f32.mrf.mxu0
      %1506 = vmatprep.mubr.bf16.mxu0 0
      %1507 = vmatmul.mubr.bf16.gmra.mxu0 %v1228
      %v1508 = vpop.f32.mrf.mxu0
      %v1509 = vadd.f32 %v1444, %v1508
      %v1510 = vpop.f32.mrf.mxu0
      %v1511 = vpop.f32.mrf.mxu0
      %v1512 = vadd.f32 %v1447, %v1511
      %v1513 = vpop.f32.mrf.mxu0
      %1514 = vdwg.mxu0
      %1515 = vst [vmem:[#allocation3] sm:$0xff] %v1485
      %1516 = vst [vmem:[#allocation3 + $0x8] sm:$0xff] %v1488
      %1517 = vst [vmem:[#allocation3 + $0x10] sm:$0xff] %v1493
      %1518 = vst [vmem:[#allocation3 + $0x18] sm:$0xff] %v1496
      %1519 = vst [vmem:[#allocation3 + $0x20] sm:$0xff] %v1501
      %1520 = vst [vmem:[#allocation3 + $0x28] sm:$0xff] %v1504
      %1521 = vst [vmem:[#allocation3 + $0x30] sm:$0xff] %v1509
      %1522 = vst [vmem:[#allocation3 + $0x38] sm:$0xff] %v1512
      %v1523 = vld [vmem:[%s767] sm:$0xf]
      %v1524 = vld [vmem:[%s767 + $0x8] sm:$0xf]
      %v1525 = vld [vmem:[%s767 + $0x10] sm:$0xf]
      %v1526 = vld [vmem:[%s767 + $0x18] sm:$0xf]
      %v1527 = vld [vmem:[%s767 + $0x20] sm:$0xf]
      %v1528 = vld [vmem:[%s767 + $0x28] sm:$0xf]
      %v1529 = vld [vmem:[%s767 + $0x30] sm:$0xf]
      %v1530 = vld [vmem:[%s767 + $0x38] sm:$0xf]
      %1531 = vst [vmem:[#allocation4] sm:$0xf] %v1523
      %1532 = vst [vmem:[#allocation4 + $0xc] sm:$0xf] %v1524
      %1533 = vst [vmem:[#allocation4 + $0x18] sm:$0xf] %v1525
      %1534 = vst [vmem:[#allocation4 + $0x24] sm:$0xf] %v1526
      %1535 = vst [vmem:[#allocation4 + $0x30] sm:$0xf] %v1527
      %1536 = vst [vmem:[#allocation4 + $0x3c] sm:$0xf] %v1528
      %1537 = vst [vmem:[#allocation4 + $0x48] sm:$0xf] %v1529
      %1538 = vst [vmem:[#allocation4 + $0x54] sm:$0xf] %v1530
      %v1539 = vld [vmem:[%s767] sm:$0xf]
      %v1540 = vld [vmem:[%s767 + $0x4] sm:$0x1]
      %v1541 = vld [vmem:[%s767 + $0x8] sm:$0xf]
      %v1542 = vld [vmem:[%s767 + $0xc] sm:$0x1]
      %v1543 = vld [vmem:[%s767 + $0x10] sm:$0xf]
      %v1544 = vld [vmem:[%s767 + $0x14] sm:$0x1]
      %v1545 = vld [vmem:[%s767 + $0x18] sm:$0xf]
      %v1546 = vld [vmem:[%s767 + $0x1c] sm:$0x1]
      %v1547 = vld [vmem:[%s767 + $0x20] sm:$0xf]
      %v1548 = vld [vmem:[%s767 + $0x24] sm:$0x1]
      %v1549 = vld [vmem:[%s767 + $0x28] sm:$0xf]
      %v1550 = vld [vmem:[%s767 + $0x2c] sm:$0x1]
      %v1551 = vld [vmem:[%s767 + $0x30] sm:$0xf]
      %v1552 = vld [vmem:[%s767 + $0x34] sm:$0x1]
      %v1553 = vld [vmem:[%s767 + $0x38] sm:$0xf]
      %v1554 = vld [vmem:[%s767 + $0x3c] sm:$0x1]
      %v1556 = vshrl.u32 %v1539, 16
      %v1558 = vrot.slane %v1556, 4
      %v1559 = vshll.u32 %v1539, 16
      %v1561 = vrot.slane %v1559, 5
      %v1562 = vor.u32 %v1558, %v1561
      %v1563 = vrot.slane %v1562, 4
      %v1565 = vshll.u32 %v1540, 16
      %v1567 = vrot.slane %v1565, 5
      %v1568 = vsel %vm901, %v1563, %v1567
      %v1570 = vshrl.u32 %v1541, 16
      %v1572 = vrot.slane %v1570, 4
      %v1573 = vshll.u32 %v1541, 16
      %v1575 = vrot.slane %v1573, 5
      %v1576 = vor.u32 %v1572, %v1575
      %v1577 = vrot.slane %v1576, 4
      %v1579 = vshll.u32 %v1542, 16
      %v1581 = vrot.slane %v1579, 5
      %v1582 = vsel %vm901, %v1577, %v1581
      %v1584 = vshrl.u32 %v1543, 16
      %v1586 = vrot.slane %v1584, 4
      %v1587 = vshll.u32 %v1543, 16
      %v1589 = vrot.slane %v1587, 5
      %v1590 = vor.u32 %v1586, %v1589
      %v1591 = vrot.slane %v1590, 4
      %v1593 = vshll.u32 %v1544, 16
      %v1595 = vrot.slane %v1593, 5
      %v1596 = vsel %vm901, %v1591, %v1595
      %v1598 = vshrl.u32 %v1545, 16
      %v1600 = vrot.slane %v1598, 4
      %v1601 = vshll.u32 %v1545, 16
      %v1603 = vrot.slane %v1601, 5
      %v1604 = vor.u32 %v1600, %v1603
      %v1605 = vrot.slane %v1604, 4
      %v1607 = vshll.u32 %v1546, 16
      %v1609 = vrot.slane %v1607, 5
      %v1610 = vsel %vm901, %v1605, %v1609
      %v1612 = vshrl.u32 %v1547, 16
      %v1614 = vrot.slane %v1612, 4
      %v1615 = vshll.u32 %v1547, 16
      %v1617 = vrot.slane %v1615, 5
      %v1618 = vor.u32 %v1614, %v1617
      %v1619 = vrot.slane %v1618, 4
      %v1621 = vshll.u32 %v1548, 16
      %v1623 = vrot.slane %v1621, 5
      %v1624 = vsel %vm901, %v1619, %v1623
      %v1626 = vshrl.u32 %v1549, 16
      %v1628 = vrot.slane %v1626, 4
      %v1629 = vshll.u32 %v1549, 16
      %v1631 = vrot.slane %v1629, 5
      %v1632 = vor.u32 %v1628, %v1631
      %v1633 = vrot.slane %v1632, 4
      %v1635 = vshll.u32 %v1550, 16
      %v1637 = vrot.slane %v1635, 5
      %v1638 = vsel %vm901, %v1633, %v1637
      %v1640 = vshrl.u32 %v1551, 16
      %v1642 = vrot.slane %v1640, 4
      %v1643 = vshll.u32 %v1551, 16
      %v1645 = vrot.slane %v1643, 5
      %v1646 = vor.u32 %v1642, %v1645
      %v1647 = vrot.slane %v1646, 4
      %v1649 = vshll.u32 %v1552, 16
      %v1651 = vrot.slane %v1649, 5
      %v1652 = vsel %vm901, %v1647, %v1651
      %v1654 = vshrl.u32 %v1553, 16
      %v1656 = vrot.slane %v1654, 4
      %v1657 = vshll.u32 %v1553, 16
      %v1659 = vrot.slane %v1657, 5
      %v1660 = vor.u32 %v1656, %v1659
      %v1661 = vrot.slane %v1660, 4
      %v1663 = vshll.u32 %v1554, 16
      %v1665 = vrot.slane %v1663, 5
      %v1666 = vsel %vm901, %v1661, %v1665
      %1675 = vst [vmem:[#allocation4 + $0x4] sm:$0xf] %v1568
      %1676 = vst [vmem:[#allocation4 + $0x10] sm:$0xf] %v1582
      %1677 = vst [vmem:[#allocation4 + $0x1c] sm:$0xf] %v1596
      %1678 = vst [vmem:[#allocation4 + $0x28] sm:$0xf] %v1610
      %1679 = vst [vmem:[#allocation4 + $0x34] sm:$0xf] %v1624
      %1680 = vst [vmem:[#allocation4 + $0x40] sm:$0xf] %v1638
      %1681 = vst [vmem:[#allocation4 + $0x4c] sm:$0xf] %v1652
      %1682 = vst [vmem:[#allocation4 + $0x58] sm:$0xf] %v1666
      %v1683 = vld [vmem:[%s767] sm:$0xe]
      %v1684 = vld [vmem:[%s767 + $0x4] sm:$0x1]
      %v1685 = vld [vmem:[%s767 + $0x8] sm:$0xe]
      %v1686 = vld [vmem:[%s767 + $0xc] sm:$0x1]
      %v1687 = vld [vmem:[%s767 + $0x10] sm:$0xe]
      %v1688 = vld [vmem:[%s767 + $0x14] sm:$0x1]
      %v1689 = vld [vmem:[%s767 + $0x18] sm:$0xe]
      %v1690 = vld [vmem:[%s767 + $0x1c] sm:$0x1]
      %v1691 = vld [vmem:[%s767 + $0x20] sm:$0xe]
      %v1692 = vld [vmem:[%s767 + $0x24] sm:$0x1]
      %v1693 = vld [vmem:[%s767 + $0x28] sm:$0xe]
      %v1694 = vld [vmem:[%s767 + $0x2c] sm:$0x1]
      %v1695 = vld [vmem:[%s767 + $0x30] sm:$0xe]
      %v1696 = vld [vmem:[%s767 + $0x34] sm:$0x1]
      %v1697 = vld [vmem:[%s767 + $0x38] sm:$0xe]
      %v1698 = vld [vmem:[%s767 + $0x3c] sm:$0x1]
      %v1715 = vrot.slane %v1683, 5
      %v1716 = vrot.slane %v1715, 4
      %v1717 = vrot.slane %v1684, 5
      %v1718 = vsel %vm1064, %v1716, %v1717
      %v1719 = vrot.slane %v1685, 5
      %v1720 = vrot.slane %v1719, 4
      %v1721 = vrot.slane %v1686, 5
      %v1722 = vsel %vm1064, %v1720, %v1721
      %v1723 = vrot.slane %v1687, 5
      %v1724 = vrot.slane %v1723, 4
      %v1725 = vrot.slane %v1688, 5
      %v1726 = vsel %vm1064, %v1724, %v1725
      %v1727 = vrot.slane %v1689, 5
      %v1728 = vrot.slane %v1727, 4
      %v1729 = vrot.slane %v1690, 5
      %v1730 = vsel %vm1064, %v1728, %v1729
      %v1731 = vrot.slane %v1691, 5
      %v1732 = vrot.slane %v1731, 4
      %v1733 = vrot.slane %v1692, 5
      %v1734 = vsel %vm1064, %v1732, %v1733
      %v1735 = vrot.slane %v1693, 5
      %v1736 = vrot.slane %v1735, 4
      %v1737 = vrot.slane %v1694, 5
      %v1738 = vsel %vm1064, %v1736, %v1737
      %v1739 = vrot.slane %v1695, 5
      %v1740 = vrot.slane %v1739, 4
      %v1741 = vrot.slane %v1696, 5
      %v1742 = vsel %vm1064, %v1740, %v1741
      %v1743 = vrot.slane %v1697, 5
      %v1744 = vrot.slane %v1743, 4
      %v1745 = vrot.slane %v1698, 5
      %v1746 = vsel %vm1064, %v1744, %v1745
      %1755 = vst [vmem:[#allocation4 + $0x8] sm:$0xf] %v1718
      %1756 = vst [vmem:[#allocation4 + $0x14] sm:$0xf] %v1722
      %1757 = vst [vmem:[#allocation4 + $0x20] sm:$0xf] %v1726
      %1758 = vst [vmem:[#allocation4 + $0x2c] sm:$0xf] %v1730
      %1759 = vst [vmem:[#allocation4 + $0x38] sm:$0xf] %v1734
      %1760 = vst [vmem:[#allocation4 + $0x44] sm:$0xf] %v1738
      %1761 = vst [vmem:[#allocation4 + $0x50] sm:$0xf] %v1742
      %1762 = vst [vmem:[#allocation4 + $0x5c] sm:$0xf] %v1746
      %v1763 = vld [vmem:[#allocation4] sm:$0xff]
      %v1764 = vld [vmem:[#allocation4 + $0x8] sm:$0xf]
      %v1765 = vld [vmem:[#allocation4 + $0xc] sm:$0xff]
      %v1766 = vld [vmem:[#allocation4 + $0x14] sm:$0xf]
      %v1767 = vld [vmem:[#allocation4 + $0x18] sm:$0xff]
      %v1768 = vld [vmem:[#allocation4 + $0x20] sm:$0xf]
      %v1769 = vld [vmem:[#allocation4 + $0x24] sm:$0xff]
      %v1770 = vld [vmem:[#allocation4 + $0x2c] sm:$0xf]
      %v1771 = vld [vmem:[#allocation4 + $0x30] sm:$0xff]
      %v1772 = vld [vmem:[#allocation4 + $0x38] sm:$0xf]
      %v1773 = vld [vmem:[#allocation4 + $0x3c] sm:$0xff]
      %v1774 = vld [vmem:[#allocation4 + $0x44] sm:$0xf]
      %v1775 = vld [vmem:[#allocation4 + $0x48] sm:$0xff]
      %v1776 = vld [vmem:[#allocation4 + $0x50] sm:$0xf]
      %v1777 = vld [vmem:[#allocation4 + $0x54] sm:$0xff]
      %v1778 = vld [vmem:[#allocation4 + $0x5c] sm:$0xf]
      %s1779 = scalar_lea.vmem %s5, 192
      %v1780 = vld [vmem:[%s1779] sm:$0xf]
      %v1781 = vld [vmem:[%s1779 + $0x4] sm:$0xf]
      %v1782 = vld [vmem:[%s1779 + $0x8] sm:$0xf]
      %v1783 = vld [vmem:[%s1779 + $0xc] sm:$0xf]
      %v1784 = vld [vmem:[%s1779 + $0x10] sm:$0xf]
      %v1785 = vld [vmem:[%s1779 + $0x14] sm:$0xf]
      %v1786 = vld [vmem:[%s1779 + $0x18] sm:$0xf]
      %v1787 = vld [vmem:[%s1779 + $0x1c] sm:$0xf]
      %v1788 = vld [vmem:[%s1779 + $0x20] sm:$0xf]
      %v1789 = vld [vmem:[%s1779 + $0x24] sm:$0xf]
      %v1790 = vld [vmem:[%s1779 + $0x28] sm:$0xf]
      %v1791 = vld [vmem:[%s1779 + $0x2c] sm:$0xf]
      %v1792 = vld [vmem:[%s1779 + $0x30] sm:$0xf]
      %v1793 = vld [vmem:[%s1779 + $0x34] sm:$0xf]
      %v1794 = vld [vmem:[%s1779 + $0x38] sm:$0xf]
      %v1795 = vld [vmem:[%s1779 + $0x3c] sm:$0xf]
      %v1796 = vld [vmem:[%s1779 + $0x40] sm:$0xf]
      %v1797 = vld [vmem:[%s1779 + $0x44] sm:$0xf]
      %v1798 = vld [vmem:[%s1779 + $0x48] sm:$0xf]
      %v1799 = vld [vmem:[%s1779 + $0x4c] sm:$0xf]
      %v1800 = vld [vmem:[%s1779 + $0x50] sm:$0xf]
      %v1801 = vld [vmem:[%s1779 + $0x54] sm:$0xf]
      %v1802 = vld [vmem:[%s1779 + $0x58] sm:$0xf]
      %v1803 = vld [vmem:[%s1779 + $0x5c] sm:$0xf]
      %v1804 = vld [vmem:[%s1779 + $0x60] sm:$0xf]
      %v1805 = vld [vmem:[%s1779 + $0x64] sm:$0xf]
      %v1806 = vld [vmem:[%s1779 + $0x68] sm:$0xf]
      %v1807 = vld [vmem:[%s1779 + $0x6c] sm:$0xf]
      %v1808 = vld [vmem:[%s1779 + $0x70] sm:$0xf]
      %v1809 = vld [vmem:[%s1779 + $0x74] sm:$0xf]
      %v1810 = vld [vmem:[%s1779 + $0x78] sm:$0xf]
      %v1811 = vld [vmem:[%s1779 + $0x7c] sm:$0xf]
      %v1812 = vld [vmem:[%s1779 + $0x80] sm:$0xf]
      %v1813 = vld [vmem:[%s1779 + $0x84] sm:$0xf]
      %v1814 = vld [vmem:[%s1779 + $0x88] sm:$0xf]
      %v1815 = vld [vmem:[%s1779 + $0x8c] sm:$0xf]
      %v1816 = vld [vmem:[%s1779 + $0x90] sm:$0xf]
      %v1817 = vld [vmem:[%s1779 + $0x94] sm:$0xf]
      %v1818 = vld [vmem:[%s1779 + $0x98] sm:$0xf]
      %v1819 = vld [vmem:[%s1779 + $0x9c] sm:$0xf]
      %v1820 = vld [vmem:[%s1779 + $0xa0] sm:$0xf]
      %v1821 = vld [vmem:[%s1779 + $0xa4] sm:$0xf]
      %v1822 = vld [vmem:[%s1779 + $0xa8] sm:$0xf]
      %v1823 = vld [vmem:[%s1779 + $0xac] sm:$0xf]
      %v1824 = vld [vmem:[%s1779 + $0xb0] sm:$0xf]
      %v1825 = vld [vmem:[%s1779 + $0xb4] sm:$0xf]
      %v1826 = vld [vmem:[%s1779 + $0xb8] sm:$0xf]
      %v1827 = vld [vmem:[%s1779 + $0xbc] sm:$0xf]
      %v1844 = vunpack.c.l.b16 %v1763
      %v1845 = vunpack.c.h.b16 %v1763
      %v1846 = vunpack.c.l.b16 %v1764
      %v1847 = vunpack.c.l.b16 %v1765
      %v1848 = vunpack.c.h.b16 %v1765
      %v1849 = vunpack.c.l.b16 %v1766
      %v1850 = vunpack.c.l.b16 %v1767
      %v1851 = vunpack.c.h.b16 %v1767
      %v1852 = vunpack.c.l.b16 %v1768
      %v1853 = vunpack.c.l.b16 %v1769
      %v1854 = vunpack.c.h.b16 %v1769
      %v1855 = vunpack.c.l.b16 %v1770
      %v1856 = vunpack.c.l.b16 %v1771
      %v1857 = vunpack.c.h.b16 %v1771
      %v1858 = vunpack.c.l.b16 %v1772
      %v1859 = vunpack.c.l.b16 %v1773
      %v1860 = vunpack.c.h.b16 %v1773
      %v1861 = vunpack.c.l.b16 %v1774
      %v1862 = vunpack.c.l.b16 %v1775
      %v1863 = vunpack.c.h.b16 %v1775
      %v1864 = vunpack.c.l.b16 %v1776
      %v1865 = vunpack.c.l.b16 %v1777
      %v1866 = vunpack.c.h.b16 %v1777
      %v1867 = vunpack.c.l.b16 %v1778
      %v1868 = vpack.c.b16 %v1847, %v1844
      %v1869 = vpack.c.b16 %v1848, %v1845
      %v1870 = vpack.c.b16 %v1849, %v1846
      %v1871 = vpack.c.b16 %v1853, %v1850
      %v1872 = vpack.c.b16 %v1854, %v1851
      %v1873 = vpack.c.b16 %v1855, %v1852
      %v1874 = vpack.c.b16 %v1859, %v1856
      %v1875 = vpack.c.b16 %v1860, %v1857
      %v1876 = vpack.c.b16 %v1861, %v1858
      %v1877 = vpack.c.b16 %v1865, %v1862
      %v1878 = vpack.c.b16 %v1866, %v1863
      %v1879 = vpack.c.b16 %v1867, %v1864
      %v1940 = vunpack.c.l.b16 %v1780
      %v1941 = vunpack.c.l.b16 %v1781
      %v1942 = vunpack.c.l.b16 %v1782
      %v1943 = vunpack.c.l.b16 %v1783
      %v1944 = vunpack.c.l.b16 %v1784
      %v1945 = vunpack.c.l.b16 %v1785
      %v1946 = vunpack.c.l.b16 %v1786
      %v1947 = vunpack.c.l.b16 %v1787
      %v1948 = vunpack.c.l.b16 %v1788
      %v1949 = vunpack.c.l.b16 %v1789
      %v1950 = vunpack.c.l.b16 %v1790
      %v1951 = vunpack.c.l.b16 %v1791
      %v1952 = vunpack.c.l.b16 %v1792
      %v1953 = vunpack.c.l.b16 %v1793
      %v1954 = vunpack.c.l.b16 %v1794
      %v1955 = vunpack.c.l.b16 %v1795
      %v1956 = vunpack.c.l.b16 %v1796
      %v1957 = vunpack.c.l.b16 %v1797
      %v1958 = vunpack.c.l.b16 %v1798
      %v1959 = vunpack.c.l.b16 %v1799
      %v1960 = vunpack.c.l.b16 %v1800
      %v1961 = vunpack.c.l.b16 %v1801
      %v1962 = vunpack.c.l.b16 %v1802
      %v1963 = vunpack.c.l.b16 %v1803
      %v1964 = vunpack.c.l.b16 %v1804
      %v1965 = vunpack.c.l.b16 %v1805
      %v1966 = vunpack.c.l.b16 %v1806
      %v1967 = vunpack.c.l.b16 %v1807
      %v1968 = vunpack.c.l.b16 %v1808
      %v1969 = vunpack.c.l.b16 %v1809
      %v1970 = vunpack.c.l.b16 %v1810
      %v1971 = vunpack.c.l.b16 %v1811
      %v1972 = vunpack.c.l.b16 %v1812
      %v1973 = vunpack.c.l.b16 %v1813
      %v1974 = vunpack.c.l.b16 %v1814
      %v1975 = vunpack.c.l.b16 %v1815
      %v1976 = vunpack.c.l.b16 %v1816
      %v1977 = vunpack.c.l.b16 %v1817
      %v1978 = vunpack.c.l.b16 %v1818
      %v1979 = vunpack.c.l.b16 %v1819
      %v1980 = vunpack.c.l.b16 %v1820
      %v1981 = vunpack.c.l.b16 %v1821
      %v1982 = vunpack.c.l.b16 %v1822
      %v1983 = vunpack.c.l.b16 %v1823
      %v1984 = vunpack.c.l.b16 %v1824
      %v1985 = vunpack.c.l.b16 %v1825
      %v1986 = vunpack.c.l.b16 %v1826
      %v1987 = vunpack.c.l.b16 %v1827
      %v1988 = vpack.c.b16 %v1941, %v1940
      %v1989 = vpack.c.b16 %v1943, %v1942
      %v1990 = vpack.c.b16 %v1945, %v1944
      %v1991 = vpack.c.b16 %v1947, %v1946
      %v1992 = vpack.c.b16 %v1949, %v1948
      %v1993 = vpack.c.b16 %v1951, %v1950
      %v1994 = vpack.c.b16 %v1953, %v1952
      %v1995 = vpack.c.b16 %v1955, %v1954
      %v1996 = vpack.c.b16 %v1957, %v1956
      %v1997 = vpack.c.b16 %v1959, %v1958
      %v1998 = vpack.c.b16 %v1961, %v1960
      %v1999 = vpack.c.b16 %v1963, %v1962
      %v2000 = vpack.c.b16 %v1965, %v1964
      %v2001 = vpack.c.b16 %v1967, %v1966
      %v2002 = vpack.c.b16 %v1969, %v1968
      %v2003 = vpack.c.b16 %v1971, %v1970
      %v2004 = vpack.c.b16 %v1973, %v1972
      %v2005 = vpack.c.b16 %v1975, %v1974
      %v2006 = vpack.c.b16 %v1977, %v1976
      %v2007 = vpack.c.b16 %v1979, %v1978
      %v2008 = vpack.c.b16 %v1981, %v1980
      %v2009 = vpack.c.b16 %v1983, %v1982
      %v2010 = vpack.c.b16 %v1985, %v1984
      %v2011 = vpack.c.b16 %v1987, %v1986
      %2036 = vmatprep.subr.bf16.mxu0 0
      %2037 = vmatpush1.bf16.msra.mxu0 %v1995
      %2038 = vmatprep.subr.bf16.mxu0 0
      %2039 = vmatpush1.bf16.msra.mxu0 %v1994
      %2040 = vmatprep.subr.bf16.mxu0 0
      %2041 = vmatpush1.bf16.msra.mxu0 %v1993
      %2042 = vmatprep.subr.bf16.mxu0 0
      %2043 = vmatpush1.bf16.msra.mxu0 %v1992
      %2044 = vmatprep.subr.bf16.mxu0 0
      %2045 = vmatpush1.bf16.msra.mxu0 %v1991
      %2046 = vmatprep.subr.bf16.mxu0 0
      %2047 = vmatpush1.bf16.msra.mxu0 %v1990
      %2048 = vmatprep.subr.bf16.mxu0 0
      %2049 = vmatpush1.bf16.msra.mxu0 %v1989
      %2050 = vmatprep.subr.bf16.mxu0 0
      %2051 = vmatpush1.bf16.msra.mxu0 %v1988
      %2052 = vmatprep.subr.bf16.mxu0 0
      %2053 = vmatpush2.bf16.msra.mxu0 %v2003
      %2054 = vmatprep.subr.bf16.mxu0 0
      %2055 = vmatpush2.bf16.msra.mxu0 %v2002
      %2056 = vmatprep.subr.bf16.mxu0 0
      %2057 = vmatpush2.bf16.msra.mxu0 %v2001
      %2058 = vmatprep.subr.bf16.mxu0 0
      %2059 = vmatpush2.bf16.msra.mxu0 %v2000
      %2060 = vmatprep.subr.bf16.mxu0 0
      %2061 = vmatpush2.bf16.msra.mxu0 %v1999
      %2062 = vmatprep.subr.bf16.mxu0 0
      %2063 = vmatpush2.bf16.msra.mxu0 %v1998
      %2064 = vmatprep.subr.bf16.mxu0 0
      %2065 = vmatpush2.bf16.msra.mxu0 %v1997
      %2066 = vmatprep.subr.bf16.mxu0 0
      %2067 = vmatpush2.bf16.msra.mxu0 %v1996
      %2068 = vmatprep.mubr.bf16.mxu0 %v1869
      %2069 = vmatmul.mubr.bf16.gmra.mxu0 %v1868
      %v2070 = vpop.f32.mrf.mxu0
      %v2071 = vadd.f32 0.0, %v2070
      %v2072 = vpop.f32.mrf.mxu0
      %v2073 = vpop.f32.mrf.mxu0
      %v2074 = vadd.f32 0.0, %v2073
      %v2075 = vpop.f32.mrf.mxu0
      %2076 = vmatprep.mubr.bf16.mxu0 %v1872
      %2077 = vmatmul.mubr.bf16.gmra.mxu0 %v1871
      %v2078 = vpop.f32.mrf.mxu0
      %v2079 = vadd.f32 0.0, %v2078
      %v2080 = vpop.f32.mrf.mxu0
      %v2081 = vpop.f32.mrf.mxu0
      %v2082 = vadd.f32 0.0, %v2081
      %v2083 = vpop.f32.mrf.mxu0
      %2084 = vmatprep.mubr.bf16.mxu0 %v1875
      %2085 = vmatmul.mubr.bf16.gmra.mxu0 %v1874
      %v2086 = vpop.f32.mrf.mxu0
      %v2087 = vadd.f32 0.0, %v2086
      %v2088 = vpop.f32.mrf.mxu0
      %v2089 = vpop.f32.mrf.mxu0
      %v2090 = vadd.f32 0.0, %v2089
      %v2091 = vpop.f32.mrf.mxu0
      %2092 = vmatprep.mubr.bf16.mxu0 %v1878
      %2093 = vmatmul.mubr.bf16.gmra.mxu0 %v1877
      %v2094 = vpop.f32.mrf.mxu0
      %v2095 = vadd.f32 0.0, %v2094
      %v2096 = vpop.f32.mrf.mxu0
      %v2097 = vpop.f32.mrf.mxu0
      %v2098 = vadd.f32 0.0, %v2097
      %v2099 = vpop.f32.mrf.mxu0
      %2100 = vdwg.mxu0
      %2101 = vmatprep.subr.bf16.mxu0 0
      %2102 = vmatpush1.bf16.msra.mxu0 %v2011
      %2103 = vmatprep.subr.bf16.mxu0 0
      %2104 = vmatpush1.bf16.msra.mxu0 %v2010
      %2105 = vmatprep.subr.bf16.mxu0 0
      %2106 = vmatpush1.bf16.msra.mxu0 %v2009
      %2107 = vmatprep.subr.bf16.mxu0 0
      %2108 = vmatpush1.bf16.msra.mxu0 %v2008
      %2109 = vmatprep.subr.bf16.mxu0 0
      %2110 = vmatpush1.bf16.msra.mxu0 %v2007
      %2111 = vmatprep.subr.bf16.mxu0 0
      %2112 = vmatpush1.bf16.msra.mxu0 %v2006
      %2113 = vmatprep.subr.bf16.mxu0 0
      %2114 = vmatpush1.bf16.msra.mxu0 %v2005
      %2115 = vmatprep.subr.bf16.mxu0 0
      %2116 = vmatpush1.bf16.msra.mxu0 %v2004
      %2117 = vmatprep.subr.bf16.mxu0 0
      %2118 = vmatpush2.bf16.msra.mxu0 0
      %2119 = vmatprep.subr.bf16.mxu0 0
      %2120 = vmatpush2.bf16.msra.mxu0 0
      %2121 = vmatprep.subr.bf16.mxu0 0
      %2122 = vmatpush2.bf16.msra.mxu0 0
      %2123 = vmatprep.subr.bf16.mxu0 0
      %2124 = vmatpush2.bf16.msra.mxu0 0
      %2125 = vmatprep.subr.bf16.mxu0 0
      %2126 = vmatpush2.bf16.msra.mxu0 0
      %2127 = vmatprep.subr.bf16.mxu0 0
      %2128 = vmatpush2.bf16.msra.mxu0 0
      %2129 = vmatprep.subr.bf16.mxu0 0
      %2130 = vmatpush2.bf16.msra.mxu0 0
      %2131 = vmatprep.subr.bf16.mxu0 0
      %2132 = vmatpush2.bf16.msra.mxu0 0
      %2133 = vmatprep.mubr.bf16.mxu0 0
      %2134 = vmatmul.mubr.bf16.gmra.mxu0 %v1870
      %v2135 = vpop.f32.mrf.mxu0
      %v2136 = vadd.f32 %v2071, %v2135
      %v2137 = vpop.f32.mrf.mxu0
      %v2138 = vpop.f32.mrf.mxu0
      %v2139 = vadd.f32 %v2074, %v2138
      %v2140 = vpop.f32.mrf.mxu0
      %2141 = vmatprep.mubr.bf16.mxu0 0
      %2142 = vmatmul.mubr.bf16.gmra.mxu0 %v1873
      %v2143 = vpop.f32.mrf.mxu0
      %v2144 = vadd.f32 %v2079, %v2143
      %v2145 = vpop.f32.mrf.mxu0
      %v2146 = vpop.f32.mrf.mxu0
      %v2147 = vadd.f32 %v2082, %v2146
      %v2148 = vpop.f32.mrf.mxu0
      %2149 = vmatprep.mubr.bf16.mxu0 0
      %2150 = vmatmul.mubr.bf16.gmra.mxu0 %v1876
      %v2151 = vpop.f32.mrf.mxu0
      %v2152 = vadd.f32 %v2087, %v2151
      %v2153 = vpop.f32.mrf.mxu0
      %v2154 = vpop.f32.mrf.mxu0
      %v2155 = vadd.f32 %v2090, %v2154
      %v2156 = vpop.f32.mrf.mxu0
      %2157 = vmatprep.mubr.bf16.mxu0 0
      %2158 = vmatmul.mubr.bf16.gmra.mxu0 %v1879
      %v2159 = vpop.f32.mrf.mxu0
      %v2160 = vadd.f32 %v2095, %v2159
      %v2161 = vpop.f32.mrf.mxu0
      %v2162 = vpop.f32.mrf.mxu0
      %v2163 = vadd.f32 %v2098, %v2162
      %v2164 = vpop.f32.mrf.mxu0
      %2165 = vdwg.mxu0
      %v2166 = vld [vmem:[#allocation3] sm:$0xff]
      %v2167 = vld [vmem:[#allocation3 + $0x8] sm:$0xff]
      %v2168 = vld [vmem:[#allocation3 + $0x10] sm:$0xff]
      %v2169 = vld [vmem:[#allocation3 + $0x18] sm:$0xff]
      %v2170 = vld [vmem:[#allocation3 + $0x20] sm:$0xff]
      %v2171 = vld [vmem:[#allocation3 + $0x28] sm:$0xff]
      %v2172 = vld [vmem:[#allocation3 + $0x30] sm:$0xff]
      %v2173 = vld [vmem:[#allocation3 + $0x38] sm:$0xff]
      %v2174 = vadd.f32 %v2166, %v2136
      %v2175 = vadd.f32 %v2167, %v2139
      %v2176 = vadd.f32 %v2168, %v2144
      %v2177 = vadd.f32 %v2169, %v2147
      %v2178 = vadd.f32 %v2170, %v2152
      %v2179 = vadd.f32 %v2171, %v2155
      %v2180 = vadd.f32 %v2172, %v2160
      %v2181 = vadd.f32 %v2173, %v2163
      %2182 = vst [vmem:[#allocation3] sm:$0xff] %v2174
      %2183 = vst [vmem:[#allocation3 + $0x8] sm:$0xff] %v2175
      %2184 = vst [vmem:[#allocation3 + $0x10] sm:$0xff] %v2176
      %2185 = vst [vmem:[#allocation3 + $0x18] sm:$0xff] %v2177
      %2186 = vst [vmem:[#allocation3 + $0x20] sm:$0xff] %v2178
      %2187 = vst [vmem:[#allocation3 + $0x28] sm:$0xff] %v2179
      %2188 = vst [vmem:[#allocation3 + $0x30] sm:$0xff] %v2180
      %2189 = vst [vmem:[#allocation3 + $0x38] sm:$0xff] %v2181
      %s2190 = scalar_lea.vmem [#allocation2], 16
      %v2191 = vld [vmem:[%s2190] sm:$0xf]
      %v2192 = vld [vmem:[%s2190 + $0x8] sm:$0xf]
      %v2193 = vld [vmem:[%s2190 + $0x10] sm:$0xf]
      %v2194 = vld [vmem:[%s2190 + $0x18] sm:$0xf]
      %v2195 = vld [vmem:[%s2190 + $0x20] sm:$0xf]
      %v2196 = vld [vmem:[%s2190 + $0x28] sm:$0xf]
      %v2197 = vld [vmem:[%s2190 + $0x30] sm:$0xf]
      %v2198 = vld [vmem:[%s2190 + $0x38] sm:$0xf]
      %2199 = vst [vmem:[#allocation4] sm:$0xf] %v2191
      %2200 = vst [vmem:[#allocation4 + $0xc] sm:$0xf] %v2192
      %2201 = vst [vmem:[#allocation4 + $0x18] sm:$0xf] %v2193
      %2202 = vst [vmem:[#allocation4 + $0x24] sm:$0xf] %v2194
      %2203 = vst [vmem:[#allocation4 + $0x30] sm:$0xf] %v2195
      %2204 = vst [vmem:[#allocation4 + $0x3c] sm:$0xf] %v2196
      %2205 = vst [vmem:[#allocation4 + $0x48] sm:$0xf] %v2197
      %2206 = vst [vmem:[#allocation4 + $0x54] sm:$0xf] %v2198
      %v2207 = vld [vmem:[%s2190] sm:$0xf]
      %v2208 = vld [vmem:[%s2190 + $0x4] sm:$0x1]
      %v2209 = vld [vmem:[%s2190 + $0x8] sm:$0xf]
      %v2210 = vld [vmem:[%s2190 + $0xc] sm:$0x1]
      %v2211 = vld [vmem:[%s2190 + $0x10] sm:$0xf]
      %v2212 = vld [vmem:[%s2190 + $0x14] sm:$0x1]
      %v2213 = vld [vmem:[%s2190 + $0x18] sm:$0xf]
      %v2214 = vld [vmem:[%s2190 + $0x1c] sm:$0x1]
      %v2215 = vld [vmem:[%s2190 + $0x20] sm:$0xf]
      %v2216 = vld [vmem:[%s2190 + $0x24] sm:$0x1]
      %v2217 = vld [vmem:[%s2190 + $0x28] sm:$0xf]
      %v2218 = vld [vmem:[%s2190 + $0x2c] sm:$0x1]
      %v2219 = vld [vmem:[%s2190 + $0x30] sm:$0xf]
      %v2220 = vld [vmem:[%s2190 + $0x34] sm:$0x1]
      %v2221 = vld [vmem:[%s2190 + $0x38] sm:$0xf]
      %v2222 = vld [vmem:[%s2190 + $0x3c] sm:$0x1]
      %v2224 = vshrl.u32 %v2207, 16
      %v2226 = vrot.slane %v2224, 4
      %v2227 = vshll.u32 %v2207, 16
      %v2229 = vrot.slane %v2227, 5
      %v2230 = vor.u32 %v2226, %v2229
      %v2231 = vrot.slane %v2230, 4
      %v2233 = vshll.u32 %v2208, 16
      %v2235 = vrot.slane %v2233, 5
      %v2236 = vsel %vm901, %v2231, %v2235
      %v2238 = vshrl.u32 %v2209, 16
      %v2240 = vrot.slane %v2238, 4
      %v2241 = vshll.u32 %v2209, 16
      %v2243 = vrot.slane %v2241, 5
      %v2244 = vor.u32 %v2240, %v2243
      %v2245 = vrot.slane %v2244, 4
      %v2247 = vshll.u32 %v2210, 16
      %v2249 = vrot.slane %v2247, 5
      %v2250 = vsel %vm901, %v2245, %v2249
      %v2252 = vshrl.u32 %v2211, 16
      %v2254 = vrot.slane %v2252, 4
      %v2255 = vshll.u32 %v2211, 16
      %v2257 = vrot.slane %v2255, 5
      %v2258 = vor.u32 %v2254, %v2257
      %v2259 = vrot.slane %v2258, 4
      %v2261 = vshll.u32 %v2212, 16
      %v2263 = vrot.slane %v2261, 5
      %v2264 = vsel %vm901, %v2259, %v2263
      %v2266 = vshrl.u32 %v2213, 16
      %v2268 = vrot.slane %v2266, 4
      %v2269 = vshll.u32 %v2213, 16
      %v2271 = vrot.slane %v2269, 5
      %v2272 = vor.u32 %v2268, %v2271
      %v2273 = vrot.slane %v2272, 4
      %v2275 = vshll.u32 %v2214, 16
      %v2277 = vrot.slane %v2275, 5
      %v2278 = vsel %vm901, %v2273, %v2277
      %v2280 = vshrl.u32 %v2215, 16
      %v2282 = vrot.slane %v2280, 4
      %v2283 = vshll.u32 %v2215, 16
      %v2285 = vrot.slane %v2283, 5
      %v2286 = vor.u32 %v2282, %v2285
      %v2287 = vrot.slane %v2286, 4
      %v2289 = vshll.u32 %v2216, 16
      %v2291 = vrot.slane %v2289, 5
      %v2292 = vsel %vm901, %v2287, %v2291
      %v2294 = vshrl.u32 %v2217, 16
      %v2296 = vrot.slane %v2294, 4
      %v2297 = vshll.u32 %v2217, 16
      %v2299 = vrot.slane %v2297, 5
      %v2300 = vor.u32 %v2296, %v2299
      %v2301 = vrot.slane %v2300, 4
      %v2303 = vshll.u32 %v2218, 16
      %v2305 = vrot.slane %v2303, 5
      %v2306 = vsel %vm901, %v2301, %v2305
      %v2308 = vshrl.u32 %v2219, 16
      %v2310 = vrot.slane %v2308, 4
      %v2311 = vshll.u32 %v2219, 16
      %v2313 = vrot.slane %v2311, 5
      %v2314 = vor.u32 %v2310, %v2313
      %v2315 = vrot.slane %v2314, 4
      %v2317 = vshll.u32 %v2220, 16
      %v2319 = vrot.slane %v2317, 5
      %v2320 = vsel %vm901, %v2315, %v2319
      %v2322 = vshrl.u32 %v2221, 16
      %v2324 = vrot.slane %v2322, 4
      %v2325 = vshll.u32 %v2221, 16
      %v2327 = vrot.slane %v2325, 5
      %v2328 = vor.u32 %v2324, %v2327
      %v2329 = vrot.slane %v2328, 4
      %v2331 = vshll.u32 %v2222, 16
      %v2333 = vrot.slane %v2331, 5
      %v2334 = vsel %vm901, %v2329, %v2333
      %2343 = vst [vmem:[#allocation4 + $0x4] sm:$0xf] %v2236
      %2344 = vst [vmem:[#allocation4 + $0x10] sm:$0xf] %v2250
      %2345 = vst [vmem:[#allocation4 + $0x1c] sm:$0xf] %v2264
      %2346 = vst [vmem:[#allocation4 + $0x28] sm:$0xf] %v2278
      %2347 = vst [vmem:[#allocation4 + $0x34] sm:$0xf] %v2292
      %2348 = vst [vmem:[#allocation4 + $0x40] sm:$0xf] %v2306
      %2349 = vst [vmem:[#allocation4 + $0x4c] sm:$0xf] %v2320
      %2350 = vst [vmem:[#allocation4 + $0x58] sm:$0xf] %v2334
      %v2351 = vld [vmem:[%s2190] sm:$0xe]
      %v2352 = vld [vmem:[%s2190 + $0x4] sm:$0x1]
      %v2353 = vld [vmem:[%s2190 + $0x8] sm:$0xe]
      %v2354 = vld [vmem:[%s2190 + $0xc] sm:$0x1]
      %v2355 = vld [vmem:[%s2190 + $0x10] sm:$0xe]
      %v2356 = vld [vmem:[%s2190 + $0x14] sm:$0x1]
      %v2357 = vld [vmem:[%s2190 + $0x18] sm:$0xe]
      %v2358 = vld [vmem:[%s2190 + $0x1c] sm:$0x1]
      %v2359 = vld [vmem:[%s2190 + $0x20] sm:$0xe]
      %v2360 = vld [vmem:[%s2190 + $0x24] sm:$0x1]
      %v2361 = vld [vmem:[%s2190 + $0x28] sm:$0xe]
      %v2362 = vld [vmem:[%s2190 + $0x2c] sm:$0x1]
      %v2363 = vld [vmem:[%s2190 + $0x30] sm:$0xe]
      %v2364 = vld [vmem:[%s2190 + $0x34] sm:$0x1]
      %v2365 = vld [vmem:[%s2190 + $0x38] sm:$0xe]
      %v2366 = vld [vmem:[%s2190 + $0x3c] sm:$0x1]
      %v2383 = vrot.slane %v2351, 5
      %v2384 = vrot.slane %v2383, 4
      %v2385 = vrot.slane %v2352, 5
      %v2386 = vsel %vm1064, %v2384, %v2385
      %v2387 = vrot.slane %v2353, 5
      %v2388 = vrot.slane %v2387, 4
      %v2389 = vrot.slane %v2354, 5
      %v2390 = vsel %vm1064, %v2388, %v2389
      %v2391 = vrot.slane %v2355, 5
      %v2392 = vrot.slane %v2391, 4
      %v2393 = vrot.slane %v2356, 5
      %v2394 = vsel %vm1064, %v2392, %v2393
      %v2395 = vrot.slane %v2357, 5
      %v2396 = vrot.slane %v2395, 4
      %v2397 = vrot.slane %v2358, 5
      %v2398 = vsel %vm1064, %v2396, %v2397
      %v2399 = vrot.slane %v2359, 5
      %v2400 = vrot.slane %v2399, 4
      %v2401 = vrot.slane %v2360, 5
      %v2402 = vsel %vm1064, %v2400, %v2401
      %v2403 = vrot.slane %v2361, 5
      %v2404 = vrot.slane %v2403, 4
      %v2405 = vrot.slane %v2362, 5
      %v2406 = vsel %vm1064, %v2404, %v2405
      %v2407 = vrot.slane %v2363, 5
      %v2408 = vrot.slane %v2407, 4
      %v2409 = vrot.slane %v2364, 5
      %v2410 = vsel %vm1064, %v2408, %v2409
      %v2411 = vrot.slane %v2365, 5
      %v2412 = vrot.slane %v2411, 4
      %v2413 = vrot.slane %v2366, 5
      %v2414 = vsel %vm1064, %v2412, %v2413
      %2423 = vst [vmem:[#allocation4 + $0x8] sm:$0xf] %v2386
      %2424 = vst [vmem:[#allocation4 + $0x14] sm:$0xf] %v2390
      %2425 = vst [vmem:[#allocation4 + $0x20] sm:$0xf] %v2394
      %2426 = vst [vmem:[#allocation4 + $0x2c] sm:$0xf] %v2398
      %2427 = vst [vmem:[#allocation4 + $0x38] sm:$0xf] %v2402
      %2428 = vst [vmem:[#allocation4 + $0x44] sm:$0xf] %v2406
      %2429 = vst [vmem:[#allocation4 + $0x50] sm:$0xf] %v2410
      %2430 = vst [vmem:[#allocation4 + $0x5c] sm:$0xf] %v2414
      %v2431 = vld [vmem:[#allocation4] sm:$0xff]
      %v2432 = vld [vmem:[#allocation4 + $0x8] sm:$0xf]
      %v2433 = vld [vmem:[#allocation4 + $0xc] sm:$0xff]
      %v2434 = vld [vmem:[#allocation4 + $0x14] sm:$0xf]
      %v2435 = vld [vmem:[#allocation4 + $0x18] sm:$0xff]
      %v2436 = vld [vmem:[#allocation4 + $0x20] sm:$0xf]
      %v2437 = vld [vmem:[#allocation4 + $0x24] sm:$0xff]
      %v2438 = vld [vmem:[#allocation4 + $0x2c] sm:$0xf]
      %v2439 = vld [vmem:[#allocation4 + $0x30] sm:$0xff]
      %v2440 = vld [vmem:[#allocation4 + $0x38] sm:$0xf]
      %v2441 = vld [vmem:[#allocation4 + $0x3c] sm:$0xff]
      %v2442 = vld [vmem:[#allocation4 + $0x44] sm:$0xf]
      %v2443 = vld [vmem:[#allocation4 + $0x48] sm:$0xff]
      %v2444 = vld [vmem:[#allocation4 + $0x50] sm:$0xf]
      %v2445 = vld [vmem:[#allocation4 + $0x54] sm:$0xff]
      %v2446 = vld [vmem:[#allocation4 + $0x5c] sm:$0xf]
      %s2447 = scalar_lea.vmem %s5, 384
      %v2448 = vld [vmem:[%s2447] sm:$0xf]
      %v2449 = vld [vmem:[%s2447 + $0x4] sm:$0xf]
      %v2450 = vld [vmem:[%s2447 + $0x8] sm:$0xf]
      %v2451 = vld [vmem:[%s2447 + $0xc] sm:$0xf]
      %v2452 = vld [vmem:[%s2447 + $0x10] sm:$0xf]
      %v2453 = vld [vmem:[%s2447 + $0x14] sm:$0xf]
      %v2454 = vld [vmem:[%s2447 + $0x18] sm:$0xf]
      %v2455 = vld [vmem:[%s2447 + $0x1c] sm:$0xf]
      %v2456 = vld [vmem:[%s2447 + $0x20] sm:$0xf]
      %v2457 = vld [vmem:[%s2447 + $0x24] sm:$0xf]
      %v2458 = vld [vmem:[%s2447 + $0x28] sm:$0xf]
      %v2459 = vld [vmem:[%s2447 + $0x2c] sm:$0xf]
      %v2460 = vld [vmem:[%s2447 + $0x30] sm:$0xf]
      %v2461 = vld [vmem:[%s2447 + $0x34] sm:$0xf]
      %v2462 = vld [vmem:[%s2447 + $0x38] sm:$0xf]
      %v2463 = vld [vmem:[%s2447 + $0x3c] sm:$0xf]
      %v2464 = vld [vmem:[%s2447 + $0x40] sm:$0xf]
      %v2465 = vld [vmem:[%s2447 + $0x44] sm:$0xf]
      %v2466 = vld [vmem:[%s2447 + $0x48] sm:$0xf]
      %v2467 = vld [vmem:[%s2447 + $0x4c] sm:$0xf]
      %v2468 = vld [vmem:[%s2447 + $0x50] sm:$0xf]
      %v2469 = vld [vmem:[%s2447 + $0x54] sm:$0xf]
      %v2470 = vld [vmem:[%s2447 + $0x58] sm:$0xf]
      %v2471 = vld [vmem:[%s2447 + $0x5c] sm:$0xf]
      %v2472 = vld [vmem:[%s2447 + $0x60] sm:$0xf]
      %v2473 = vld [vmem:[%s2447 + $0x64] sm:$0xf]
      %v2474 = vld [vmem:[%s2447 + $0x68] sm:$0xf]
      %v2475 = vld [vmem:[%s2447 + $0x6c] sm:$0xf]
      %v2476 = vld [vmem:[%s2447 + $0x70] sm:$0xf]
      %v2477 = vld [vmem:[%s2447 + $0x74] sm:$0xf]
      %v2478 = vld [vmem:[%s2447 + $0x78] sm:$0xf]
      %v2479 = vld [vmem:[%s2447 + $0x7c] sm:$0xf]
      %v2480 = vld [vmem:[%s2447 + $0x80] sm:$0xf]
      %v2481 = vld [vmem:[%s2447 + $0x84] sm:$0xf]
      %v2482 = vld [vmem:[%s2447 + $0x88] sm:$0xf]
      %v2483 = vld [vmem:[%s2447 + $0x8c] sm:$0xf]
      %v2484 = vld [vmem:[%s2447 + $0x90] sm:$0xf]
      %v2485 = vld [vmem:[%s2447 + $0x94] sm:$0xf]
      %v2486 = vld [vmem:[%s2447 + $0x98] sm:$0xf]
      %v2487 = vld [vmem:[%s2447 + $0x9c] sm:$0xf]
      %v2488 = vld [vmem:[%s2447 + $0xa0] sm:$0xf]
      %v2489 = vld [vmem:[%s2447 + $0xa4] sm:$0xf]
      %v2490 = vld [vmem:[%s2447 + $0xa8] sm:$0xf]
      %v2491 = vld [vmem:[%s2447 + $0xac] sm:$0xf]
      %v2492 = vld [vmem:[%s2447 + $0xb0] sm:$0xf]
      %v2493 = vld [vmem:[%s2447 + $0xb4] sm:$0xf]
      %v2494 = vld [vmem:[%s2447 + $0xb8] sm:$0xf]
      %v2495 = vld [vmem:[%s2447 + $0xbc] sm:$0xf]
      %v2512 = vunpack.c.l.b16 %v2431
      %v2513 = vunpack.c.h.b16 %v2431
      %v2514 = vunpack.c.l.b16 %v2432
      %v2515 = vunpack.c.l.b16 %v2433
      %v2516 = vunpack.c.h.b16 %v2433
      %v2517 = vunpack.c.l.b16 %v2434
      %v2518 = vunpack.c.l.b16 %v2435
      %v2519 = vunpack.c.h.b16 %v2435
      %v2520 = vunpack.c.l.b16 %v2436
      %v2521 = vunpack.c.l.b16 %v2437
      %v2522 = vunpack.c.h.b16 %v2437
      %v2523 = vunpack.c.l.b16 %v2438
      %v2524 = vunpack.c.l.b16 %v2439
      %v2525 = vunpack.c.h.b16 %v2439
      %v2526 = vunpack.c.l.b16 %v2440
      %v2527 = vunpack.c.l.b16 %v2441
      %v2528 = vunpack.c.h.b16 %v2441
      %v2529 = vunpack.c.l.b16 %v2442
      %v2530 = vunpack.c.l.b16 %v2443
      %v2531 = vunpack.c.h.b16 %v2443
      %v2532 = vunpack.c.l.b16 %v2444
      %v2533 = vunpack.c.l.b16 %v2445
      %v2534 = vunpack.c.h.b16 %v2445
      %v2535 = vunpack.c.l.b16 %v2446
      %v2536 = vpack.c.b16 %v2515, %v2512
      %v2537 = vpack.c.b16 %v2516, %v2513
      %v2538 = vpack.c.b16 %v2517, %v2514
      %v2539 = vpack.c.b16 %v2521, %v2518
      %v2540 = vpack.c.b16 %v2522, %v2519
      %v2541 = vpack.c.b16 %v2523, %v2520
      %v2542 = vpack.c.b16 %v2527, %v2524
      %v2543 = vpack.c.b16 %v2528, %v2525
      %v2544 = vpack.c.b16 %v2529, %v2526
      %v2545 = vpack.c.b16 %v2533, %v2530
      %v2546 = vpack.c.b16 %v2534, %v2531
      %v2547 = vpack.c.b16 %v2535, %v2532
      %v2608 = vunpack.c.l.b16 %v2448
      %v2609 = vunpack.c.l.b16 %v2449
      %v2610 = vunpack.c.l.b16 %v2450
      %v2611 = vunpack.c.l.b16 %v2451
      %v2612 = vunpack.c.l.b16 %v2452
      %v2613 = vunpack.c.l.b16 %v2453
      %v2614 = vunpack.c.l.b16 %v2454
      %v2615 = vunpack.c.l.b16 %v2455
      %v2616 = vunpack.c.l.b16 %v2456
      %v2617 = vunpack.c.l.b16 %v2457
      %v2618 = vunpack.c.l.b16 %v2458
      %v2619 = vunpack.c.l.b16 %v2459
      %v2620 = vunpack.c.l.b16 %v2460
      %v2621 = vunpack.c.l.b16 %v2461
      %v2622 = vunpack.c.l.b16 %v2462
      %v2623 = vunpack.c.l.b16 %v2463
      %v2624 = vunpack.c.l.b16 %v2464
      %v2625 = vunpack.c.l.b16 %v2465
      %v2626 = vunpack.c.l.b16 %v2466
      %v2627 = vunpack.c.l.b16 %v2467
      %v2628 = vunpack.c.l.b16 %v2468
      %v2629 = vunpack.c.l.b16 %v2469
      %v2630 = vunpack.c.l.b16 %v2470
      %v2631 = vunpack.c.l.b16 %v2471
      %v2632 = vunpack.c.l.b16 %v2472
      %v2633 = vunpack.c.l.b16 %v2473
      %v2634 = vunpack.c.l.b16 %v2474
      %v2635 = vunpack.c.l.b16 %v2475
      %v2636 = vunpack.c.l.b16 %v2476
      %v2637 = vunpack.c.l.b16 %v2477
      %v2638 = vunpack.c.l.b16 %v2478
      %v2639 = vunpack.c.l.b16 %v2479
      %v2640 = vunpack.c.l.b16 %v2480
      %v2641 = vunpack.c.l.b16 %v2481
      %v2642 = vunpack.c.l.b16 %v2482
      %v2643 = vunpack.c.l.b16 %v2483
      %v2644 = vunpack.c.l.b16 %v2484
      %v2645 = vunpack.c.l.b16 %v2485
      %v2646 = vunpack.c.l.b16 %v2486
      %v2647 = vunpack.c.l.b16 %v2487
      %v2648 = vunpack.c.l.b16 %v2488
      %v2649 = vunpack.c.l.b16 %v2489
      %v2650 = vunpack.c.l.b16 %v2490
      %v2651 = vunpack.c.l.b16 %v2491
      %v2652 = vunpack.c.l.b16 %v2492
      %v2653 = vunpack.c.l.b16 %v2493
      %v2654 = vunpack.c.l.b16 %v2494
      %v2655 = vunpack.c.l.b16 %v2495
      %v2656 = vpack.c.b16 %v2609, %v2608
      %v2657 = vpack.c.b16 %v2611, %v2610
      %v2658 = vpack.c.b16 %v2613, %v2612
      %v2659 = vpack.c.b16 %v2615, %v2614
      %v2660 = vpack.c.b16 %v2617, %v2616
      %v2661 = vpack.c.b16 %v2619, %v2618
      %v2662 = vpack.c.b16 %v2621, %v2620
      %v2663 = vpack.c.b16 %v2623, %v2622
      %v2664 = vpack.c.b16 %v2625, %v2624
      %v2665 = vpack.c.b16 %v2627, %v2626
      %v2666 = vpack.c.b16 %v2629, %v2628
      %v2667 = vpack.c.b16 %v2631, %v2630
      %v2668 = vpack.c.b16 %v2633, %v2632
      %v2669 = vpack.c.b16 %v2635, %v2634
      %v2670 = vpack.c.b16 %v2637, %v2636
      %v2671 = vpack.c.b16 %v2639, %v2638
      %v2672 = vpack.c.b16 %v2641, %v2640
      %v2673 = vpack.c.b16 %v2643, %v2642
      %v2674 = vpack.c.b16 %v2645, %v2644
      %v2675 = vpack.c.b16 %v2647, %v2646
      %v2676 = vpack.c.b16 %v2649, %v2648
      %v2677 = vpack.c.b16 %v2651, %v2650
      %v2678 = vpack.c.b16 %v2653, %v2652
      %v2679 = vpack.c.b16 %v2655, %v2654
      %2704 = vmatprep.subr.bf16.mxu0 0
      %2705 = vmatpush1.bf16.msra.mxu0 %v2663
      %2706 = vmatprep.subr.bf16.mxu0 0
      %2707 = vmatpush1.bf16.msra.mxu0 %v2662
      %2708 = vmatprep.subr.bf16.mxu0 0
      %2709 = vmatpush1.bf16.msra.mxu0 %v2661
      %2710 = vmatprep.subr.bf16.mxu0 0
      %2711 = vmatpush1.bf16.msra.mxu0 %v2660
      %2712 = vmatprep.subr.bf16.mxu0 0
      %2713 = vmatpush1.bf16.msra.mxu0 %v2659
      %2714 = vmatprep.subr.bf16.mxu0 0
      %2715 = vmatpush1.bf16.msra.mxu0 %v2658
      %2716 = vmatprep.subr.bf16.mxu0 0
      %2717 = vmatpush1.bf16.msra.mxu0 %v2657
      %2718 = vmatprep.subr.bf16.mxu0 0
      %2719 = vmatpush1.bf16.msra.mxu0 %v2656
      %2720 = vmatprep.subr.bf16.mxu0 0
      %2721 = vmatpush2.bf16.msra.mxu0 %v2671
      %2722 = vmatprep.subr.bf16.mxu0 0
      %2723 = vmatpush2.bf16.msra.mxu0 %v2670
      %2724 = vmatprep.subr.bf16.mxu0 0
      %2725 = vmatpush2.bf16.msra.mxu0 %v2669
      %2726 = vmatprep.subr.bf16.mxu0 0
      %2727 = vmatpush2.bf16.msra.mxu0 %v2668
      %2728 = vmatprep.subr.bf16.mxu0 0
      %2729 = vmatpush2.bf16.msra.mxu0 %v2667
      %2730 = vmatprep.subr.bf16.mxu0 0
      %2731 = vmatpush2.bf16.msra.mxu0 %v2666
      %2732 = vmatprep.subr.bf16.mxu0 0
      %2733 = vmatpush2.bf16.msra.mxu0 %v2665
      %2734 = vmatprep.subr.bf16.mxu0 0
      %2735 = vmatpush2.bf16.msra.mxu0 %v2664
      %2736 = vmatprep.mubr.bf16.mxu0 %v2537
      %2737 = vmatmul.mubr.bf16.gmra.mxu0 %v2536
      %v2738 = vpop.f32.mrf.mxu0
      %v2739 = vadd.f32 0.0, %v2738
      %v2740 = vpop.f32.mrf.mxu0
      %v2741 = vpop.f32.mrf.mxu0
      %v2742 = vadd.f32 0.0, %v2741
      %v2743 = vpop.f32.mrf.mxu0
      %2744 = vmatprep.mubr.bf16.mxu0 %v2540
      %2745 = vmatmul.mubr.bf16.gmra.mxu0 %v2539
      %v2746 = vpop.f32.mrf.mxu0
      %v2747 = vadd.f32 0.0, %v2746
      %v2748 = vpop.f32.mrf.mxu0
      %v2749 = vpop.f32.mrf.mxu0
      %v2750 = vadd.f32 0.0, %v2749
      %v2751 = vpop.f32.mrf.mxu0
      %2752 = vmatprep.mubr.bf16.mxu0 %v2543
      %2753 = vmatmul.mubr.bf16.gmra.mxu0 %v2542
      %v2754 = vpop.f32.mrf.mxu0
      %v2755 = vadd.f32 0.0, %v2754
      %v2756 = vpop.f32.mrf.mxu0
      %v2757 = vpop.f32.mrf.mxu0
      %v2758 = vadd.f32 0.0, %v2757
      %v2759 = vpop.f32.mrf.mxu0
      %2760 = vmatprep.mubr.bf16.mxu0 %v2546
      %2761 = vmatmul.mubr.bf16.gmra.mxu0 %v2545
      %v2762 = vpop.f32.mrf.mxu0
      %v2763 = vadd.f32 0.0, %v2762
      %v2764 = vpop.f32.mrf.mxu0
      %v2765 = vpop.f32.mrf.mxu0
      %v2766 = vadd.f32 0.0, %v2765
      %v2767 = vpop.f32.mrf.mxu0
      %2768 = vdwg.mxu0
      %2769 = vmatprep.subr.bf16.mxu0 0
      %2770 = vmatpush1.bf16.msra.mxu0 %v2679
      %2771 = vmatprep.subr.bf16.mxu0 0
      %2772 = vmatpush1.bf16.msra.mxu0 %v2678
      %2773 = vmatprep.subr.bf16.mxu0 0
      %2774 = vmatpush1.bf16.msra.mxu0 %v2677
      %2775 = vmatprep.subr.bf16.mxu0 0
      %2776 = vmatpush1.bf16.msra.mxu0 %v2676
      %2777 = vmatprep.subr.bf16.mxu0 0
      %2778 = vmatpush1.bf16.msra.mxu0 %v2675
      %2779 = vmatprep.subr.bf16.mxu0 0
      %2780 = vmatpush1.bf16.msra.mxu0 %v2674
      %2781 = vmatprep.subr.bf16.mxu0 0
      %2782 = vmatpush1.bf16.msra.mxu0 %v2673
      %2783 = vmatprep.subr.bf16.mxu0 0
      %2784 = vmatpush1.bf16.msra.mxu0 %v2672
      %2785 = vmatprep.subr.bf16.mxu0 0
      %2786 = vmatpush2.bf16.msra.mxu0 0
      %2787 = vmatprep.subr.bf16.mxu0 0
      %2788 = vmatpush2.bf16.msra.mxu0 0
      %2789 = vmatprep.subr.bf16.mxu0 0
      %2790 = vmatpush2.bf16.msra.mxu0 0
      %2791 = vmatprep.subr.bf16.mxu0 0
      %2792 = vmatpush2.bf16.msra.mxu0 0
      %2793 = vmatprep.subr.bf16.mxu0 0
      %2794 = vmatpush2.bf16.msra.mxu0 0
      %2795 = vmatprep.subr.bf16.mxu0 0
      %2796 = vmatpush2.bf16.msra.mxu0 0
      %2797 = vmatprep.subr.bf16.mxu0 0
      %2798 = vmatpush2.bf16.msra.mxu0 0
      %2799 = vmatprep.subr.bf16.mxu0 0
      %2800 = vmatpush2.bf16.msra.mxu0 0
      %2801 = vmatprep.mubr.bf16.mxu0 0
      %2802 = vmatmul.mubr.bf16.gmra.mxu0 %v2538
      %v2803 = vpop.f32.mrf.mxu0
      %v2804 = vadd.f32 %v2739, %v2803
      %v2805 = vpop.f32.mrf.mxu0
      %v2806 = vpop.f32.mrf.mxu0
      %v2807 = vadd.f32 %v2742, %v2806
      %v2808 = vpop.f32.mrf.mxu0
      %2809 = vmatprep.mubr.bf16.mxu0 0
      %2810 = vmatmul.mubr.bf16.gmra.mxu0 %v2541
      %v2811 = vpop.f32.mrf.mxu0
      %v2812 = vadd.f32 %v2747, %v2811
      %v2813 = vpop.f32.mrf.mxu0
      %v2814 = vpop.f32.mrf.mxu0
      %v2815 = vadd.f32 %v2750, %v2814
      %v2816 = vpop.f32.mrf.mxu0
      %2817 = vmatprep.mubr.bf16.mxu0 0
      %2818 = vmatmul.mubr.bf16.gmra.mxu0 %v2544
      %v2819 = vpop.f32.mrf.mxu0
      %v2820 = vadd.f32 %v2755, %v2819
      %v2821 = vpop.f32.mrf.mxu0
      %v2822 = vpop.f32.mrf.mxu0
      %v2823 = vadd.f32 %v2758, %v2822
      %v2824 = vpop.f32.mrf.mxu0
      %2825 = vmatprep.mubr.bf16.mxu0 0
      %2826 = vmatmul.mubr.bf16.gmra.mxu0 %v2547
      %v2827 = vpop.f32.mrf.mxu0
      %v2828 = vadd.f32 %v2763, %v2827
      %v2829 = vpop.f32.mrf.mxu0
      %v2830 = vpop.f32.mrf.mxu0
      %v2831 = vadd.f32 %v2766, %v2830
      %v2832 = vpop.f32.mrf.mxu0
      %2833 = vdwg.mxu0
      %v2834 = vld [vmem:[#allocation3] sm:$0xff]
      %v2835 = vld [vmem:[#allocation3 + $0x8] sm:$0xff]
      %v2836 = vld [vmem:[#allocation3 + $0x10] sm:$0xff]
      %v2837 = vld [vmem:[#allocation3 + $0x18] sm:$0xff]
      %v2838 = vld [vmem:[#allocation3 + $0x20] sm:$0xff]
      %v2839 = vld [vmem:[#allocation3 + $0x28] sm:$0xff]
      %v2840 = vld [vmem:[#allocation3 + $0x30] sm:$0xff]
      %v2841 = vld [vmem:[#allocation3 + $0x38] sm:$0xff]
      %v2842 = vadd.f32 %v2834, %v2804
      %v2843 = vadd.f32 %v2835, %v2807
      %v2844 = vadd.f32 %v2836, %v2812
      %v2845 = vadd.f32 %v2837, %v2815
      %v2846 = vadd.f32 %v2838, %v2820
      %v2847 = vadd.f32 %v2839, %v2823
      %v2848 = vadd.f32 %v2840, %v2828
      %v2849 = vadd.f32 %v2841, %v2831
      %2850 = vst [vmem:[#allocation3] sm:$0xff] %v2842
      %2851 = vst [vmem:[#allocation3 + $0x8] sm:$0xff] %v2843
      %2852 = vst [vmem:[#allocation3 + $0x10] sm:$0xff] %v2844
      %2853 = vst [vmem:[#allocation3 + $0x18] sm:$0xff] %v2845
      %2854 = vst [vmem:[#allocation3 + $0x20] sm:$0xff] %v2846
      %2855 = vst [vmem:[#allocation3 + $0x28] sm:$0xff] %v2847
      %2856 = vst [vmem:[#allocation3 + $0x30] sm:$0xff] %v2848
      %2857 = vst [vmem:[#allocation3 + $0x38] sm:$0xff] %v2849
      %v2858 = vld [vmem:[#allocation3] sm:$0xff]
      %v2859 = vld [vmem:[#allocation3 + $0x8] sm:$0xff]
      %v2860 = vld [vmem:[#allocation3 + $0x10] sm:$0xff]
      %v2861 = vld [vmem:[#allocation3 + $0x18] sm:$0xff]
      %v2862 = vld [vmem:[#allocation3 + $0x20] sm:$0xff]
      %v2863 = vld [vmem:[#allocation3 + $0x28] sm:$0xff]
      %v2864 = vld [vmem:[#allocation3 + $0x30] sm:$0xff]
      %v2865 = vld [vmem:[#allocation3 + $0x38] sm:$0xff]
      %v2866 = vld [vmem:[%s6] sm:$0x1]
      %v2868 = vlaneseq
      %v2869 = vshrl.u32 %v2868, 7
      %v2870 = vsub.s32 0, %v2869
      %v2871 = vrot.slane %v2866, %v2870
      %v2873 = vadd.f32 %v2858, %v2871
      %v2874 = vadd.f32 %v2859, %v2871
      %v2875 = vadd.f32 %v2860, %v2871
      %v2876 = vadd.f32 %v2861, %v2871
      %v2877 = vadd.f32 %v2862, %v2871
      %v2878 = vadd.f32 %v2863, %v2871
      %v2879 = vadd.f32 %v2864, %v2871
      %v2880 = vadd.f32 %v2865, %v2871
      %v2881 = vpack.c.bf16 %v2873, %v2873
      %v2882 = vpack.c.bf16 %v2874, %v2874
      %v2883 = vpack.c.bf16 %v2875, %v2875
      %v2884 = vpack.c.bf16 %v2876, %v2876
      %v2885 = vpack.c.bf16 %v2877, %v2877
      %v2886 = vpack.c.bf16 %v2878, %v2878
      %v2887 = vpack.c.bf16 %v2879, %v2879
      %v2888 = vpack.c.bf16 %v2880, %v2880
      %2889 = vst [vmem:[%s509] sm:$0xf] %v2881
      %2890 = vst [vmem:[%s509 + $0x4] sm:$0xf] %v2882
      %2891 = vst [vmem:[%s509 + $0x8] sm:$0xf] %v2883
      %2892 = vst [vmem:[%s509 + $0xc] sm:$0xf] %v2884
      %2893 = vst [vmem:[%s509 + $0x10] sm:$0xf] %v2885
      %2894 = vst [vmem:[%s509 + $0x14] sm:$0xf] %v2886
      %2895 = vst [vmem:[%s509 + $0x18] sm:$0xf] %v2887
      %2896 = vst [vmem:[%s509 + $0x1c] sm:$0xf] %v2888
      %v2897 = vadd.f32 %v2873, %v2874
      %v2898 = vadd.f32 %v2897, %v2875
      %v2899 = vadd.f32 %v2898, %v2876
      %v2900 = vadd.f32 %v2899, %v2877
      %v2901 = vadd.f32 %v2900, %v2878
      %v2902 = vadd.f32 %v2901, %v2879
      %v2903 = vadd.f32 %v2902, %v2880
      %v2904 = vrot.slane %v2903, 4
      %v2905 = vadd.f32 %v2903, %v2904
      %v2906 = vrot.slane %v2905, 2
      %v2907 = vadd.f32 %v2905, %v2906
      %v2908 = vrot.slane %v2907, 1
      %v2909 = vadd.f32 %v2907, %v2908
      %2910 = vst [vmem:[%s516] sm:$0x1] %v2909
      %v2911 = vmul.f32 %v2873, %v2873
      %v2912 = vmul.f32 %v2874, %v2874
      %v2913 = vmul.f32 %v2875, %v2875
      %v2914 = vmul.f32 %v2876, %v2876
      %v2915 = vmul.f32 %v2877, %v2877
      %v2916 = vmul.f32 %v2878, %v2878
      %v2917 = vmul.f32 %v2879, %v2879
      %v2918 = vmul.f32 %v2880, %v2880
      %v2919 = vadd.f32 %v2911, %v2912
      %v2920 = vadd.f32 %v2919, %v2913
      %v2921 = vadd.f32 %v2920, %v2914
      %v2922 = vadd.f32 %v2921, %v2915
      %v2923 = vadd.f32 %v2922, %v2916
      %v2924 = vadd.f32 %v2923, %v2917
      %v2925 = vadd.f32 %v2924, %v2918
      %v2926 = vrot.slane %v2925, 4
      %v2927 = vadd.f32 %v2925, %v2926
      %v2928 = vrot.slane %v2927, 2
      %v2929 = vadd.f32 %v2927, %v2928
      %v2930 = vrot.slane %v2929, 1
      %v2931 = vadd.f32 %v2929, %v2930
      %2932 = vst [vmem:[%s522] sm:$0x1] %v2931
      %s2933 = smul.u32 8, %s26
      %p2934 = scmp.lt.s32.totalorder %s25, 1
      %s2935 = scalar_select %p2934, %s25, 1
      %p2936 = scmp.lt.s32.totalorder %s2933, 7
      %s2937 = scalar_select %p2936, %s2933, 7
      %s2938 = smul.addr %s2935, 8
      %s2939 = sadd.s32 %s2937, %s2938
      %s2940 = smul.addr %s2939, 4
      %s2941 = scalar_lea.vmem %s7, %s2940
      %p2942 = scmp.lt.s32.totalorder %s25, 1
      %s2943 = scalar_select %p2942, %s25, 1
      %p2944 = scmp.lt.s32.totalorder %s26, 0
      %s2945 = scalar_select %p2944, %s26, 0
      %s2946 = sadd.s32 %s2945, %s2943
      %s2947 = scalar_lea.vmem %s8, %s2946
      %p2948 = scmp.lt.s32.totalorder %s25, 1
      %s2949 = scalar_select %p2948, %s25, 1
      %p2950 = scmp.lt.s32.totalorder %s26, 0
      %s2951 = scalar_select %p2950, %s26, 0
      %s2952 = sadd.s32 %s2951, %s2949
      %s2953 = scalar_lea.vmem %s9, %s2952
      // Predicated region
      $region49: #{down_forward.4} parent=47 // pred_check
        %p2954 = pneg %p237
      $region50: #{down_forward.4} parent=47 // pred_check_branch
        %2956 = sbr.rel (%p2954) target = $region52
      $region51: #{down_forward.4} parent=47 // pred_region
        %s2957 = smul.u32 8, %s26
      $region52: #{down_forward.4} parent=47 // pred_fallthru
        _
      // Predicated region
      $region53: #{down_forward.4} parent=47 // pred_check
        %p2958 = pneg %p265
      $region54: #{down_forward.4} parent=47 // pred_check_branch
        %2960 = sbr.rel (%p2958) target = $region56
      $region55: #{down_forward.4} parent=47 // pred_region
        _
      $region56: #{down_forward.4} parent=47 // pred_fallthru
        _
      // Predicated region
      $region57: #{down_forward.4} parent=47 // pred_check
        %p2961 = pneg %p293
      $region58: #{down_forward.4} parent=47 // pred_check_branch
        %2963 = sbr.rel (%p2961) target = $region60
      $region59: #{down_forward.4} parent=47 // pred_region
        _
      $region60: #{down_forward.4} parent=47 // pred_fallthru
        _
    $region48: #{down_forward.4} parent=5 // pred_fallthru
      _
    %p2964 = scmp.le.s32.totalorder 2, %s16
    // Predicated region
    $region61: #{down_forward.4} parent=5 // pred_check
      %p2965 = pneg %p2964
    $region62: #{down_forward.4} parent=5 // pred_check_branch
      %2967 = sbr.rel (%p2965) target = $region64
    $region63: #{down_forward.4} parent=5 // pred_region
      %s2968 = ssub.s32 %s16, 2
      // Predicated region
      $region65: #{down_forward.4} parent=63 // pred_check
        %p2969 = pneg %p243
      $region66: #{down_forward.4} parent=63 // pred_check_branch
        %2971 = sbr.rel (%p2969) target = $region68
      $region67: #{down_forward.4} parent=63 // pred_region
        %s2972 = smul.u32 8, %s28
        %p2973 = scmp.lt.s32.totalorder %s27, 1
        %s2974 = scalar_select %p2973, %s27, 1
        %p2975 = scmp.lt.s32.totalorder %s2972, 7
        %s2976 = scalar_select %p2975, %s2972, 7
        %s2977 = smul.addr %s2974, 8
        %s2978 = sadd.s32 %s2976, %s2977
        %s2979 = smul.addr %s2978, 4
        %s2980 = scalar_lea.vmem %s7, %s2979
      $region68: #{down_forward.4} parent=63 // pred_fallthru
        _
      // Predicated region
      $region69: #{down_forward.4} parent=63 // pred_check
        %p2981 = pneg %p271
      $region70: #{down_forward.4} parent=63 // pred_check_branch
        %2983 = sbr.rel (%p2981) target = $region72
      $region71: #{down_forward.4} parent=63 // pred_region
        %p2984 = scmp.lt.s32.totalorder %s27, 1
        %s2985 = scalar_select %p2984, %s27, 1
        %p2986 = scmp.lt.s32.totalorder %s28, 0
        %s2987 = scalar_select %p2986, %s28, 0
        %s2988 = sadd.s32 %s2987, %s2985
        %s2989 = scalar_lea.vmem %s8, %s2988
      $region72: #{down_forward.4} parent=63 // pred_fallthru
        _
      // Predicated region
      $region73: #{down_forward.4} parent=63 // pred_check
        %p2990 = pneg %p299
      $region74: #{down_forward.4} parent=63 // pred_check_branch
        %2992 = sbr.rel (%p2990) target = $region76
      $region75: #{down_forward.4} parent=63 // pred_region
        %p2993 = scmp.lt.s32.totalorder %s27, 1
        %s2994 = scalar_select %p2993, %s27, 1
        %p2995 = scmp.lt.s32.totalorder %s28, 0
        %s2996 = scalar_select %p2995, %s28, 0
        %s2997 = sadd.s32 %s2996, %s2994
        %s2998 = scalar_lea.vmem %s9, %s2997
      $region76: #{down_forward.4} parent=63 // pred_fallthru
        _
    $region64: #{down_forward.4} parent=5 // pred_fallthru
      _
  $region6: #{down_forward.4} parent=0 // loop_footer
    %s20 = sadd.s32 1, %s16
  $region7: #{down_forward.4} parent=0 // loop_footer_branch
    %15 = sbr.rel target = $region3
  $region8: #{down_forward.4} parent=0 // loop_exit
    _

</llo_original>
